<compile_context>
chip_gen: v5e
topology: v5e:2x2
jax: 0.10.0
libtpu: 0.0.40
codegen_flags: <defaults>
</compile_context>

<pallas_src>
import functools
import random

import numpy as np
import jax
import jax.numpy as jnp
from jax.experimental import pallas as pl
from jax.experimental.pallas import tpu as pltpu

NUM_HEADS = 8
EMBED_DIM = 128
IMG_SIZE = 32          # scaled-down CLIP input (real model: 224)
VIT_PATCH = 16
MLP_RATIO = 4
TACTILE_PATCH = 4
TOK_PAD = 8            # per-image tokens padded 5 -> 8 (sublane aligned)
DEC_OUT = 3 * 24 * 32  # 2304 = 18 * 128 (lane dense)
NEG_INF = -1e9


# --------------------------- pallas_call helpers ---------------------------

def _zero_index_map(nd):
    return lambda i: (0,) * nd


def pallas_call_full(kernel, out_shape, *args):
    """Single-step grid, every operand resident as one full VMEM block."""
    return pl.pallas_call(
        kernel,
        out_shape=out_shape,
        grid=(1,),
        in_specs=[pl.BlockSpec(a.shape, _zero_index_map(a.ndim)) for a in args],
        out_specs=pl.BlockSpec(out_shape.shape, _zero_index_map(len(out_shape.shape))),
        compiler_params=pltpu.CompilerParams(dimension_semantics=("arbitrary",)),
    )(*args)


# ----------------------------- Pallas kernels ------------------------------

def _vit_encoder_kernel(patches_ref, pw_ref, base_ref,
                        wqkv_ref, bqkv_ref, wo_ref, bo_ref,
                        ln1g_ref, ln1b_ref, ln2g_ref, ln2b_ref,
                        w1_ref, b1_ref, w2_ref, b2_ref,
                        lnfg_ref, lnfb_ref,
                        hmask_ref, abias_ref, csel_ref,
                        o_ref, *, num_heads, eps):
    """Entire ViT stub in one call, all images batched into one token matrix.

    Tokens are padded to 8 rows per image (sublane aligned).  All heads and
    images share ONE QK^T matmul + ONE softmax; per-image separation and
    pad-key masking are done with a precomputed additive bias.  Only the
    per-batch cls rows are emitted (dense (8, D) store).
    """
    Tt, D = base_ref.shape                 # (n_imgs*8, 128)
    dh = D // num_heads
    scale = 1.0 / float(np.sqrt(dh))

    def layer_norm(v, g, b):
        mu = jnp.mean(v, axis=-1, keepdims=True)
        var = jnp.mean(jnp.square(v - mu), axis=-1, keepdims=True)
        return (v - mu) * jax.lax.rsqrt(var + eps) * g + b

    # --- patch embed, all images stacked; base carries cls/pos/patch-bias ---
    x = jnp.dot(patches_ref[...], pw_ref[...],
                preferred_element_type=jnp.float32) + base_ref[...]        # (Tt, D)

    # --- pre-norm multi-head self-attention (one fused LN -> QKV matmul) ---
    h = layer_norm(x, ln1g_ref[...], ln1b_ref[...])
    qkv = jnp.dot(h.astype(jnp.bfloat16), wqkv_ref[...],
                  preferred_element_type=jnp.float32) + bqkv_ref[...]      # (Tt, 3D)
    q = qkv[:, 0:D] * scale
    k = qkv[:, D:2 * D].astype(jnp.bfloat16)
    v = qkv[:, 2 * D:3 * D].astype(jnp.bfloat16)

    # head-stacked scores: replicate Q per head, lane-mask to that head, and
    # compute every (head, image) score block in ONE MXU matmul.
    qs = (jnp.concatenate([q] * num_heads, axis=0) * hmask_ref[...])       # (nh*Tt, D)
    s = jax.lax.dot_general(qs.astype(jnp.bfloat16), k,
                            (((1,), (1,)), ((), ())),
                            preferred_element_type=jnp.float32)            # (nh*Tt, Tt)
    s = s + abias_ref[...]                 # per-image block-diag + pad-key mask
    s = s - jnp.max(s, axis=-1, keepdims=True)
    p = jnp.exp(s)
    p = p * pl.reciprocal(jnp.sum(p, axis=-1, keepdims=True), approx=False)
    p = p.astype(jnp.bfloat16)

    attn = jnp.zeros((Tt, D), jnp.float32)
    for hh in range(num_heads):            # PV: 8 small lane-masked matmuls
        ph = p[hh * Tt:(hh + 1) * Tt, :]                                    # (Tt, Tt)
        mh = hmask_ref[hh * Tt:hh * Tt + 1, :]                              # (1, D)
        attn = attn + jnp.dot(ph, v, preferred_element_type=jnp.float32) * mh
    x = x + jnp.dot(attn.astype(jnp.bfloat16), wo_ref[...],
                    preferred_element_type=jnp.float32) + bo_ref[...]

    # --- MLP ---
    h2 = layer_norm(x, ln2g_ref[...], ln2b_ref[...])
    mlp = jnp.dot(h2.astype(jnp.bfloat16), w1_ref[...],
                  preferred_element_type=jnp.float32) + b1_ref[...]
    # TODO(synk): timm CLIP uses exact erf-GELU; tanh approximation here.
    mlp = jax.nn.gelu(mlp, approximate=True)
    x = x + jnp.dot(mlp.astype(jnp.bfloat16), w2_ref[...],
                    preferred_element_type=jnp.float32) + b2_ref[...]

    # --- select per-batch cls rows (only downstream consumer) + final LN ---
    cls = jnp.dot(csel_ref[...], x, preferred_element_type=jnp.float32)    # (8, D)
    o_ref[...] = layer_norm(cls, lnfg_ref[...], lnfb_ref[...]).astype(o_ref.dtype)


def _cnn_tail_kernel(col1_ref, w1_ref, b1_ref,
                     g2_ref, w2s_ref, b2_ref,
                     g3_ref, w3s_ref, b3_ref,
                     pool_ref, fcw_ref, fcb_ref,
                     cls_ref,
                     wv1_ref, bv1_ref, wo1_ref, bo1_ref, ltg_ref, ltb_ref,
                     wv2_ref, bv2_ref, wo2_ref, bo2_ref, lig_ref, lib_ref,
                     dw1t_ref, dw1c_ref, db1_ref, dw2_ref, db2_ref,
                     o_ref, *, eps):
    """SimpleCNN (3 conv+BN+ReLU stages with in-VMEM im2col) + adaptive-avg-pool
    + fc + cls cross-attention (Lk==1) + decoder MLP + sigmoid, all fused."""
    Cp = 128

    def mm(a, w):   # bf16 MXU operands, f32 accumulate
        return jnp.dot(a.astype(jnp.bfloat16), w, preferred_element_type=jnp.float32)

    def layer_norm(v, g, b):
        mu = jnp.mean(v, axis=-1, keepdims=True)
        var = jnp.mean(jnp.square(v - mu), axis=-1, keepdims=True)
        return (v - mu) * jax.lax.rsqrt(var + eps) * g + b

    def conv_stage(x_prev, g_ref, ws_ref, b_row):
        # in-VMEM im2col via ONE 0/1 selection matmul (exact on bf16 values),
        # then 9 lane-aligned per-offset conv matmuls summed in f32.
        cs = jnp.dot(g_ref[...], x_prev.astype(jnp.bfloat16),
                     preferred_element_type=jnp.float32)                   # (9*r, Cp)
        r = cs.shape[0] // 9
        y = jnp.zeros((r, Cp), jnp.float32)
        for kk in range(9):
            y = y + mm(cs[kk * r:(kk + 1) * r, :],
                       ws_ref[kk * Cp:(kk + 1) * Cp, :])
        return jnp.maximum(y + b_row, 0.0)

    # ---- SimpleCNN (eval BatchNorm folded); stage 1 uses precomputed im2col ----
    x1 = jnp.maximum(jnp.dot(col1_ref[...], w1_ref[...],
                             preferred_element_type=jnp.float32) + b1_ref[...],
                     0.0)                                                   # (B*192, 128)
    x2 = conv_stage(x1, g2_ref, w2s_ref, b2_ref[...])                       # (B*48, 128)
    x3 = conv_stage(x2, g3_ref, w3s_ref, b3_ref[...])                       # (B*12, 128)

    # ---- adaptive average pool (selection matmul) + fc ----
    pooled = jnp.dot(pool_ref[...], x3, preferred_element_type=jnp.float32)  # (8, 128)
    tact = mm(pooled, fcw_ref[...]) + fcb_ref[...]                           # (8, D)
    cls = cls_ref[...]                                                       # (8, D)

    # ---- cls cross-attention: Lk == 1 => softmax == 1, q/k projections drop
    #      out algebraically; dropout is identity in eval mode. ----
    t_out = mm(mm(cls, wv1_ref[...]) + bv1_ref[...], wo1_ref[...]) + bo1_ref[...]
    tact = layer_norm(tact + t_out, ltg_ref[...], ltb_ref[...])
    i_out = mm(mm(tact, wv2_ref[...]) + bv2_ref[...], wo2_ref[...]) + bo2_ref[...]
    cls = layer_norm(cls + i_out, lig_ref[...], lib_ref[...])

    # ---- decoder MLP: cat([tact, cls]) @ W1 as split weights ----
    h = jnp.maximum(mm(tact, dw1t_ref[...]) + mm(cls, dw1c_ref[...]) + db1_ref[...],
                    0.0)
    o_ref[...] = jax.nn.sigmoid(mm(h, dw2_ref[...]) + db2_ref[...]).astype(o_ref.dtype)


# --------------------------- kernel call wrappers ---------------------------

def vit_encode(patches, v):
    kernel = functools.partial(_vit_encoder_kernel, num_heads=NUM_HEADS, eps=1e-6)
    out_shape = jax.ShapeDtypeStruct((8, EMBED_DIM), jnp.float32)
    args = (patches, v["pw"], v["base"], v["wqkv"], v["bqkv"], v["wo"], v["bo"],
            v["ln1g"], v["ln1b"], v["ln2g"], v["ln2b"],
            v["w1"], v["b1"], v["w2"], v["b2"], v["lnfg"], v["lnfb"],
            v["hmask"], v["abias"], v["csel"])
    return pallas_call_full(kernel, out_shape, *args)


def cnn_tail(col1, cls_tok, t):
    kernel = functools.partial(_cnn_tail_kernel, eps=1e-5)
    out_shape = jax.ShapeDtypeStruct((8, DEC_OUT), jnp.float32)
    args = (col1, t["w1"], t["b1"], t["g2"], t["w2s"], t["b2"],
            t["g3"], t["w3s"], t["b3"], t["pool"], t["fcw"], t["fcb"],
            cls_tok,
            t["wv1"], t["bv1"], t["wo1"], t["bo1"], t["ltg"], t["ltb"],
            t["wv2"], t["bv2"], t["wo2"], t["bo2"], t["lig"], t["lib"],
            t["dw1t"], t["dw1c"], t["db1"], t["dw2"], t["db2"])
    return pallas_call_full(kernel, out_shape, *args)


# ------------------------------- XLA-side glue -------------------------------

def im2col_nhwc(x, k=3, stride=2, pad=1):
    """Tiny XLA-level im2col used only for the (B,24,32,3) stage-1 input."""
    B, H, W, C = x.shape
    Ho = (H + 2 * pad - k) // stride + 1
    Wo = (W + 2 * pad - k) // stride + 1
    xp = jnp.pad(x, ((0, 0), (pad, pad), (pad, pad), (0, 0)))
    cols = []
    for kh in range(k):
        for kw in range(k):
            cols.append(xp[:, kh:kh + stride * Ho:stride, kw:kw + stride * Wo:stride, :])
    col = jnp.concatenate(cols, axis=-1)            # (B, Ho, Wo, k*k*C)
    return col.reshape(B * Ho * Wo, k * k * C), Ho, Wo


def colorize_and_mask(tactile, prepped, mask_pixels):
    """Viridis colorization of the 12x64 tactile map + precomputed masking."""
    viridis = prepped["viridis"]
    left = jnp.clip(tactile[..., :32], 0.0, 1.0)
    right = jnp.clip(tactile[..., 32:], 0.0, 1.0)
    li = jnp.clip((left * 255.0).astype(jnp.int32), 0, 255)
    ri = jnp.clip((right * 255.0).astype(jnp.int32), 0, 255)
    lc = jnp.take(viridis, li, axis=0)                                   # (B,12,32,3)
    rc = jnp.take(viridis, ri, axis=0)
    color = jnp.concatenate([lc, rc], axis=1)                            # (B,24,32,3)
    return jnp.where(mask_pixels[..., None], prepped["mask_token_tile"], color)


def tactile_autoencoder_forward(prepped, rgb, tactile, mask_pixels):
    B, n_cams, C, H, W = rgb.shape
    N = B * n_cams
    ps = VIT_PATCH
    gh, gw = H // ps, W // ps
    Pn = gh * gw

    # --- patchify + pad each image's token block to 8 sublane-aligned rows ---
    patches = rgb.reshape(N, C, gh, ps, gw, ps).transpose(0, 2, 4, 1, 3, 5)
    patches = patches.reshape(N, Pn, C * ps * ps)
    patches = jnp.pad(patches, ((0, 0), (1, TOK_PAD - 1 - Pn), (0, 0)))
    patches = patches.reshape(N * TOK_PAD, C * ps * ps).astype(jnp.bfloat16)

    # --- CLIP ViT stub (one fused pallas_call), emits per-batch cls only ---
    cls_tok = vit_encode(patches, prepped["vit"])                        # (8, D) f32

    # --- tactile colorization + masking + stage-1 im2col (tiny XLA glue) ---
    color = colorize_and_mask(tactile, prepped, mask_pixels)             # (B,24,32,3)
    col1, _, _ = im2col_nhwc(color)                                      # (B*192, 27)
    col1 = jnp.pad(col1, ((0, 0), (0, 32 - col1.shape[1]))).astype(jnp.bfloat16)

    # --- CNN + pool + fc + cross-attention + decoder (one fused pallas_call) ---
    out = cnn_tail(col1, cls_tok, prepped["cnn_tail"])                   # (8, 2304)
    return out[:B].reshape(B, 3, 24, 32)


# ----------------------------- parameter creation ---------------------------

class KeyGen:
    def __init__(self, key):
        self.key = key

    def __call__(self):
        self.key, sub = jax.random.split(self.key)
        return sub


def _n(kg, shape, std=0.02):
    return jax.random.normal(kg(), shape, jnp.float32) * std


def make_attn_params(kg, D):
    return dict(
        wq=_n(kg, (D, D)), bq=jnp.zeros((D,), jnp.float32),
        wk=_n(kg, (D, D)), bk=jnp.zeros((D,), jnp.float32),
        wv=_n(kg, (D, D)), bv=jnp.zeros((D,), jnp.float32),
        wo=_n(kg, (D, D)), bo=jnp.zeros((D,), jnp.float32),
    )


def init_params(key):
    kg = KeyGen(key)
    D = EMBED_DIM
    grid = IMG_SIZE // VIT_PATCH
    P = grid * grid
    T = P + 1
    Hm = MLP_RATIO * D

    clip = dict(
        patch_w=_n(kg, (3 * VIT_PATCH * VIT_PATCH, D)), patch_b=jnp.zeros((D,), jnp.float32),
        cls_token=_n(kg, (1, 1, D)),
        pos_embed=_n(kg, (1, T, D)),
        ln1_g=jnp.ones((D,), jnp.float32), ln1_b=jnp.zeros((D,), jnp.float32),
        ln2_g=jnp.ones((D,), jnp.float32), ln2_b=jnp.zeros((D,), jnp.float32),
        lnf_g=jnp.ones((D,), jnp.float32), lnf_b=jnp.zeros((D,), jnp.float32),
        attn=make_attn_params(kg, D),
        mlp_w1=_n(kg, (D, Hm)), mlp_b1=jnp.zeros((Hm,), jnp.float32),
        mlp_w2=_n(kg, (Hm, D)), mlp_b2=jnp.zeros((D,), jnp.float32),
    )

    def bn(C):
        return dict(g=jnp.ones((C,), jnp.float32), b=jnp.zeros((C,), jnp.float32),
                    m=jnp.zeros((C,), jnp.float32), v=jnp.ones((C,), jnp.float32))

    b1, b2, b3 = bn(16), bn(32), bn(64)
    cnn = dict(
        conv1_w=_n(kg, (16, 3, 3, 3)), conv1_b=jnp.zeros((16,), jnp.float32),
        bn1_g=b1["g"], bn1_b=b1["b"], bn1_m=b1["m"], bn1_v=b1["v"],
        conv2_w=_n(kg, (32, 16, 3, 3)), conv2_b=jnp.zeros((32,), jnp.float32),
        bn2_g=b2["g"], bn2_b=b2["b"], bn2_m=b2["m"], bn2_v=b2["v"],
        conv3_w=_n(kg, (64, 32, 3, 3)), conv3_b=jnp.zeros((64,), jnp.float32),
        bn3_g=b3["g"], bn3_b=b3["b"], bn3_m=b3["m"], bn3_v=b3["v"],
        fc_w=_n(kg, (64, D)), fc_b=jnp.zeros((D,), jnp.float32),
    )

    cross = dict(
        attn_t2i=make_attn_params(kg, D),     # wq/wk unused (Lk==1 => softmax==1)
        attn_i2t=make_attn_params(kg, D),
        ln_tact_g=jnp.ones((D,), jnp.float32), ln_tact_b=jnp.zeros((D,), jnp.float32),
        ln_img_g=jnp.ones((D,), jnp.float32), ln_img_b=jnp.zeros((D,), jnp.float32),
    )

    t = jnp.linspace(0.0, 1.0, 256)
    viridis = jnp.stack([t, jnp.sqrt(t), 1.0 - t], axis=1).astype(jnp.float32)

    return dict(
        clip=clip, cnn=cnn, cross=cross,
        viridis=viridis,
        mask_token=_n(kg, (1, 3, TACTILE_PATCH, TACTILE_PATCH)),
        # pos_embed on patch tokens is dead code for attention_type='cls'
        # (patch tokens never reach the decoder); kept for structural fidelity.
        pos_embed=_n(kg, (P, D)),
        dec_w1=_n(kg, (2 * D, D)), dec_b1=jnp.zeros((D,), jnp.float32),
        dec_w2=_n(kg, (D, DEC_OUT)), dec_b2=jnp.zeros((DEC_OUT,), jnp.float32),
    )


# ------------------------ kernel-ready parameter prep ------------------------

def _fold_bn(conv_w, conv_b, g, b, m, v, eps=1e-5):
    scale = np.asarray(g) / np.sqrt(np.asarray(v) + eps)
    w = np.asarray(conv_w) * scale[:, None, None, None]
    bias = (np.asarray(conv_b) - np.asarray(m)) * scale + np.asarray(b)
    return w.astype(np.float32), bias.astype(np.float32)


def _im2col_selector(batch, Hi, Wi, Ho, Wo, k=3, stride=2, pad=1):
    """(9*batch*Ho*Wo, batch*Hi*Wi) 0/1 matrix: row (kk,b,ho,wo) selects the
    shifted input row (b,hi,wi), or is all-zero for spatial padding."""
    rin, rout = batch * Hi * Wi, batch * Ho * Wo
    g = np.zeros((k * k * rout, rin), np.float32)
    for kh in range(k):
        for kw in range(k):
            kk = kh * k + kw
            for b in range(batch):
                for ho in range(Ho):
                    for wo in range(Wo):
                        hi, wi = stride * ho + kh - pad, stride * wo + kw - pad
                        if 0 <= hi < Hi and 0 <= wi < Wi:
                            g[kk * rout + b * Ho * Wo + ho * Wo + wo,
                              b * Hi * Wi + hi * Wi + wi] = 1.0
    return g


def _stack_offset_weights(w_folded, cin_pad=128, cout_pad=128):
    """Per-offset conv weights stacked to (9*cin_pad, cout_pad), zero padded."""
    Cout, Cin, k, _ = w_folded.shape
    w = np.transpose(w_folded, (2, 3, 1, 0))      # (kh, kw, Cin, Cout)
    out = np.zeros((k * k * cin_pad, cout_pad), np.float32)
    for kh in range(k):
        for kw in range(k):
            kk = kh * k + kw
            out[kk * cin_pad:kk * cin_pad + Cin, :Cout] = w[kh, kw]
    return out


def prepare_params(params, batch, n_cams=1):
    """Precompute (once, outside jit) all padded / folded / selection arrays."""
    D = EMBED_DIM
    nh = NUM_HEADS
    dh = D // nh
    N = batch * n_cams
    Tp = TOK_PAD
    Tt = N * Tp
    grid = IMG_SIZE // VIT_PATCH
    Pn = grid * grid
    T = Pn + 1

    def row(x):
        return jnp.asarray(x).reshape(1, -1).astype(jnp.float32)

    # ---------------- ViT stub ----------------
    c = params["clip"]
    a = c["attn"]

    base = np.zeros((Tt, D), np.float32)
    pos = np.asarray(c["pos_embed"][0])
    clsv = np.asarray(c["cls_token"]).reshape(D)
    pb = np.asarray(c["patch_b"])
    for im in range(N):
        base[im * Tp + 0] = clsv + pos[0]
        for i in range(Pn):
            base[im * Tp + 1 + i] = pb + pos[1 + i]

    hmask = np.zeros((nh * Tt, D), np.float32)
    for hh in range(nh):
        hmask[hh * Tt:(hh + 1) * Tt, hh * dh:(hh + 1) * dh] = 1.0

    abias_img = np.full((Tt, Tt), NEG_INF, np.float32)
    for i in range(Tt):
        for j in range(Tt):
            if (i // Tp == j // Tp) and (j % Tp) < T:
                abias_img[i, j] = 0.0
    abias = np.tile(abias_img, (nh, 1))

    csel = np.zeros((8, Tt), np.float32)
    for b in range(batch):
        csel[b, b * n_cams * Tp] = 1.0      # first camera's cls per batch element

    vit = dict(
        pw=jnp.asarray(c["patch_w"], jnp.bfloat16),
        base=jnp.asarray(base),
        wqkv=jnp.concatenate([a["wq"], a["wk"], a["wv"]], axis=1).astype(jnp.bfloat16),
        bqkv=jnp.concatenate([a["bq"], a["bk"], a["bv"]]).reshape(1, 3 * D),
        wo=a["wo"].astype(jnp.bfloat16), bo=row(a["bo"]),
        ln1g=row(c["ln1_g"]), ln1b=row(c["ln1_b"]),
        ln2g=row(c["ln2_g"]), ln2b=row(c["ln2_b"]),
        w1=c["mlp_w1"].astype(jnp.bfloat16), b1=row(c["mlp_b1"]),
        w2=c["mlp_w2"].astype(jnp.bfloat16), b2=row(c["mlp_b2"]),
        lnfg=row(c["lnf_g"]), lnfb=row(c["lnf_b"]),
        hmask=jnp.asarray(hmask), abias=jnp.asarray(abias), csel=jnp.asarray(csel),
    )

    # ---------------- CNN + tail ----------------
    cn = params["cnn"]
    w1f, b1f = _fold_bn(cn["conv1_w"], cn["conv1_b"], cn["bn1_g"], cn["bn1_b"],
                        cn["bn1_m"], cn["bn1_v"])
    w2f, b2f = _fold_bn(cn["conv2_w"], cn["conv2_b"], cn["bn2_g"], cn["bn2_b"],
                        cn["bn2_m"], cn["bn2_v"])
    w3f, b3f = _fold_bn(cn["conv3_w"], cn["conv3_b"], cn["bn3_g"], cn["bn3_b"],
                        cn["bn3_m"], cn["bn3_v"])

    # stage-1 weight matrix matching the XLA-side im2col column ordering
    w1m = np.transpose(w1f, (2, 3, 1, 0)).reshape(27, 16)
    w1m = np.pad(w1m, ((0, 5), (0, 112)))
    b1m = np.pad(b1f, (0, 112)).reshape(1, 128)

    r3 = batch * 3 * 4
    pool = np.zeros((8, r3), np.float32)
    for b in range(batch):
        pool[b, b * 12:(b + 1) * 12] = 1.0 / 12.0

    cr = params["cross"]
    t2i, i2t = cr["attn_t2i"], cr["attn_i2t"]    # wq/wk unused (Lk==1)

    cnn_tail_p = dict(
        w1=jnp.asarray(w1m, jnp.bfloat16), b1=jnp.asarray(b1m),
        g2=jnp.asarray(_im2col_selector(batch, 12, 16, 6, 8), jnp.bfloat16),
        w2s=jnp.asarray(_stack_offset_weights(w2f), jnp.bfloat16),
        b2=jnp.asarray(np.pad(b2f, (0, 96)).reshape(1, 128)),
        g3=jnp.asarray(_im2col_selector(batch, 6, 8, 3, 4), jnp.bfloat16),
        w3s=jnp.asarray(_stack_offset_weights(w3f), jnp.bfloat16),
        b3=jnp.asarray(np.pad(b3f, (0, 64)).reshape(1, 128)),
        pool=jnp.asarray(pool),
        fcw=jnp.asarray(np.pad(np.asarray(cn["fc_w"]), ((0, 64), (0, 0))), jnp.bfloat16),
        fcb=row(cn["fc_b"]),
        wv1=t2i["wv"].astype(jnp.bfloat16), bv1=row(t2i["bv"]),
        wo1=t2i["wo"].astype(jnp.bfloat16), bo1=row(t2i["bo"]),
        ltg=row(cr["ln_tact_g"]), ltb=row(cr["ln_tact_b"]),
        wv2=i2t["wv"].astype(jnp.bfloat16), bv2=row(i2t["bv"]),
        wo2=i2t["wo"].astype(jnp.bfloat16), bo2=row(i2t["bo"]),
        lig=row(cr["ln_img_g"]), lib=row(cr["ln_img_b"]),
        dw1t=params["dec_w1"][:D].astype(jnp.bfloat16),
        dw1c=params["dec_w1"][D:].astype(jnp.bfloat16),
        db1=row(params["dec_b1"]),
        dw2=params["dec_w2"].astype(jnp.bfloat16),
        db2=row(params["dec_b2"]),
    )

    mask_token_tile = jnp.tile(params["mask_token"].transpose(0, 2, 3, 1),
                               (1, 24 // TACTILE_PATCH, 32 // TACTILE_PATCH, 1))

    return dict(vit=vit, cnn_tail=cnn_tail_p,
                viridis=params["viridis"], mask_token_tile=mask_token_tile)


def make_tactile_mask(B, patch=TACTILE_PATCH, H=24, W=32,
                      unmask_prob=0.05, ratio_min=0.6, ratio_max=0.8, seed=0):
    """Deterministic host-side reimplementation of mask_tactile_color_image's RNG."""
    pyrng = random.Random(seed)
    nprng = np.random.RandomState(seed)
    pH, pW = H // patch, W // patch
    total = pH * pW
    mask = np.zeros((B, total), dtype=bool)
    if pyrng.random() >= unmask_prob:
        ratio = pyrng.uniform(ratio_min, ratio_max)
        num_mask = int(total * ratio)
        for b in range(B):
            idxs = nprng.permutation(total)
            mask[b, idxs[:num_mask]] = True
    return mask.reshape(B, pH, pW)


# ------------------------------------ main ----------------------------------

if __name__ == "__main__":
    root = jax.random.PRNGKey(0)
    pkey, dkey = jax.random.split(root)
    params = init_params(pkey)

    B, n_cams = 2, 1
    prepped = prepare_params(params, B, n_cams)

    k1, k2 = jax.random.split(dkey)
    rgb = jax.random.uniform(k1, (B, n_cams, 3, IMG_SIZE, IMG_SIZE), jnp.float32)
    tactile = jax.random.uniform(k2, (B, 12, 64), jnp.float32)

    patch_mask = make_tactile_mask(B)                                    # (B, 6, 8)
    pixel_mask = jnp.asarray(np.repeat(np.repeat(patch_mask, TACTILE_PATCH, axis=1),
                                       TACTILE_PATCH, axis=2))           # (B, 24, 32)

    fwd = jax.jit(tactile_autoencoder_forward)
    out = fwd(prepped, rgb, tactile, pixel_mask)
    jax.block_until_ready(out)
    assert out.shape == (B, 3, 24, 32) and out.dtype == jnp.float32
    assert bool(jnp.all(jnp.isfinite(out)))
    print("KERNEL_OK")
</pallas_src>

<mosaic_0001>
module attributes {stable_mosaic.version = 11 : i64} {
  func.func @_vit_encoder_kernel(%arg0: i32, %arg1: memref<16x768xbf16, #tpu.memory_space<vmem>>, %arg2: memref<768x128xbf16, #tpu.memory_space<vmem>>, %arg3: memref<16x128xf32, #tpu.memory_space<vmem>>, %arg4: memref<128x384xbf16, #tpu.memory_space<vmem>>, %arg5: memref<1x384xf32, #tpu.memory_space<vmem>>, %arg6: memref<128x128xbf16, #tpu.memory_space<vmem>>, %arg7: memref<1x128xf32, #tpu.memory_space<vmem>>, %arg8: memref<1x128xf32, #tpu.memory_space<vmem>>, %arg9: memref<1x128xf32, #tpu.memory_space<vmem>>, %arg10: memref<1x128xf32, #tpu.memory_space<vmem>>, %arg11: memref<1x128xf32, #tpu.memory_space<vmem>>, %arg12: memref<128x512xbf16, #tpu.memory_space<vmem>>, %arg13: memref<1x512xf32, #tpu.memory_space<vmem>>, %arg14: memref<512x128xbf16, #tpu.memory_space<vmem>>, %arg15: memref<1x128xf32, #tpu.memory_space<vmem>>, %arg16: memref<1x128xf32, #tpu.memory_space<vmem>>, %arg17: memref<1x128xf32, #tpu.memory_space<vmem>>, %arg18: memref<128x128xf32, #tpu.memory_space<vmem>>, %arg19: memref<128x16xf32, #tpu.memory_space<vmem>>, %arg20: memref<8x16xf32, #tpu.memory_space<vmem>>, %arg21: memref<8x128xf32, #tpu.memory_space<vmem>>) attributes {dimension_semantics = [#tpu.dimension_semantics<arbitrary>], iteration_bounds = array<i64: 1>, scalar_prefetch = 0 : i64, scratch_operands = 0 : i64, tpu.core_type = #tpu.core_type<tc>, window_params = [{pipeline_mode = #tpu.pipeline_mode<synchronous>, transform_indices = @transform_0, window_bounds = array<i64: 16, 768>}, {pipeline_mode = #tpu.pipeline_mode<synchronous>, transform_indices = @transform_1, window_bounds = array<i64: 768, 128>}, {pipeline_mode = #tpu.pipeline_mode<synchronous>, transform_indices = @transform_2, window_bounds = array<i64: 16, 128>}, {pipeline_mode = #tpu.pipeline_mode<synchronous>, transform_indices = @transform_3, window_bounds = array<i64: 128, 384>}, {pipeline_mode = #tpu.pipeline_mode<synchronous>, transform_indices = @transform_4, window_bounds = array<i64: 1, 384>}, {pipeline_mode = #tpu.pipeline_mode<synchronous>, transform_indices = @transform_5, window_bounds = array<i64: 128, 128>}, {pipeline_mode = #tpu.pipeline_mode<synchronous>, transform_indices = @transform_6, window_bounds = array<i64: 1, 128>}, {pipeline_mode = #tpu.pipeline_mode<synchronous>, transform_indices = @transform_7, window_bounds = array<i64: 1, 128>}, {pipeline_mode = #tpu.pipeline_mode<synchronous>, transform_indices = @transform_8, window_bounds = array<i64: 1, 128>}, {pipeline_mode = #tpu.pipeline_mode<synchronous>, transform_indices = @transform_9, window_bounds = array<i64: 1, 128>}, {pipeline_mode = #tpu.pipeline_mode<synchronous>, transform_indices = @transform_10, window_bounds = array<i64: 1, 128>}, {pipeline_mode = #tpu.pipeline_mode<synchronous>, transform_indices = @transform_11, window_bounds = array<i64: 128, 512>}, {pipeline_mode = #tpu.pipeline_mode<synchronous>, transform_indices = @transform_12, window_bounds = array<i64: 1, 512>}, {pipeline_mode = #tpu.pipeline_mode<synchronous>, transform_indices = @transform_13, window_bounds = array<i64: 512, 128>}, {pipeline_mode = #tpu.pipeline_mode<synchronous>, transform_indices = @transform_14, window_bounds = array<i64: 1, 128>}, {pipeline_mode = #tpu.pipeline_mode<synchronous>, transform_indices = @transform_15, window_bounds = array<i64: 1, 128>}, {pipeline_mode = #tpu.pipeline_mode<synchronous>, transform_indices = @transform_16, window_bounds = array<i64: 1, 128>}, {pipeline_mode = #tpu.pipeline_mode<synchronous>, transform_indices = @transform_17, window_bounds = array<i64: 128, 128>}, {pipeline_mode = #tpu.pipeline_mode<synchronous>, transform_indices = @transform_18, window_bounds = array<i64: 128, 16>}, {pipeline_mode = #tpu.pipeline_mode<synchronous>, transform_indices = @transform_19, window_bounds = array<i64: 8, 16>}, {pipeline_mode = #tpu.pipeline_mode<synchronous>, transform_indices = @transform_20, window_bounds = array<i64: 8, 128>}]} {
    %c0 = arith.constant 0 : index
    %c0_0 = arith.constant 0 : index
    %0 = vector.load %arg1[%c0, %c0_0] : memref<16x768xbf16, #tpu.memory_space<vmem>>, vector<16x768xbf16>
    %c0_1 = arith.constant 0 : index
    %c0_2 = arith.constant 0 : index
    %1 = vector.load %arg2[%c0_1, %c0_2] : memref<768x128xbf16, #tpu.memory_space<vmem>>, vector<768x128xbf16>
    %cst = arith.constant dense<0.000000e+00> : vector<16x128xf32>
    %2 = tpu.matmul %0, %1, %cst {dimension_numbers = #tpu.dot_dimension_numbers<[1], [0], [0], [1], [0, 0, 1, 1], [], []>} : vector<16x768xbf16>, vector<768x128xbf16>, vector<16x128xf32> -> vector<16x128xf32>
    %c0_3 = arith.constant 0 : index
    %c0_4 = arith.constant 0 : index
    %3 = vector.load %arg3[%c0_3, %c0_4] : memref<16x128xf32, #tpu.memory_space<vmem>>, vector<16x128xf32>
    %4 = arith.addf %2, %3 : vector<16x128xf32>
    %c0_5 = arith.constant 0 : index
    %c0_6 = arith.constant 0 : index
    %5 = vector.load %arg8[%c0_5, %c0_6] : memref<1x128xf32, #tpu.memory_space<vmem>>, vector<1x128xf32>
    %c0_7 = arith.constant 0 : index
    %c0_8 = arith.constant 0 : index
    %6 = vector.load %arg9[%c0_7, %c0_8] : memref<1x128xf32, #tpu.memory_space<vmem>>, vector<1x128xf32>
    %cst_9 = arith.constant dense<0.000000e+00> : vector<16xf32>
    %7 = vector.multi_reduction <add>, %4, %cst_9 [1] : vector<16x128xf32> to vector<16xf32>
    %8 = vector.shape_cast %7 : vector<16xf32> to vector<16x1xf32>
    %cst_10 = arith.constant 1.280000e+02 : f32
    %9 = vector.broadcast %cst_10 : f32 to vector<16x1xf32>
    %10 = arith.divf %8, %9 : vector<16x1xf32>
    %11 = vector.broadcast %10 : vector<16x1xf32> to vector<16x128xf32>
    %12 = arith.subf %4, %11 : vector<16x128xf32>
    %13 = arith.mulf %12, %12 : vector<16x128xf32>
    %cst_11 = arith.constant dense<0.000000e+00> : vector<16xf32>
    %14 = vector.multi_reduction <add>, %13, %cst_11 [1] : vector<16x128xf32> to vector<16xf32>
    %15 = vector.shape_cast %14 : vector<16xf32> to vector<16x1xf32>
    %cst_12 = arith.constant 1.280000e+02 : f32
    %16 = vector.broadcast %cst_12 : f32 to vector<16x1xf32>
    %17 = arith.divf %15, %16 : vector<16x1xf32>
    %18 = vector.broadcast %10 : vector<16x1xf32> to vector<16x128xf32>
    %19 = arith.subf %4, %18 : vector<16x128xf32>
    %cst_13 = arith.constant 9.99999997E-7 : f32
    %20 = vector.broadcast %cst_13 : f32 to vector<16x1xf32>
    %21 = arith.addf %17, %20 : vector<16x1xf32>
    %22 = math.rsqrt %21 : vector<16x1xf32>
    %23 = vector.broadcast %22 : vector<16x1xf32> to vector<16x128xf32>
    %24 = arith.mulf %19, %23 : vector<16x128xf32>
    %25 = vector.broadcast %5 : vector<1x128xf32> to vector<16x128xf32>
    %26 = arith.mulf %24, %25 : vector<16x128xf32>
    %27 = vector.broadcast %6 : vector<1x128xf32> to vector<16x128xf32>
    %28 = arith.addf %26, %27 : vector<16x128xf32>
    %29 = arith.truncf %28 : vector<16x128xf32> to vector<16x128xbf16>
    %c0_14 = arith.constant 0 : index
    %c0_15 = arith.constant 0 : index
    %30 = vector.load %arg4[%c0_14, %c0_15] : memref<128x384xbf16, #tpu.memory_space<vmem>>, vector<128x384xbf16>
    %cst_16 = arith.constant dense<0.000000e+00> : vector<16x384xf32>
    %31 = tpu.matmul %29, %30, %cst_16 {dimension_numbers = #tpu.dot_dimension_numbers<[1], [0], [0], [1], [0, 0, 1, 1], [], []>} : vector<16x128xbf16>, vector<128x384xbf16>, vector<16x384xf32> -> vector<16x384xf32>
    %c0_17 = arith.constant 0 : index
    %c0_18 = arith.constant 0 : index
    %32 = vector.load %arg5[%c0_17, %c0_18] : memref<1x384xf32, #tpu.memory_space<vmem>>, vector<1x384xf32>
    %33 = vector.broadcast %32 : vector<1x384xf32> to vector<16x384xf32>
    %34 = arith.addf %31, %33 : vector<16x384xf32>
    %35 = vector.extract_strided_slice %34 {offsets = [0, 0], sizes = [16, 128], strides = [1, 1]} : vector<16x384xf32> to vector<16x128xf32>
    %cst_19 = arith.constant 2.500000e-01 : f32
    %36 = vector.broadcast %cst_19 : f32 to vector<16x128xf32>
    %37 = arith.mulf %35, %36 : vector<16x128xf32>
    %38 = vector.extract_strided_slice %34 {offsets = [0, 128], sizes = [16, 128], strides = [1, 1]} : vector<16x384xf32> to vector<16x128xf32>
    %39 = arith.truncf %38 : vector<16x128xf32> to vector<16x128xbf16>
    %40 = vector.extract_strided_slice %34 {offsets = [0, 256], sizes = [16, 128], strides = [1, 1]} : vector<16x384xf32> to vector<16x128xf32>
    %41 = arith.truncf %40 : vector<16x128xf32> to vector<16x128xbf16>
    %42 = tpu.concatenate %37, %37, %37, %37, %37, %37, %37, %37 in 0 : vector<16x128xf32>, vector<16x128xf32>, vector<16x128xf32>, vector<16x128xf32>, vector<16x128xf32>, vector<16x128xf32>, vector<16x128xf32>, vector<16x128xf32> -> vector<128x128xf32>
    %c0_20 = arith.constant 0 : index
    %c0_21 = arith.constant 0 : index
    %43 = vector.load %arg18[%c0_20, %c0_21] : memref<128x128xf32, #tpu.memory_space<vmem>>, vector<128x128xf32>
    %44 = arith.mulf %42, %43 : vector<128x128xf32>
    %45 = arith.truncf %44 : vector<128x128xf32> to vector<128x128xbf16>
    %cst_22 = arith.constant dense<0.000000e+00> : vector<128x16xf32>
    %46 = tpu.matmul %45, %39, %cst_22 {dimension_numbers = #tpu.dot_dimension_numbers<[1], [1], [0], [0], [0, 0, 1, 0], [], []>} : vector<128x128xbf16>, vector<16x128xbf16>, vector<128x16xf32> -> vector<128x16xf32>
    %c0_23 = arith.constant 0 : index
    %c0_24 = arith.constant 0 : index
    %47 = vector.load %arg19[%c0_23, %c0_24] : memref<128x16xf32, #tpu.memory_space<vmem>>, vector<128x16xf32>
    %48 = arith.addf %46, %47 : vector<128x16xf32>
    %cst_25 = arith.constant dense<0xFF800000> : vector<128xf32>
    %49 = vector.multi_reduction <maximumf>, %48, %cst_25 [1] : vector<128x16xf32> to vector<128xf32>
    %50 = vector.shape_cast %49 : vector<128xf32> to vector<128x1xf32>
    %51 = vector.broadcast %50 : vector<128x1xf32> to vector<128x16xf32>
    %52 = arith.subf %48, %51 : vector<128x16xf32>
    %53 = math.exp %52 : vector<128x16xf32>
    %cst_26 = arith.constant dense<0.000000e+00> : vector<128xf32>
    %54 = vector.multi_reduction <add>, %53, %cst_26 [1] : vector<128x16xf32> to vector<128xf32>
    %55 = vector.shape_cast %54 : vector<128xf32> to vector<128x1xf32>
    %56 = tpu.reciprocal %55 : vector<128x1xf32> -> vector<128x1xf32>
    %57 = vector.broadcast %56 : vector<128x1xf32> to vector<128x16xf32>
    %58 = arith.mulf %53, %57 : vector<128x16xf32>
    %59 = arith.truncf %58 : vector<128x16xf32> to vector<128x16xbf16>
    %cst_27 = arith.constant 0.000000e+00 : f32
    %60 = vector.broadcast %cst_27 : f32 to vector<16x128xf32>
    %61 = vector.extract_strided_slice %59 {offsets = [0, 0], sizes = [16, 16], strides = [1, 1]} : vector<128x16xbf16> to vector<16x16xbf16>
    %c0_28 = arith.constant 0 : index
    %c0_29 = arith.constant 0 : index
    %62 = vector.load %arg18[%c0_28, %c0_29] : memref<128x128xf32, #tpu.memory_space<vmem>>, vector<1x128xf32>
    %cst_30 = arith.constant dense<0.000000e+00> : vector<16x128xf32>
    %63 = tpu.matmul %61, %41, %cst_30 {dimension_numbers = #tpu.dot_dimension_numbers<[1], [0], [0], [1], [0, 0, 1, 1], [], []>} : vector<16x16xbf16>, vector<16x128xbf16>, vector<16x128xf32> -> vector<16x128xf32>
    %64 = vector.broadcast %62 : vector<1x128xf32> to vector<16x128xf32>
    %65 = arith.mulf %63, %64 : vector<16x128xf32>
    %66 = arith.addf %60, %65 : vector<16x128xf32>
    %67 = vector.extract_strided_slice %59 {offsets = [16, 0], sizes = [16, 16], strides = [1, 1]} : vector<128x16xbf16> to vector<16x16xbf16>
    %c16 = arith.constant 16 : index
    %c0_31 = arith.constant 0 : index
    %68 = vector.load %arg18[%c16, %c0_31] : memref<128x128xf32, #tpu.memory_space<vmem>>, vector<1x128xf32>
    %cst_32 = arith.constant dense<0.000000e+00> : vector<16x128xf32>
    %69 = tpu.matmul %67, %41, %cst_32 {dimension_numbers = #tpu.dot_dimension_numbers<[1], [0], [0], [1], [0, 0, 1, 1], [], []>} : vector<16x16xbf16>, vector<16x128xbf16>, vector<16x128xf32> -> vector<16x128xf32>
    %70 = vector.broadcast %68 : vector<1x128xf32> to vector<16x128xf32>
    %71 = arith.mulf %69, %70 : vector<16x128xf32>
    %72 = arith.addf %66, %71 : vector<16x128xf32>
    %73 = vector.extract_strided_slice %59 {offsets = [32, 0], sizes = [16, 16], strides = [1, 1]} : vector<128x16xbf16> to vector<16x16xbf16>
    %c32 = arith.constant 32 : index
    %c0_33 = arith.constant 0 : index
    %74 = vector.load %arg18[%c32, %c0_33] : memref<128x128xf32, #tpu.memory_space<vmem>>, vector<1x128xf32>
    %cst_34 = arith.constant dense<0.000000e+00> : vector<16x128xf32>
    %75 = tpu.matmul %73, %41, %cst_34 {dimension_numbers = #tpu.dot_dimension_numbers<[1], [0], [0], [1], [0, 0, 1, 1], [], []>} : vector<16x16xbf16>, vector<16x128xbf16>, vector<16x128xf32> -> vector<16x128xf32>
    %76 = vector.broadcast %74 : vector<1x128xf32> to vector<16x128xf32>
    %77 = arith.mulf %75, %76 : vector<16x128xf32>
    %78 = arith.addf %72, %77 : vector<16x128xf32>
    %79 = vector.extract_strided_slice %59 {offsets = [48, 0], sizes = [16, 16], strides = [1, 1]} : vector<128x16xbf16> to vector<16x16xbf16>
    %c48 = arith.constant 48 : index
    %c0_35 = arith.constant 0 : index
    %80 = vector.load %arg18[%c48, %c0_35] : memref<128x128xf32, #tpu.memory_space<vmem>>, vector<1x128xf32>
    %cst_36 = arith.constant dense<0.000000e+00> : vector<16x128xf32>
    %81 = tpu.matmul %79, %41, %cst_36 {dimension_numbers = #tpu.dot_dimension_numbers<[1], [0], [0], [1], [0, 0, 1, 1], [], []>} : vector<16x16xbf16>, vector<16x128xbf16>, vector<16x128xf32> -> vector<16x128xf32>
    %82 = vector.broadcast %80 : vector<1x128xf32> to vector<16x128xf32>
    %83 = arith.mulf %81, %82 : vector<16x128xf32>
    %84 = arith.addf %78, %83 : vector<16x128xf32>
    %85 = vector.extract_strided_slice %59 {offsets = [64, 0], sizes = [16, 16], strides = [1, 1]} : vector<128x16xbf16> to vector<16x16xbf16>
    %c64 = arith.constant 64 : index
    %c0_37 = arith.constant 0 : index
    %86 = vector.load %arg18[%c64, %c0_37] : memref<128x128xf32, #tpu.memory_space<vmem>>, vector<1x128xf32>
    %cst_38 = arith.constant dense<0.000000e+00> : vector<16x128xf32>
    %87 = tpu.matmul %85, %41, %cst_38 {dimension_numbers = #tpu.dot_dimension_numbers<[1], [0], [0], [1], [0, 0, 1, 1], [], []>} : vector<16x16xbf16>, vector<16x128xbf16>, vector<16x128xf32> -> vector<16x128xf32>
    %88 = vector.broadcast %86 : vector<1x128xf32> to vector<16x128xf32>
    %89 = arith.mulf %87, %88 : vector<16x128xf32>
    %90 = arith.addf %84, %89 : vector<16x128xf32>
    %91 = vector.extract_strided_slice %59 {offsets = [80, 0], sizes = [16, 16], strides = [1, 1]} : vector<128x16xbf16> to vector<16x16xbf16>
    %c80 = arith.constant 80 : index
    %c0_39 = arith.constant 0 : index
    %92 = vector.load %arg18[%c80, %c0_39] : memref<128x128xf32, #tpu.memory_space<vmem>>, vector<1x128xf32>
    %cst_40 = arith.constant dense<0.000000e+00> : vector<16x128xf32>
    %93 = tpu.matmul %91, %41, %cst_40 {dimension_numbers = #tpu.dot_dimension_numbers<[1], [0], [0], [1], [0, 0, 1, 1], [], []>} : vector<16x16xbf16>, vector<16x128xbf16>, vector<16x128xf32> -> vector<16x128xf32>
    %94 = vector.broadcast %92 : vector<1x128xf32> to vector<16x128xf32>
    %95 = arith.mulf %93, %94 : vector<16x128xf32>
    %96 = arith.addf %90, %95 : vector<16x128xf32>
    %97 = vector.extract_strided_slice %59 {offsets = [96, 0], sizes = [16, 16], strides = [1, 1]} : vector<128x16xbf16> to vector<16x16xbf16>
    %c96 = arith.constant 96 : index
    %c0_41 = arith.constant 0 : index
    %98 = vector.load %arg18[%c96, %c0_41] : memref<128x128xf32, #tpu.memory_space<vmem>>, vector<1x128xf32>
    %cst_42 = arith.constant dense<0.000000e+00> : vector<16x128xf32>
    %99 = tpu.matmul %97, %41, %cst_42 {dimension_numbers = #tpu.dot_dimension_numbers<[1], [0], [0], [1], [0, 0, 1, 1], [], []>} : vector<16x16xbf16>, vector<16x128xbf16>, vector<16x128xf32> -> vector<16x128xf32>
    %100 = vector.broadcast %98 : vector<1x128xf32> to vector<16x128xf32>
    %101 = arith.mulf %99, %100 : vector<16x128xf32>
    %102 = arith.addf %96, %101 : vector<16x128xf32>
    %103 = vector.extract_strided_slice %59 {offsets = [112, 0], sizes = [16, 16], strides = [1, 1]} : vector<128x16xbf16> to vector<16x16xbf16>
    %c112 = arith.constant 112 : index
    %c0_43 = arith.constant 0 : index
    %104 = vector.load %arg18[%c112, %c0_43] : memref<128x128xf32, #tpu.memory_space<vmem>>, vector<1x128xf32>
    %cst_44 = arith.constant dense<0.000000e+00> : vector<16x128xf32>
    %105 = tpu.matmul %103, %41, %cst_44 {dimension_numbers = #tpu.dot_dimension_numbers<[1], [0], [0], [1], [0, 0, 1, 1], [], []>} : vector<16x16xbf16>, vector<16x128xbf16>, vector<16x128xf32> -> vector<16x128xf32>
    %106 = vector.broadcast %104 : vector<1x128xf32> to vector<16x128xf32>
    %107 = arith.mulf %105, %106 : vector<16x128xf32>
    %108 = arith.addf %102, %107 : vector<16x128xf32>
    %109 = arith.truncf %108 : vector<16x128xf32> to vector<16x128xbf16>
    %c0_45 = arith.constant 0 : index
    %c0_46 = arith.constant 0 : index
    %110 = vector.load %arg6[%c0_45, %c0_46] : memref<128x128xbf16, #tpu.memory_space<vmem>>, vector<128x128xbf16>
    %cst_47 = arith.constant dense<0.000000e+00> : vector<16x128xf32>
    %111 = tpu.matmul %109, %110, %cst_47 {dimension_numbers = #tpu.dot_dimension_numbers<[1], [0], [0], [1], [0, 0, 1, 1], [], []>} : vector<16x128xbf16>, vector<128x128xbf16>, vector<16x128xf32> -> vector<16x128xf32>
    %112 = arith.addf %4, %111 : vector<16x128xf32>
    %c0_48 = arith.constant 0 : index
    %c0_49 = arith.constant 0 : index
    %113 = vector.load %arg7[%c0_48, %c0_49] : memref<1x128xf32, #tpu.memory_space<vmem>>, vector<1x128xf32>
    %114 = vector.broadcast %113 : vector<1x128xf32> to vector<16x128xf32>
    %115 = arith.addf %112, %114 : vector<16x128xf32>
    %c0_50 = arith.constant 0 : index
    %c0_51 = arith.constant 0 : index
    %116 = vector.load %arg10[%c0_50, %c0_51] : memref<1x128xf32, #tpu.memory_space<vmem>>, vector<1x128xf32>
    %c0_52 = arith.constant 0 : index
    %c0_53 = arith.constant 0 : index
    %117 = vector.load %arg11[%c0_52, %c0_53] : memref<1x128xf32, #tpu.memory_space<vmem>>, vector<1x128xf32>
    %cst_54 = arith.constant dense<0.000000e+00> : vector<16xf32>
    %118 = vector.multi_reduction <add>, %115, %cst_54 [1] : vector<16x128xf32> to vector<16xf32>
    %119 = vector.shape_cast %118 : vector<16xf32> to vector<16x1xf32>
    %cst_55 = arith.constant 1.280000e+02 : f32
    %120 = vector.broadcast %cst_55 : f32 to vector<16x1xf32>
    %121 = arith.divf %119, %120 : vector<16x1xf32>
    %122 = vector.broadcast %121 : vector<16x1xf32> to vector<16x128xf32>
    %123 = arith.subf %115, %122 : vector<16x128xf32>
    %124 = arith.mulf %123, %123 : vector<16x128xf32>
    %cst_56 = arith.constant dense<0.000000e+00> : vector<16xf32>
    %125 = vector.multi_reduction <add>, %124, %cst_56 [1] : vector<16x128xf32> to vector<16xf32>
    %126 = vector.shape_cast %125 : vector<16xf32> to vector<16x1xf32>
    %cst_57 = arith.constant 1.280000e+02 : f32
    %127 = vector.broadcast %cst_57 : f32 to vector<16x1xf32>
    %128 = arith.divf %126, %127 : vector<16x1xf32>
    %129 = vector.broadcast %121 : vector<16x1xf32> to vector<16x128xf32>
    %130 = arith.subf %115, %129 : vector<16x128xf32>
    %cst_58 = arith.constant 9.99999997E-7 : f32
    %131 = vector.broadcast %cst_58 : f32 to vector<16x1xf32>
    %132 = arith.addf %128, %131 : vector<16x1xf32>
    %133 = math.rsqrt %132 : vector<16x1xf32>
    %134 = vector.broadcast %133 : vector<16x1xf32> to vector<16x128xf32>
    %135 = arith.mulf %130, %134 : vector<16x128xf32>
    %136 = vector.broadcast %116 : vector<1x128xf32> to vector<16x128xf32>
    %137 = arith.mulf %135, %136 : vector<16x128xf32>
    %138 = vector.broadcast %117 : vector<1x128xf32> to vector<16x128xf32>
    %139 = arith.addf %137, %138 : vector<16x128xf32>
    %140 = arith.truncf %139 : vector<16x128xf32> to vector<16x128xbf16>
    %c0_59 = arith.constant 0 : index
    %c0_60 = arith.constant 0 : index
    %141 = vector.load %arg12[%c0_59, %c0_60] : memref<128x512xbf16, #tpu.memory_space<vmem>>, vector<128x512xbf16>
    %cst_61 = arith.constant dense<0.000000e+00> : vector<16x512xf32>
    %142 = tpu.matmul %140, %141, %cst_61 {dimension_numbers = #tpu.dot_dimension_numbers<[1], [0], [0], [1], [0, 0, 1, 1], [], []>} : vector<16x128xbf16>, vector<128x512xbf16>, vector<16x512xf32> -> vector<16x512xf32>
    %c0_62 = arith.constant 0 : index
    %c0_63 = arith.constant 0 : index
    %143 = vector.load %arg13[%c0_62, %c0_63] : memref<1x512xf32, #tpu.memory_space<vmem>>, vector<1x512xf32>
    %144 = vector.broadcast %143 : vector<1x512xf32> to vector<16x512xf32>
    %145 = arith.addf %142, %144 : vector<16x512xf32>
    %146 = arith.mulf %145, %145 : vector<16x512xf32>
    %147 = arith.mulf %145, %146 : vector<16x512xf32>
    %cst_64 = arith.constant 4.471500e-02 : f32
    %148 = vector.broadcast %cst_64 : f32 to vector<16x512xf32>
    %149 = arith.mulf %148, %147 : vector<16x512xf32>
    %150 = arith.addf %145, %149 : vector<16x512xf32>
    %cst_65 = arith.constant 0.797884583 : f32
    %151 = vector.broadcast %cst_65 : f32 to vector<16x512xf32>
    %152 = arith.mulf %151, %150 : vector<16x512xf32>
    %153 = math.tanh %152 : vector<16x512xf32>
    %cst_66 = arith.constant 1.000000e+00 : f32
    %154 = vector.broadcast %cst_66 : f32 to vector<16x512xf32>
    %155 = arith.addf %154, %153 : vector<16x512xf32>
    %cst_67 = arith.constant 5.000000e-01 : f32
    %156 = vector.broadcast %cst_67 : f32 to vector<16x512xf32>
    %157 = arith.mulf %156, %155 : vector<16x512xf32>
    %158 = arith.mulf %145, %157 : vector<16x512xf32>
    %159 = arith.truncf %158 : vector<16x512xf32> to vector<16x512xbf16>
    %c0_68 = arith.constant 0 : index
    %c0_69 = arith.constant 0 : index
    %160 = vector.load %arg14[%c0_68, %c0_69] : memref<512x128xbf16, #tpu.memory_space<vmem>>, vector<512x128xbf16>
    %cst_70 = arith.constant dense<0.000000e+00> : vector<16x128xf32>
    %161 = tpu.matmul %159, %160, %cst_70 {dimension_numbers = #tpu.dot_dimension_numbers<[1], [0], [0], [1], [0, 0, 1, 1], [], []>} : vector<16x512xbf16>, vector<512x128xbf16>, vector<16x128xf32> -> vector<16x128xf32>
    %162 = arith.addf %115, %161 : vector<16x128xf32>
    %c0_71 = arith.constant 0 : index
    %c0_72 = arith.constant 0 : index
    %163 = vector.load %arg15[%c0_71, %c0_72] : memref<1x128xf32, #tpu.memory_space<vmem>>, vector<1x128xf32>
    %164 = vector.broadcast %163 : vector<1x128xf32> to vector<16x128xf32>
    %165 = arith.addf %162, %164 : vector<16x128xf32>
    %c0_73 = arith.constant 0 : index
    %c0_74 = arith.constant 0 : index
    %166 = vector.load %arg20[%c0_73, %c0_74] : memref<8x16xf32, #tpu.memory_space<vmem>>, vector<8x16xf32>
    %cst_75 = arith.constant dense<0.000000e+00> : vector<8x128xf32>
    %167 = tpu.matmul %166, %165, %cst_75 {dimension_numbers = #tpu.dot_dimension_numbers<[1], [0], [0], [1], [0, 0, 1, 1], [], []>} : vector<8x16xf32>, vector<16x128xf32>, vector<8x128xf32> -> vector<8x128xf32>
    %c0_76 = arith.constant 0 : index
    %c0_77 = arith.constant 0 : index
    %168 = vector.load %arg16[%c0_76, %c0_77] : memref<1x128xf32, #tpu.memory_space<vmem>>, vector<1x128xf32>
    %c0_78 = arith.constant 0 : index
    %c0_79 = arith.constant 0 : index
    %169 = vector.load %arg17[%c0_78, %c0_79] : memref<1x128xf32, #tpu.memory_space<vmem>>, vector<1x128xf32>
    %cst_80 = arith.constant dense<0.000000e+00> : vector<8xf32>
    %170 = vector.multi_reduction <add>, %167, %cst_80 [1] : vector<8x128xf32> to vector<8xf32>
    %171 = vector.shape_cast %170 : vector<8xf32> to vector<8x1xf32>
    %cst_81 = arith.constant 1.280000e+02 : f32
    %172 = vector.broadcast %cst_81 : f32 to vector<8x1xf32>
    %173 = arith.divf %171, %172 : vector<8x1xf32>
    %174 = vector.broadcast %173 : vector<8x1xf32> to vector<8x128xf32>
    %175 = arith.subf %167, %174 : vector<8x128xf32>
    %176 = arith.mulf %175, %175 : vector<8x128xf32>
    %cst_82 = arith.constant dense<0.000000e+00> : vector<8xf32>
    %177 = vector.multi_reduction <add>, %176, %cst_82 [1] : vector<8x128xf32> to vector<8xf32>
    %178 = vector.shape_cast %177 : vector<8xf32> to vector<8x1xf32>
    %cst_83 = arith.constant 1.280000e+02 : f32
    %179 = vector.broadcast %cst_83 : f32 to vector<8x1xf32>
    %180 = arith.divf %178, %179 : vector<8x1xf32>
    %181 = vector.broadcast %173 : vector<8x1xf32> to vector<8x128xf32>
    %182 = arith.subf %167, %181 : vector<8x128xf32>
    %cst_84 = arith.constant 9.99999997E-7 : f32
    %183 = vector.broadcast %cst_84 : f32 to vector<8x1xf32>
    %184 = arith.addf %180, %183 : vector<8x1xf32>
    %185 = math.rsqrt %184 : vector<8x1xf32>
    %186 = vector.broadcast %185 : vector<8x1xf32> to vector<8x128xf32>
    %187 = arith.mulf %182, %186 : vector<8x128xf32>
    %188 = vector.broadcast %168 : vector<1x128xf32> to vector<8x128xf32>
    %189 = arith.mulf %187, %188 : vector<8x128xf32>
    %190 = vector.broadcast %169 : vector<1x128xf32> to vector<8x128xf32>
    %191 = arith.addf %189, %190 : vector<8x128xf32>
    %c0_85 = arith.constant 0 : index
    %c0_86 = arith.constant 0 : index
    %192 = vector.load %arg21[%c0_85, %c0_86] : memref<8x128xf32, #tpu.memory_space<vmem>>, vector<8x128xf32>
    tpu.vector_store %arg21[%c0_85, %c0_86], %191 {strides = array<i32>} : memref<8x128xf32, #tpu.memory_space<vmem>>, vector<8x128xf32>,
    return
  }
  func.func @transform_0(%arg0: i32) -> (i32, i32) {
    %c0_i32 = arith.constant 0 : i32
    %c0_i32_0 = arith.constant 0 : i32
    %c0_i32_1 = arith.constant 0 : i32
    return %c0_i32, %c0_i32_0 : i32, i32
  }
  func.func @transform_1(%arg0: i32) -> (i32, i32) {
    %c0_i32 = arith.constant 0 : i32
    %c0_i32_0 = arith.constant 0 : i32
    %c0_i32_1 = arith.constant 0 : i32
    return %c0_i32, %c0_i32_0 : i32, i32
  }
  func.func @transform_2(%arg0: i32) -> (i32, i32) {
    %c0_i32 = arith.constant 0 : i32
    %c0_i32_0 = arith.constant 0 : i32
    %c0_i32_1 = arith.constant 0 : i32
    return %c0_i32, %c0_i32_0 : i32, i32
  }
  func.func @transform_3(%arg0: i32) -> (i32, i32) {
    %c0_i32 = arith.constant 0 : i32
    %c0_i32_0 = arith.constant 0 : i32
    %c0_i32_1 = arith.constant 0 : i32
    return %c0_i32, %c0_i32_0 : i32, i32
  }
  func.func @transform_4(%arg0: i32) -> (i32, i32) {
    %c0_i32 = arith.constant 0 : i32
    %c0_i32_0 = arith.constant 0 : i32
    %c0_i32_1 = arith.constant 0 : i32
    return %c0_i32, %c0_i32_0 : i32, i32
  }
  func.func @transform_5(%arg0: i32) -> (i32, i32) {
    %c0_i32 = arith.constant 0 : i32
    %c0_i32_0 = arith.constant 0 : i32
    %c0_i32_1 = arith.constant 0 : i32
    return %c0_i32, %c0_i32_0 : i32, i32
  }
  func.func @transform_6(%arg0: i32) -> (i32, i32) {
    %c0_i32 = arith.constant 0 : i32
    %c0_i32_0 = arith.constant 0 : i32
    %c0_i32_1 = arith.constant 0 : i32
    return %c0_i32, %c0_i32_0 : i32, i32
  }
  func.func @transform_7(%arg0: i32) -> (i32, i32) {
    %c0_i32 = arith.constant 0 : i32
    %c0_i32_0 = arith.constant 0 : i32
    %c0_i32_1 = arith.constant 0 : i32
    return %c0_i32, %c0_i32_0 : i32, i32
  }
  func.func @transform_8(%arg0: i32) -> (i32, i32) {
    %c0_i32 = arith.constant 0 : i32
    %c0_i32_0 = arith.constant 0 : i32
    %c0_i32_1 = arith.constant 0 : i32
    return %c0_i32, %c0_i32_0 : i32, i32
  }
  func.func @transform_9(%arg0: i32) -> (i32, i32) {
    %c0_i32 = arith.constant 0 : i32
    %c0_i32_0 = arith.constant 0 : i32
    %c0_i32_1 = arith.constant 0 : i32
    return %c0_i32, %c0_i32_0 : i32, i32
  }
  func.func @transform_10(%arg0: i32) -> (i32, i32) {
    %c0_i32 = arith.constant 0 : i32
    %c0_i32_0 = arith.constant 0 : i32
    %c0_i32_1 = arith.constant 0 : i32
    return %c0_i32, %c0_i32_0 : i32, i32
  }
  func.func @transform_11(%arg0: i32) -> (i32, i32) {
    %c0_i32 = arith.constant 0 : i32
    %c0_i32_0 = arith.constant 0 : i32
    %c0_i32_1 = arith.constant 0 : i32
    return %c0_i32, %c0_i32_0 : i32, i32
  }
  func.func @transform_12(%arg0: i32) -> (i32, i32) {
    %c0_i32 = arith.constant 0 : i32
    %c0_i32_0 = arith.constant 0 : i32
    %c0_i32_1 = arith.constant 0 : i32
    return %c0_i32, %c0_i32_0 : i32, i32
  }
  func.func @transform_13(%arg0: i32) -> (i32, i32) {
    %c0_i32 = arith.constant 0 : i32
    %c0_i32_0 = arith.constant 0 : i32
    %c0_i32_1 = arith.constant 0 : i32
    return %c0_i32, %c0_i32_0 : i32, i32
  }
  func.func @transform_14(%arg0: i32) -> (i32, i32) {
    %c0_i32 = arith.constant 0 : i32
    %c0_i32_0 = arith.constant 0 : i32
    %c0_i32_1 = arith.constant 0 : i32
    return %c0_i32, %c0_i32_0 : i32, i32
  }
  func.func @transform_15(%arg0: i32) -> (i32, i32) {
    %c0_i32 = arith.constant 0 : i32
    %c0_i32_0 = arith.constant 0 : i32
    %c0_i32_1 = arith.constant 0 : i32
    return %c0_i32, %c0_i32_0 : i32, i32
  }
  func.func @transform_16(%arg0: i32) -> (i32, i32) {
    %c0_i32 = arith.constant 0 : i32
    %c0_i32_0 = arith.constant 0 : i32
    %c0_i32_1 = arith.constant 0 : i32
    return %c0_i32, %c0_i32_0 : i32, i32
  }
  func.func @transform_17(%arg0: i32) -> (i32, i32) {
    %c0_i32 = arith.constant 0 : i32
    %c0_i32_0 = arith.constant 0 : i32
    %c0_i32_1 = arith.constant 0 : i32
    return %c0_i32, %c0_i32_0 : i32, i32
  }
  func.func @transform_18(%arg0: i32) -> (i32, i32) {
    %c0_i32 = arith.constant 0 : i32
    %c0_i32_0 = arith.constant 0 : i32
    %c0_i32_1 = arith.constant 0 : i32
    return %c0_i32, %c0_i32_0 : i32, i32
  }
  func.func @transform_19(%arg0: i32) -> (i32, i32) {
    %c0_i32 = arith.constant 0 : i32
    %c0_i32_0 = arith.constant 0 : i32
    %c0_i32_1 = arith.constant 0 : i32
    return %c0_i32, %c0_i32_0 : i32, i32
  }
  func.func @transform_20(%arg0: i32) -> (i32, i32) {
    %c0_i32 = arith.constant 0 : i32
    %c0_i32_0 = arith.constant 0 : i32
    %c0_i32_1 = arith.constant 0 : i32
    return %c0_i32, %c0_i32_0 : i32, i32
  }
}

module attributes {stable_mosaic.version = 11 : i64} {
  func.func @_cnn_tail_kernel(%arg0: i32, %arg1: memref<384x32xbf16, #tpu.memory_space<vmem>>, %arg2: memref<32x128xbf16, #tpu.memory_space<vmem>>, %arg3: memref<1x128xf32, #tpu.memory_space<vmem>>, %arg4: memref<864x384xbf16, #tpu.memory_space<vmem>>, %arg5: memref<1152x128xbf16, #tpu.memory_space<vmem>>, %arg6: memref<1x128xf32, #tpu.memory_space<vmem>>, %arg7: memref<216x96xbf16, #tpu.memory_space<vmem>>, %arg8: memref<1152x128xbf16, #tpu.memory_space<vmem>>, %arg9: memref<1x128xf32, #tpu.memory_space<vmem>>, %arg10: memref<8x24xf32, #tpu.memory_space<vmem>>, %arg11: memref<128x128xbf16, #tpu.memory_space<vmem>>, %arg12: memref<1x128xf32, #tpu.memory_space<vmem>>, %arg13: memref<8x128xf32, #tpu.memory_space<vmem>>, %arg14: memref<128x128xbf16, #tpu.memory_space<vmem>>, %arg15: memref<1x128xf32, #tpu.memory_space<vmem>>, %arg16: memref<128x128xbf16, #tpu.memory_space<vmem>>, %arg17: memref<1x128xf32, #tpu.memory_space<vmem>>, %arg18: memref<1x128xf32, #tpu.memory_space<vmem>>, %arg19: memref<1x128xf32, #tpu.memory_space<vmem>>, %arg20: memref<128x128xbf16, #tpu.memory_space<vmem>>, %arg21: memref<1x128xf32, #tpu.memory_space<vmem>>, %arg22: memref<128x128xbf16, #tpu.memory_space<vmem>>, %arg23: memref<1x128xf32, #tpu.memory_space<vmem>>, %arg24: memref<1x128xf32, #tpu.memory_space<vmem>>, %arg25: memref<1x128xf32, #tpu.memory_space<vmem>>, %arg26: memref<128x128xbf16, #tpu.memory_space<vmem>>, %arg27: memref<128x128xbf16, #tpu.memory_space<vmem>>, %arg28: memref<1x128xf32, #tpu.memory_space<vmem>>, %arg29: memref<128x2304xbf16, #tpu.memory_space<vmem>>, %arg30: memref<1x2304xf32, #tpu.memory_space<vmem>>, %arg31: memref<8x2304xf32, #tpu.memory_space<vmem>>) attributes {dimension_semantics = [#tpu.dimension_semantics<arbitrary>], iteration_bounds = array<i64: 1>, scalar_prefetch = 0 : i64, scratch_operands = 0 : i64, tpu.core_type = #tpu.core_type<tc>, window_params = [{pipeline_mode = #tpu.pipeline_mode<synchronous>, transform_indices = @transform_0, window_bounds = array<i64: 384, 32>}, {pipeline_mode = #tpu.pipeline_mode<synchronous>, transform_indices = @transform_1, window_bounds = array<i64: 32, 128>}, {pipeline_mode = #tpu.pipeline_mode<synchronous>, transform_indices = @transform_2, window_bounds = array<i64: 1, 128>}, {pipeline_mode = #tpu.pipeline_mode<synchronous>, transform_indices = @transform_3, window_bounds = array<i64: 864, 384>}, {pipeline_mode = #tpu.pipeline_mode<synchronous>, transform_indices = @transform_4, window_bounds = array<i64: 1152, 128>}, {pipeline_mode = #tpu.pipeline_mode<synchronous>, transform_indices = @transform_5, window_bounds = array<i64: 1, 128>}, {pipeline_mode = #tpu.pipeline_mode<synchronous>, transform_indices = @transform_6, window_bounds = array<i64: 216, 96>}, {pipeline_mode = #tpu.pipeline_mode<synchronous>, transform_indices = @transform_7, window_bounds = array<i64: 1152, 128>}, {pipeline_mode = #tpu.pipeline_mode<synchronous>, transform_indices = @transform_8, window_bounds = array<i64: 1, 128>}, {pipeline_mode = #tpu.pipeline_mode<synchronous>, transform_indices = @transform_9, window_bounds = array<i64: 8, 24>}, {pipeline_mode = #tpu.pipeline_mode<synchronous>, transform_indices = @transform_10, window_bounds = array<i64: 128, 128>}, {pipeline_mode = #tpu.pipeline_mode<synchronous>, transform_indices = @transform_11, window_bounds = array<i64: 1, 128>}, {pipeline_mode = #tpu.pipeline_mode<synchronous>, transform_indices = @transform_12, window_bounds = array<i64: 8, 128>}, {pipeline_mode = #tpu.pipeline_mode<synchronous>, transform_indices = @transform_13, window_bounds = array<i64: 128, 128>}, {pipeline_mode = #tpu.pipeline_mode<synchronous>, transform_indices = @transform_14, window_bounds = array<i64: 1, 128>}, {pipeline_mode = #tpu.pipeline_mode<synchronous>, transform_indices = @transform_15, window_bounds = array<i64: 128, 128>}, {pipeline_mode = #tpu.pipeline_mode<synchronous>, transform_indices = @transform_16, window_bounds = array<i64: 1, 128>}, {pipeline_mode = #tpu.pipeline_mode<synchronous>, transform_indices = @transform_17, window_bounds = array<i64: 1, 128>}, {pipeline_mode = #tpu.pipeline_mode<synchronous>, transform_indices = @transform_18, window_bounds = array<i64: 1, 128>}, {pipeline_mode = #tpu.pipeline_mode<synchronous>, transform_indices = @transform_19, window_bounds = array<i64: 128, 128>}, {pipeline_mode = #tpu.pipeline_mode<synchronous>, transform_indices = @transform_20, window_bounds = array<i64: 1, 128>}, {pipeline_mode = #tpu.pipeline_mode<synchronous>, transform_indices = @transform_21, window_bounds = array<i64: 128, 128>}, {pipeline_mode = #tpu.pipeline_mode<synchronous>, transform_indices = @transform_22, window_bounds = array<i64: 1, 128>}, {pipeline_mode = #tpu.pipeline_mode<synchronous>, transform_indices = @transform_23, window_bounds = array<i64: 1, 128>}, {pipeline_mode = #tpu.pipeline_mode<synchronous>, transform_indices = @transform_24, window_bounds = array<i64: 1, 128>}, {pipeline_mode = #tpu.pipeline_mode<synchronous>, transform_indices = @transform_25, window_bounds = array<i64: 128, 128>}, {pipeline_mode = #tpu.pipeline_mode<synchronous>, transform_indices = @transform_26, window_bounds = array<i64: 128, 128>}, {pipeline_mode = #tpu.pipeline_mode<synchronous>, transform_indices = @transform_27, window_bounds = array<i64: 1, 128>}, {pipeline_mode = #tpu.pipeline_mode<synchronous>, transform_indices = @transform_28, window_bounds = array<i64: 128, 2304>}, {pipeline_mode = #tpu.pipeline_mode<synchronous>, transform_indices = @transform_29, window_bounds = array<i64: 1, 2304>}, {pipeline_mode = #tpu.pipeline_mode<synchronous>, transform_indices = @transform_30, window_bounds = array<i64: 8, 2304>}]} {
    %c0 = arith.constant 0 : index
    %c0_0 = arith.constant 0 : index
    %0 = vector.load %arg1[%c0, %c0_0] : memref<384x32xbf16, #tpu.memory_space<vmem>>, vector<384x32xbf16>
    %c0_1 = arith.constant 0 : index
    %c0_2 = arith.constant 0 : index
    %1 = vector.load %arg2[%c0_1, %c0_2] : memref<32x128xbf16, #tpu.memory_space<vmem>>, vector<32x128xbf16>
    %cst = arith.constant dense<0.000000e+00> : vector<384x128xf32>
    %2 = tpu.matmul %0, %1, %cst {dimension_numbers = #tpu.dot_dimension_numbers<[1], [0], [0], [1], [0, 0, 1, 1], [], []>} : vector<384x32xbf16>, vector<32x128xbf16>, vector<384x128xf32> -> vector<384x128xf32>
    %c0_3 = arith.constant 0 : index
    %c0_4 = arith.constant 0 : index
    %3 = vector.load %arg3[%c0_3, %c0_4] : memref<1x128xf32, #tpu.memory_space<vmem>>, vector<1x128xf32>
    %4 = vector.broadcast %3 : vector<1x128xf32> to vector<384x128xf32>
    %5 = arith.addf %2, %4 : vector<384x128xf32>
    %cst_5 = arith.constant 0.000000e+00 : f32
    %6 = vector.broadcast %cst_5 : f32 to vector<384x128xf32>
    %7 = arith.maximumf %5, %6 : vector<384x128xf32>
    %c0_6 = arith.constant 0 : index
    %c0_7 = arith.constant 0 : index
    %8 = vector.load %arg6[%c0_6, %c0_7] : memref<1x128xf32, #tpu.memory_space<vmem>>, vector<1x128xf32>
    %c0_8 = arith.constant 0 : index
    %c0_9 = arith.constant 0 : index
    %9 = vector.load %arg4[%c0_8, %c0_9] : memref<864x384xbf16, #tpu.memory_space<vmem>>, vector<864x384xbf16>
    %10 = arith.truncf %7 : vector<384x128xf32> to vector<384x128xbf16>
    %cst_10 = arith.constant dense<0.000000e+00> : vector<864x128xf32>
    %11 = tpu.matmul %9, %10, %cst_10 {dimension_numbers = #tpu.dot_dimension_numbers<[1], [0], [0], [1], [0, 0, 1, 1], [], []>} : vector<864x384xbf16>, vector<384x128xbf16>, vector<864x128xf32> -> vector<864x128xf32>
    %cst_11 = arith.constant 0.000000e+00 : f32
    %12 = vector.broadcast %cst_11 : f32 to vector<96x128xf32>
    %13 = vector.extract_strided_slice %11 {offsets = [0, 0], sizes = [96, 128], strides = [1, 1]} : vector<864x128xf32> to vector<96x128xf32>
    %c0_12 = arith.constant 0 : index
    %c0_13 = arith.constant 0 : index
    %14 = vector.load %arg5[%c0_12, %c0_13] : memref<1152x128xbf16, #tpu.memory_space<vmem>>, vector<128x128xbf16>
    %15 = arith.truncf %13 : vector<96x128xf32> to vector<96x128xbf16>
    %cst_14 = arith.constant dense<0.000000e+00> : vector<96x128xf32>
    %16 = tpu.matmul %15, %14, %cst_14 {dimension_numbers = #tpu.dot_dimension_numbers<[1], [0], [0], [1], [0, 0, 1, 1], [], []>} : vector<96x128xbf16>, vector<128x128xbf16>, vector<96x128xf32> -> vector<96x128xf32>
    %17 = arith.addf %12, %16 : vector<96x128xf32>
    %18 = vector.extract_strided_slice %11 {offsets = [96, 0], sizes = [96, 128], strides = [1, 1]} : vector<864x128xf32> to vector<96x128xf32>
    %c128 = arith.constant 128 : index
    %c0_15 = arith.constant 0 : index
    %19 = vector.load %arg5[%c128, %c0_15] : memref<1152x128xbf16, #tpu.memory_space<vmem>>, vector<128x128xbf16>
    %20 = arith.truncf %18 : vector<96x128xf32> to vector<96x128xbf16>
    %cst_16 = arith.constant dense<0.000000e+00> : vector<96x128xf32>
    %21 = tpu.matmul %20, %19, %cst_16 {dimension_numbers = #tpu.dot_dimension_numbers<[1], [0], [0], [1], [0, 0, 1, 1], [], []>} : vector<96x128xbf16>, vector<128x128xbf16>, vector<96x128xf32> -> vector<96x128xf32>
    %22 = arith.addf %17, %21 : vector<96x128xf32>
    %23 = vector.extract_strided_slice %11 {offsets = [192, 0], sizes = [96, 128], strides = [1, 1]} : vector<864x128xf32> to vector<96x128xf32>
    %c256 = arith.constant 256 : index
    %c0_17 = arith.constant 0 : index
    %24 = vector.load %arg5[%c256, %c0_17] : memref<1152x128xbf16, #tpu.memory_space<vmem>>, vector<128x128xbf16>
    %25 = arith.truncf %23 : vector<96x128xf32> to vector<96x128xbf16>
    %cst_18 = arith.constant dense<0.000000e+00> : vector<96x128xf32>
    %26 = tpu.matmul %25, %24, %cst_18 {dimension_numbers = #tpu.dot_dimension_numbers<[1], [0], [0], [1], [0, 0, 1, 1], [], []>} : vector<96x128xbf16>, vector<128x128xbf16>, vector<96x128xf32> -> vector<96x128xf32>
    %27 = arith.addf %22, %26 : vector<96x128xf32>
    %28 = vector.extract_strided_slice %11 {offsets = [288, 0], sizes = [96, 128], strides = [1, 1]} : vector<864x128xf32> to vector<96x128xf32>
    %c384 = arith.constant 384 : index
    %c0_19 = arith.constant 0 : index
    %29 = vector.load %arg5[%c384, %c0_19] : memref<1152x128xbf16, #tpu.memory_space<vmem>>, vector<128x128xbf16>
    %30 = arith.truncf %28 : vector<96x128xf32> to vector<96x128xbf16>
    %cst_20 = arith.constant dense<0.000000e+00> : vector<96x128xf32>
    %31 = tpu.matmul %30, %29, %cst_20 {dimension_numbers = #tpu.dot_dimension_numbers<[1], [0], [0], [1], [0, 0, 1, 1], [], []>} : vector<96x128xbf16>, vector<128x128xbf16>, vector<96x128xf32> -> vector<96x128xf32>
    %32 = arith.addf %27, %31 : vector<96x128xf32>
    %33 = vector.extract_strided_slice %11 {offsets = [384, 0], sizes = [96, 128], strides = [1, 1]} : vector<864x128xf32> to vector<96x128xf32>
    %c512 = arith.constant 512 : index
    %c0_21 = arith.constant 0 : index
    %34 = vector.load %arg5[%c512, %c0_21] : memref<1152x128xbf16, #tpu.memory_space<vmem>>, vector<128x128xbf16>
    %35 = arith.truncf %33 : vector<96x128xf32> to vector<96x128xbf16>
    %cst_22 = arith.constant dense<0.000000e+00> : vector<96x128xf32>
    %36 = tpu.matmul %35, %34, %cst_22 {dimension_numbers = #tpu.dot_dimension_numbers<[1], [0], [0], [1], [0, 0, 1, 1], [], []>} : vector<96x128xbf16>, vector<128x128xbf16>, vector<96x128xf32> -> vector<96x128xf32>
    %37 = arith.addf %32, %36 : vector<96x128xf32>
    %38 = vector.extract_strided_slice %11 {offsets = [480, 0], sizes = [96, 128], strides = [1, 1]} : vector<864x128xf32> to vector<96x128xf32>
    %c640 = arith.constant 640 : index
    %c0_23 = arith.constant 0 : index
    %39 = vector.load %arg5[%c640, %c0_23] : memref<1152x128xbf16, #tpu.memory_space<vmem>>, vector<128x128xbf16>
    %40 = arith.truncf %38 : vector<96x128xf32> to vector<96x128xbf16>
    %cst_24 = arith.constant dense<0.000000e+00> : vector<96x128xf32>
    %41 = tpu.matmul %40, %39, %cst_24 {dimension_numbers = #tpu.dot_dimension_numbers<[1], [0], [0], [1], [0, 0, 1, 1], [], []>} : vector<96x128xbf16>, vector<128x128xbf16>, vector<96x128xf32> -> vector<96x128xf32>
    %42 = arith.addf %37, %41 : vector<96x128xf32>
    %43 = vector.extract_strided_slice %11 {offsets = [576, 0], sizes = [96, 128], strides = [1, 1]} : vector<864x128xf32> to vector<96x128xf32>
    %c768 = arith.constant 768 : index
    %c0_25 = arith.constant 0 : index
    %44 = vector.load %arg5[%c768, %c0_25] : memref<1152x128xbf16, #tpu.memory_space<vmem>>, vector<128x128xbf16>
    %45 = arith.truncf %43 : vector<96x128xf32> to vector<96x128xbf16>
    %cst_26 = arith.constant dense<0.000000e+00> : vector<96x128xf32>
    %46 = tpu.matmul %45, %44, %cst_26 {dimension_numbers = #tpu.dot_dimension_numbers<[1], [0], [0], [1], [0, 0, 1, 1], [], []>} : vector<96x128xbf16>, vector<128x128xbf16>, vector<96x128xf32> -> vector<96x128xf32>
    %47 = arith.addf %42, %46 : vector<96x128xf32>
    %48 = vector.extract_strided_slice %11 {offsets = [672, 0], sizes = [96, 128], strides = [1, 1]} : vector<864x128xf32> to vector<96x128xf32>
    %c896 = arith.constant 896 : index
    %c0_27 = arith.constant 0 : index
    %49 = vector.load %arg5[%c896, %c0_27] : memref<1152x128xbf16, #tpu.memory_space<vmem>>, vector<128x128xbf16>
    %50 = arith.truncf %48 : vector<96x128xf32> to vector<96x128xbf16>
    %cst_28 = arith.constant dense<0.000000e+00> : vector<96x128xf32>
    %51 = tpu.matmul %50, %49, %cst_28 {dimension_numbers = #tpu.dot_dimension_numbers<[1], [0], [0], [1], [0, 0, 1, 1], [], []>} : vector<96x128xbf16>, vector<128x128xbf16>, vector<96x128xf32> -> vector<96x128xf32>
    %52 = arith.addf %47, %51 : vector<96x128xf32>
    %53 = vector.extract_strided_slice %11 {offsets = [768, 0], sizes = [96, 128], strides = [1, 1]} : vector<864x128xf32> to vector<96x128xf32>
    %c1024 = arith.constant 1024 : index
    %c0_29 = arith.constant 0 : index
    %54 = vector.load %arg5[%c1024, %c0_29] : memref<1152x128xbf16, #tpu.memory_space<vmem>>, vector<128x128xbf16>
    %55 = arith.truncf %53 : vector<96x128xf32> to vector<96x128xbf16>
    %cst_30 = arith.constant dense<0.000000e+00> : vector<96x128xf32>
    %56 = tpu.matmul %55, %54, %cst_30 {dimension_numbers = #tpu.dot_dimension_numbers<[1], [0], [0], [1], [0, 0, 1, 1], [], []>} : vector<96x128xbf16>, vector<128x128xbf16>, vector<96x128xf32> -> vector<96x128xf32>
    %57 = arith.addf %52, %56 : vector<96x128xf32>
    %58 = vector.broadcast %8 : vector<1x128xf32> to vector<96x128xf32>
    %59 = arith.addf %57, %58 : vector<96x128xf32>
    %cst_31 = arith.constant 0.000000e+00 : f32
    %60 = vector.broadcast %cst_31 : f32 to vector<96x128xf32>
    %61 = arith.maximumf %59, %60 : vector<96x128xf32>
    %c0_32 = arith.constant 0 : index
    %c0_33 = arith.constant 0 : index
    %62 = vector.load %arg9[%c0_32, %c0_33] : memref<1x128xf32, #tpu.memory_space<vmem>>, vector<1x128xf32>
    %c0_34 = arith.constant 0 : index
    %c0_35 = arith.constant 0 : index
    %63 = vector.load %arg7[%c0_34, %c0_35] : memref<216x96xbf16, #tpu.memory_space<vmem>>, vector<216x96xbf16>
    %64 = arith.truncf %61 : vector<96x128xf32> to vector<96x128xbf16>
    %cst_36 = arith.constant dense<0.000000e+00> : vector<216x128xf32>
    %65 = tpu.matmul %63, %64, %cst_36 {dimension_numbers = #tpu.dot_dimension_numbers<[1], [0], [0], [1], [0, 0, 1, 1], [], []>} : vector<216x96xbf16>, vector<96x128xbf16>, vector<216x128xf32> -> vector<216x128xf32>
    %cst_37 = arith.constant 0.000000e+00 : f32
    %66 = vector.broadcast %cst_37 : f32 to vector<24x128xf32>
    %67 = vector.extract_strided_slice %65 {offsets = [0, 0], sizes = [24, 128], strides = [1, 1]} : vector<216x128xf32> to vector<24x128xf32>
    %c0_38 = arith.constant 0 : index
    %c0_39 = arith.constant 0 : index
    %68 = vector.load %arg8[%c0_38, %c0_39] : memref<1152x128xbf16, #tpu.memory_space<vmem>>, vector<128x128xbf16>
    %69 = arith.truncf %67 : vector<24x128xf32> to vector<24x128xbf16>
    %cst_40 = arith.constant dense<0.000000e+00> : vector<24x128xf32>
    %70 = tpu.matmul %69, %68, %cst_40 {dimension_numbers = #tpu.dot_dimension_numbers<[1], [0], [0], [1], [0, 0, 1, 1], [], []>} : vector<24x128xbf16>, vector<128x128xbf16>, vector<24x128xf32> -> vector<24x128xf32>
    %71 = arith.addf %66, %70 : vector<24x128xf32>
    %72 = vector.extract_strided_slice %65 {offsets = [24, 0], sizes = [24, 128], strides = [1, 1]} : vector<216x128xf32> to vector<24x128xf32>
    %c128_41 = arith.constant 128 : index
    %c0_42 = arith.constant 0 : index
    %73 = vector.load %arg8[%c128_41, %c0_42] : memref<1152x128xbf16, #tpu.memory_space<vmem>>, vector<128x128xbf16>
    %74 = arith.truncf %72 : vector<24x128xf32> to vector<24x128xbf16>
    %cst_43 = arith.constant dense<0.000000e+00> : vector<24x128xf32>
    %75 = tpu.matmul %74, %73, %cst_43 {dimension_numbers = #tpu.dot_dimension_numbers<[1], [0], [0], [1], [0, 0, 1, 1], [], []>} : vector<24x128xbf16>, vector<128x128xbf16>, vector<24x128xf32> -> vector<24x128xf32>
    %76 = arith.addf %71, %75 : vector<24x128xf32>
    %77 = vector.extract_strided_slice %65 {offsets = [48, 0], sizes = [24, 128], strides = [1, 1]} : vector<216x128xf32> to vector<24x128xf32>
    %c256_44 = arith.constant 256 : index
    %c0_45 = arith.constant 0 : index
    %78 = vector.load %arg8[%c256_44, %c0_45] : memref<1152x128xbf16, #tpu.memory_space<vmem>>, vector<128x128xbf16>
    %79 = arith.truncf %77 : vector<24x128xf32> to vector<24x128xbf16>
    %cst_46 = arith.constant dense<0.000000e+00> : vector<24x128xf32>
    %80 = tpu.matmul %79, %78, %cst_46 {dimension_numbers = #tpu.dot_dimension_numbers<[1], [0], [0], [1], [0, 0, 1, 1], [], []>} : vector<24x128xbf16>, vector<128x128xbf16>, vector<24x128xf32> -> vector<24x128xf32>
    %81 = arith.addf %76, %80 : vector<24x128xf32>
    %82 = vector.extract_strided_slice %65 {offsets = [72, 0], sizes = [24, 128], strides = [1, 1]} : vector<216x128xf32> to vector<24x128xf32>
    %c384_47 = arith.constant 384 : index
    %c0_48 = arith.constant 0 : index
    %83 = vector.load %arg8[%c384_47, %c0_48] : memref<1152x128xbf16, #tpu.memory_space<vmem>>, vector<128x128xbf16>
    %84 = arith.truncf %82 : vector<24x128xf32> to vector<24x128xbf16>
    %cst_49 = arith.constant dense<0.000000e+00> : vector<24x128xf32>
    %85 = tpu.matmul %84, %83, %cst_49 {dimension_numbers = #tpu.dot_dimension_numbers<[1], [0], [0], [1], [0, 0, 1, 1], [], []>} : vector<24x128xbf16>, vector<128x128xbf16>, vector<24x128xf32> -> vector<24x128xf32>
    %86 = arith.addf %81, %85 : vector<24x128xf32>
    %87 = vector.extract_strided_slice %65 {offsets = [96, 0], sizes = [24, 128], strides = [1, 1]} : vector<216x128xf32> to vector<24x128xf32>
    %c512_50 = arith.constant 512 : index
    %c0_51 = arith.constant 0 : index
    %88 = vector.load %arg8[%c512_50, %c0_51] : memref<1152x128xbf16, #tpu.memory_space<vmem>>, vector<128x128xbf16>
    %89 = arith.truncf %87 : vector<24x128xf32> to vector<24x128xbf16>
    %cst_52 = arith.constant dense<0.000000e+00> : vector<24x128xf32>
    %90 = tpu.matmul %89, %88, %cst_52 {dimension_numbers = #tpu.dot_dimension_numbers<[1], [0], [0], [1], [0, 0, 1, 1], [], []>} : vector<24x128xbf16>, vector<128x128xbf16>, vector<24x128xf32> -> vector<24x128xf32>
    %91 = arith.addf %86, %90 : vector<24x128xf32>
    %92 = vector.extract_strided_slice %65 {offsets = [120, 0], sizes = [24, 128], strides = [1, 1]} : vector<216x128xf32> to vector<24x128xf32>
    %c640_53 = arith.constant 640 : index
    %c0_54 = arith.constant 0 : index
    %93 = vector.load %arg8[%c640_53, %c0_54] : memref<1152x128xbf16, #tpu.memory_space<vmem>>, vector<128x128xbf16>
    %94 = arith.truncf %92 : vector<24x128xf32> to vector<24x128xbf16>
    %cst_55 = arith.constant dense<0.000000e+00> : vector<24x128xf32>
    %95 = tpu.matmul %94, %93, %cst_55 {dimension_numbers = #tpu.dot_dimension_numbers<[1], [0], [0], [1], [0, 0, 1, 1], [], []>} : vector<24x128xbf16>, vector<128x128xbf16>, vector<24x128xf32> -> vector<24x128xf32>
    %96 = arith.addf %91, %95 : vector<24x128xf32>
    %97 = vector.extract_strided_slice %65 {offsets = [144, 0], sizes = [24, 128], strides = [1, 1]} : vector<216x128xf32> to vector<24x128xf32>
    %c768_56 = arith.constant 768 : index
    %c0_57 = arith.constant 0 : index
    %98 = vector.load %arg8[%c768_56, %c0_57] : memref<1152x128xbf16, #tpu.memory_space<vmem>>, vector<128x128xbf16>
    %99 = arith.truncf %97 : vector<24x128xf32> to vector<24x128xbf16>
    %cst_58 = arith.constant dense<0.000000e+00> : vector<24x128xf32>
    %100 = tpu.matmul %99, %98, %cst_58 {dimension_numbers = #tpu.dot_dimension_numbers<[1], [0], [0], [1], [0, 0, 1, 1], [], []>} : vector<24x128xbf16>, vector<128x128xbf16>, vector<24x128xf32> -> vector<24x128xf32>
    %101 = arith.addf %96, %100 : vector<24x128xf32>
    %102 = vector.extract_strided_slice %65 {offsets = [168, 0], sizes = [24, 128], strides = [1, 1]} : vector<216x128xf32> to vector<24x128xf32>
    %c896_59 = arith.constant 896 : index
    %c0_60 = arith.constant 0 : index
    %103 = vector.load %arg8[%c896_59, %c0_60] : memref<1152x128xbf16, #tpu.memory_space<vmem>>, vector<128x128xbf16>
    %104 = arith.truncf %102 : vector<24x128xf32> to vector<24x128xbf16>
    %cst_61 = arith.constant dense<0.000000e+00> : vector<24x128xf32>
    %105 = tpu.matmul %104, %103, %cst_61 {dimension_numbers = #tpu.dot_dimension_numbers<[1], [0], [0], [1], [0, 0, 1, 1], [], []>} : vector<24x128xbf16>, vector<128x128xbf16>, vector<24x128xf32> -> vector<24x128xf32>
    %106 = arith.addf %101, %105 : vector<24x128xf32>
    %107 = vector.extract_strided_slice %65 {offsets = [192, 0], sizes = [24, 128], strides = [1, 1]} : vector<216x128xf32> to vector<24x128xf32>
    %c1024_62 = arith.constant 1024 : index
    %c0_63 = arith.constant 0 : index
    %108 = vector.load %arg8[%c1024_62, %c0_63] : memref<1152x128xbf16, #tpu.memory_space<vmem>>, vector<128x128xbf16>
    %109 = arith.truncf %107 : vector<24x128xf32> to vector<24x128xbf16>
    %cst_64 = arith.constant dense<0.000000e+00> : vector<24x128xf32>
    %110 = tpu.matmul %109, %108, %cst_64 {dimension_numbers = #tpu.dot_dimension_numbers<[1], [0], [0], [1], [0, 0, 1, 1], [], []>} : vector<24x128xbf16>, vector<128x128xbf16>, vector<24x128xf32> -> vector<24x128xf32>
    %111 = arith.addf %106, %110 : vector<24x128xf32>
    %112 = vector.broadcast %62 : vector<1x128xf32> to vector<24x128xf32>
    %113 = arith.addf %111, %112 : vector<24x128xf32>
    %cst_65 = arith.constant 0.000000e+00 : f32
    %114 = vector.broadcast %cst_65 : f32 to vector<24x128xf32>
    %115 = arith.maximumf %113, %114 : vector<24x128xf32>
    %c0_66 = arith.constant 0 : index
    %c0_67 = arith.constant 0 : index
    %116 = vector.load %arg10[%c0_66, %c0_67] : memref<8x24xf32, #tpu.memory_space<vmem>>, vector<8x24xf32>
    %cst_68 = arith.constant dense<0.000000e+00> : vector<8x128xf32>
    %117 = tpu.matmul %116, %115, %cst_68 {dimension_numbers = #tpu.dot_dimension_numbers<[1], [0], [0], [1], [0, 0, 1, 1], [], []>} : vector<8x24xf32>, vector<24x128xf32>, vector<8x128xf32> -> vector<8x128xf32>
    %c0_69 = arith.constant 0 : index
    %c0_70 = arith.constant 0 : index
    %118 = vector.load %arg11[%c0_69, %c0_70] : memref<128x128xbf16, #tpu.memory_space<vmem>>, vector<128x128xbf16>
    %119 = arith.truncf %117 : vector<8x128xf32> to vector<8x128xbf16>
    %cst_71 = arith.constant dense<0.000000e+00> : vector<8x128xf32>
    %120 = tpu.matmul %119, %118, %cst_71 {dimension_numbers = #tpu.dot_dimension_numbers<[1], [0], [0], [1], [0, 0, 1, 1], [], []>} : vector<8x128xbf16>, vector<128x128xbf16>, vector<8x128xf32> -> vector<8x128xf32>
    %c0_72 = arith.constant 0 : index
    %c0_73 = arith.constant 0 : index
    %121 = vector.load %arg12[%c0_72, %c0_73] : memref<1x128xf32, #tpu.memory_space<vmem>>, vector<1x128xf32>
    %122 = vector.broadcast %121 : vector<1x128xf32> to vector<8x128xf32>
    %123 = arith.addf %120, %122 : vector<8x128xf32>
    %c0_74 = arith.constant 0 : index
    %c0_75 = arith.constant 0 : index
    %124 = vector.load %arg13[%c0_74, %c0_75] : memref<8x128xf32, #tpu.memory_space<vmem>>, vector<8x128xf32>
    %c0_76 = arith.constant 0 : index
    %c0_77 = arith.constant 0 : index
    %125 = vector.load %arg14[%c0_76, %c0_77] : memref<128x128xbf16, #tpu.memory_space<vmem>>, vector<128x128xbf16>
    %126 = arith.truncf %124 : vector<8x128xf32> to vector<8x128xbf16>
    %cst_78 = arith.constant dense<0.000000e+00> : vector<8x128xf32>
    %127 = tpu.matmul %126, %125, %cst_78 {dimension_numbers = #tpu.dot_dimension_numbers<[1], [0], [0], [1], [0, 0, 1, 1], [], []>} : vector<8x128xbf16>, vector<128x128xbf16>, vector<8x128xf32> -> vector<8x128xf32>
    %c0_79 = arith.constant 0 : index
    %c0_80 = arith.constant 0 : index
    %128 = vector.load %arg15[%c0_79, %c0_80] : memref<1x128xf32, #tpu.memory_space<vmem>>, vector<1x128xf32>
    %129 = vector.broadcast %128 : vector<1x128xf32> to vector<8x128xf32>
    %130 = arith.addf %127, %129 : vector<8x128xf32>
    %c0_81 = arith.constant 0 : index
    %c0_82 = arith.constant 0 : index
    %131 = vector.load %arg16[%c0_81, %c0_82] : memref<128x128xbf16, #tpu.memory_space<vmem>>, vector<128x128xbf16>
    %132 = arith.truncf %130 : vector<8x128xf32> to vector<8x128xbf16>
    %cst_83 = arith.constant dense<0.000000e+00> : vector<8x128xf32>
    %133 = tpu.matmul %132, %131, %cst_83 {dimension_numbers = #tpu.dot_dimension_numbers<[1], [0], [0], [1], [0, 0, 1, 1], [], []>} : vector<8x128xbf16>, vector<128x128xbf16>, vector<8x128xf32> -> vector<8x128xf32>
    %c0_84 = arith.constant 0 : index
    %c0_85 = arith.constant 0 : index
    %134 = vector.load %arg17[%c0_84, %c0_85] : memref<1x128xf32, #tpu.memory_space<vmem>>, vector<1x128xf32>
    %135 = vector.broadcast %134 : vector<1x128xf32> to vector<8x128xf32>
    %136 = arith.addf %133, %135 : vector<8x128xf32>
    %137 = arith.addf %123, %136 : vector<8x128xf32>
    %c0_86 = arith.constant 0 : index
    %c0_87 = arith.constant 0 : index
    %138 = vector.load %arg18[%c0_86, %c0_87] : memref<1x128xf32, #tpu.memory_space<vmem>>, vector<1x128xf32>
    %c0_88 = arith.constant 0 : index
    %c0_89 = arith.constant 0 : index
    %139 = vector.load %arg19[%c0_88, %c0_89] : memref<1x128xf32, #tpu.memory_space<vmem>>, vector<1x128xf32>
    %cst_90 = arith.constant dense<0.000000e+00> : vector<8xf32>
    %140 = vector.multi_reduction <add>, %137, %cst_90 [1] : vector<8x128xf32> to vector<8xf32>
    %141 = vector.shape_cast %140 : vector<8xf32> to vector<8x1xf32>
    %cst_91 = arith.constant 1.280000e+02 : f32
    %142 = vector.broadcast %cst_91 : f32 to vector<8x1xf32>
    %143 = arith.divf %141, %142 : vector<8x1xf32>
    %144 = vector.broadcast %143 : vector<8x1xf32> to vector<8x128xf32>
    %145 = arith.subf %137, %144 : vector<8x128xf32>
    %146 = arith.mulf %145, %145 : vector<8x128xf32>
    %cst_92 = arith.constant dense<0.000000e+00> : vector<8xf32>
    %147 = vector.multi_reduction <add>, %146, %cst_92 [1] : vector<8x128xf32> to vector<8xf32>
    %148 = vector.shape_cast %147 : vector<8xf32> to vector<8x1xf32>
    %cst_93 = arith.constant 1.280000e+02 : f32
    %149 = vector.broadcast %cst_93 : f32 to vector<8x1xf32>
    %150 = arith.divf %148, %149 : vector<8x1xf32>
    %151 = vector.broadcast %143 : vector<8x1xf32> to vector<8x128xf32>
    %152 = arith.subf %137, %151 : vector<8x128xf32>
    %cst_94 = arith.constant 9.99999974E-6 : f32
    %153 = vector.broadcast %cst_94 : f32 to vector<8x1xf32>
    %154 = arith.addf %150, %153 : vector<8x1xf32>
    %155 = math.rsqrt %154 : vector<8x1xf32>
    %156 = vector.broadcast %155 : vector<8x1xf32> to vector<8x128xf32>
    %157 = arith.mulf %152, %156 : vector<8x128xf32>
    %158 = vector.broadcast %138 : vector<1x128xf32> to vector<8x128xf32>
    %159 = arith.mulf %157, %158 : vector<8x128xf32>
    %160 = vector.broadcast %139 : vector<1x128xf32> to vector<8x128xf32>
    %161 = arith.addf %159, %160 : vector<8x128xf32>
    %c0_95 = arith.constant 0 : index
    %c0_96 = arith.constant 0 : index
    %162 = vector.load %arg20[%c0_95, %c0_96] : memref<128x128xbf16, #tpu.memory_space<vmem>>, vector<128x128xbf16>
    %163 = arith.truncf %161 : vector<8x128xf32> to vector<8x128xbf16>
    %cst_97 = arith.constant dense<0.000000e+00> : vector<8x128xf32>
    %164 = tpu.matmul %163, %162, %cst_97 {dimension_numbers = #tpu.dot_dimension_numbers<[1], [0], [0], [1], [0, 0, 1, 1], [], []>} : vector<8x128xbf16>, vector<128x128xbf16>, vector<8x128xf32> -> vector<8x128xf32>
    %c0_98 = arith.constant 0 : index
    %c0_99 = arith.constant 0 : index
    %165 = vector.load %arg21[%c0_98, %c0_99] : memref<1x128xf32, #tpu.memory_space<vmem>>, vector<1x128xf32>
    %166 = vector.broadcast %165 : vector<1x128xf32> to vector<8x128xf32>
    %167 = arith.addf %164, %166 : vector<8x128xf32>
    %c0_100 = arith.constant 0 : index
    %c0_101 = arith.constant 0 : index
    %168 = vector.load %arg22[%c0_100, %c0_101] : memref<128x128xbf16, #tpu.memory_space<vmem>>, vector<128x128xbf16>
    %169 = arith.truncf %167 : vector<8x128xf32> to vector<8x128xbf16>
    %cst_102 = arith.constant dense<0.000000e+00> : vector<8x128xf32>
    %170 = tpu.matmul %169, %168, %cst_102 {dimension_numbers = #tpu.dot_dimension_numbers<[1], [0], [0], [1], [0, 0, 1, 1], [], []>} : vector<8x128xbf16>, vector<128x128xbf16>, vector<8x128xf32> -> vector<8x128xf32>
    %c0_103 = arith.constant 0 : index
    %c0_104 = arith.constant 0 : index
    %171 = vector.load %arg23[%c0_103, %c0_104] : memref<1x128xf32, #tpu.memory_space<vmem>>, vector<1x128xf32>
    %172 = vector.broadcast %171 : vector<1x128xf32> to vector<8x128xf32>
    %173 = arith.addf %170, %172 : vector<8x128xf32>
    %174 = arith.addf %124, %173 : vector<8x128xf32>
    %c0_105 = arith.constant 0 : index
    %c0_106 = arith.constant 0 : index
    %175 = vector.load %arg24[%c0_105, %c0_106] : memref<1x128xf32, #tpu.memory_space<vmem>>, vector<1x128xf32>
    %c0_107 = arith.constant 0 : index
    %c0_108 = arith.constant 0 : index
    %176 = vector.load %arg25[%c0_107, %c0_108] : memref<1x128xf32, #tpu.memory_space<vmem>>, vector<1x128xf32>
    %cst_109 = arith.constant dense<0.000000e+00> : vector<8xf32>
    %177 = vector.multi_reduction <add>, %174, %cst_109 [1] : vector<8x128xf32> to vector<8xf32>
    %178 = vector.shape_cast %177 : vector<8xf32> to vector<8x1xf32>
    %cst_110 = arith.constant 1.280000e+02 : f32
    %179 = vector.broadcast %cst_110 : f32 to vector<8x1xf32>
    %180 = arith.divf %178, %179 : vector<8x1xf32>
    %181 = vector.broadcast %180 : vector<8x1xf32> to vector<8x128xf32>
    %182 = arith.subf %174, %181 : vector<8x128xf32>
    %183 = arith.mulf %182, %182 : vector<8x128xf32>
    %cst_111 = arith.constant dense<0.000000e+00> : vector<8xf32>
    %184 = vector.multi_reduction <add>, %183, %cst_111 [1] : vector<8x128xf32> to vector<8xf32>
    %185 = vector.shape_cast %184 : vector<8xf32> to vector<8x1xf32>
    %cst_112 = arith.constant 1.280000e+02 : f32
    %186 = vector.broadcast %cst_112 : f32 to vector<8x1xf32>
    %187 = arith.divf %185, %186 : vector<8x1xf32>
    %188 = vector.broadcast %180 : vector<8x1xf32> to vector<8x128xf32>
    %189 = arith.subf %174, %188 : vector<8x128xf32>
    %cst_113 = arith.constant 9.99999974E-6 : f32
    %190 = vector.broadcast %cst_113 : f32 to vector<8x1xf32>
    %191 = arith.addf %187, %190 : vector<8x1xf32>
    %192 = math.rsqrt %191 : vector<8x1xf32>
    %193 = vector.broadcast %192 : vector<8x1xf32> to vector<8x128xf32>
    %194 = arith.mulf %189, %193 : vector<8x128xf32>
    %195 = vector.broadcast %175 : vector<1x128xf32> to vector<8x128xf32>
    %196 = arith.mulf %194, %195 : vector<8x128xf32>
    %197 = vector.broadcast %176 : vector<1x128xf32> to vector<8x128xf32>
    %198 = arith.addf %196, %197 : vector<8x128xf32>
    %c0_114 = arith.constant 0 : index
    %c0_115 = arith.constant 0 : index
    %199 = vector.load %arg26[%c0_114, %c0_115] : memref<128x128xbf16, #tpu.memory_space<vmem>>, vector<128x128xbf16>
    %200 = arith.truncf %161 : vector<8x128xf32> to vector<8x128xbf16>
    %cst_116 = arith.constant dense<0.000000e+00> : vector<8x128xf32>
    %201 = tpu.matmul %200, %199, %cst_116 {dimension_numbers = #tpu.dot_dimension_numbers<[1], [0], [0], [1], [0, 0, 1, 1], [], []>} : vector<8x128xbf16>, vector<128x128xbf16>, vector<8x128xf32> -> vector<8x128xf32>
    %c0_117 = arith.constant 0 : index
    %c0_118 = arith.constant 0 : index
    %202 = vector.load %arg27[%c0_117, %c0_118] : memref<128x128xbf16, #tpu.memory_space<vmem>>, vector<128x128xbf16>
    %203 = arith.truncf %198 : vector<8x128xf32> to vector<8x128xbf16>
    %cst_119 = arith.constant dense<0.000000e+00> : vector<8x128xf32>
    %204 = tpu.matmul %203, %202, %cst_119 {dimension_numbers = #tpu.dot_dimension_numbers<[1], [0], [0], [1], [0, 0, 1, 1], [], []>} : vector<8x128xbf16>, vector<128x128xbf16>, vector<8x128xf32> -> vector<8x128xf32>
    %205 = arith.addf %201, %204 : vector<8x128xf32>
    %c0_120 = arith.constant 0 : index
    %c0_121 = arith.constant 0 : index
    %206 = vector.load %arg28[%c0_120, %c0_121] : memref<1x128xf32, #tpu.memory_space<vmem>>, vector<1x128xf32>
    %207 = vector.broadcast %206 : vector<1x128xf32> to vector<8x128xf32>
    %208 = arith.addf %205, %207 : vector<8x128xf32>
    %cst_122 = arith.constant 0.000000e+00 : f32
    %209 = vector.broadcast %cst_122 : f32 to vector<8x128xf32>
    %210 = arith.maximumf %208, %209 : vector<8x128xf32>
    %c0_123 = arith.constant 0 : index
    %c0_124 = arith.constant 0 : index
    %211 = vector.load %arg29[%c0_123, %c0_124] : memref<128x2304xbf16, #tpu.memory_space<vmem>>, vector<128x2304xbf16>
    %212 = arith.truncf %210 : vector<8x128xf32> to vector<8x128xbf16>
    %cst_125 = arith.constant dense<0.000000e+00> : vector<8x2304xf32>
    %213 = tpu.matmul %212, %211, %cst_125 {dimension_numbers = #tpu.dot_dimension_numbers<[1], [0], [0], [1], [0, 0, 1, 1], [], []>} : vector<8x128xbf16>, vector<128x2304xbf16>, vector<8x2304xf32> -> vector<8x2304xf32>
    %c0_126 = arith.constant 0 : index
    %c0_127 = arith.constant 0 : index
    %214 = vector.load %arg30[%c0_126, %c0_127] : memref<1x2304xf32, #tpu.memory_space<vmem>>, vector<1x2304xf32>
    %215 = vector.broadcast %214 : vector<1x2304xf32> to vector<8x2304xf32>
    %216 = arith.addf %213, %215 : vector<8x2304xf32>
    %217 = arith.negf %216 : vector<8x2304xf32>
    %218 = math.exp %217 : vector<8x2304xf32>
    %cst_128 = arith.constant 1.000000e+00 : f32
    %219 = vector.broadcast %cst_128 : f32 to vector<8x2304xf32>
    %220 = arith.addf %219, %218 : vector<8x2304xf32>
    %221 = arith.divf %219, %220 : vector<8x2304xf32>
    %c0_129 = arith.constant 0 : index
    %c0_130 = arith.constant 0 : index
    %222 = vector.load %arg31[%c0_129, %c0_130] : memref<8x2304xf32, #tpu.memory_space<vmem>>, vector<8x2304xf32>
    tpu.vector_store %arg31[%c0_129, %c0_130], %221 {strides = array<i32>} : memref<8x2304xf32, #tpu.memory_space<vmem>>, vector<8x2304xf32>,
    return
  }
  func.func @transform_0(%arg0: i32) -> (i32, i32) {
    %c0_i32 = arith.constant 0 : i32
    %c0_i32_0 = arith.constant 0 : i32
    %c0_i32_1 = arith.constant 0 : i32
    return %c0_i32, %c0_i32_0 : i32, i32
  }
  func.func @transform_1(%arg0: i32) -> (i32, i32) {
    %c0_i32 = arith.constant 0 : i32
    %c0_i32_0 = arith.constant 0 : i32
    %c0_i32_1 = arith.constant 0 : i32
    return %c0_i32, %c0_i32_0 : i32, i32
  }
  func.func @transform_2(%arg0: i32) -> (i32, i32) {
    %c0_i32 = arith.constant 0 : i32
    %c0_i32_0 = arith.constant 0 : i32
    %c0_i32_1 = arith.constant 0 : i32
    return %c0_i32, %c0_i32_0 : i32, i32
  }
  func.func @transform_3(%arg0: i32) -> (i32, i32) {
    %c0_i32 = arith.constant 0 : i32
    %c0_i32_0 = arith.constant 0 : i32
    %c0_i32_1 = arith.constant 0 : i32
    return %c0_i32, %c0_i32_0 : i32, i32
  }
  func.func @transform_4(%arg0: i32) -> (i32, i32) {
    %c0_i32 = arith.constant 0 : i32
    %c0_i32_0 = arith.constant 0 : i32
    %c0_i32_1 = arith.constant 0 : i32
    return %c0_i32, %c0_i32_0 : i32, i32
  }
  func.func @transform_5(%arg0: i32) -> (i32, i32) {
    %c0_i32 = arith.constant 0 : i32
    %c0_i32_0 = arith.constant 0 : i32
    %c0_i32_1 = arith.constant 0 : i32
    return %c0_i32, %c0_i32_0 : i32, i32
  }
  func.func @transform_6(%arg0: i32) -> (i32, i32) {
    %c0_i32 = arith.constant 0 : i32
    %c0_i32_0 = arith.constant 0 : i32
    %c0_i32_1 = arith.constant 0 : i32
    return %c0_i32, %c0_i32_0 : i32, i32
  }
  func.func @transform_7(%arg0: i32) -> (i32, i32) {
    %c0_i32 = arith.constant 0 : i32
    %c0_i32_0 = arith.constant 0 : i32
    %c0_i32_1 = arith.constant 0 : i32
    return %c0_i32, %c0_i32_0 : i32, i32
  }
  func.func @transform_8(%arg0: i32) -> (i32, i32) {
    %c0_i32 = arith.constant 0 : i32
    %c0_i32_0 = arith.constant 0 : i32
    %c0_i32_1 = arith.constant 0 : i32
    return %c0_i32, %c0_i32_0 : i32, i32
  }
  func.func @transform_9(%arg0: i32) -> (i32, i32) {
    %c0_i32 = arith.constant 0 : i32
    %c0_i32_0 = arith.constant 0 : i32
    %c0_i32_1 = arith.constant 0 : i32
    return %c0_i32, %c0_i32_0 : i32, i32
  }
  func.func @transform_10(%arg0: i32) -> (i32, i32) {
    %c0_i32 = arith.constant 0 : i32
    %c0_i32_0 = arith.constant 0 : i32
    %c0_i32_1 = arith.constant 0 : i32
    return %c0_i32, %c0_i32_0 : i32, i32
  }
  func.func @transform_11(%arg0: i32) -> (i32, i32) {
    %c0_i32 = arith.constant 0 : i32
    %c0_i32_0 = arith.constant 0 : i32
    %c0_i32_1 = arith.constant 0 : i32
    return %c0_i32, %c0_i32_0 : i32, i32
  }
  func.func @transform_12(%arg0: i32) -> (i32, i32) {
    %c0_i32 = arith.constant 0 : i32
    %c0_i32_0 = arith.constant 0 : i32
    %c0_i32_1 = arith.constant 0 : i32
    return %c0_i32, %c0_i32_0 : i32, i32
  }
  func.func @transform_13(%arg0: i32) -> (i32, i32) {
    %c0_i32 = arith.constant 0 : i32
    %c0_i32_0 = arith.constant 0 : i32
    %c0_i32_1 = arith.constant 0 : i32
    return %c0_i32, %c0_i32_0 : i32, i32
  }
  func.func @transform_14(%arg0: i32) -> (i32, i32) {
    %c0_i32 = arith.constant 0 : i32
    %c0_i32_0 = arith.constant 0 : i32
    %c0_i32_1 = arith.constant 0 : i32
    return %c0_i32, %c0_i32_0 : i32, i32
  }
  func.func @transform_15(%arg0: i32) -> (i32, i32) {
    %c0_i32 = arith.constant 0 : i32
    %c0_i32_0 = arith.constant 0 : i32
    %c0_i32_1 = arith.constant 0 : i32
    return %c0_i32, %c0_i32_0 : i32, i32
  }
  func.func @transform_16(%arg0: i32) -> (i32, i32) {
    %c0_i32 = arith.constant 0 : i32
    %c0_i32_0 = arith.constant 0 : i32
    %c0_i32_1 = arith.constant 0 : i32
    return %c0_i32, %c0_i32_0 : i32, i32
  }
  func.func @transform_17(%arg0: i32) -> (i32, i32) {
    %c0_i32 = arith.constant 0 : i32
    %c0_i32_0 = arith.constant 0 : i32
    %c0_i32_1 = arith.constant 0 : i32
    return %c0_i32, %c0_i32_0 : i32, i32
  }
  func.func @transform_18(%arg0: i32) -> (i32, i32) {
    %c0_i32 = arith.constant 0 : i32
    %c0_i32_0 = arith.constant 0 : i32
    %c0_i32_1 = arith.constant 0 : i32
    return %c0_i32, %c0_i32_0 : i32, i32
  }
  func.func @transform_19(%arg0: i32) -> (i32, i32) {
    %c0_i32 = arith.constant 0 : i32
    %c0_i32_0 = arith.constant 0 : i32
    %c0_i32_1 = arith.constant 0 : i32
    return %c0_i32, %c0_i32_0 : i32, i32
  }
  func.func @transform_20(%arg0: i32) -> (i32, i32) {
    %c0_i32 = arith.constant 0 : i32
    %c0_i32_0 = arith.constant 0 : i32
    %c0_i32_1 = arith.constant 0 : i32
    return %c0_i32, %c0_i32_0 : i32, i32
  }
  func.func @transform_21(%arg0: i32) -> (i32, i32) {
    %c0_i32 = arith.constant 0 : i32
    %c0_i32_0 = arith.constant 0 : i32
    %c0_i32_1 = arith.constant 0 : i32
    return %c0_i32, %c0_i32_0 : i32, i32
  }
  func.func @transform_22(%arg0: i32) -> (i32, i32) {
    %c0_i32 = arith.constant 0 : i32
    %c0_i32_0 = arith.constant 0 : i32
    %c0_i32_1 = arith.constant 0 : i32
    return %c0_i32, %c0_i32_0 : i32, i32
  }
  func.func @transform_23(%arg0: i32) -> (i32, i32) {
    %c0_i32 = arith.constant 0 : i32
    %c0_i32_0 = arith.constant 0 : i32
    %c0_i32_1 = arith.constant 0 : i32
    return %c0_i32, %c0_i32_0 : i32, i32
  }
  func.func @transform_24(%arg0: i32) -> (i32, i32) {
    %c0_i32 = arith.constant 0 : i32
    %c0_i32_0 = arith.constant 0 : i32
    %c0_i32_1 = arith.constant 0 : i32
    return %c0_i32, %c0_i32_0 : i32, i32
  }
  func.func @transform_25(%arg0: i32) -> (i32, i32) {
    %c0_i32 = arith.constant 0 : i32
    %c0_i32_0 = arith.constant 0 : i32
    %c0_i32_1 = arith.constant 0 : i32
    return %c0_i32, %c0_i32_0 : i32, i32
  }
  func.func @transform_26(%arg0: i32) -> (i32, i32) {
    %c0_i32 = arith.constant 0 : i32
    %c0_i32_0 = arith.constant 0 : i32
    %c0_i32_1 = arith.constant 0 : i32
    return %c0_i32, %c0_i32_0 : i32, i32
  }
  func.func @transform_27(%arg0: i32) -> (i32, i32) {
    %c0_i32 = arith.constant 0 : i32
    %c0_i32_0 = arith.constant 0 : i32
    %c0_i32_1 = arith.constant 0 : i32
    return %c0_i32, %c0_i32_0 : i32, i32
  }
  func.func @transform_28(%arg0: i32) -> (i32, i32) {
    %c0_i32 = arith.constant 0 : i32
    %c0_i32_0 = arith.constant 0 : i32
    %c0_i32_1 = arith.constant 0 : i32
    return %c0_i32, %c0_i32_0 : i32, i32
  }
  func.func @transform_29(%arg0: i32) -> (i32, i32) {
    %c0_i32 = arith.constant 0 : i32
    %c0_i32_0 = arith.constant 0 : i32
    %c0_i32_1 = arith.constant 0 : i32
    return %c0_i32, %c0_i32_0 : i32, i32
  }
  func.func @transform_30(%arg0: i32) -> (i32, i32) {
    %c0_i32 = arith.constant 0 : i32
    %c0_i32_0 = arith.constant 0 : i32
    %c0_i32_1 = arith.constant 0 : i32
    return %c0_i32, %c0_i32_0 : i32, i32
  }
}

</mosaic_0001>

<llo_original>
// kernel: tactile_autoencoder_forward.2
$region0: #{tactile_autoencoder_forward.2}
  #allocation0 [shape = 'u32[]', space=smem, size = 0x4, offset = 0x4, fixed_abs, tag = 'smem constant byte address 0x4 - core index']
  #allocation1 [shape = 'u32[72,128]{1,0:T(1,128)}', space=vmem, size = 0x9000, scoped, tag = 'internal scratch']
  %s0 = inlined_call_operand.vmem [shape: bf16[16,768], index: 0, kind: input, shape index: {}]
  %s1 = inlined_call_operand.vmem [shape: bf16[768,128], index: 1, kind: input, shape index: {}]
  %s2 = inlined_call_operand.vmem [shape: f32[16,128], index: 2, kind: input, shape index: {}]
  %s3 = inlined_call_operand.vmem [shape: bf16[128,384], index: 3, kind: input, shape index: {}]
  %s4 = inlined_call_operand.vmem [shape: f32[1,384], index: 4, kind: input, shape index: {}]
  %s5 = inlined_call_operand.vmem [shape: bf16[128,128], index: 5, kind: input, shape index: {}]
  %s6 = inlined_call_operand.vmem [shape: f32[1,128], index: 6, kind: input, shape index: {}]
  %s7 = inlined_call_operand.vmem [shape: f32[1,128], index: 7, kind: input, shape index: {}]
  %s8 = inlined_call_operand.vmem [shape: f32[1,128], index: 8, kind: input, shape index: {}]
  %s9 = inlined_call_operand.vmem [shape: f32[1,128], index: 9, kind: input, shape index: {}]
  %s10 = inlined_call_operand.vmem [shape: f32[1,128], index: 10, kind: input, shape index: {}]
  %s11 = inlined_call_operand.vmem [shape: bf16[128,512], index: 11, kind: input, shape index: {}]
  %s12 = inlined_call_operand.vmem [shape: f32[1,512], index: 12, kind: input, shape index: {}]
  %s13 = inlined_call_operand.vmem [shape: bf16[512,128], index: 13, kind: input, shape index: {}]
  %s14 = inlined_call_operand.vmem [shape: f32[1,128], index: 14, kind: input, shape index: {}]
  %s15 = inlined_call_operand.vmem [shape: f32[1,128], index: 15, kind: input, shape index: {}]
  %s16 = inlined_call_operand.vmem [shape: f32[1,128], index: 16, kind: input, shape index: {}]
  %s17 = inlined_call_operand.vmem [shape: f32[128,128], index: 17, kind: input, shape index: {}]
  %s18 = inlined_call_operand.vmem [shape: f32[128,16], index: 18, kind: input, shape index: {}]
  %s19 = inlined_call_operand.vmem [shape: f32[8,16], index: 19, kind: input, shape index: {}]
  %s20 = inlined_call_operand.vmem [shape: f32[8,128], index: 20, kind: output, shape index: {}]
  %s21 = sld [smem:[#allocation0]]
  $region90: #{tactile_autoencoder_forward.2} parent=0
    _
  %s23 = ssub.s32 1, %s21
  %s24 = scalar_select 0, %s23, %s21
  // Predicated region
  $region2: #{tactile_autoencoder_forward.2} parent=0 // pred_check
    _
  $region3: #{tactile_autoencoder_forward.2} parent=0 // pred_check_branch
    %26 = sbr.rel (0) target = $region5
  $region4: #{tactile_autoencoder_forward.2} parent=0 // pred_region
    _
  $region5: #{tactile_autoencoder_forward.2} parent=0 // pred_fallthru
    _
  // Predicated region
  $region6: #{tactile_autoencoder_forward.2} parent=0 // pred_check
    _
  $region7: #{tactile_autoencoder_forward.2} parent=0 // pred_check_branch
    %28 = sbr.rel (0) target = $region9
  $region8: #{tactile_autoencoder_forward.2} parent=0 // pred_region
    _
  $region9: #{tactile_autoencoder_forward.2} parent=0 // pred_fallthru
    _
  // Predicated region
  $region10: #{tactile_autoencoder_forward.2} parent=0 // pred_check
    _
  $region11: #{tactile_autoencoder_forward.2} parent=0 // pred_check_branch
    %30 = sbr.rel (0) target = $region13
  $region12: #{tactile_autoencoder_forward.2} parent=0 // pred_region
    _
  $region13: #{tactile_autoencoder_forward.2} parent=0 // pred_fallthru
    _
  // Predicated region
  $region14: #{tactile_autoencoder_forward.2} parent=0 // pred_check
    _
  $region15: #{tactile_autoencoder_forward.2} parent=0 // pred_check_branch
    %32 = sbr.rel (0) target = $region17
  $region16: #{tactile_autoencoder_forward.2} parent=0 // pred_region
    _
  $region17: #{tactile_autoencoder_forward.2} parent=0 // pred_fallthru
    _
  // Predicated region
  $region18: #{tactile_autoencoder_forward.2} parent=0 // pred_check
    _
  $region19: #{tactile_autoencoder_forward.2} parent=0 // pred_check_branch
    %34 = sbr.rel (0) target = $region21
  $region20: #{tactile_autoencoder_forward.2} parent=0 // pred_region
    _
  $region21: #{tactile_autoencoder_forward.2} parent=0 // pred_fallthru
    _
  // Predicated region
  $region22: #{tactile_autoencoder_forward.2} parent=0 // pred_check
    _
  $region23: #{tactile_autoencoder_forward.2} parent=0 // pred_check_branch
    %36 = sbr.rel (0) target = $region25
  $region24: #{tactile_autoencoder_forward.2} parent=0 // pred_region
    _
  $region25: #{tactile_autoencoder_forward.2} parent=0 // pred_fallthru
    _
  // Predicated region
  $region26: #{tactile_autoencoder_forward.2} parent=0 // pred_check
    _
  $region27: #{tactile_autoencoder_forward.2} parent=0 // pred_check_branch
    %38 = sbr.rel (0) target = $region29
  $region28: #{tactile_autoencoder_forward.2} parent=0 // pred_region
    _
  $region29: #{tactile_autoencoder_forward.2} parent=0 // pred_fallthru
    _
  // Predicated region
  $region30: #{tactile_autoencoder_forward.2} parent=0 // pred_check
    _
  $region31: #{tactile_autoencoder_forward.2} parent=0 // pred_check_branch
    %40 = sbr.rel (0) target = $region33
  $region32: #{tactile_autoencoder_forward.2} parent=0 // pred_region
    _
  $region33: #{tactile_autoencoder_forward.2} parent=0 // pred_fallthru
    _
  // Predicated region
  $region34: #{tactile_autoencoder_forward.2} parent=0 // pred_check
    _
  $region35: #{tactile_autoencoder_forward.2} parent=0 // pred_check_branch
    %42 = sbr.rel (0) target = $region37
  $region36: #{tactile_autoencoder_forward.2} parent=0 // pred_region
    _
  $region37: #{tactile_autoencoder_forward.2} parent=0 // pred_fallthru
    _
  // Predicated region
  $region38: #{tactile_autoencoder_forward.2} parent=0 // pred_check
    _
  $region39: #{tactile_autoencoder_forward.2} parent=0 // pred_check_branch
    %44 = sbr.rel (0) target = $region41
  $region40: #{tactile_autoencoder_forward.2} parent=0 // pred_region
    _
  $region41: #{tactile_autoencoder_forward.2} parent=0 // pred_fallthru
    _
  // Predicated region
  $region42: #{tactile_autoencoder_forward.2} parent=0 // pred_check
    _
  $region43: #{tactile_autoencoder_forward.2} parent=0 // pred_check_branch
    %46 = sbr.rel (0) target = $region45
  $region44: #{tactile_autoencoder_forward.2} parent=0 // pred_region
    _
  $region45: #{tactile_autoencoder_forward.2} parent=0 // pred_fallthru
    _
  // Predicated region
  $region46: #{tactile_autoencoder_forward.2} parent=0 // pred_check
    _
  $region47: #{tactile_autoencoder_forward.2} parent=0 // pred_check_branch
    %48 = sbr.rel (0) target = $region49
  $region48: #{tactile_autoencoder_forward.2} parent=0 // pred_region
    _
  $region49: #{tactile_autoencoder_forward.2} parent=0 // pred_fallthru
    _
  // Predicated region
  $region50: #{tactile_autoencoder_forward.2} parent=0 // pred_check
    _
  $region51: #{tactile_autoencoder_forward.2} parent=0 // pred_check_branch
    %50 = sbr.rel (0) target = $region53
  $region52: #{tactile_autoencoder_forward.2} parent=0 // pred_region
    _
  $region53: #{tactile_autoencoder_forward.2} parent=0 // pred_fallthru
    _
  // Predicated region
  $region54: #{tactile_autoencoder_forward.2} parent=0 // pred_check
    _
  $region55: #{tactile_autoencoder_forward.2} parent=0 // pred_check_branch
    %52 = sbr.rel (0) target = $region57
  $region56: #{tactile_autoencoder_forward.2} parent=0 // pred_region
    _
  $region57: #{tactile_autoencoder_forward.2} parent=0 // pred_fallthru
    _
  // Predicated region
  $region58: #{tactile_autoencoder_forward.2} parent=0 // pred_check
    _
  $region59: #{tactile_autoencoder_forward.2} parent=0 // pred_check_branch
    %54 = sbr.rel (0) target = $region61
  $region60: #{tactile_autoencoder_forward.2} parent=0 // pred_region
    _
  $region61: #{tactile_autoencoder_forward.2} parent=0 // pred_fallthru
    _
  // Predicated region
  $region62: #{tactile_autoencoder_forward.2} parent=0 // pred_check
    _
  $region63: #{tactile_autoencoder_forward.2} parent=0 // pred_check_branch
    %56 = sbr.rel (0) target = $region65
  $region64: #{tactile_autoencoder_forward.2} parent=0 // pred_region
    _
  $region65: #{tactile_autoencoder_forward.2} parent=0 // pred_fallthru
    _
  // Predicated region
  $region66: #{tactile_autoencoder_forward.2} parent=0 // pred_check
    _
  $region67: #{tactile_autoencoder_forward.2} parent=0 // pred_check_branch
    %58 = sbr.rel (0) target = $region69
  $region68: #{tactile_autoencoder_forward.2} parent=0 // pred_region
    _
  $region69: #{tactile_autoencoder_forward.2} parent=0 // pred_fallthru
    _
  // Predicated region
  $region70: #{tactile_autoencoder_forward.2} parent=0 // pred_check
    _
  $region71: #{tactile_autoencoder_forward.2} parent=0 // pred_check_branch
    %60 = sbr.rel (0) target = $region73
  $region72: #{tactile_autoencoder_forward.2} parent=0 // pred_region
    _
  $region73: #{tactile_autoencoder_forward.2} parent=0 // pred_fallthru
    _
  // Predicated region
  $region74: #{tactile_autoencoder_forward.2} parent=0 // pred_check
    _
  $region75: #{tactile_autoencoder_forward.2} parent=0 // pred_check_branch
    %62 = sbr.rel (0) target = $region77
  $region76: #{tactile_autoencoder_forward.2} parent=0 // pred_region
    _
  $region77: #{tactile_autoencoder_forward.2} parent=0 // pred_fallthru
    _
  // Predicated region
  $region78: #{tactile_autoencoder_forward.2} parent=0 // pred_check
    _
  $region79: #{tactile_autoencoder_forward.2} parent=0 // pred_check_branch
    %64 = sbr.rel (0) target = $region81
  $region80: #{tactile_autoencoder_forward.2} parent=0 // pred_region
    _
  $region81: #{tactile_autoencoder_forward.2} parent=0 // pred_fallthru
    _
  %v66 = vld [vmem:[%s0] sm:$0xff]
  %v67 = vld [vmem:[%s0 + $0x8] sm:$0xff]
  %v68 = vld [vmem:[%s0 + $0x10] sm:$0xff]
  %v69 = vld [vmem:[%s0 + $0x18] sm:$0xff]
  %v70 = vld [vmem:[%s0 + $0x20] sm:$0xff]
  %v71 = vld [vmem:[%s0 + $0x28] sm:$0xff]
  %v72 = vld [vmem:[%s1] sm:$0xf]
  %v73 = vld [vmem:[%s1 + $0x4] sm:$0xf]
  %v74 = vld [vmem:[%s1 + $0x8] sm:$0xf]
  %v75 = vld [vmem:[%s1 + $0xc] sm:$0xf]
  %v76 = vld [vmem:[%s1 + $0x10] sm:$0xf]
  %v77 = vld [vmem:[%s1 + $0x14] sm:$0xf]
  %v78 = vld [vmem:[%s1 + $0x18] sm:$0xf]
  %v79 = vld [vmem:[%s1 + $0x1c] sm:$0xf]
  %v80 = vld [vmem:[%s1 + $0x20] sm:$0xf]
  %v81 = vld [vmem:[%s1 + $0x24] sm:$0xf]
  %v82 = vld [vmem:[%s1 + $0x28] sm:$0xf]
  %v83 = vld [vmem:[%s1 + $0x2c] sm:$0xf]
  %v84 = vld [vmem:[%s1 + $0x30] sm:$0xf]
  %v85 = vld [vmem:[%s1 + $0x34] sm:$0xf]
  %v86 = vld [vmem:[%s1 + $0x38] sm:$0xf]
  %v87 = vld [vmem:[%s1 + $0x3c] sm:$0xf]
  %v88 = vld [vmem:[%s1 + $0x40] sm:$0xf]
  %v89 = vld [vmem:[%s1 + $0x44] sm:$0xf]
  %v90 = vld [vmem:[%s1 + $0x48] sm:$0xf]
  %v91 = vld [vmem:[%s1 + $0x4c] sm:$0xf]
  %v92 = vld [vmem:[%s1 + $0x50] sm:$0xf]
  %v93 = vld [vmem:[%s1 + $0x54] sm:$0xf]
  %v94 = vld [vmem:[%s1 + $0x58] sm:$0xf]
  %v95 = vld [vmem:[%s1 + $0x5c] sm:$0xf]
  %v96 = vld [vmem:[%s1 + $0x60] sm:$0xf]
  %v97 = vld [vmem:[%s1 + $0x64] sm:$0xf]
  %v98 = vld [vmem:[%s1 + $0x68] sm:$0xf]
  %v99 = vld [vmem:[%s1 + $0x6c] sm:$0xf]
  %v100 = vld [vmem:[%s1 + $0x70] sm:$0xf]
  %v101 = vld [vmem:[%s1 + $0x74] sm:$0xf]
  %v102 = vld [vmem:[%s1 + $0x78] sm:$0xf]
  %v103 = vld [vmem:[%s1 + $0x7c] sm:$0xf]
  %v104 = vld [vmem:[%s1 + $0x80] sm:$0xf]
  %v105 = vld [vmem:[%s1 + $0x84] sm:$0xf]
  %v106 = vld [vmem:[%s1 + $0x88] sm:$0xf]
  %v107 = vld [vmem:[%s1 + $0x8c] sm:$0xf]
  %v108 = vld [vmem:[%s1 + $0x90] sm:$0xf]
  %v109 = vld [vmem:[%s1 + $0x94] sm:$0xf]
  %v110 = vld [vmem:[%s1 + $0x98] sm:$0xf]
  %v111 = vld [vmem:[%s1 + $0x9c] sm:$0xf]
  %v112 = vld [vmem:[%s1 + $0xa0] sm:$0xf]
  %v113 = vld [vmem:[%s1 + $0xa4] sm:$0xf]
  %v114 = vld [vmem:[%s1 + $0xa8] sm:$0xf]
  %v115 = vld [vmem:[%s1 + $0xac] sm:$0xf]
  %v116 = vld [vmem:[%s1 + $0xb0] sm:$0xf]
  %v117 = vld [vmem:[%s1 + $0xb4] sm:$0xf]
  %v118 = vld [vmem:[%s1 + $0xb8] sm:$0xf]
  %v119 = vld [vmem:[%s1 + $0xbc] sm:$0xf]
  %v120 = vld [vmem:[%s1 + $0xc0] sm:$0xf]
  %v121 = vld [vmem:[%s1 + $0xc4] sm:$0xf]
  %v122 = vld [vmem:[%s1 + $0xc8] sm:$0xf]
  %v123 = vld [vmem:[%s1 + $0xcc] sm:$0xf]
  %v124 = vld [vmem:[%s1 + $0xd0] sm:$0xf]
  %v125 = vld [vmem:[%s1 + $0xd4] sm:$0xf]
  %v126 = vld [vmem:[%s1 + $0xd8] sm:$0xf]
  %v127 = vld [vmem:[%s1 + $0xdc] sm:$0xf]
  %v128 = vld [vmem:[%s1 + $0xe0] sm:$0xf]
  %v129 = vld [vmem:[%s1 + $0xe4] sm:$0xf]
  %v130 = vld [vmem:[%s1 + $0xe8] sm:$0xf]
  %v131 = vld [vmem:[%s1 + $0xec] sm:$0xf]
  %v132 = vld [vmem:[%s1 + $0xf0] sm:$0xf]
  %v133 = vld [vmem:[%s1 + $0xf4] sm:$0xf]
  %v134 = vld [vmem:[%s1 + $0xf8] sm:$0xf]
  %v135 = vld [vmem:[%s1 + $0xfc] sm:$0xf]
  %v136 = vld [vmem:[%s1 + $0x100] sm:$0xf]
  %v137 = vld [vmem:[%s1 + $0x104] sm:$0xf]
  %v138 = vld [vmem:[%s1 + $0x108] sm:$0xf]
  %v139 = vld [vmem:[%s1 + $0x10c] sm:$0xf]
  %v140 = vld [vmem:[%s1 + $0x110] sm:$0xf]
  %v141 = vld [vmem:[%s1 + $0x114] sm:$0xf]
  %v142 = vld [vmem:[%s1 + $0x118] sm:$0xf]
  %v143 = vld [vmem:[%s1 + $0x11c] sm:$0xf]
  %v144 = vld [vmem:[%s1 + $0x120] sm:$0xf]
  %v145 = vld [vmem:[%s1 + $0x124] sm:$0xf]
  %v146 = vld [vmem:[%s1 + $0x128] sm:$0xf]
  %v147 = vld [vmem:[%s1 + $0x12c] sm:$0xf]
  %v148 = vld [vmem:[%s1 + $0x130] sm:$0xf]
  %v149 = vld [vmem:[%s1 + $0x134] sm:$0xf]
  %v150 = vld [vmem:[%s1 + $0x138] sm:$0xf]
  %v151 = vld [vmem:[%s1 + $0x13c] sm:$0xf]
  %v152 = vld [vmem:[%s1 + $0x140] sm:$0xf]
  %v153 = vld [vmem:[%s1 + $0x144] sm:$0xf]
  %v154 = vld [vmem:[%s1 + $0x148] sm:$0xf]
  %v155 = vld [vmem:[%s1 + $0x14c] sm:$0xf]
  %v156 = vld [vmem:[%s1 + $0x150] sm:$0xf]
  %v157 = vld [vmem:[%s1 + $0x154] sm:$0xf]
  %v158 = vld [vmem:[%s1 + $0x158] sm:$0xf]
  %v159 = vld [vmem:[%s1 + $0x15c] sm:$0xf]
  %v160 = vld [vmem:[%s1 + $0x160] sm:$0xf]
  %v161 = vld [vmem:[%s1 + $0x164] sm:$0xf]
  %v162 = vld [vmem:[%s1 + $0x168] sm:$0xf]
  %v163 = vld [vmem:[%s1 + $0x16c] sm:$0xf]
  %v164 = vld [vmem:[%s1 + $0x170] sm:$0xf]
  %v165 = vld [vmem:[%s1 + $0x174] sm:$0xf]
  %v166 = vld [vmem:[%s1 + $0x178] sm:$0xf]
  %v167 = vld [vmem:[%s1 + $0x17c] sm:$0xf]
  %v168 = vld [vmem:[%s2] sm:$0xff]
  %v169 = vld [vmem:[%s2 + $0x8] sm:$0xff]
  %v176 = vunpack.c.l.b16 %v66
  %v177 = vunpack.c.h.b16 %v66
  %v178 = vunpack.c.l.b16 %v67
  %v179 = vunpack.c.h.b16 %v67
  %v180 = vunpack.c.l.b16 %v68
  %v181 = vunpack.c.h.b16 %v68
  %v182 = vunpack.c.l.b16 %v69
  %v183 = vunpack.c.h.b16 %v69
  %v184 = vunpack.c.l.b16 %v70
  %v185 = vunpack.c.h.b16 %v70
  %v186 = vunpack.c.l.b16 %v71
  %v187 = vunpack.c.h.b16 %v71
  %v188 = vpack.c.b16 %v182, %v176
  %v189 = vpack.c.b16 %v183, %v177
  %v190 = vpack.c.b16 %v184, %v178
  %v191 = vpack.c.b16 %v185, %v179
  %v192 = vpack.c.b16 %v186, %v180
  %v193 = vpack.c.b16 %v187, %v181
  %v296 = vunpack.c.l.b16 %v72
  %v297 = vunpack.c.l.b16 %v73
  %v298 = vunpack.c.l.b16 %v74
  %v299 = vunpack.c.l.b16 %v75
  %v300 = vunpack.c.l.b16 %v76
  %v301 = vunpack.c.l.b16 %v77
  %v302 = vunpack.c.l.b16 %v78
  %v303 = vunpack.c.l.b16 %v79
  %v304 = vunpack.c.l.b16 %v80
  %v305 = vunpack.c.l.b16 %v81
  %v306 = vunpack.c.l.b16 %v82
  %v307 = vunpack.c.l.b16 %v83
  %v308 = vunpack.c.l.b16 %v84
  %v309 = vunpack.c.l.b16 %v85
  %v310 = vunpack.c.l.b16 %v86
  %v311 = vunpack.c.l.b16 %v87
  %v312 = vunpack.c.l.b16 %v88
  %v313 = vunpack.c.l.b16 %v89
  %v314 = vunpack.c.l.b16 %v90
  %v315 = vunpack.c.l.b16 %v91
  %v316 = vunpack.c.l.b16 %v92
  %v317 = vunpack.c.l.b16 %v93
  %v318 = vunpack.c.l.b16 %v94
  %v319 = vunpack.c.l.b16 %v95
  %v320 = vunpack.c.l.b16 %v96
  %v321 = vunpack.c.l.b16 %v97
  %v322 = vunpack.c.l.b16 %v98
  %v323 = vunpack.c.l.b16 %v99
  %v324 = vunpack.c.l.b16 %v100
  %v325 = vunpack.c.l.b16 %v101
  %v326 = vunpack.c.l.b16 %v102
  %v327 = vunpack.c.l.b16 %v103
  %v328 = vunpack.c.l.b16 %v104
  %v329 = vunpack.c.l.b16 %v105
  %v330 = vunpack.c.l.b16 %v106
  %v331 = vunpack.c.l.b16 %v107
  %v332 = vunpack.c.l.b16 %v108
  %v333 = vunpack.c.l.b16 %v109
  %v334 = vunpack.c.l.b16 %v110
  %v335 = vunpack.c.l.b16 %v111
  %v336 = vunpack.c.l.b16 %v112
  %v337 = vunpack.c.l.b16 %v113
  %v338 = vunpack.c.l.b16 %v114
  %v339 = vunpack.c.l.b16 %v115
  %v340 = vunpack.c.l.b16 %v116
  %v341 = vunpack.c.l.b16 %v117
  %v342 = vunpack.c.l.b16 %v118
  %v343 = vunpack.c.l.b16 %v119
  %v344 = vunpack.c.l.b16 %v120
  %v345 = vunpack.c.l.b16 %v121
  %v346 = vunpack.c.l.b16 %v122
  %v347 = vunpack.c.l.b16 %v123
  %v348 = vunpack.c.l.b16 %v124
  %v349 = vunpack.c.l.b16 %v125
  %v350 = vunpack.c.l.b16 %v126
  %v351 = vunpack.c.l.b16 %v127
  %v352 = vunpack.c.l.b16 %v128
  %v353 = vunpack.c.l.b16 %v129
  %v354 = vunpack.c.l.b16 %v130
  %v355 = vunpack.c.l.b16 %v131
  %v356 = vunpack.c.l.b16 %v132
  %v357 = vunpack.c.l.b16 %v133
  %v358 = vunpack.c.l.b16 %v134
  %v359 = vunpack.c.l.b16 %v135
  %v360 = vunpack.c.l.b16 %v136
  %v361 = vunpack.c.l.b16 %v137
  %v362 = vunpack.c.l.b16 %v138
  %v363 = vunpack.c.l.b16 %v139
  %v364 = vunpack.c.l.b16 %v140
  %v365 = vunpack.c.l.b16 %v141
  %v366 = vunpack.c.l.b16 %v142
  %v367 = vunpack.c.l.b16 %v143
  %v368 = vunpack.c.l.b16 %v144
  %v369 = vunpack.c.l.b16 %v145
  %v370 = vunpack.c.l.b16 %v146
  %v371 = vunpack.c.l.b16 %v147
  %v372 = vunpack.c.l.b16 %v148
  %v373 = vunpack.c.l.b16 %v149
  %v374 = vunpack.c.l.b16 %v150
  %v375 = vunpack.c.l.b16 %v151
  %v376 = vunpack.c.l.b16 %v152
  %v377 = vunpack.c.l.b16 %v153
  %v378 = vunpack.c.l.b16 %v154
  %v379 = vunpack.c.l.b16 %v155
  %v380 = vunpack.c.l.b16 %v156
  %v381 = vunpack.c.l.b16 %v157
  %v382 = vunpack.c.l.b16 %v158
  %v383 = vunpack.c.l.b16 %v159
  %v384 = vunpack.c.l.b16 %v160
  %v385 = vunpack.c.l.b16 %v161
  %v386 = vunpack.c.l.b16 %v162
  %v387 = vunpack.c.l.b16 %v163
  %v388 = vunpack.c.l.b16 %v164
  %v389 = vunpack.c.l.b16 %v165
  %v390 = vunpack.c.l.b16 %v166
  %v391 = vunpack.c.l.b16 %v167
  %v392 = vpack.c.b16 %v297, %v296
  %v393 = vpack.c.b16 %v299, %v298
  %v394 = vpack.c.b16 %v301, %v300
  %v395 = vpack.c.b16 %v303, %v302
  %v396 = vpack.c.b16 %v305, %v304
  %v397 = vpack.c.b16 %v307, %v306
  %v398 = vpack.c.b16 %v309, %v308
  %v399 = vpack.c.b16 %v311, %v310
  %v400 = vpack.c.b16 %v313, %v312
  %v401 = vpack.c.b16 %v315, %v314
  %v402 = vpack.c.b16 %v317, %v316
  %v403 = vpack.c.b16 %v319, %v318
  %v404 = vpack.c.b16 %v321, %v320
  %v405 = vpack.c.b16 %v323, %v322
  %v406 = vpack.c.b16 %v325, %v324
  %v407 = vpack.c.b16 %v327, %v326
  %v408 = vpack.c.b16 %v329, %v328
  %v409 = vpack.c.b16 %v331, %v330
  %v410 = vpack.c.b16 %v333, %v332
  %v411 = vpack.c.b16 %v335, %v334
  %v412 = vpack.c.b16 %v337, %v336
  %v413 = vpack.c.b16 %v339, %v338
  %v414 = vpack.c.b16 %v341, %v340
  %v415 = vpack.c.b16 %v343, %v342
  %v416 = vpack.c.b16 %v345, %v344
  %v417 = vpack.c.b16 %v347, %v346
  %v418 = vpack.c.b16 %v349, %v348
  %v419 = vpack.c.b16 %v351, %v350
  %v420 = vpack.c.b16 %v353, %v352
  %v421 = vpack.c.b16 %v355, %v354
  %v422 = vpack.c.b16 %v357, %v356
  %v423 = vpack.c.b16 %v359, %v358
  %v424 = vpack.c.b16 %v361, %v360
  %v425 = vpack.c.b16 %v363, %v362
  %v426 = vpack.c.b16 %v365, %v364
  %v427 = vpack.c.b16 %v367, %v366
  %v428 = vpack.c.b16 %v369, %v368
  %v429 = vpack.c.b16 %v371, %v370
  %v430 = vpack.c.b16 %v373, %v372
  %v431 = vpack.c.b16 %v375, %v374
  %v432 = vpack.c.b16 %v377, %v376
  %v433 = vpack.c.b16 %v379, %v378
  %v434 = vpack.c.b16 %v381, %v380
  %v435 = vpack.c.b16 %v383, %v382
  %v436 = vpack.c.b16 %v385, %v384
  %v437 = vpack.c.b16 %v387, %v386
  %v438 = vpack.c.b16 %v389, %v388
  %v439 = vpack.c.b16 %v391, %v390
  %488 = vmatpush.bf16.msra.mxu0 %v399
  %489 = vmatpush.bf16.msra.mxu0 %v398
  %490 = vmatpush.bf16.msra.mxu0 %v397
  %491 = vmatpush.bf16.msra.mxu0 %v396
  %492 = vmatpush.bf16.msra.mxu0 %v395
  %493 = vmatpush.bf16.msra.mxu0 %v394
  %494 = vmatpush.bf16.msra.mxu0 %v393
  %495 = vmatpush.bf16.msra.mxu0 %v392
  %496 = vmatmul.bf16.gmra.mxu0 %v188
  %v497 = vpop.f32.mrf.mxu0
  %v498 = vadd.f32 %v168, %v497
  %v499 = vpop.f32.mrf.mxu0
  %v500 = vadd.f32 %v169, %v499
  %501 = vdwg.mxu0
  %502 = vmatpush.bf16.msra.mxu0 %v407
  %503 = vmatpush.bf16.msra.mxu0 %v406
  %504 = vmatpush.bf16.msra.mxu0 %v405
  %505 = vmatpush.bf16.msra.mxu0 %v404
  %506 = vmatpush.bf16.msra.mxu0 %v403
  %507 = vmatpush.bf16.msra.mxu0 %v402
  %508 = vmatpush.bf16.msra.mxu0 %v401
  %509 = vmatpush.bf16.msra.mxu0 %v400
  %510 = vmatmul.bf16.gmra.mxu0 %v189
  %v511 = vpop.f32.mrf.mxu0
  %v512 = vadd.f32 %v498, %v511
  %v513 = vpop.f32.mrf.mxu0
  %v514 = vadd.f32 %v500, %v513
  %515 = vdwg.mxu0
  %516 = vmatpush.bf16.msra.mxu0 %v415
  %517 = vmatpush.bf16.msra.mxu0 %v414
  %518 = vmatpush.bf16.msra.mxu0 %v413
  %519 = vmatpush.bf16.msra.mxu0 %v412
  %520 = vmatpush.bf16.msra.mxu0 %v411
  %521 = vmatpush.bf16.msra.mxu0 %v410
  %522 = vmatpush.bf16.msra.mxu0 %v409
  %523 = vmatpush.bf16.msra.mxu0 %v408
  %524 = vmatmul.bf16.gmra.mxu0 %v190
  %v525 = vpop.f32.mrf.mxu0
  %v526 = vadd.f32 %v512, %v525
  %v527 = vpop.f32.mrf.mxu0
  %v528 = vadd.f32 %v514, %v527
  %529 = vdwg.mxu0
  %530 = vmatpush.bf16.msra.mxu0 %v423
  %531 = vmatpush.bf16.msra.mxu0 %v422
  %532 = vmatpush.bf16.msra.mxu0 %v421
  %533 = vmatpush.bf16.msra.mxu0 %v420
  %534 = vmatpush.bf16.msra.mxu0 %v419
  %535 = vmatpush.bf16.msra.mxu0 %v418
  %536 = vmatpush.bf16.msra.mxu0 %v417
  %537 = vmatpush.bf16.msra.mxu0 %v416
  %538 = vmatmul.bf16.gmra.mxu0 %v191
  %v539 = vpop.f32.mrf.mxu0
  %v540 = vadd.f32 %v526, %v539
  %v541 = vpop.f32.mrf.mxu0
  %v542 = vadd.f32 %v528, %v541
  %543 = vdwg.mxu0
  %544 = vmatpush.bf16.msra.mxu0 %v431
  %545 = vmatpush.bf16.msra.mxu0 %v430
  %546 = vmatpush.bf16.msra.mxu0 %v429
  %547 = vmatpush.bf16.msra.mxu0 %v428
  %548 = vmatpush.bf16.msra.mxu0 %v427
  %549 = vmatpush.bf16.msra.mxu0 %v426
  %550 = vmatpush.bf16.msra.mxu0 %v425
  %551 = vmatpush.bf16.msra.mxu0 %v424
  %552 = vmatmul.bf16.gmra.mxu0 %v192
  %v553 = vpop.f32.mrf.mxu0
  %v554 = vadd.f32 %v540, %v553
  %v555 = vpop.f32.mrf.mxu0
  %v556 = vadd.f32 %v542, %v555
  %557 = vdwg.mxu0
  %558 = vmatpush.bf16.msra.mxu0 %v439
  %559 = vmatpush.bf16.msra.mxu0 %v438
  %560 = vmatpush.bf16.msra.mxu0 %v437
  %561 = vmatpush.bf16.msra.mxu0 %v436
  %562 = vmatpush.bf16.msra.mxu0 %v435
  %563 = vmatpush.bf16.msra.mxu0 %v434
  %564 = vmatpush.bf16.msra.mxu0 %v433
  %565 = vmatpush.bf16.msra.mxu0 %v432
  %566 = vmatmul.bf16.gmra.mxu0 %v193
  %v567 = vpop.f32.mrf.mxu0
  %v568 = vadd.f32 %v554, %v567
  %v569 = vpop.f32.mrf.mxu0
  %v570 = vadd.f32 %v556, %v569
  %571 = vdwg.mxu0
  %v572 = vld [vmem:[%s7] sm:$0x1]
  %v573 = vld [vmem:[%s8] sm:$0x1]
  %574 = vadd.xlane.f32.xlu0 %v568
  %v575 = vpop.xlane.xlu0 %574
  %576 = vadd.xlane.f32.xlu0 %v570
  %v577 = vpop.xlane.xlu0 %576
  %v578 = vrcp.pop 128.0
  %v579 = vmul.f32 128.0, %v578
  %v580 = vsub.f32 1.0, %v579
  %v581 = vmul.f32 %v578, %v580
  %v582 = vadd.f32 %v578, %v581
  %vm583 = vweird.f32 %v578
  %v584 = vsel %vm583, %v578, %v582
  %v585 = vmul.f32 %v575, %v584
  %v586 = vmul.f32 %v577, %v584
  %v587 = vsub.f32 %v568, %v585
  %v588 = vsub.f32 %v570, %v586
  %v589 = vmul.f32 %v587, %v587
  %v590 = vmul.f32 %v588, %v588
  %591 = vadd.xlane.f32.xlu0 %v589
  %v592 = vpop.xlane.xlu0 %591
  %593 = vadd.xlane.f32.xlu0 %v590
  %v594 = vpop.xlane.xlu0 %593
  %v595 = vmul.f32 %v592, %v584
  %v596 = vmul.f32 %v594, %v584
  %v597 = vadd.f32 %v595, 1e-06
  %v598 = vadd.f32 %v596, 1e-06
  %v599 = vrsqrt.pop %v597
  %v600 = vmul.f32 %v599, %v597
  %v601 = vmul.f32 %v600, %v599
  %v602 = vmul.f32 0.5, %v601
  %v603 = vsub.f32 1.5, %v602
  %v604 = vmul.f32 %v599, %v603
  %vm605 = vweird.f32 %v597
  %vm606 = vweird.f32 %v599
  %vm607 = vmor %vm605, %vm606
  %v608 = vsel %vm607, %v599, %v604
  %v609 = vrsqrt.pop %v598
  %v610 = vmul.f32 %v609, %v598
  %v611 = vmul.f32 %v610, %v609
  %v612 = vmul.f32 0.5, %v611
  %v613 = vsub.f32 1.5, %v612
  %v614 = vmul.f32 %v609, %v613
  %vm615 = vweird.f32 %v598
  %vm616 = vweird.f32 %v609
  %vm617 = vmor %vm615, %vm616
  %v618 = vsel %vm617, %v609, %v614
  %v619 = vmul.f32 %v587, %v608
  %v620 = vmul.f32 %v588, %v618
  %v622 = vperm.slane %v572, 0
  %v624 = vmul.f32 %v619, %v622
  %v625 = vmul.f32 %v620, %v622
  %v627 = vperm.slane %v573, 0
  %v629 = vadd.f32 %v624, %v627
  %v630 = vadd.f32 %v625, %v627
  %v631 = vpack.c.bf16 %v630, %v629
  %v632 = vld [vmem:[%s3] sm:$0xff]
  %v633 = vld [vmem:[%s3 + $0x8] sm:$0xf]
  %v634 = vld [vmem:[%s3 + $0xc] sm:$0xff]
  %v635 = vld [vmem:[%s3 + $0x14] sm:$0xf]
  %v636 = vld [vmem:[%s3 + $0x18] sm:$0xff]
  %v637 = vld [vmem:[%s3 + $0x20] sm:$0xf]
  %v638 = vld [vmem:[%s3 + $0x24] sm:$0xff]
  %v639 = vld [vmem:[%s3 + $0x2c] sm:$0xf]
  %v640 = vld [vmem:[%s3 + $0x30] sm:$0xff]
  %v641 = vld [vmem:[%s3 + $0x38] sm:$0xf]
  %v642 = vld [vmem:[%s3 + $0x3c] sm:$0xff]
  %v643 = vld [vmem:[%s3 + $0x44] sm:$0xf]
  %v644 = vld [vmem:[%s3 + $0x48] sm:$0xff]
  %v645 = vld [vmem:[%s3 + $0x50] sm:$0xf]
  %v646 = vld [vmem:[%s3 + $0x54] sm:$0xff]
  %v647 = vld [vmem:[%s3 + $0x5c] sm:$0xf]
  %v648 = vld [vmem:[%s3 + $0x60] sm:$0xff]
  %v649 = vld [vmem:[%s3 + $0x68] sm:$0xf]
  %v650 = vld [vmem:[%s3 + $0x6c] sm:$0xff]
  %v651 = vld [vmem:[%s3 + $0x74] sm:$0xf]
  %v652 = vld [vmem:[%s3 + $0x78] sm:$0xff]
  %v653 = vld [vmem:[%s3 + $0x80] sm:$0xf]
  %v654 = vld [vmem:[%s3 + $0x84] sm:$0xff]
  %v655 = vld [vmem:[%s3 + $0x8c] sm:$0xf]
  %v656 = vld [vmem:[%s3 + $0x90] sm:$0xff]
  %v657 = vld [vmem:[%s3 + $0x98] sm:$0xf]
  %v658 = vld [vmem:[%s3 + $0x9c] sm:$0xff]
  %v659 = vld [vmem:[%s3 + $0xa4] sm:$0xf]
  %v660 = vld [vmem:[%s3 + $0xa8] sm:$0xff]
  %v661 = vld [vmem:[%s3 + $0xb0] sm:$0xf]
  %v662 = vld [vmem:[%s3 + $0xb4] sm:$0xff]
  %v663 = vld [vmem:[%s3 + $0xbc] sm:$0xf]
  %v664 = vld [vmem:[%s4] sm:$0x7]
  %v666 = vperm.slane %v664, 0
  %v667 = vperm.slane %v664, 1
  %v668 = vperm.slane %v664, 2
  %v704 = vunpack.c.l.b16 %v632
  %v705 = vunpack.c.h.b16 %v632
  %v706 = vunpack.c.l.b16 %v633
  %v707 = vunpack.c.l.b16 %v634
  %v708 = vunpack.c.h.b16 %v634
  %v709 = vunpack.c.l.b16 %v635
  %v710 = vunpack.c.l.b16 %v636
  %v711 = vunpack.c.h.b16 %v636
  %v712 = vunpack.c.l.b16 %v637
  %v713 = vunpack.c.l.b16 %v638
  %v714 = vunpack.c.h.b16 %v638
  %v715 = vunpack.c.l.b16 %v639
  %v716 = vunpack.c.l.b16 %v640
  %v717 = vunpack.c.h.b16 %v640
  %v718 = vunpack.c.l.b16 %v641
  %v719 = vunpack.c.l.b16 %v642
  %v720 = vunpack.c.h.b16 %v642
  %v721 = vunpack.c.l.b16 %v643
  %v722 = vunpack.c.l.b16 %v644
  %v723 = vunpack.c.h.b16 %v644
  %v724 = vunpack.c.l.b16 %v645
  %v725 = vunpack.c.l.b16 %v646
  %v726 = vunpack.c.h.b16 %v646
  %v727 = vunpack.c.l.b16 %v647
  %v728 = vunpack.c.l.b16 %v648
  %v729 = vunpack.c.h.b16 %v648
  %v730 = vunpack.c.l.b16 %v649
  %v731 = vunpack.c.l.b16 %v650
  %v732 = vunpack.c.h.b16 %v650
  %v733 = vunpack.c.l.b16 %v651
  %v734 = vunpack.c.l.b16 %v652
  %v735 = vunpack.c.h.b16 %v652
  %v736 = vunpack.c.l.b16 %v653
  %v737 = vunpack.c.l.b16 %v654
  %v738 = vunpack.c.h.b16 %v654
  %v739 = vunpack.c.l.b16 %v655
  %v740 = vunpack.c.l.b16 %v656
  %v741 = vunpack.c.h.b16 %v656
  %v742 = vunpack.c.l.b16 %v657
  %v743 = vunpack.c.l.b16 %v658
  %v744 = vunpack.c.h.b16 %v658
  %v745 = vunpack.c.l.b16 %v659
  %v746 = vunpack.c.l.b16 %v660
  %v747 = vunpack.c.h.b16 %v660
  %v748 = vunpack.c.l.b16 %v661
  %v749 = vunpack.c.l.b16 %v662
  %v750 = vunpack.c.h.b16 %v662
  %v751 = vunpack.c.l.b16 %v663
  %v752 = vpack.c.b16 %v707, %v704
  %v753 = vpack.c.b16 %v708, %v705
  %v754 = vpack.c.b16 %v709, %v706
  %v755 = vpack.c.b16 %v713, %v710
  %v756 = vpack.c.b16 %v714, %v711
  %v757 = vpack.c.b16 %v715, %v712
  %v758 = vpack.c.b16 %v719, %v716
  %v759 = vpack.c.b16 %v720, %v717
  %v760 = vpack.c.b16 %v721, %v718
  %v761 = vpack.c.b16 %v725, %v722
  %v762 = vpack.c.b16 %v726, %v723
  %v763 = vpack.c.b16 %v727, %v724
  %v764 = vpack.c.b16 %v731, %v728
  %v765 = vpack.c.b16 %v732, %v729
  %v766 = vpack.c.b16 %v733, %v730
  %v767 = vpack.c.b16 %v737, %v734
  %v768 = vpack.c.b16 %v738, %v735
  %v769 = vpack.c.b16 %v739, %v736
  %v770 = vpack.c.b16 %v743, %v740
  %v771 = vpack.c.b16 %v744, %v741
  %v772 = vpack.c.b16 %v745, %v742
  %v773 = vpack.c.b16 %v749, %v746
  %v774 = vpack.c.b16 %v750, %v747
  %v775 = vpack.c.b16 %v751, %v748
  %800 = vmatpush.bf16.msra.mxu0 %v773
  %801 = vmatpush.bf16.msra.mxu0 %v770
  %802 = vmatpush.bf16.msra.mxu0 %v767
  %803 = vmatpush.bf16.msra.mxu0 %v764
  %804 = vmatpush.bf16.msra.mxu0 %v761
  %805 = vmatpush.bf16.msra.mxu0 %v758
  %806 = vmatpush.bf16.msra.mxu0 %v755
  %807 = vmatpush.bf16.msra.mxu0 %v752
  %808 = vmatmul.bf16.gmra.mxu0 %v631
  %v809 = vpop.f32.mrf.mxu0
  %v810 = vadd.f32 %v666, %v809
  %v811 = vpop.f32.mrf.mxu0
  %v812 = vadd.f32 %v666, %v811
  %813 = vdwg.mxu0
  %814 = vmatpush.bf16.msra.mxu0 %v774
  %815 = vmatpush.bf16.msra.mxu0 %v771
  %816 = vmatpush.bf16.msra.mxu0 %v768
  %817 = vmatpush.bf16.msra.mxu0 %v765
  %818 = vmatpush.bf16.msra.mxu0 %v762
  %819 = vmatpush.bf16.msra.mxu0 %v759
  %820 = vmatpush.bf16.msra.mxu0 %v756
  %821 = vmatpush.bf16.msra.mxu0 %v753
  %822 = vmatmul.bf16.gmra.mxu0 %v631
  %v823 = vpop.f32.mrf.mxu0
  %v824 = vadd.f32 %v667, %v823
  %v825 = vpop.f32.mrf.mxu0
  %v826 = vadd.f32 %v667, %v825
  %827 = vdwg.mxu0
  %828 = vmatpush.bf16.msra.mxu0 %v775
  %829 = vmatpush.bf16.msra.mxu0 %v772
  %830 = vmatpush.bf16.msra.mxu0 %v769
  %831 = vmatpush.bf16.msra.mxu0 %v766
  %832 = vmatpush.bf16.msra.mxu0 %v763
  %833 = vmatpush.bf16.msra.mxu0 %v760
  %834 = vmatpush.bf16.msra.mxu0 %v757
  %835 = vmatpush.bf16.msra.mxu0 %v754
  %836 = vmatmul.bf16.gmra.mxu0 %v631
  %v837 = vpop.f32.mrf.mxu0
  %v838 = vadd.f32 %v668, %v837
  %v839 = vpop.f32.mrf.mxu0
  %v840 = vadd.f32 %v668, %v839
  %841 = vdwg.mxu0
  %v842 = vmul.f32 %v810, 0.25
  %v843 = vmul.f32 %v812, 0.25
  %v844 = vpack.c.bf16 %v826, %v824
  %v845 = vpack.c.bf16 %v840, %v838
  %v846 = vld [vmem:[%s17] sm:$0xff]
  %v847 = vld [vmem:[%s17 + $0x8] sm:$0xff]
  %v848 = vld [vmem:[%s17 + $0x10] sm:$0xff]
  %v849 = vld [vmem:[%s17 + $0x18] sm:$0xff]
  %v850 = vld [vmem:[%s17 + $0x20] sm:$0xff]
  %v851 = vld [vmem:[%s17 + $0x28] sm:$0xff]
  %v852 = vld [vmem:[%s17 + $0x30] sm:$0xff]
  %v853 = vld [vmem:[%s17 + $0x38] sm:$0xff]
  %v854 = vld [vmem:[%s17 + $0x40] sm:$0xff]
  %v855 = vld [vmem:[%s17 + $0x48] sm:$0xff]
  %v856 = vld [vmem:[%s17 + $0x50] sm:$0xff]
  %v857 = vld [vmem:[%s17 + $0x58] sm:$0xff]
  %v858 = vld [vmem:[%s17 + $0x60] sm:$0xff]
  %v859 = vld [vmem:[%s17 + $0x68] sm:$0xff]
  %v860 = vld [vmem:[%s17 + $0x70] sm:$0xff]
  %v861 = vld [vmem:[%s17 + $0x78] sm:$0xff]
  %v862 = vmul.f32 %v842, %v846
  %v863 = vmul.f32 %v843, %v847
  %v864 = vmul.f32 %v842, %v848
  %v865 = vmul.f32 %v843, %v849
  %v866 = vmul.f32 %v842, %v850
  %v867 = vmul.f32 %v843, %v851
  %v868 = vmul.f32 %v842, %v852
  %v869 = vmul.f32 %v843, %v853
  %v870 = vmul.f32 %v842, %v854
  %v871 = vmul.f32 %v843, %v855
  %v872 = vmul.f32 %v842, %v856
  %v873 = vmul.f32 %v843, %v857
  %v874 = vmul.f32 %v842, %v858
  %v875 = vmul.f32 %v843, %v859
  %v876 = vmul.f32 %v842, %v860
  %v877 = vmul.f32 %v843, %v861
  %v878 = vpack.c.bf16 %v863, %v862
  %v879 = vpack.c.bf16 %v865, %v864
  %v880 = vpack.c.bf16 %v867, %v866
  %v881 = vpack.c.bf16 %v869, %v868
  %v882 = vpack.c.bf16 %v871, %v870
  %v883 = vpack.c.bf16 %v873, %v872
  %v884 = vpack.c.bf16 %v875, %v874
  %v885 = vpack.c.bf16 %v877, %v876
  %v886 = vld [vmem:[%s18] sm:$0xff]
  %v887 = vld [vmem:[%s18 + $0x8] sm:$0xff]
  %v888 = vld [vmem:[%s18 + $0x10] sm:$0xff]
  %v889 = vld [vmem:[%s18 + $0x18] sm:$0xff]
  %v890 = vld [vmem:[%s18 + $0x20] sm:$0xff]
  %v891 = vld [vmem:[%s18 + $0x28] sm:$0xff]
  %v892 = vld [vmem:[%s18 + $0x30] sm:$0xff]
  %v893 = vld [vmem:[%s18 + $0x38] sm:$0xff]
  %v894 = vld [vmem:[%s18 + $0x40] sm:$0xff]
  %v895 = vld [vmem:[%s18 + $0x48] sm:$0xff]
  %v896 = vld [vmem:[%s18 + $0x50] sm:$0xff]
  %v897 = vld [vmem:[%s18 + $0x58] sm:$0xff]
  %v898 = vld [vmem:[%s18 + $0x60] sm:$0xff]
  %v899 = vld [vmem:[%s18 + $0x68] sm:$0xff]
  %v900 = vld [vmem:[%s18 + $0x70] sm:$0xff]
  %v901 = vld [vmem:[%s18 + $0x78] sm:$0xff]
  %902 = vmatpush.bf16.xpose.msra.mxu0 0
  %903 = vmatpush.bf16.xpose.msra.mxu0 0
  %904 = vmatpush.bf16.xpose.msra.mxu0 0
  %905 = vmatpush.bf16.xpose.msra.mxu0 0
  %906 = vmatpush.bf16.xpose.msra.mxu0 0
  %907 = vmatpush.bf16.xpose.msra.mxu0 0
  %908 = vmatpush.bf16.xpose.msra.mxu0 0
  %909 = vmatpush.bf16.xpose.msra.mxu0 %v844
  %910 = vmatmul.bf16.gmra.mxu0 %v878
  %v911 = vpop.f32.mrf.mxu0
  %v912 = vadd.f32 %v886, %v911
  %v913 = vpop.f32.mrf.mxu0
  %v914 = vadd.f32 %v887, %v913
  %915 = vmatmul.bf16.gmra.mxu0 %v879
  %v916 = vpop.f32.mrf.mxu0
  %v917 = vadd.f32 %v888, %v916
  %v918 = vpop.f32.mrf.mxu0
  %v919 = vadd.f32 %v889, %v918
  %920 = vmatmul.bf16.gmra.mxu0 %v880
  %v921 = vpop.f32.mrf.mxu0
  %v922 = vadd.f32 %v890, %v921
  %v923 = vpop.f32.mrf.mxu0
  %v924 = vadd.f32 %v891, %v923
  %925 = vmatmul.bf16.gmra.mxu0 %v881
  %v926 = vpop.f32.mrf.mxu0
  %v927 = vadd.f32 %v892, %v926
  %v928 = vpop.f32.mrf.mxu0
  %v929 = vadd.f32 %v893, %v928
  %930 = vmatmul.bf16.gmra.mxu0 %v882
  %v931 = vpop.f32.mrf.mxu0
  %v932 = vadd.f32 %v894, %v931
  %v933 = vpop.f32.mrf.mxu0
  %v934 = vadd.f32 %v895, %v933
  %935 = vmatmul.bf16.gmra.mxu0 %v883
  %v936 = vpop.f32.mrf.mxu0
  %v937 = vadd.f32 %v896, %v936
  %v938 = vpop.f32.mrf.mxu0
  %v939 = vadd.f32 %v897, %v938
  %940 = vmatmul.bf16.gmra.mxu0 %v884
  %v941 = vpop.f32.mrf.mxu0
  %v942 = vadd.f32 %v898, %v941
  %v943 = vpop.f32.mrf.mxu0
  %v944 = vadd.f32 %v899, %v943
  %945 = vmatmul.bf16.gmra.mxu0 %v885
  %v946 = vpop.f32.mrf.mxu0
  %v947 = vadd.f32 %v900, %v946
  %v948 = vpop.f32.mrf.mxu0
  %v949 = vadd.f32 %v901, %v948
  %950 = vdwg.mxu0
  %vm951 = vcmask 130048
  %v952 = vsel %vm951, %v912, -inf
  %953 = vmax.xlane.f32.xlu0 %v952
  %v954 = vpop.xlane.xlu0 %953
  %v955 = vsel %vm951, %v914, -inf
  %956 = vmax.xlane.f32.xlu0 %v955
  %v957 = vpop.xlane.xlu0 %956
  %v958 = vsel %vm951, %v917, -inf
  %959 = vmax.xlane.f32.xlu0 %v958
  %v960 = vpop.xlane.xlu0 %959
  %v961 = vsel %vm951, %v919, -inf
  %962 = vmax.xlane.f32.xlu0 %v961
  %v963 = vpop.xlane.xlu0 %962
  %v964 = vsel %vm951, %v922, -inf
  %965 = vmax.xlane.f32.xlu0 %v964
  %v966 = vpop.xlane.xlu0 %965
  %v967 = vsel %vm951, %v924, -inf
  %968 = vmax.xlane.f32.xlu0 %v967
  %v969 = vpop.xlane.xlu0 %968
  %v970 = vsel %vm951, %v927, -inf
  %971 = vmax.xlane.f32.xlu0 %v970
  %v972 = vpop.xlane.xlu0 %971
  %v973 = vsel %vm951, %v929, -inf
  %974 = vmax.xlane.f32.xlu0 %v973
  %v975 = vpop.xlane.xlu0 %974
  %v976 = vsel %vm951, %v932, -inf
  %977 = vmax.xlane.f32.xlu0 %v976
  %v978 = vpop.xlane.xlu0 %977
  %v979 = vsel %vm951, %v934, -inf
  %980 = vmax.xlane.f32.xlu0 %v979
  %v981 = vpop.xlane.xlu0 %980
  %v982 = vsel %vm951, %v937, -inf
  %983 = vmax.xlane.f32.xlu0 %v982
  %v984 = vpop.xlane.xlu0 %983
  %v985 = vsel %vm951, %v939, -inf
  %986 = vmax.xlane.f32.xlu0 %v985
  %v987 = vpop.xlane.xlu0 %986
  %v988 = vsel %vm951, %v942, -inf
  %989 = vmax.xlane.f32.xlu0 %v988
  %v990 = vpop.xlane.xlu0 %989
  %v991 = vsel %vm951, %v944, -inf
  %992 = vmax.xlane.f32.xlu0 %v991
  %v993 = vpop.xlane.xlu0 %992
  %v994 = vsel %vm951, %v947, -inf
  %995 = vmax.xlane.f32.xlu0 %v994
  %v996 = vpop.xlane.xlu0 %995
  %v997 = vsel %vm951, %v949, -inf
  %998 = vmax.xlane.f32.xlu0 %v997
  %v999 = vpop.xlane.xlu0 %998
  %v1000 = vsub.f32 %v912, %v954
  %v1001 = vsub.f32 %v914, %v957
  %v1002 = vsub.f32 %v917, %v960
  %v1003 = vsub.f32 %v919, %v963
  %v1004 = vsub.f32 %v922, %v966
  %v1005 = vsub.f32 %v924, %v969
  %v1006 = vsub.f32 %v927, %v972
  %v1007 = vsub.f32 %v929, %v975
  %v1008 = vsub.f32 %v932, %v978
  %v1009 = vsub.f32 %v934, %v981
  %v1010 = vsub.f32 %v937, %v984
  %v1011 = vsub.f32 %v939, %v987
  %v1012 = vsub.f32 %v942, %v990
  %v1013 = vsub.f32 %v944, %v993
  %v1014 = vsub.f32 %v947, %v996
  %v1015 = vsub.f32 %v949, %v999
  %v1016 = vmul.f32 %v1000, 1.442695
  %v1017 = vpow.pop %v1016
  %v1018 = vmul.f32 %v1001, 1.442695
  %v1019 = vpow.pop %v1018
  %v1020 = vmul.f32 %v1002, 1.442695
  %v1021 = vpow.pop %v1020
  %v1022 = vmul.f32 %v1003, 1.442695
  %v1023 = vpow.pop %v1022
  %v1024 = vmul.f32 %v1004, 1.442695
  %v1025 = vpow.pop %v1024
  %v1026 = vmul.f32 %v1005, 1.442695
  %v1027 = vpow.pop %v1026
  %v1028 = vmul.f32 %v1006, 1.442695
  %v1029 = vpow.pop %v1028
  %v1030 = vmul.f32 %v1007, 1.442695
  %v1031 = vpow.pop %v1030
  %v1032 = vmul.f32 %v1008, 1.442695
  %v1033 = vpow.pop %v1032
  %v1034 = vmul.f32 %v1009, 1.442695
  %v1035 = vpow.pop %v1034
  %v1036 = vmul.f32 %v1010, 1.442695
  %v1037 = vpow.pop %v1036
  %v1038 = vmul.f32 %v1011, 1.442695
  %v1039 = vpow.pop %v1038
  %v1040 = vmul.f32 %v1012, 1.442695
  %v1041 = vpow.pop %v1040
  %v1042 = vmul.f32 %v1013, 1.442695
  %v1043 = vpow.pop %v1042
  %v1044 = vmul.f32 %v1014, 1.442695
  %v1045 = vpow.pop %v1044
  %v1046 = vmul.f32 %v1015, 1.442695
  %v1047 = vpow.pop %v1046
  %v1048 = vsel %vm951, %v1017, 0.0
  %1049 = vadd.xlane.f32.xlu0 %v1048
  %v1050 = vpop.xlane.xlu0 %1049
  %v1051 = vsel %vm951, %v1019, 0.0
  %1052 = vadd.xlane.f32.xlu0 %v1051
  %v1053 = vpop.xlane.xlu0 %1052
  %v1054 = vsel %vm951, %v1021, 0.0
  %1055 = vadd.xlane.f32.xlu0 %v1054
  %v1056 = vpop.xlane.xlu0 %1055
  %v1057 = vsel %vm951, %v1023, 0.0
  %1058 = vadd.xlane.f32.xlu0 %v1057
  %v1059 = vpop.xlane.xlu0 %1058
  %v1060 = vsel %vm951, %v1025, 0.0
  %1061 = vadd.xlane.f32.xlu0 %v1060
  %v1062 = vpop.xlane.xlu0 %1061
  %v1063 = vsel %vm951, %v1027, 0.0
  %1064 = vadd.xlane.f32.xlu0 %v1063
  %v1065 = vpop.xlane.xlu0 %1064
  %v1066 = vsel %vm951, %v1029, 0.0
  %1067 = vadd.xlane.f32.xlu0 %v1066
  %v1068 = vpop.xlane.xlu0 %1067
  %v1069 = vsel %vm951, %v1031, 0.0
  %1070 = vadd.xlane.f32.xlu0 %v1069
  %v1071 = vpop.xlane.xlu0 %1070
  %v1072 = vsel %vm951, %v1033, 0.0
  %1073 = vadd.xlane.f32.xlu0 %v1072
  %v1074 = vpop.xlane.xlu0 %1073
  %v1075 = vsel %vm951, %v1035, 0.0
  %1076 = vadd.xlane.f32.xlu0 %v1075
  %v1077 = vpop.xlane.xlu0 %1076
  %v1078 = vsel %vm951, %v1037, 0.0
  %1079 = vadd.xlane.f32.xlu0 %v1078
  %v1080 = vpop.xlane.xlu0 %1079
  %v1081 = vsel %vm951, %v1039, 0.0
  %1082 = vadd.xlane.f32.xlu0 %v1081
  %v1083 = vpop.xlane.xlu0 %1082
  %v1084 = vsel %vm951, %v1041, 0.0
  %1085 = vadd.xlane.f32.xlu0 %v1084
  %v1086 = vpop.xlane.xlu0 %1085
  %v1087 = vsel %vm951, %v1043, 0.0
  %1088 = vadd.xlane.f32.xlu0 %v1087
  %v1089 = vpop.xlane.xlu0 %1088
  %v1090 = vsel %vm951, %v1045, 0.0
  %1091 = vadd.xlane.f32.xlu0 %v1090
  %v1092 = vpop.xlane.xlu0 %1091
  %v1093 = vsel %vm951, %v1047, 0.0
  %1094 = vadd.xlane.f32.xlu0 %v1093
  %v1095 = vpop.xlane.xlu0 %1094
  %v1096 = vrcp.pop %v1050
  %v1097 = vmul.f32 %v1050, %v1096
  %v1098 = vsub.f32 1.0, %v1097
  %v1099 = vmul.f32 %v1096, %v1098
  %v1100 = vadd.f32 %v1096, %v1099
  %vm1101 = vweird.f32 %v1050
  %vm1102 = vweird.f32 %v1096
  %vm1103 = vmor %vm1101, %vm1102
  %v1104 = vsel %vm1103, %v1096, %v1100
  %v1105 = vand.u32 2147483647, %v1050
  %vm1106 = vcmp.eq.f32.partialorder %v1105, 8.507059e+37
  %v1107 = vand.u32 %v1050, 2147483648
  %v1108 = vor.u32 1.1754944e-38, %v1107
  %v1109 = vsel %vm1106, %v1108, %v1104
  %v1110 = vrcp.pop %v1053
  %v1111 = vmul.f32 %v1053, %v1110
  %v1112 = vsub.f32 1.0, %v1111
  %v1113 = vmul.f32 %v1110, %v1112
  %v1114 = vadd.f32 %v1110, %v1113
  %vm1115 = vweird.f32 %v1053
  %vm1116 = vweird.f32 %v1110
  %vm1117 = vmor %vm1115, %vm1116
  %v1118 = vsel %vm1117, %v1110, %v1114
  %v1119 = vand.u32 2147483647, %v1053
  %vm1120 = vcmp.eq.f32.partialorder %v1119, 8.507059e+37
  %v1121 = vand.u32 %v1053, 2147483648
  %v1122 = vor.u32 1.1754944e-38, %v1121
  %v1123 = vsel %vm1120, %v1122, %v1118
  %v1124 = vrcp.pop %v1056
  %v1125 = vmul.f32 %v1056, %v1124
  %v1126 = vsub.f32 1.0, %v1125
  %v1127 = vmul.f32 %v1124, %v1126
  %v1128 = vadd.f32 %v1124, %v1127
  %vm1129 = vweird.f32 %v1056
  %vm1130 = vweird.f32 %v1124
  %vm1131 = vmor %vm1129, %vm1130
  %v1132 = vsel %vm1131, %v1124, %v1128
  %v1133 = vand.u32 2147483647, %v1056
  %vm1134 = vcmp.eq.f32.partialorder %v1133, 8.507059e+37
  %v1135 = vand.u32 %v1056, 2147483648
  %v1136 = vor.u32 1.1754944e-38, %v1135
  %v1137 = vsel %vm1134, %v1136, %v1132
  %v1138 = vrcp.pop %v1059
  %v1139 = vmul.f32 %v1059, %v1138
  %v1140 = vsub.f32 1.0, %v1139
  %v1141 = vmul.f32 %v1138, %v1140
  %v1142 = vadd.f32 %v1138, %v1141
  %vm1143 = vweird.f32 %v1059
  %vm1144 = vweird.f32 %v1138
  %vm1145 = vmor %vm1143, %vm1144
  %v1146 = vsel %vm1145, %v1138, %v1142
  %v1147 = vand.u32 2147483647, %v1059
  %vm1148 = vcmp.eq.f32.partialorder %v1147, 8.507059e+37
  %v1149 = vand.u32 %v1059, 2147483648
  %v1150 = vor.u32 1.1754944e-38, %v1149
  %v1151 = vsel %vm1148, %v1150, %v1146
  %v1152 = vrcp.pop %v1062
  %v1153 = vmul.f32 %v1062, %v1152
  %v1154 = vsub.f32 1.0, %v1153
  %v1155 = vmul.f32 %v1152, %v1154
  %v1156 = vadd.f32 %v1152, %v1155
  %vm1157 = vweird.f32 %v1062
  %vm1158 = vweird.f32 %v1152
  %vm1159 = vmor %vm1157, %vm1158
  %v1160 = vsel %vm1159, %v1152, %v1156
  %v1161 = vand.u32 2147483647, %v1062
  %vm1162 = vcmp.eq.f32.partialorder %v1161, 8.507059e+37
  %v1163 = vand.u32 %v1062, 2147483648
  %v1164 = vor.u32 1.1754944e-38, %v1163
  %v1165 = vsel %vm1162, %v1164, %v1160
  %v1166 = vrcp.pop %v1065
  %v1167 = vmul.f32 %v1065, %v1166
  %v1168 = vsub.f32 1.0, %v1167
  %v1169 = vmul.f32 %v1166, %v1168
  %v1170 = vadd.f32 %v1166, %v1169
  %vm1171 = vweird.f32 %v1065
  %vm1172 = vweird.f32 %v1166
  %vm1173 = vmor %vm1171, %vm1172
  %v1174 = vsel %vm1173, %v1166, %v1170
  %v1175 = vand.u32 2147483647, %v1065
  %vm1176 = vcmp.eq.f32.partialorder %v1175, 8.507059e+37
  %v1177 = vand.u32 %v1065, 2147483648
  %v1178 = vor.u32 1.1754944e-38, %v1177
  %v1179 = vsel %vm1176, %v1178, %v1174
  %v1180 = vrcp.pop %v1068
  %v1181 = vmul.f32 %v1068, %v1180
  %v1182 = vsub.f32 1.0, %v1181
  %v1183 = vmul.f32 %v1180, %v1182
  %v1184 = vadd.f32 %v1180, %v1183
  %vm1185 = vweird.f32 %v1068
  %vm1186 = vweird.f32 %v1180
  %vm1187 = vmor %vm1185, %vm1186
  %v1188 = vsel %vm1187, %v1180, %v1184
  %v1189 = vand.u32 2147483647, %v1068
  %vm1190 = vcmp.eq.f32.partialorder %v1189, 8.507059e+37
  %v1191 = vand.u32 %v1068, 2147483648
  %v1192 = vor.u32 1.1754944e-38, %v1191
  %v1193 = vsel %vm1190, %v1192, %v1188
  %v1194 = vrcp.pop %v1071
  %v1195 = vmul.f32 %v1071, %v1194
  %v1196 = vsub.f32 1.0, %v1195
  %v1197 = vmul.f32 %v1194, %v1196
  %v1198 = vadd.f32 %v1194, %v1197
  %vm1199 = vweird.f32 %v1071
  %vm1200 = vweird.f32 %v1194
  %vm1201 = vmor %vm1199, %vm1200
  %v1202 = vsel %vm1201, %v1194, %v1198
  %v1203 = vand.u32 2147483647, %v1071
  %vm1204 = vcmp.eq.f32.partialorder %v1203, 8.507059e+37
  %v1205 = vand.u32 %v1071, 2147483648
  %v1206 = vor.u32 1.1754944e-38, %v1205
  %v1207 = vsel %vm1204, %v1206, %v1202
  %v1208 = vrcp.pop %v1074
  %v1209 = vmul.f32 %v1074, %v1208
  %v1210 = vsub.f32 1.0, %v1209
  %v1211 = vmul.f32 %v1208, %v1210
  %v1212 = vadd.f32 %v1208, %v1211
  %vm1213 = vweird.f32 %v1074
  %vm1214 = vweird.f32 %v1208
  %vm1215 = vmor %vm1213, %vm1214
  %v1216 = vsel %vm1215, %v1208, %v1212
  %v1217 = vand.u32 2147483647, %v1074
  %vm1218 = vcmp.eq.f32.partialorder %v1217, 8.507059e+37
  %v1219 = vand.u32 %v1074, 2147483648
  %v1220 = vor.u32 1.1754944e-38, %v1219
  %v1221 = vsel %vm1218, %v1220, %v1216
  %v1222 = vrcp.pop %v1077
  %v1223 = vmul.f32 %v1077, %v1222
  %v1224 = vsub.f32 1.0, %v1223
  %v1225 = vmul.f32 %v1222, %v1224
  %v1226 = vadd.f32 %v1222, %v1225
  %vm1227 = vweird.f32 %v1077
  %vm1228 = vweird.f32 %v1222
  %vm1229 = vmor %vm1227, %vm1228
  %v1230 = vsel %vm1229, %v1222, %v1226
  %v1231 = vand.u32 2147483647, %v1077
  %vm1232 = vcmp.eq.f32.partialorder %v1231, 8.507059e+37
  %v1233 = vand.u32 %v1077, 2147483648
  %v1234 = vor.u32 1.1754944e-38, %v1233
  %v1235 = vsel %vm1232, %v1234, %v1230
  %v1236 = vrcp.pop %v1080
  %v1237 = vmul.f32 %v1080, %v1236
  %v1238 = vsub.f32 1.0, %v1237
  %v1239 = vmul.f32 %v1236, %v1238
  %v1240 = vadd.f32 %v1236, %v1239
  %vm1241 = vweird.f32 %v1080
  %vm1242 = vweird.f32 %v1236
  %vm1243 = vmor %vm1241, %vm1242
  %v1244 = vsel %vm1243, %v1236, %v1240
  %v1245 = vand.u32 2147483647, %v1080
  %vm1246 = vcmp.eq.f32.partialorder %v1245, 8.507059e+37
  %v1247 = vand.u32 %v1080, 2147483648
  %v1248 = vor.u32 1.1754944e-38, %v1247
  %v1249 = vsel %vm1246, %v1248, %v1244
  %v1250 = vrcp.pop %v1083
  %v1251 = vmul.f32 %v1083, %v1250
  %v1252 = vsub.f32 1.0, %v1251
  %v1253 = vmul.f32 %v1250, %v1252
  %v1254 = vadd.f32 %v1250, %v1253
  %vm1255 = vweird.f32 %v1083
  %vm1256 = vweird.f32 %v1250
  %vm1257 = vmor %vm1255, %vm1256
  %v1258 = vsel %vm1257, %v1250, %v1254
  %v1259 = vand.u32 2147483647, %v1083
  %vm1260 = vcmp.eq.f32.partialorder %v1259, 8.507059e+37
  %v1261 = vand.u32 %v1083, 2147483648
  %v1262 = vor.u32 1.1754944e-38, %v1261
  %v1263 = vsel %vm1260, %v1262, %v1258
  %v1264 = vrcp.pop %v1086
  %v1265 = vmul.f32 %v1086, %v1264
  %v1266 = vsub.f32 1.0, %v1265
  %v1267 = vmul.f32 %v1264, %v1266
  %v1268 = vadd.f32 %v1264, %v1267
  %vm1269 = vweird.f32 %v1086
  %vm1270 = vweird.f32 %v1264
  %vm1271 = vmor %vm1269, %vm1270
  %v1272 = vsel %vm1271, %v1264, %v1268
  %v1273 = vand.u32 2147483647, %v1086
  %vm1274 = vcmp.eq.f32.partialorder %v1273, 8.507059e+37
  %v1275 = vand.u32 %v1086, 2147483648
  %v1276 = vor.u32 1.1754944e-38, %v1275
  %v1277 = vsel %vm1274, %v1276, %v1272
  %v1278 = vrcp.pop %v1089
  %v1279 = vmul.f32 %v1089, %v1278
  %v1280 = vsub.f32 1.0, %v1279
  %v1281 = vmul.f32 %v1278, %v1280
  %v1282 = vadd.f32 %v1278, %v1281
  %vm1283 = vweird.f32 %v1089
  %vm1284 = vweird.f32 %v1278
  %vm1285 = vmor %vm1283, %vm1284
  %v1286 = vsel %vm1285, %v1278, %v1282
  %v1287 = vand.u32 2147483647, %v1089
  %vm1288 = vcmp.eq.f32.partialorder %v1287, 8.507059e+37
  %v1289 = vand.u32 %v1089, 2147483648
  %v1290 = vor.u32 1.1754944e-38, %v1289
  %v1291 = vsel %vm1288, %v1290, %v1286
  %v1292 = vrcp.pop %v1092
  %v1293 = vmul.f32 %v1092, %v1292
  %v1294 = vsub.f32 1.0, %v1293
  %v1295 = vmul.f32 %v1292, %v1294
  %v1296 = vadd.f32 %v1292, %v1295
  %vm1297 = vweird.f32 %v1092
  %vm1298 = vweird.f32 %v1292
  %vm1299 = vmor %vm1297, %vm1298
  %v1300 = vsel %vm1299, %v1292, %v1296
  %v1301 = vand.u32 2147483647, %v1092
  %vm1302 = vcmp.eq.f32.partialorder %v1301, 8.507059e+37
  %v1303 = vand.u32 %v1092, 2147483648
  %v1304 = vor.u32 1.1754944e-38, %v1303
  %v1305 = vsel %vm1302, %v1304, %v1300
  %v1306 = vrcp.pop %v1095
  %v1307 = vmul.f32 %v1095, %v1306
  %v1308 = vsub.f32 1.0, %v1307
  %v1309 = vmul.f32 %v1306, %v1308
  %v1310 = vadd.f32 %v1306, %v1309
  %vm1311 = vweird.f32 %v1095
  %vm1312 = vweird.f32 %v1306
  %vm1313 = vmor %vm1311, %vm1312
  %v1314 = vsel %vm1313, %v1306, %v1310
  %v1315 = vand.u32 2147483647, %v1095
  %vm1316 = vcmp.eq.f32.partialorder %v1315, 8.507059e+37
  %v1317 = vand.u32 %v1095, 2147483648
  %v1318 = vor.u32 1.1754944e-38, %v1317
  %v1319 = vsel %vm1316, %v1318, %v1314
  %v1320 = vmul.f32 %v1017, %v1109
  %v1321 = vmul.f32 %v1019, %v1123
  %v1322 = vmul.f32 %v1021, %v1137
  %v1323 = vmul.f32 %v1023, %v1151
  %v1324 = vmul.f32 %v1025, %v1165
  %v1325 = vmul.f32 %v1027, %v1179
  %v1326 = vmul.f32 %v1029, %v1193
  %v1327 = vmul.f32 %v1031, %v1207
  %v1328 = vmul.f32 %v1033, %v1221
  %v1329 = vmul.f32 %v1035, %v1235
  %v1330 = vmul.f32 %v1037, %v1249
  %v1331 = vmul.f32 %v1039, %v1263
  %v1332 = vmul.f32 %v1041, %v1277
  %v1333 = vmul.f32 %v1043, %v1291
  %v1334 = vmul.f32 %v1045, %v1305
  %v1335 = vmul.f32 %v1047, %v1319
  %v1336 = vpack.c.bf16 %v1320, %v1320
  %v1337 = vpack.c.bf16 %v1321, %v1321
  %v1338 = vpack.c.bf16 %v1322, %v1322
  %v1339 = vpack.c.bf16 %v1323, %v1323
  %v1340 = vpack.c.bf16 %v1324, %v1324
  %v1341 = vpack.c.bf16 %v1325, %v1325
  %v1342 = vpack.c.bf16 %v1326, %v1326
  %v1343 = vpack.c.bf16 %v1327, %v1327
  %v1344 = vpack.c.bf16 %v1328, %v1328
  %v1345 = vpack.c.bf16 %v1329, %v1329
  %v1346 = vpack.c.bf16 %v1330, %v1330
  %v1347 = vpack.c.bf16 %v1331, %v1331
  %v1348 = vpack.c.bf16 %v1332, %v1332
  %v1349 = vpack.c.bf16 %v1333, %v1333
  %v1350 = vpack.c.bf16 %v1334, %v1334
  %v1351 = vpack.c.bf16 %v1335, %v1335
  %v1352 = vld [vmem:[%s17] sm:$0x1]
  %v1355 = vunpack.c.l.b16 %v1336
  %v1356 = vunpack.c.l.b16 %v1337
  %v1357 = vpack.c.b16 %v1356, %v1355
  %v1359 = vsel %vm951, %v1357, 0
  %1361 = vmatpush.bf16.msra.mxu0 0
  %1362 = vmatpush.bf16.msra.mxu0 0
  %1363 = vmatpush.bf16.msra.mxu0 0
  %1364 = vmatpush.bf16.msra.mxu0 0
  %1365 = vmatpush.bf16.msra.mxu0 0
  %1366 = vmatpush.bf16.msra.mxu0 0
  %1367 = vmatpush.bf16.msra.mxu0 0
  %1368 = vmatpush.bf16.msra.mxu0 %v845
  %1369 = vmatmul.bf16.gmra.mxu0 %v1359
  %v1370 = vpop.f32.mrf.mxu0
  %v1371 = vadd.f32 0.0, %v1370
  %v1372 = vpop.f32.mrf.mxu0
  %v1373 = vadd.f32 0.0, %v1372
  %1374 = vdwg.mxu0
  %v1375 = vperm.slane %v1352, 0
  %v1376 = vmul.f32 %v1371, %v1375
  %v1377 = vmul.f32 %v1373, %v1375
  %v1378 = vadd.f32 %v1376, 0.0
  %v1379 = vadd.f32 %v1377, 0.0
  %v1380 = vld [vmem:[%s17 + $0x10] sm:$0x1]
  %v1383 = vunpack.c.l.b16 %v1338
  %v1384 = vunpack.c.l.b16 %v1339
  %v1385 = vpack.c.b16 %v1384, %v1383
  %v1387 = vsel %vm951, %v1385, 0
  %1389 = vmatpush.bf16.msra.mxu0 0
  %1390 = vmatpush.bf16.msra.mxu0 0
  %1391 = vmatpush.bf16.msra.mxu0 0
  %1392 = vmatpush.bf16.msra.mxu0 0
  %1393 = vmatpush.bf16.msra.mxu0 0
  %1394 = vmatpush.bf16.msra.mxu0 0
  %1395 = vmatpush.bf16.msra.mxu0 0
  %1396 = vmatpush.bf16.msra.mxu0 %v845
  %1397 = vmatmul.bf16.gmra.mxu0 %v1387
  %v1398 = vpop.f32.mrf.mxu0
  %v1399 = vadd.f32 0.0, %v1398
  %v1400 = vpop.f32.mrf.mxu0
  %v1401 = vadd.f32 0.0, %v1400
  %1402 = vdwg.mxu0
  %v1403 = vperm.slane %v1380, 0
  %v1404 = vmul.f32 %v1399, %v1403
  %v1405 = vmul.f32 %v1401, %v1403
  %v1406 = vadd.f32 %v1378, %v1404
  %v1407 = vadd.f32 %v1379, %v1405
  %v1408 = vld [vmem:[%s17 + $0x20] sm:$0x1]
  %v1411 = vunpack.c.l.b16 %v1340
  %v1412 = vunpack.c.l.b16 %v1341
  %v1413 = vpack.c.b16 %v1412, %v1411
  %v1415 = vsel %vm951, %v1413, 0
  %1417 = vmatpush.bf16.msra.mxu0 0
  %1418 = vmatpush.bf16.msra.mxu0 0
  %1419 = vmatpush.bf16.msra.mxu0 0
  %1420 = vmatpush.bf16.msra.mxu0 0
  %1421 = vmatpush.bf16.msra.mxu0 0
  %1422 = vmatpush.bf16.msra.mxu0 0
  %1423 = vmatpush.bf16.msra.mxu0 0
  %1424 = vmatpush.bf16.msra.mxu0 %v845
  %1425 = vmatmul.bf16.gmra.mxu0 %v1415
  %v1426 = vpop.f32.mrf.mxu0
  %v1427 = vadd.f32 0.0, %v1426
  %v1428 = vpop.f32.mrf.mxu0
  %v1429 = vadd.f32 0.0, %v1428
  %1430 = vdwg.mxu0
  %v1431 = vperm.slane %v1408, 0
  %v1432 = vmul.f32 %v1427, %v1431
  %v1433 = vmul.f32 %v1429, %v1431
  %v1434 = vadd.f32 %v1406, %v1432
  %v1435 = vadd.f32 %v1407, %v1433
  %v1436 = vld [vmem:[%s17 + $0x30] sm:$0x1]
  %v1439 = vunpack.c.l.b16 %v1342
  %v1440 = vunpack.c.l.b16 %v1343
  %v1441 = vpack.c.b16 %v1440, %v1439
  %v1443 = vsel %vm951, %v1441, 0
  %1445 = vmatpush.bf16.msra.mxu0 0
  %1446 = vmatpush.bf16.msra.mxu0 0
  %1447 = vmatpush.bf16.msra.mxu0 0
  %1448 = vmatpush.bf16.msra.mxu0 0
  %1449 = vmatpush.bf16.msra.mxu0 0
  %1450 = vmatpush.bf16.msra.mxu0 0
  %1451 = vmatpush.bf16.msra.mxu0 0
  %1452 = vmatpush.bf16.msra.mxu0 %v845
  %1453 = vmatmul.bf16.gmra.mxu0 %v1443
  %v1454 = vpop.f32.mrf.mxu0
  %v1455 = vadd.f32 0.0, %v1454
  %v1456 = vpop.f32.mrf.mxu0
  %v1457 = vadd.f32 0.0, %v1456
  %1458 = vdwg.mxu0
  %v1459 = vperm.slane %v1436, 0
  %v1460 = vmul.f32 %v1455, %v1459
  %v1461 = vmul.f32 %v1457, %v1459
  %v1462 = vadd.f32 %v1434, %v1460
  %v1463 = vadd.f32 %v1435, %v1461
  %v1464 = vld [vmem:[%s17 + $0x40] sm:$0x1]
  %v1467 = vunpack.c.l.b16 %v1344
  %v1468 = vunpack.c.l.b16 %v1345
  %v1469 = vpack.c.b16 %v1468, %v1467
  %v1471 = vsel %vm951, %v1469, 0
  %1473 = vmatpush.bf16.msra.mxu0 0
  %1474 = vmatpush.bf16.msra.mxu0 0
  %1475 = vmatpush.bf16.msra.mxu0 0
  %1476 = vmatpush.bf16.msra.mxu0 0
  %1477 = vmatpush.bf16.msra.mxu0 0
  %1478 = vmatpush.bf16.msra.mxu0 0
  %1479 = vmatpush.bf16.msra.mxu0 0
  %1480 = vmatpush.bf16.msra.mxu0 %v845
  %1481 = vmatmul.bf16.gmra.mxu0 %v1471
  %v1482 = vpop.f32.mrf.mxu0
  %v1483 = vadd.f32 0.0, %v1482
  %v1484 = vpop.f32.mrf.mxu0
  %v1485 = vadd.f32 0.0, %v1484
  %1486 = vdwg.mxu0
  %v1487 = vperm.slane %v1464, 0
  %v1488 = vmul.f32 %v1483, %v1487
  %v1489 = vmul.f32 %v1485, %v1487
  %v1490 = vadd.f32 %v1462, %v1488
  %v1491 = vadd.f32 %v1463, %v1489
  %v1492 = vld [vmem:[%s17 + $0x50] sm:$0x1]
  %v1495 = vunpack.c.l.b16 %v1346
  %v1496 = vunpack.c.l.b16 %v1347
  %v1497 = vpack.c.b16 %v1496, %v1495
  %v1499 = vsel %vm951, %v1497, 0
  %1501 = vmatpush.bf16.msra.mxu0 0
  %1502 = vmatpush.bf16.msra.mxu0 0
  %1503 = vmatpush.bf16.msra.mxu0 0
  %1504 = vmatpush.bf16.msra.mxu0 0
  %1505 = vmatpush.bf16.msra.mxu0 0
  %1506 = vmatpush.bf16.msra.mxu0 0
  %1507 = vmatpush.bf16.msra.mxu0 0
  %1508 = vmatpush.bf16.msra.mxu0 %v845
  %1509 = vmatmul.bf16.gmra.mxu0 %v1499
  %v1510 = vpop.f32.mrf.mxu0
  %v1511 = vadd.f32 0.0, %v1510
  %v1512 = vpop.f32.mrf.mxu0
  %v1513 = vadd.f32 0.0, %v1512
  %1514 = vdwg.mxu0
  %v1515 = vperm.slane %v1492, 0
  %v1516 = vmul.f32 %v1511, %v1515
  %v1517 = vmul.f32 %v1513, %v1515
  %v1518 = vadd.f32 %v1490, %v1516
  %v1519 = vadd.f32 %v1491, %v1517
  %v1520 = vld [vmem:[%s17 + $0x60] sm:$0x1]
  %v1523 = vunpack.c.l.b16 %v1348
  %v1524 = vunpack.c.l.b16 %v1349
  %v1525 = vpack.c.b16 %v1524, %v1523
  %v1527 = vsel %vm951, %v1525, 0
  %1529 = vmatpush.bf16.msra.mxu0 0
  %1530 = vmatpush.bf16.msra.mxu0 0
  %1531 = vmatpush.bf16.msra.mxu0 0
  %1532 = vmatpush.bf16.msra.mxu0 0
  %1533 = vmatpush.bf16.msra.mxu0 0
  %1534 = vmatpush.bf16.msra.mxu0 0
  %1535 = vmatpush.bf16.msra.mxu0 0
  %1536 = vmatpush.bf16.msra.mxu0 %v845
  %1537 = vmatmul.bf16.gmra.mxu0 %v1527
  %v1538 = vpop.f32.mrf.mxu0
  %v1539 = vadd.f32 0.0, %v1538
  %v1540 = vpop.f32.mrf.mxu0
  %v1541 = vadd.f32 0.0, %v1540
  %1542 = vdwg.mxu0
  %v1543 = vperm.slane %v1520, 0
  %v1544 = vmul.f32 %v1539, %v1543
  %v1545 = vmul.f32 %v1541, %v1543
  %v1546 = vadd.f32 %v1518, %v1544
  %v1547 = vadd.f32 %v1519, %v1545
  %v1548 = vld [vmem:[%s17 + $0x70] sm:$0x1]
  %v1551 = vunpack.c.l.b16 %v1350
  %v1552 = vunpack.c.l.b16 %v1351
  %v1553 = vpack.c.b16 %v1552, %v1551
  %v1555 = vsel %vm951, %v1553, 0
  %1557 = vmatpush.bf16.msra.mxu0 0
  %1558 = vmatpush.bf16.msra.mxu0 0
  %1559 = vmatpush.bf16.msra.mxu0 0
  %1560 = vmatpush.bf16.msra.mxu0 0
  %1561 = vmatpush.bf16.msra.mxu0 0
  %1562 = vmatpush.bf16.msra.mxu0 0
  %1563 = vmatpush.bf16.msra.mxu0 0
  %1564 = vmatpush.bf16.msra.mxu0 %v845
  %1565 = vmatmul.bf16.gmra.mxu0 %v1555
  %v1566 = vpop.f32.mrf.mxu0
  %v1567 = vadd.f32 0.0, %v1566
  %v1568 = vpop.f32.mrf.mxu0
  %v1569 = vadd.f32 0.0, %v1568
  %1570 = vdwg.mxu0
  %v1571 = vperm.slane %v1548, 0
  %v1572 = vmul.f32 %v1567, %v1571
  %v1573 = vmul.f32 %v1569, %v1571
  %v1574 = vadd.f32 %v1546, %v1572
  %v1575 = vadd.f32 %v1547, %v1573
  %v1576 = vpack.c.bf16 %v1575, %v1574
  %v1577 = vld [vmem:[%s5] sm:$0xf]
  %v1578 = vld [vmem:[%s5 + $0x4] sm:$0xf]
  %v1579 = vld [vmem:[%s5 + $0x8] sm:$0xf]
  %v1580 = vld [vmem:[%s5 + $0xc] sm:$0xf]
  %v1581 = vld [vmem:[%s5 + $0x10] sm:$0xf]
  %v1582 = vld [vmem:[%s5 + $0x14] sm:$0xf]
  %v1583 = vld [vmem:[%s5 + $0x18] sm:$0xf]
  %v1584 = vld [vmem:[%s5 + $0x1c] sm:$0xf]
  %v1585 = vld [vmem:[%s5 + $0x20] sm:$0xf]
  %v1586 = vld [vmem:[%s5 + $0x24] sm:$0xf]
  %v1587 = vld [vmem:[%s5 + $0x28] sm:$0xf]
  %v1588 = vld [vmem:[%s5 + $0x2c] sm:$0xf]
  %v1589 = vld [vmem:[%s5 + $0x30] sm:$0xf]
  %v1590 = vld [vmem:[%s5 + $0x34] sm:$0xf]
  %v1591 = vld [vmem:[%s5 + $0x38] sm:$0xf]
  %v1592 = vld [vmem:[%s5 + $0x3c] sm:$0xf]
  %v1609 = vunpack.c.l.b16 %v1577
  %v1610 = vunpack.c.l.b16 %v1578
  %v1611 = vunpack.c.l.b16 %v1579
  %v1612 = vunpack.c.l.b16 %v1580
  %v1613 = vunpack.c.l.b16 %v1581
  %v1614 = vunpack.c.l.b16 %v1582
  %v1615 = vunpack.c.l.b16 %v1583
  %v1616 = vunpack.c.l.b16 %v1584
  %v1617 = vunpack.c.l.b16 %v1585
  %v1618 = vunpack.c.l.b16 %v1586
  %v1619 = vunpack.c.l.b16 %v1587
  %v1620 = vunpack.c.l.b16 %v1588
  %v1621 = vunpack.c.l.b16 %v1589
  %v1622 = vunpack.c.l.b16 %v1590
  %v1623 = vunpack.c.l.b16 %v1591
  %v1624 = vunpack.c.l.b16 %v1592
  %v1625 = vpack.c.b16 %v1610, %v1609
  %v1626 = vpack.c.b16 %v1612, %v1611
  %v1627 = vpack.c.b16 %v1614, %v1613
  %v1628 = vpack.c.b16 %v1616, %v1615
  %v1629 = vpack.c.b16 %v1618, %v1617
  %v1630 = vpack.c.b16 %v1620, %v1619
  %v1631 = vpack.c.b16 %v1622, %v1621
  %v1632 = vpack.c.b16 %v1624, %v1623
  %1641 = vmatpush.bf16.msra.mxu0 %v1632
  %1642 = vmatpush.bf16.msra.mxu0 %v1631
  %1643 = vmatpush.bf16.msra.mxu0 %v1630
  %1644 = vmatpush.bf16.msra.mxu0 %v1629
  %1645 = vmatpush.bf16.msra.mxu0 %v1628
  %1646 = vmatpush.bf16.msra.mxu0 %v1627
  %1647 = vmatpush.bf16.msra.mxu0 %v1626
  %1648 = vmatpush.bf16.msra.mxu0 %v1625
  %1649 = vmatmul.bf16.gmra.mxu0 %v1576
  %v1650 = vpop.f32.mrf.mxu0
  %v1651 = vadd.f32 0.0, %v1650
  %v1652 = vpop.f32.mrf.mxu0
  %v1653 = vadd.f32 0.0, %v1652
  %1654 = vdwg.mxu0
  %v1655 = vadd.f32 %v568, %v1651
  %v1656 = vadd.f32 %v570, %v1653
  %v1657 = vld [vmem:[%s6] sm:$0x1]
  %v1659 = vperm.slane %v1657, 0
  %v1661 = vadd.f32 %v1655, %v1659
  %v1662 = vadd.f32 %v1656, %v1659
  %v1663 = vld [vmem:[%s9] sm:$0x1]
  %v1664 = vld [vmem:[%s10] sm:$0x1]
  %1665 = vadd.xlane.f32.xlu0 %v1661
  %v1666 = vpop.xlane.xlu0 %1665
  %1667 = vadd.xlane.f32.xlu0 %v1662
  %v1668 = vpop.xlane.xlu0 %1667
  %v1669 = vmul.f32 %v1666, %v584
  %v1670 = vmul.f32 %v1668, %v584
  %v1671 = vsub.f32 %v1661, %v1669
  %v1672 = vsub.f32 %v1662, %v1670
  %v1673 = vmul.f32 %v1671, %v1671
  %v1674 = vmul.f32 %v1672, %v1672
  %1675 = vadd.xlane.f32.xlu0 %v1673
  %v1676 = vpop.xlane.xlu0 %1675
  %1677 = vadd.xlane.f32.xlu0 %v1674
  %v1678 = vpop.xlane.xlu0 %1677
  %v1679 = vmul.f32 %v1676, %v584
  %v1680 = vmul.f32 %v1678, %v584
  %v1681 = vadd.f32 %v1679, 1e-06
  %v1682 = vadd.f32 %v1680, 1e-06
  %v1683 = vrsqrt.pop %v1681
  %v1684 = vmul.f32 %v1683, %v1681
  %v1685 = vmul.f32 %v1684, %v1683
  %v1686 = vmul.f32 0.5, %v1685
  %v1687 = vsub.f32 1.5, %v1686
  %v1688 = vmul.f32 %v1683, %v1687
  %vm1689 = vweird.f32 %v1681
  %vm1690 = vweird.f32 %v1683
  %vm1691 = vmor %vm1689, %vm1690
  %v1692 = vsel %vm1691, %v1683, %v1688
  %v1693 = vrsqrt.pop %v1682
  %v1694 = vmul.f32 %v1693, %v1682
  %v1695 = vmul.f32 %v1694, %v1693
  %v1696 = vmul.f32 0.5, %v1695
  %v1697 = vsub.f32 1.5, %v1696
  %v1698 = vmul.f32 %v1693, %v1697
  %vm1699 = vweird.f32 %v1682
  %vm1700 = vweird.f32 %v1693
  %vm1701 = vmor %vm1699, %vm1700
  %v1702 = vsel %vm1701, %v1693, %v1698
  %v1703 = vmul.f32 %v1671, %v1692
  %v1704 = vmul.f32 %v1672, %v1702
  %v1706 = vperm.slane %v1663, 0
  %v1708 = vmul.f32 %v1703, %v1706
  %v1709 = vmul.f32 %v1704, %v1706
  %v1711 = vperm.slane %v1664, 0
  %v1713 = vadd.f32 %v1708, %v1711
  %v1714 = vadd.f32 %v1709, %v1711
  %v1715 = vpack.c.bf16 %v1714, %v1713
  %v1716 = vld [vmem:[%s11] sm:$0xff]
  %v1717 = vld [vmem:[%s11 + $0x8] sm:$0xff]
  %v1718 = vld [vmem:[%s11 + $0x10] sm:$0xff]
  %v1719 = vld [vmem:[%s11 + $0x18] sm:$0xff]
  %v1720 = vld [vmem:[%s11 + $0x20] sm:$0xff]
  %v1721 = vld [vmem:[%s11 + $0x28] sm:$0xff]
  %v1722 = vld [vmem:[%s11 + $0x30] sm:$0xff]
  %v1723 = vld [vmem:[%s11 + $0x38] sm:$0xff]
  %v1724 = vld [vmem:[%s11 + $0x40] sm:$0xff]
  %v1725 = vld [vmem:[%s11 + $0x48] sm:$0xff]
  %v1726 = vld [vmem:[%s11 + $0x50] sm:$0xff]
  %v1727 = vld [vmem:[%s11 + $0x58] sm:$0xff]
  %v1728 = vld [vmem:[%s11 + $0x60] sm:$0xff]
  %v1729 = vld [vmem:[%s11 + $0x68] sm:$0xff]
  %v1730 = vld [vmem:[%s11 + $0x70] sm:$0xff]
  %v1731 = vld [vmem:[%s11 + $0x78] sm:$0xff]
  %v1732 = vld [vmem:[%s11 + $0x80] sm:$0xff]
  %v1733 = vld [vmem:[%s11 + $0x88] sm:$0xff]
  %v1734 = vld [vmem:[%s11 + $0x90] sm:$0xff]
  %v1735 = vld [vmem:[%s11 + $0x98] sm:$0xff]
  %v1736 = vld [vmem:[%s11 + $0xa0] sm:$0xff]
  %v1737 = vld [vmem:[%s11 + $0xa8] sm:$0xff]
  %v1738 = vld [vmem:[%s11 + $0xb0] sm:$0xff]
  %v1739 = vld [vmem:[%s11 + $0xb8] sm:$0xff]
  %v1740 = vld [vmem:[%s11 + $0xc0] sm:$0xff]
  %v1741 = vld [vmem:[%s11 + $0xc8] sm:$0xff]
  %v1742 = vld [vmem:[%s11 + $0xd0] sm:$0xff]
  %v1743 = vld [vmem:[%s11 + $0xd8] sm:$0xff]
  %v1744 = vld [vmem:[%s11 + $0xe0] sm:$0xff]
  %v1745 = vld [vmem:[%s11 + $0xe8] sm:$0xff]
  %v1746 = vld [vmem:[%s11 + $0xf0] sm:$0xff]
  %v1747 = vld [vmem:[%s11 + $0xf8] sm:$0xff]
  %v1748 = vld [vmem:[%s12] sm:$0xf]
  %v1750 = vperm.slane %v1748, 0
  %v1751 = vperm.slane %v1748, 1
  %v1752 = vperm.slane %v1748, 2
  %v1753 = vperm.slane %v1748, 3
  %v1790 = vunpack.c.l.b16 %v1716
  %v1791 = vunpack.c.h.b16 %v1716
  %v1792 = vunpack.c.l.b16 %v1717
  %v1793 = vunpack.c.h.b16 %v1717
  %v1794 = vunpack.c.l.b16 %v1718
  %v1795 = vunpack.c.h.b16 %v1718
  %v1796 = vunpack.c.l.b16 %v1719
  %v1797 = vunpack.c.h.b16 %v1719
  %v1798 = vunpack.c.l.b16 %v1720
  %v1799 = vunpack.c.h.b16 %v1720
  %v1800 = vunpack.c.l.b16 %v1721
  %v1801 = vunpack.c.h.b16 %v1721
  %v1802 = vunpack.c.l.b16 %v1722
  %v1803 = vunpack.c.h.b16 %v1722
  %v1804 = vunpack.c.l.b16 %v1723
  %v1805 = vunpack.c.h.b16 %v1723
  %v1806 = vunpack.c.l.b16 %v1724
  %v1807 = vunpack.c.h.b16 %v1724
  %v1808 = vunpack.c.l.b16 %v1725
  %v1809 = vunpack.c.h.b16 %v1725
  %v1810 = vunpack.c.l.b16 %v1726
  %v1811 = vunpack.c.h.b16 %v1726
  %v1812 = vunpack.c.l.b16 %v1727
  %v1813 = vunpack.c.h.b16 %v1727
  %v1814 = vunpack.c.l.b16 %v1728
  %v1815 = vunpack.c.h.b16 %v1728
  %v1816 = vunpack.c.l.b16 %v1729
  %v1817 = vunpack.c.h.b16 %v1729
  %v1818 = vunpack.c.l.b16 %v1730
  %v1819 = vunpack.c.h.b16 %v1730
  %v1820 = vunpack.c.l.b16 %v1731
  %v1821 = vunpack.c.h.b16 %v1731
  %v1822 = vunpack.c.l.b16 %v1732
  %v1823 = vunpack.c.h.b16 %v1732
  %v1824 = vunpack.c.l.b16 %v1733
  %v1825 = vunpack.c.h.b16 %v1733
  %v1826 = vunpack.c.l.b16 %v1734
  %v1827 = vunpack.c.h.b16 %v1734
  %v1828 = vunpack.c.l.b16 %v1735
  %v1829 = vunpack.c.h.b16 %v1735
  %v1830 = vunpack.c.l.b16 %v1736
  %v1831 = vunpack.c.h.b16 %v1736
  %v1832 = vunpack.c.l.b16 %v1737
  %v1833 = vunpack.c.h.b16 %v1737
  %v1834 = vunpack.c.l.b16 %v1738
  %v1835 = vunpack.c.h.b16 %v1738
  %v1836 = vunpack.c.l.b16 %v1739
  %v1837 = vunpack.c.h.b16 %v1739
  %v1838 = vunpack.c.l.b16 %v1740
  %v1839 = vunpack.c.h.b16 %v1740
  %v1840 = vunpack.c.l.b16 %v1741
  %v1841 = vunpack.c.h.b16 %v1741
  %v1842 = vunpack.c.l.b16 %v1742
  %v1843 = vunpack.c.h.b16 %v1742
  %v1844 = vunpack.c.l.b16 %v1743
  %v1845 = vunpack.c.h.b16 %v1743
  %v1846 = vunpack.c.l.b16 %v1744
  %v1847 = vunpack.c.h.b16 %v1744
  %v1848 = vunpack.c.l.b16 %v1745
  %v1849 = vunpack.c.h.b16 %v1745
  %v1850 = vunpack.c.l.b16 %v1746
  %v1851 = vunpack.c.h.b16 %v1746
  %v1852 = vunpack.c.l.b16 %v1747
  %v1853 = vunpack.c.h.b16 %v1747
  %v1854 = vpack.c.b16 %v1794, %v1790
  %v1855 = vpack.c.b16 %v1795, %v1791
  %v1856 = vpack.c.b16 %v1796, %v1792
  %v1857 = vpack.c.b16 %v1797, %v1793
  %v1858 = vpack.c.b16 %v1802, %v1798
  %v1859 = vpack.c.b16 %v1803, %v1799
  %v1860 = vpack.c.b16 %v1804, %v1800
  %v1861 = vpack.c.b16 %v1805, %v1801
  %v1862 = vpack.c.b16 %v1810, %v1806
  %v1863 = vpack.c.b16 %v1811, %v1807
  %v1864 = vpack.c.b16 %v1812, %v1808
  %v1865 = vpack.c.b16 %v1813, %v1809
  %v1866 = vpack.c.b16 %v1818, %v1814
  %v1867 = vpack.c.b16 %v1819, %v1815
  %v1868 = vpack.c.b16 %v1820, %v1816
  %v1869 = vpack.c.b16 %v1821, %v1817
  %v1870 = vpack.c.b16 %v1826, %v1822
  %v1871 = vpack.c.b16 %v1827, %v1823
  %v1872 = vpack.c.b16 %v1828, %v1824
  %v1873 = vpack.c.b16 %v1829, %v1825
  %v1874 = vpack.c.b16 %v1834, %v1830
  %v1875 = vpack.c.b16 %v1835, %v1831
  %v1876 = vpack.c.b16 %v1836, %v1832
  %v1877 = vpack.c.b16 %v1837, %v1833
  %v1878 = vpack.c.b16 %v1842, %v1838
  %v1879 = vpack.c.b16 %v1843, %v1839
  %v1880 = vpack.c.b16 %v1844, %v1840
  %v1881 = vpack.c.b16 %v1845, %v1841
  %v1882 = vpack.c.b16 %v1850, %v1846
  %v1883 = vpack.c.b16 %v1851, %v1847
  %v1884 = vpack.c.b16 %v1852, %v1848
  %v1885 = vpack.c.b16 %v1853, %v1849
  %1918 = vmatpush.bf16.msra.mxu0 %v1882
  %1919 = vmatpush.bf16.msra.mxu0 %v1878
  %1920 = vmatpush.bf16.msra.mxu0 %v1874
  %1921 = vmatpush.bf16.msra.mxu0 %v1870
  %1922 = vmatpush.bf16.msra.mxu0 %v1866
  %1923 = vmatpush.bf16.msra.mxu0 %v1862
  %1924 = vmatpush.bf16.msra.mxu0 %v1858
  %1925 = vmatpush.bf16.msra.mxu0 %v1854
  %1926 = vmatmul.bf16.gmra.mxu0 %v1715
  %v1927 = vpop.f32.mrf.mxu0
  %v1928 = vadd.f32 %v1750, %v1927
  %v1929 = vpop.f32.mrf.mxu0
  %v1930 = vadd.f32 %v1750, %v1929
  %1931 = vdwg.mxu0
  %1932 = vmatpush.bf16.msra.mxu0 %v1883
  %1933 = vmatpush.bf16.msra.mxu0 %v1879
  %1934 = vmatpush.bf16.msra.mxu0 %v1875
  %1935 = vmatpush.bf16.msra.mxu0 %v1871
  %1936 = vmatpush.bf16.msra.mxu0 %v1867
  %1937 = vmatpush.bf16.msra.mxu0 %v1863
  %1938 = vmatpush.bf16.msra.mxu0 %v1859
  %1939 = vmatpush.bf16.msra.mxu0 %v1855
  %1940 = vmatmul.bf16.gmra.mxu0 %v1715
  %v1941 = vpop.f32.mrf.mxu0
  %v1942 = vadd.f32 %v1751, %v1941
  %v1943 = vpop.f32.mrf.mxu0
  %v1944 = vadd.f32 %v1751, %v1943
  %1945 = vdwg.mxu0
  %1946 = vmatpush.bf16.msra.mxu0 %v1884
  %1947 = vmatpush.bf16.msra.mxu0 %v1880
  %1948 = vmatpush.bf16.msra.mxu0 %v1876
  %1949 = vmatpush.bf16.msra.mxu0 %v1872
  %1950 = vmatpush.bf16.msra.mxu0 %v1868
  %1951 = vmatpush.bf16.msra.mxu0 %v1864
  %1952 = vmatpush.bf16.msra.mxu0 %v1860
  %1953 = vmatpush.bf16.msra.mxu0 %v1856
  %1954 = vmatmul.bf16.gmra.mxu0 %v1715
  %v1955 = vpop.f32.mrf.mxu0
  %v1956 = vadd.f32 %v1752, %v1955
  %v1957 = vpop.f32.mrf.mxu0
  %v1958 = vadd.f32 %v1752, %v1957
  %1959 = vdwg.mxu0
  %1960 = vmatpush.bf16.msra.mxu0 %v1885
  %1961 = vmatpush.bf16.msra.mxu0 %v1881
  %1962 = vmatpush.bf16.msra.mxu0 %v1877
  %1963 = vmatpush.bf16.msra.mxu0 %v1873
  %1964 = vmatpush.bf16.msra.mxu0 %v1869
  %1965 = vmatpush.bf16.msra.mxu0 %v1865
  %1966 = vmatpush.bf16.msra.mxu0 %v1861
  %1967 = vmatpush.bf16.msra.mxu0 %v1857
  %1968 = vmatmul.bf16.gmra.mxu0 %v1715
  %v1969 = vpop.f32.mrf.mxu0
  %v1970 = vadd.f32 %v1753, %v1969
  %v1971 = vpop.f32.mrf.mxu0
  %v1972 = vadd.f32 %v1753, %v1971
  %1973 = vdwg.mxu0
  %v1974 = vmul.f32 %v1928, %v1928
  %v1975 = vmul.f32 %v1942, %v1942
  %v1976 = vmul.f32 %v1956, %v1956
  %v1977 = vmul.f32 %v1970, %v1970
  %v1978 = vmul.f32 %v1930, %v1930
  %v1979 = vmul.f32 %v1944, %v1944
  %v1980 = vmul.f32 %v1958, %v1958
  %v1981 = vmul.f32 %v1972, %v1972
  %v1982 = vmul.f32 %v1928, %v1974
  %v1983 = vmul.f32 %v1942, %v1975
  %v1984 = vmul.f32 %v1956, %v1976
  %v1985 = vmul.f32 %v1970, %v1977
  %v1986 = vmul.f32 %v1930, %v1978
  %v1987 = vmul.f32 %v1944, %v1979
  %v1988 = vmul.f32 %v1958, %v1980
  %v1989 = vmul.f32 %v1972, %v1981
  %v1990 = vmul.f32 %v1982, 0.044715
  %v1991 = vmul.f32 %v1983, 0.044715
  %v1992 = vmul.f32 %v1984, 0.044715
  %v1993 = vmul.f32 %v1985, 0.044715
  %v1994 = vmul.f32 %v1986, 0.044715
  %v1995 = vmul.f32 %v1987, 0.044715
  %v1996 = vmul.f32 %v1988, 0.044715
  %v1997 = vmul.f32 %v1989, 0.044715
  %v1998 = vadd.f32 %v1928, %v1990
  %v1999 = vadd.f32 %v1942, %v1991
  %v2000 = vadd.f32 %v1956, %v1992
  %v2001 = vadd.f32 %v1970, %v1993
  %v2002 = vadd.f32 %v1930, %v1994
  %v2003 = vadd.f32 %v1944, %v1995
  %v2004 = vadd.f32 %v1958, %v1996
  %v2005 = vadd.f32 %v1972, %v1997
  %v2006 = vmul.f32 %v1998, 0.7978846
  %v2007 = vmul.f32 %v1999, 0.7978846
  %v2008 = vmul.f32 %v2000, 0.7978846
  %v2009 = vmul.f32 %v2001, 0.7978846
  %v2010 = vmul.f32 %v2002, 0.7978846
  %v2011 = vmul.f32 %v2003, 0.7978846
  %v2012 = vmul.f32 %v2004, 0.7978846
  %v2013 = vmul.f32 %v2005, 0.7978846
  %v2014 = vtanh.pop %v2006
  %v2015 = vtanh.pop %v2007
  %v2016 = vtanh.pop %v2008
  %v2017 = vtanh.pop %v2009
  %v2018 = vtanh.pop %v2010
  %v2019 = vtanh.pop %v2011
  %v2020 = vtanh.pop %v2012
  %v2021 = vtanh.pop %v2013
  %v2022 = vadd.f32 %v2014, 1.0
  %v2023 = vadd.f32 %v2015, 1.0
  %v2024 = vadd.f32 %v2016, 1.0
  %v2025 = vadd.f32 %v2017, 1.0
  %v2026 = vadd.f32 %v2018, 1.0
  %v2027 = vadd.f32 %v2019, 1.0
  %v2028 = vadd.f32 %v2020, 1.0
  %v2029 = vadd.f32 %v2021, 1.0
  %v2030 = vmul.f32 %v2022, 0.5
  %v2031 = vmul.f32 %v2023, 0.5
  %v2032 = vmul.f32 %v2024, 0.5
  %v2033 = vmul.f32 %v2025, 0.5
  %v2034 = vmul.f32 %v2026, 0.5
  %v2035 = vmul.f32 %v2027, 0.5
  %v2036 = vmul.f32 %v2028, 0.5
  %v2037 = vmul.f32 %v2029, 0.5
  %v2038 = vmul.f32 %v1928, %v2030
  %v2039 = vmul.f32 %v1942, %v2031
  %v2040 = vmul.f32 %v1956, %v2032
  %v2041 = vmul.f32 %v1970, %v2033
  %v2042 = vmul.f32 %v1930, %v2034
  %v2043 = vmul.f32 %v1944, %v2035
  %v2044 = vmul.f32 %v1958, %v2036
  %v2045 = vmul.f32 %v1972, %v2037
  %v2046 = vpack.c.bf16 %v2042, %v2038
  %v2047 = vpack.c.bf16 %v2043, %v2039
  %v2048 = vpack.c.bf16 %v2044, %v2040
  %v2049 = vpack.c.bf16 %v2045, %v2041
  %v2050 = vld [vmem:[%s13] sm:$0xf]
  %v2051 = vld [vmem:[%s13 + $0x4] sm:$0xf]
  %v2052 = vld [vmem:[%s13 + $0x8] sm:$0xf]
  %v2053 = vld [vmem:[%s13 + $0xc] sm:$0xf]
  %v2054 = vld [vmem:[%s13 + $0x10] sm:$0xf]
  %v2055 = vld [vmem:[%s13 + $0x14] sm:$0xf]
  %v2056 = vld [vmem:[%s13 + $0x18] sm:$0xf]
  %v2057 = vld [vmem:[%s13 + $0x1c] sm:$0xf]
  %v2058 = vld [vmem:[%s13 + $0x20] sm:$0xf]
  %v2059 = vld [vmem:[%s13 + $0x24] sm:$0xf]
  %v2060 = vld [vmem:[%s13 + $0x28] sm:$0xf]
  %v2061 = vld [vmem:[%s13 + $0x2c] sm:$0xf]
  %v2062 = vld [vmem:[%s13 + $0x30] sm:$0xf]
  %v2063 = vld [vmem:[%s13 + $0x34] sm:$0xf]
  %v2064 = vld [vmem:[%s13 + $0x38] sm:$0xf]
  %v2065 = vld [vmem:[%s13 + $0x3c] sm:$0xf]
  %v2066 = vld [vmem:[%s13 + $0x40] sm:$0xf]
  %v2067 = vld [vmem:[%s13 + $0x44] sm:$0xf]
  %v2068 = vld [vmem:[%s13 + $0x48] sm:$0xf]
  %v2069 = vld [vmem:[%s13 + $0x4c] sm:$0xf]
  %v2070 = vld [vmem:[%s13 + $0x50] sm:$0xf]
  %v2071 = vld [vmem:[%s13 + $0x54] sm:$0xf]
  %v2072 = vld [vmem:[%s13 + $0x58] sm:$0xf]
  %v2073 = vld [vmem:[%s13 + $0x5c] sm:$0xf]
  %v2074 = vld [vmem:[%s13 + $0x60] sm:$0xf]
  %v2075 = vld [vmem:[%s13 + $0x64] sm:$0xf]
  %v2076 = vld [vmem:[%s13 + $0x68] sm:$0xf]
  %v2077 = vld [vmem:[%s13 + $0x6c] sm:$0xf]
  %v2078 = vld [vmem:[%s13 + $0x70] sm:$0xf]
  %v2079 = vld [vmem:[%s13 + $0x74] sm:$0xf]
  %v2080 = vld [vmem:[%s13 + $0x78] sm:$0xf]
  %v2081 = vld [vmem:[%s13 + $0x7c] sm:$0xf]
  %v2082 = vld [vmem:[%s13 + $0x80] sm:$0xf]
  %v2083 = vld [vmem:[%s13 + $0x84] sm:$0xf]
  %v2084 = vld [vmem:[%s13 + $0x88] sm:$0xf]
  %v2085 = vld [vmem:[%s13 + $0x8c] sm:$0xf]
  %v2086 = vld [vmem:[%s13 + $0x90] sm:$0xf]
  %v2087 = vld [vmem:[%s13 + $0x94] sm:$0xf]
  %v2088 = vld [vmem:[%s13 + $0x98] sm:$0xf]
  %v2089 = vld [vmem:[%s13 + $0x9c] sm:$0xf]
  %v2090 = vld [vmem:[%s13 + $0xa0] sm:$0xf]
  %v2091 = vld [vmem:[%s13 + $0xa4] sm:$0xf]
  %v2092 = vld [vmem:[%s13 + $0xa8] sm:$0xf]
  %v2093 = vld [vmem:[%s13 + $0xac] sm:$0xf]
  %v2094 = vld [vmem:[%s13 + $0xb0] sm:$0xf]
  %v2095 = vld [vmem:[%s13 + $0xb4] sm:$0xf]
  %v2096 = vld [vmem:[%s13 + $0xb8] sm:$0xf]
  %v2097 = vld [vmem:[%s13 + $0xbc] sm:$0xf]
  %v2098 = vld [vmem:[%s13 + $0xc0] sm:$0xf]
  %v2099 = vld [vmem:[%s13 + $0xc4] sm:$0xf]
  %v2100 = vld [vmem:[%s13 + $0xc8] sm:$0xf]
  %v2101 = vld [vmem:[%s13 + $0xcc] sm:$0xf]
  %v2102 = vld [vmem:[%s13 + $0xd0] sm:$0xf]
  %v2103 = vld [vmem:[%s13 + $0xd4] sm:$0xf]
  %v2104 = vld [vmem:[%s13 + $0xd8] sm:$0xf]
  %v2105 = vld [vmem:[%s13 + $0xdc] sm:$0xf]
  %v2106 = vld [vmem:[%s13 + $0xe0] sm:$0xf]
  %v2107 = vld [vmem:[%s13 + $0xe4] sm:$0xf]
  %v2108 = vld [vmem:[%s13 + $0xe8] sm:$0xf]
  %v2109 = vld [vmem:[%s13 + $0xec] sm:$0xf]
  %v2110 = vld [vmem:[%s13 + $0xf0] sm:$0xf]
  %v2111 = vld [vmem:[%s13 + $0xf4] sm:$0xf]
  %v2112 = vld [vmem:[%s13 + $0xf8] sm:$0xf]
  %v2113 = vld [vmem:[%s13 + $0xfc] sm:$0xf]
  %v2178 = vunpack.c.l.b16 %v2050
  %v2179 = vunpack.c.l.b16 %v2051
  %v2180 = vunpack.c.l.b16 %v2052
  %v2181 = vunpack.c.l.b16 %v2053
  %v2182 = vunpack.c.l.b16 %v2054
  %v2183 = vunpack.c.l.b16 %v2055
  %v2184 = vunpack.c.l.b16 %v2056
  %v2185 = vunpack.c.l.b16 %v2057
  %v2186 = vunpack.c.l.b16 %v2058
  %v2187 = vunpack.c.l.b16 %v2059
  %v2188 = vunpack.c.l.b16 %v2060
  %v2189 = vunpack.c.l.b16 %v2061
  %v2190 = vunpack.c.l.b16 %v2062
  %v2191 = vunpack.c.l.b16 %v2063
  %v2192 = vunpack.c.l.b16 %v2064
  %v2193 = vunpack.c.l.b16 %v2065
  %v2194 = vunpack.c.l.b16 %v2066
  %v2195 = vunpack.c.l.b16 %v2067
  %v2196 = vunpack.c.l.b16 %v2068
  %v2197 = vunpack.c.l.b16 %v2069
  %v2198 = vunpack.c.l.b16 %v2070
  %v2199 = vunpack.c.l.b16 %v2071
  %v2200 = vunpack.c.l.b16 %v2072
  %v2201 = vunpack.c.l.b16 %v2073
  %v2202 = vunpack.c.l.b16 %v2074
  %v2203 = vunpack.c.l.b16 %v2075
  %v2204 = vunpack.c.l.b16 %v2076
  %v2205 = vunpack.c.l.b16 %v2077
  %v2206 = vunpack.c.l.b16 %v2078
  %v2207 = vunpack.c.l.b16 %v2079
  %v2208 = vunpack.c.l.b16 %v2080
  %v2209 = vunpack.c.l.b16 %v2081
  %v2210 = vunpack.c.l.b16 %v2082
  %v2211 = vunpack.c.l.b16 %v2083
  %v2212 = vunpack.c.l.b16 %v2084
  %v2213 = vunpack.c.l.b16 %v2085
  %v2214 = vunpack.c.l.b16 %v2086
  %v2215 = vunpack.c.l.b16 %v2087
  %v2216 = vunpack.c.l.b16 %v2088
  %v2217 = vunpack.c.l.b16 %v2089
  %v2218 = vunpack.c.l.b16 %v2090
  %v2219 = vunpack.c.l.b16 %v2091
  %v2220 = vunpack.c.l.b16 %v2092
  %v2221 = vunpack.c.l.b16 %v2093
  %v2222 = vunpack.c.l.b16 %v2094
  %v2223 = vunpack.c.l.b16 %v2095
  %v2224 = vunpack.c.l.b16 %v2096
  %v2225 = vunpack.c.l.b16 %v2097
  %v2226 = vunpack.c.l.b16 %v2098
  %v2227 = vunpack.c.l.b16 %v2099
  %v2228 = vunpack.c.l.b16 %v2100
  %v2229 = vunpack.c.l.b16 %v2101
  %v2230 = vunpack.c.l.b16 %v2102
  %v2231 = vunpack.c.l.b16 %v2103
  %v2232 = vunpack.c.l.b16 %v2104
  %v2233 = vunpack.c.l.b16 %v2105
  %v2234 = vunpack.c.l.b16 %v2106
  %v2235 = vunpack.c.l.b16 %v2107
  %v2236 = vunpack.c.l.b16 %v2108
  %v2237 = vunpack.c.l.b16 %v2109
  %v2238 = vunpack.c.l.b16 %v2110
  %v2239 = vunpack.c.l.b16 %v2111
  %v2240 = vunpack.c.l.b16 %v2112
  %v2241 = vunpack.c.l.b16 %v2113
  %v2242 = vpack.c.b16 %v2179, %v2178
  %v2243 = vpack.c.b16 %v2181, %v2180
  %v2244 = vpack.c.b16 %v2183, %v2182
  %v2245 = vpack.c.b16 %v2185, %v2184
  %v2246 = vpack.c.b16 %v2187, %v2186
  %v2247 = vpack.c.b16 %v2189, %v2188
  %v2248 = vpack.c.b16 %v2191, %v2190
  %v2249 = vpack.c.b16 %v2193, %v2192
  %v2250 = vpack.c.b16 %v2195, %v2194
  %v2251 = vpack.c.b16 %v2197, %v2196
  %v2252 = vpack.c.b16 %v2199, %v2198
  %v2253 = vpack.c.b16 %v2201, %v2200
  %v2254 = vpack.c.b16 %v2203, %v2202
  %v2255 = vpack.c.b16 %v2205, %v2204
  %v2256 = vpack.c.b16 %v2207, %v2206
  %v2257 = vpack.c.b16 %v2209, %v2208
  %v2258 = vpack.c.b16 %v2211, %v2210
  %v2259 = vpack.c.b16 %v2213, %v2212
  %v2260 = vpack.c.b16 %v2215, %v2214
  %v2261 = vpack.c.b16 %v2217, %v2216
  %v2262 = vpack.c.b16 %v2219, %v2218
  %v2263 = vpack.c.b16 %v2221, %v2220
  %v2264 = vpack.c.b16 %v2223, %v2222
  %v2265 = vpack.c.b16 %v2225, %v2224
  %v2266 = vpack.c.b16 %v2227, %v2226
  %v2267 = vpack.c.b16 %v2229, %v2228
  %v2268 = vpack.c.b16 %v2231, %v2230
  %v2269 = vpack.c.b16 %v2233, %v2232
  %v2270 = vpack.c.b16 %v2235, %v2234
  %v2271 = vpack.c.b16 %v2237, %v2236
  %v2272 = vpack.c.b16 %v2239, %v2238
  %v2273 = vpack.c.b16 %v2241, %v2240
  %2306 = vmatpush.bf16.msra.mxu0 %v2249
  %2307 = vmatpush.bf16.msra.mxu0 %v2248
  %2308 = vmatpush.bf16.msra.mxu0 %v2247
  %2309 = vmatpush.bf16.msra.mxu0 %v2246
  %2310 = vmatpush.bf16.msra.mxu0 %v2245
  %2311 = vmatpush.bf16.msra.mxu0 %v2244
  %2312 = vmatpush.bf16.msra.mxu0 %v2243
  %2313 = vmatpush.bf16.msra.mxu0 %v2242
  %2314 = vmatmul.bf16.gmra.mxu0 %v2046
  %v2315 = vpop.f32.mrf.mxu0
  %v2316 = vadd.f32 0.0, %v2315
  %v2317 = vpop.f32.mrf.mxu0
  %v2318 = vadd.f32 0.0, %v2317
  %2319 = vdwg.mxu0
  %2320 = vmatpush.bf16.msra.mxu0 %v2257
  %2321 = vmatpush.bf16.msra.mxu0 %v2256
  %2322 = vmatpush.bf16.msra.mxu0 %v2255
  %2323 = vmatpush.bf16.msra.mxu0 %v2254
  %2324 = vmatpush.bf16.msra.mxu0 %v2253
  %2325 = vmatpush.bf16.msra.mxu0 %v2252
  %2326 = vmatpush.bf16.msra.mxu0 %v2251
  %2327 = vmatpush.bf16.msra.mxu0 %v2250
  %2328 = vmatmul.bf16.gmra.mxu0 %v2047
  %v2329 = vpop.f32.mrf.mxu0
  %v2330 = vadd.f32 %v2316, %v2329
  %v2331 = vpop.f32.mrf.mxu0
  %v2332 = vadd.f32 %v2318, %v2331
  %2333 = vdwg.mxu0
  %2334 = vmatpush.bf16.msra.mxu0 %v2265
  %2335 = vmatpush.bf16.msra.mxu0 %v2264
  %2336 = vmatpush.bf16.msra.mxu0 %v2263
  %2337 = vmatpush.bf16.msra.mxu0 %v2262
  %2338 = vmatpush.bf16.msra.mxu0 %v2261
  %2339 = vmatpush.bf16.msra.mxu0 %v2260
  %2340 = vmatpush.bf16.msra.mxu0 %v2259
  %2341 = vmatpush.bf16.msra.mxu0 %v2258
  %2342 = vmatmul.bf16.gmra.mxu0 %v2048
  %v2343 = vpop.f32.mrf.mxu0
  %v2344 = vadd.f32 %v2330, %v2343
  %v2345 = vpop.f32.mrf.mxu0
  %v2346 = vadd.f32 %v2332, %v2345
  %2347 = vdwg.mxu0
  %2348 = vmatpush.bf16.msra.mxu0 %v2273
  %2349 = vmatpush.bf16.msra.mxu0 %v2272
  %2350 = vmatpush.bf16.msra.mxu0 %v2271
  %2351 = vmatpush.bf16.msra.mxu0 %v2270
  %2352 = vmatpush.bf16.msra.mxu0 %v2269
  %2353 = vmatpush.bf16.msra.mxu0 %v2268
  %2354 = vmatpush.bf16.msra.mxu0 %v2267
  %2355 = vmatpush.bf16.msra.mxu0 %v2266
  %2356 = vmatmul.bf16.gmra.mxu0 %v2049
  %v2357 = vpop.f32.mrf.mxu0
  %v2358 = vadd.f32 %v2344, %v2357
  %v2359 = vpop.f32.mrf.mxu0
  %v2360 = vadd.f32 %v2346, %v2359
  %2361 = vdwg.mxu0
  %v2362 = vadd.f32 %v1661, %v2358
  %v2363 = vadd.f32 %v1662, %v2360
  %v2364 = vld [vmem:[%s14] sm:$0x1]
  %v2366 = vperm.slane %v2364, 0
  %v2368 = vadd.f32 %v2362, %v2366
  %v2369 = vadd.f32 %v2363, %v2366
  %v2370 = vld [vmem:[%s19] sm:$0xff]
  %v2372 = vsel %vm951, %v2370, 0
  %2374 = vmatpush.msra.mxu0 0.0
  %2375 = vmatpush.msra.mxu0 0.0
  %2376 = vmatpush.msra.mxu0 0.0
  %2377 = vmatpush.msra.mxu0 0.0
  %2378 = vmatpush.msra.mxu0 0.0
  %2379 = vmatpush.msra.mxu0 0.0
  %2380 = vmatpush.msra.mxu0 0.0
  %2381 = vmatpush.msra.mxu0 0.0
  %2382 = vmatpush.msra.mxu0 0.0
  %2383 = vmatpush.msra.mxu0 0.0
  %2384 = vmatpush.msra.mxu0 0.0
  %2385 = vmatpush.msra.mxu0 0.0
  %2386 = vmatpush.msra.mxu0 0.0
  %2387 = vmatpush.msra.mxu0 0.0
  %2388 = vmatpush.msra.mxu0 %v2369
  %2389 = vmatpush.msra.mxu0 %v2368
  %2390 = vmatmul.f32.gmra.mxu0 %v2372
  %v2391 = vpop.f32.mrf.mxu0
  %v2392 = vadd.f32 0.0, %v2391
  %2393 = vdwg.mxu0
  %v2394 = vld [vmem:[%s15] sm:$0x1]
  %v2395 = vld [vmem:[%s16] sm:$0x1]
  %2396 = vadd.xlane.f32.xlu0 %v2392
  %v2397 = vpop.xlane.xlu0 %2396
  %v2398 = vmul.f32 %v2397, %v584
  %v2399 = vsub.f32 %v2392, %v2398
  %v2400 = vmul.f32 %v2399, %v2399
  %2401 = vadd.xlane.f32.xlu0 %v2400
  %v2402 = vpop.xlane.xlu0 %2401
  %v2403 = vmul.f32 %v2402, %v584
  %v2404 = vadd.f32 %v2403, 1e-06
  %v2405 = vrsqrt.pop %v2404
  %v2406 = vmul.f32 %v2405, %v2404
  %v2407 = vmul.f32 %v2406, %v2405
  %v2408 = vmul.f32 0.5, %v2407
  %v2409 = vsub.f32 1.5, %v2408
  %v2410 = vmul.f32 %v2405, %v2409
  %vm2411 = vweird.f32 %v2404
  %vm2412 = vweird.f32 %v2405
  %vm2413 = vmor %vm2411, %vm2412
  %v2414 = vsel %vm2413, %v2405, %v2410
  %v2415 = vmul.f32 %v2399, %v2414
  %v2417 = vperm.slane %v2394, 0
  %v2419 = vmul.f32 %v2415, %v2417
  %v2421 = vperm.slane %v2395, 0
  %v2423 = vadd.f32 %v2419, %v2421
  %2424 = vst [vmem:[%s20] sm:$0xff] %v2423
  // Predicated region
  $region82: #{tactile_autoencoder_forward.2} parent=0 // pred_check
    _
  $region83: #{tactile_autoencoder_forward.2} parent=0 // pred_check_branch
    %2426 = sbr.rel (0) target = $region85
  $region84: #{tactile_autoencoder_forward.2} parent=0 // pred_region
    _
  $region85: #{tactile_autoencoder_forward.2} parent=0 // pred_fallthru
    _
  // Predicated region
  $region86: #{tactile_autoencoder_forward.2} parent=0 // pred_check
    _
  $region87: #{tactile_autoencoder_forward.2} parent=0 // pred_check_branch
    %2428 = sbr.rel (0) target = $region89
  $region88: #{tactile_autoencoder_forward.2} parent=0 // pred_region
    _
  $region89: #{tactile_autoencoder_forward.2} parent=0 // pred_fallthru
    _

// kernel: tactile_autoencoder_forward.3
$region0: #{tactile_autoencoder_forward.3}
  #allocation0 [shape = 'u32[]', space=smem, size = 0x4, offset = 0x4, fixed_abs, tag = 'smem constant byte address 0x4 - core index']
  #allocation1 [shape = 'u32[72,128]{1,0:T(1,128)}', space=vmem, size = 0x9000, scoped, tag = 'internal scratch']
  %s0 = inlined_call_operand.smem [shape: u32[31], index: -1, kind: input, shape index: {}]
  %s1 = sld [smem:[%s0]]
  %s2 = scalar_lea.smem %s0, 1
  %s3 = sld [smem:[%s2]]
  %s4 = scalar_lea.smem %s0, 2
  %s5 = sld [smem:[%s4]]
  %s6 = scalar_lea.smem %s0, 3
  %s7 = sld [smem:[%s6]]
  %s8 = scalar_lea.smem %s0, 4
  %s9 = sld [smem:[%s8]]
  %s10 = scalar_lea.smem %s0, 5
  %s11 = sld [smem:[%s10]]
  %s12 = scalar_lea.smem %s0, 6
  %s13 = sld [smem:[%s12]]
  %s14 = scalar_lea.smem %s0, 7
  %s15 = sld [smem:[%s14]]
  %s16 = scalar_lea.smem %s0, 8
  %s17 = sld [smem:[%s16]]
  %s18 = scalar_lea.smem %s0, 9
  %s19 = sld [smem:[%s18]]
  %s20 = scalar_lea.smem %s0, 10
  %s21 = sld [smem:[%s20]]
  %s22 = scalar_lea.smem %s0, 11
  %s23 = sld [smem:[%s22]]
  %s24 = scalar_lea.smem %s0, 12
  %s25 = sld [smem:[%s24]]
  %s26 = scalar_lea.smem %s0, 13
  %s27 = sld [smem:[%s26]]
  %s28 = scalar_lea.smem %s0, 14
  %s29 = sld [smem:[%s28]]
  %s30 = scalar_lea.smem %s0, 15
  %s31 = sld [smem:[%s30]]
  %s32 = scalar_lea.smem %s0, 16
  %s33 = sld [smem:[%s32]]
  %s34 = scalar_lea.smem %s0, 17
  %s35 = sld [smem:[%s34]]
  %s36 = scalar_lea.smem %s0, 18
  %s37 = sld [smem:[%s36]]
  %s38 = scalar_lea.smem %s0, 19
  %s39 = sld [smem:[%s38]]
  %s40 = scalar_lea.smem %s0, 20
  %s41 = sld [smem:[%s40]]
  %s42 = scalar_lea.smem %s0, 21
  %s43 = sld [smem:[%s42]]
  %s44 = scalar_lea.smem %s0, 22
  %s45 = sld [smem:[%s44]]
  %s46 = scalar_lea.smem %s0, 23
  %s47 = sld [smem:[%s46]]
  %s48 = scalar_lea.smem %s0, 24
  %s49 = sld [smem:[%s48]]
  %s50 = scalar_lea.smem %s0, 25
  %s51 = sld [smem:[%s50]]
  %s52 = scalar_lea.smem %s0, 26
  %s53 = sld [smem:[%s52]]
  %s54 = scalar_lea.smem %s0, 27
  %s55 = sld [smem:[%s54]]
  %s56 = scalar_lea.smem %s0, 28
  %s57 = sld [smem:[%s56]]
  %s58 = scalar_lea.smem %s0, 29
  %s59 = sld [smem:[%s58]]
  %s60 = scalar_lea.smem %s0, 30
  %s61 = sld [smem:[%s60]]
  %s62 = sld [smem:[#allocation0]]
  $region162: #{tactile_autoencoder_forward.3} parent=0
    _
  %s64 = ssub.s32 1, %s62
  %s65 = scalar_select 0, %s64, %s62
  $region1: #{tactile_autoencoder_forward.3} parent=0
    #allocation2 [shape = 'u8[512]{0}', space=vmem, size = 0x400, scoped, tag = 'input window, operand 16, single buffered']
    #allocation3 [shape = 's32[1]{0}', space=sflag, size = 0x4, scoped, tag = 'scoped memory for tactile_autoencoder_forward.3']
    #allocation4 [shape = 'u8[512]{0}', space=vmem, size = 0x400, scoped, tag = 'input window, operand 17, single buffered']
    #allocation5 [shape = 's32[1]{0}', space=sflag, size = 0x4, scoped, tag = 'scoped memory for tactile_autoencoder_forward.3']
    #allocation6 [shape = 'u8[512]{0}', space=vmem, size = 0x400, scoped, tag = 'input window, operand 18, single buffered']
    #allocation7 [shape = 'u8[512]{0}', space=vmem, size = 0x400, scoped, tag = 'input window, operand 20, single buffered']
    #allocation8 [shape = 's32[1]{0}', space=sflag, size = 0x4, scoped, tag = 'scoped memory for tactile_autoencoder_forward.3']
    #allocation9 [shape = 'u8[512]{0}', space=vmem, size = 0x400, scoped, tag = 'input window, operand 22, single buffered']
    #allocation10 [shape = 'u8[512]{0}', space=vmem, size = 0x400, scoped, tag = 'input window, operand 23, single buffered']
    #allocation11 [shape = 's32[1]{0}', space=sflag, size = 0x4, scoped, tag = 'scoped memory for tactile_autoencoder_forward.3']
    #allocation12 [shape = 'u8[512]{0}', space=vmem, size = 0x400, scoped, tag = 'input window, operand 24, single buffered']
    #allocation13 [shape = 'u8[512]{0}', space=vmem, size = 0x400, scoped, tag = 'input window, operand 27, single buffered']
    #allocation14 [shape = 's32[1]{0}', space=sflag, size = 0x4, scoped, tag = 'scoped memory for tactile_autoencoder_forward.3']
    %66 = vsyncpa [#allocation3], 0
    %67 = vsyncpa [#allocation5], 0
    %68 = vsyncpa [#allocation8], 0
    %69 = vsyncpa [#allocation11], 0
    %70 = vsyncpa [#allocation14], 0
    // Predicated region
    $region2: #{tactile_autoencoder_forward.3} parent=1 // pred_check
      _
    $region3: #{tactile_autoencoder_forward.3} parent=1 // pred_check_branch
      %72 = sbr.rel (0) target = $region5
    $region4: #{tactile_autoencoder_forward.3} parent=1 // pred_region
      _
    $region5: #{tactile_autoencoder_forward.3} parent=1 // pred_fallthru
      _
    // Predicated region
    $region6: #{tactile_autoencoder_forward.3} parent=1 // pred_check
      _
    $region7: #{tactile_autoencoder_forward.3} parent=1 // pred_check_branch
      %74 = sbr.rel (0) target = $region9
    $region8: #{tactile_autoencoder_forward.3} parent=1 // pred_region
      _
    $region9: #{tactile_autoencoder_forward.3} parent=1 // pred_fallthru
      _
    // Predicated region
    $region10: #{tactile_autoencoder_forward.3} parent=1 // pred_check
      _
    $region11: #{tactile_autoencoder_forward.3} parent=1 // pred_check_branch
      %76 = sbr.rel (0) target = $region13
    $region12: #{tactile_autoencoder_forward.3} parent=1 // pred_region
      _
    $region13: #{tactile_autoencoder_forward.3} parent=1 // pred_fallthru
      _
    // Predicated region
    $region14: #{tactile_autoencoder_forward.3} parent=1 // pred_check
      _
    $region15: #{tactile_autoencoder_forward.3} parent=1 // pred_check_branch
      %78 = sbr.rel (0) target = $region17
    $region16: #{tactile_autoencoder_forward.3} parent=1 // pred_region
      _
    $region17: #{tactile_autoencoder_forward.3} parent=1 // pred_fallthru
      _
    // Predicated region
    $region18: #{tactile_autoencoder_forward.3} parent=1 // pred_check
      _
    $region19: #{tactile_autoencoder_forward.3} parent=1 // pred_check_branch
      %80 = sbr.rel (0) target = $region21
    $region20: #{tactile_autoencoder_forward.3} parent=1 // pred_region
      _
    $region21: #{tactile_autoencoder_forward.3} parent=1 // pred_fallthru
      _
    // Predicated region
    $region22: #{tactile_autoencoder_forward.3} parent=1 // pred_check
      _
    $region23: #{tactile_autoencoder_forward.3} parent=1 // pred_check_branch
      %82 = sbr.rel (0) target = $region25
    $region24: #{tactile_autoencoder_forward.3} parent=1 // pred_region
      _
    $region25: #{tactile_autoencoder_forward.3} parent=1 // pred_fallthru
      _
    // Predicated region
    $region26: #{tactile_autoencoder_forward.3} parent=1 // pred_check
      _
    $region27: #{tactile_autoencoder_forward.3} parent=1 // pred_check_branch
      %84 = sbr.rel (0) target = $region29
    $region28: #{tactile_autoencoder_forward.3} parent=1 // pred_region
      _
    $region29: #{tactile_autoencoder_forward.3} parent=1 // pred_fallthru
      _
    // Predicated region
    $region30: #{tactile_autoencoder_forward.3} parent=1 // pred_check
      _
    $region31: #{tactile_autoencoder_forward.3} parent=1 // pred_check_branch
      %86 = sbr.rel (0) target = $region33
    $region32: #{tactile_autoencoder_forward.3} parent=1 // pred_region
      _
    $region33: #{tactile_autoencoder_forward.3} parent=1 // pred_fallthru
      _
    // Predicated region
    $region34: #{tactile_autoencoder_forward.3} parent=1 // pred_check
      _
    $region35: #{tactile_autoencoder_forward.3} parent=1 // pred_check_branch
      %88 = sbr.rel (0) target = $region37
    $region36: #{tactile_autoencoder_forward.3} parent=1 // pred_region
      _
    $region37: #{tactile_autoencoder_forward.3} parent=1 // pred_fallthru
      _
    // Predicated region
    $region38: #{tactile_autoencoder_forward.3} parent=1 // pred_check
      _
    $region39: #{tactile_autoencoder_forward.3} parent=1 // pred_check_branch
      %90 = sbr.rel (0) target = $region41
    $region40: #{tactile_autoencoder_forward.3} parent=1 // pred_region
      _
    $region41: #{tactile_autoencoder_forward.3} parent=1 // pred_fallthru
      _
    // Predicated region
    $region42: #{tactile_autoencoder_forward.3} parent=1 // pred_check
      _
    $region43: #{tactile_autoencoder_forward.3} parent=1 // pred_check_branch
      %92 = sbr.rel (0) target = $region45
    $region44: #{tactile_autoencoder_forward.3} parent=1 // pred_region
      _
    $region45: #{tactile_autoencoder_forward.3} parent=1 // pred_fallthru
      _
    // Predicated region
    $region46: #{tactile_autoencoder_forward.3} parent=1 // pred_check
      _
    $region47: #{tactile_autoencoder_forward.3} parent=1 // pred_check_branch
      %94 = sbr.rel (0) target = $region49
    $region48: #{tactile_autoencoder_forward.3} parent=1 // pred_region
      _
    $region49: #{tactile_autoencoder_forward.3} parent=1 // pred_fallthru
      _
    // Predicated region
    $region50: #{tactile_autoencoder_forward.3} parent=1 // pred_check
      _
    $region51: #{tactile_autoencoder_forward.3} parent=1 // pred_check_branch
      %96 = sbr.rel (0) target = $region53
    $region52: #{tactile_autoencoder_forward.3} parent=1 // pred_region
      _
    $region53: #{tactile_autoencoder_forward.3} parent=1 // pred_fallthru
      _
    // Predicated region
    $region54: #{tactile_autoencoder_forward.3} parent=1 // pred_check
      _
    $region55: #{tactile_autoencoder_forward.3} parent=1 // pred_check_branch
      %98 = sbr.rel (0) target = $region57
    $region56: #{tactile_autoencoder_forward.3} parent=1 // pred_region
      _
    $region57: #{tactile_autoencoder_forward.3} parent=1 // pred_fallthru
      _
    // Predicated region
    $region58: #{tactile_autoencoder_forward.3} parent=1 // pred_check
      _
    $region59: #{tactile_autoencoder_forward.3} parent=1 // pred_check_branch
      %100 = sbr.rel (0) target = $region61
    $region60: #{tactile_autoencoder_forward.3} parent=1 // pred_region
      _
    $region61: #{tactile_autoencoder_forward.3} parent=1 // pred_fallthru
      _
    // Predicated region
    $region62: #{tactile_autoencoder_forward.3} parent=1 // pred_check
      _
    $region63: #{tactile_autoencoder_forward.3} parent=1 // pred_check_branch
      %102 = sbr.rel (0) target = $region65
    $region64: #{tactile_autoencoder_forward.3} parent=1 // pred_region
      _
    $region65: #{tactile_autoencoder_forward.3} parent=1 // pred_fallthru
      _
    // Predicated region
    $region66: #{tactile_autoencoder_forward.3} parent=1 // pred_check
      _
    $region67: #{tactile_autoencoder_forward.3} parent=1 // pred_check_branch
      %104 = sbr.rel (0) target = $region69
    $region68: #{tactile_autoencoder_forward.3} parent=1 // pred_region
      %106 = vsyncadd [#allocation3], 0
      %s108 = sshll.u32 %s33, 4
      %s109 = int_to_ptr.hbm [resolvable:$true] %s108
      %s110 = sshll.u32 [#allocation2], 4
      %s111 = int_to_ptr.vmem [resolvable:$true] %s110
      %113 = dma.hbm_to_vmem [thread:$0]  %s109, 16, %s111, [#allocation3]
    $region69: #{tactile_autoencoder_forward.3} parent=1 // pred_fallthru
      _
    // Predicated region
    $region70: #{tactile_autoencoder_forward.3} parent=1 // pred_check
      _
    $region71: #{tactile_autoencoder_forward.3} parent=1 // pred_check_branch
      %115 = sbr.rel (0) target = $region73
    $region72: #{tactile_autoencoder_forward.3} parent=1 // pred_region
      %117 = vsyncadd [#allocation5], 0
      %s119 = sshll.u32 %s35, 4
      %s120 = int_to_ptr.hbm [resolvable:$true] %s119
      %s121 = sshll.u32 [#allocation4], 4
      %s122 = int_to_ptr.vmem [resolvable:$true] %s121
      %124 = dma.hbm_to_vmem [thread:$0]  %s120, 16, %s122, [#allocation5]
    $region73: #{tactile_autoencoder_forward.3} parent=1 // pred_fallthru
      _
    // Predicated region
    $region74: #{tactile_autoencoder_forward.3} parent=1 // pred_check
      _
    $region75: #{tactile_autoencoder_forward.3} parent=1 // pred_check_branch
      %126 = sbr.rel (0) target = $region77
    $region76: #{tactile_autoencoder_forward.3} parent=1 // pred_region
      %128 = vsyncadd [#allocation5], 0
      %s130 = sshll.u32 %s37, 4
      %s131 = int_to_ptr.hbm [resolvable:$true] %s130
      %s132 = sshll.u32 [#allocation6], 4
      %s133 = int_to_ptr.vmem [resolvable:$true] %s132
      %135 = dma.hbm_to_vmem [thread:$0]  %s131, 16, %s133, [#allocation5]
    $region77: #{tactile_autoencoder_forward.3} parent=1 // pred_fallthru
      _
    // Predicated region
    $region78: #{tactile_autoencoder_forward.3} parent=1 // pred_check
      _
    $region79: #{tactile_autoencoder_forward.3} parent=1 // pred_check_branch
      %137 = sbr.rel (0) target = $region81
    $region80: #{tactile_autoencoder_forward.3} parent=1 // pred_region
      _
    $region81: #{tactile_autoencoder_forward.3} parent=1 // pred_fallthru
      _
    // Predicated region
    $region82: #{tactile_autoencoder_forward.3} parent=1 // pred_check
      _
    $region83: #{tactile_autoencoder_forward.3} parent=1 // pred_check_branch
      %139 = sbr.rel (0) target = $region85
    $region84: #{tactile_autoencoder_forward.3} parent=1 // pred_region
      %141 = vsyncadd [#allocation8], 0
      %s143 = sshll.u32 %s41, 4
      %s144 = int_to_ptr.hbm [resolvable:$true] %s143
      %s145 = sshll.u32 [#allocation7], 4
      %s146 = int_to_ptr.vmem [resolvable:$true] %s145
      %148 = dma.hbm_to_vmem [thread:$0]  %s144, 16, %s146, [#allocation8]
    $region85: #{tactile_autoencoder_forward.3} parent=1 // pred_fallthru
      _
    // Predicated region
    $region86: #{tactile_autoencoder_forward.3} parent=1 // pred_check
      _
    $region87: #{tactile_autoencoder_forward.3} parent=1 // pred_check_branch
      %150 = sbr.rel (0) target = $region89
    $region88: #{tactile_autoencoder_forward.3} parent=1 // pred_region
      _
    $region89: #{tactile_autoencoder_forward.3} parent=1 // pred_fallthru
      _
    // Predicated region
    $region90: #{tactile_autoencoder_forward.3} parent=1 // pred_check
      _
    $region91: #{tactile_autoencoder_forward.3} parent=1 // pred_check_branch
      %152 = sbr.rel (0) target = $region93
    $region92: #{tactile_autoencoder_forward.3} parent=1 // pred_region
      %154 = vsyncadd [#allocation8], 0
      %s156 = sshll.u32 %s45, 4
      %s157 = int_to_ptr.hbm [resolvable:$true] %s156
      %s158 = sshll.u32 [#allocation9], 4
      %s159 = int_to_ptr.vmem [resolvable:$true] %s158
      %161 = dma.hbm_to_vmem [thread:$0]  %s157, 16, %s159, [#allocation8]
    $region93: #{tactile_autoencoder_forward.3} parent=1 // pred_fallthru
      _
    // Predicated region
    $region94: #{tactile_autoencoder_forward.3} parent=1 // pred_check
      _
    $region95: #{tactile_autoencoder_forward.3} parent=1 // pred_check_branch
      %163 = sbr.rel (0) target = $region97
    $region96: #{tactile_autoencoder_forward.3} parent=1 // pred_region
      %165 = vsyncadd [#allocation11], 0
      %s167 = sshll.u32 %s47, 4
      %s168 = int_to_ptr.hbm [resolvable:$true] %s167
      %s169 = sshll.u32 [#allocation10], 4
      %s170 = int_to_ptr.vmem [resolvable:$true] %s169
      %172 = dma.hbm_to_vmem [thread:$0]  %s168, 16, %s170, [#allocation11]
    $region97: #{tactile_autoencoder_forward.3} parent=1 // pred_fallthru
      _
    // Predicated region
    $region98: #{tactile_autoencoder_forward.3} parent=1 // pred_check
      _
    $region99: #{tactile_autoencoder_forward.3} parent=1 // pred_check_branch
      %174 = sbr.rel (0) target = $region101
    $region100: #{tactile_autoencoder_forward.3} parent=1 // pred_region
      %176 = vsyncadd [#allocation11], 0
      %s178 = sshll.u32 %s49, 4
      %s179 = int_to_ptr.hbm [resolvable:$true] %s178
      %s180 = sshll.u32 [#allocation12], 4
      %s181 = int_to_ptr.vmem [resolvable:$true] %s180
      %183 = dma.hbm_to_vmem [thread:$0]  %s179, 16, %s181, [#allocation11]
    $region101: #{tactile_autoencoder_forward.3} parent=1 // pred_fallthru
      _
    // Predicated region
    $region102: #{tactile_autoencoder_forward.3} parent=1 // pred_check
      _
    $region103: #{tactile_autoencoder_forward.3} parent=1 // pred_check_branch
      %185 = sbr.rel (0) target = $region105
    $region104: #{tactile_autoencoder_forward.3} parent=1 // pred_region
      _
    $region105: #{tactile_autoencoder_forward.3} parent=1 // pred_fallthru
      _
    // Predicated region
    $region106: #{tactile_autoencoder_forward.3} parent=1 // pred_check
      _
    $region107: #{tactile_autoencoder_forward.3} parent=1 // pred_check_branch
      %187 = sbr.rel (0) target = $region109
    $region108: #{tactile_autoencoder_forward.3} parent=1 // pred_region
      _
    $region109: #{tactile_autoencoder_forward.3} parent=1 // pred_fallthru
      _
    // Predicated region
    $region110: #{tactile_autoencoder_forward.3} parent=1 // pred_check
      _
    $region111: #{tactile_autoencoder_forward.3} parent=1 // pred_check_branch
      %189 = sbr.rel (0) target = $region113
    $region112: #{tactile_autoencoder_forward.3} parent=1 // pred_region
      %191 = vsyncadd [#allocation14], 0
      %s193 = sshll.u32 %s55, 4
      %s194 = int_to_ptr.hbm [resolvable:$true] %s193
      %s195 = sshll.u32 [#allocation13], 4
      %s196 = int_to_ptr.vmem [resolvable:$true] %s195
      %198 = dma.hbm_to_vmem [thread:$0]  %s194, 16, %s196, [#allocation14]
    $region113: #{tactile_autoencoder_forward.3} parent=1 // pred_fallthru
      _
    // Predicated region
    $region114: #{tactile_autoencoder_forward.3} parent=1 // pred_check
      _
    $region115: #{tactile_autoencoder_forward.3} parent=1 // pred_check_branch
      %200 = sbr.rel (0) target = $region117
    $region116: #{tactile_autoencoder_forward.3} parent=1 // pred_region
      _
    $region117: #{tactile_autoencoder_forward.3} parent=1 // pred_fallthru
      _
    // Predicated region
    $region118: #{tactile_autoencoder_forward.3} parent=1 // pred_check
      _
    $region119: #{tactile_autoencoder_forward.3} parent=1 // pred_check_branch
      %202 = sbr.rel (0) target = $region121
    $region120: #{tactile_autoencoder_forward.3} parent=1 // pred_region
      _
    $region121: #{tactile_autoencoder_forward.3} parent=1 // pred_fallthru
      _
    // Predicated region
    $region122: #{tactile_autoencoder_forward.3} parent=1 // pred_check
      _
    $region123: #{tactile_autoencoder_forward.3} parent=1 // pred_check_branch
      %204 = sbr.rel (0) target = $region125
    $region124: #{tactile_autoencoder_forward.3} parent=1 // pred_region
      %206 = dma.done [#allocation3], 16
    $region125: #{tactile_autoencoder_forward.3} parent=1 // pred_fallthru
      _
    // Predicated region
    $region126: #{tactile_autoencoder_forward.3} parent=1 // pred_check
      _
    $region127: #{tactile_autoencoder_forward.3} parent=1 // pred_check_branch
      %208 = sbr.rel (0) target = $region129
    $region128: #{tactile_autoencoder_forward.3} parent=1 // pred_region
      %210 = dma.done [#allocation5], 16
    $region129: #{tactile_autoencoder_forward.3} parent=1 // pred_fallthru
      _
    // Predicated region
    $region130: #{tactile_autoencoder_forward.3} parent=1 // pred_check
      _
    $region131: #{tactile_autoencoder_forward.3} parent=1 // pred_check_branch
      %212 = sbr.rel (0) target = $region133
    $region132: #{tactile_autoencoder_forward.3} parent=1 // pred_region
      %214 = dma.done [#allocation5], 16
    $region133: #{tactile_autoencoder_forward.3} parent=1 // pred_fallthru
      _
    // Predicated region
    $region134: #{tactile_autoencoder_forward.3} parent=1 // pred_check
      _
    $region135: #{tactile_autoencoder_forward.3} parent=1 // pred_check_branch
      %216 = sbr.rel (0) target = $region137
    $region136: #{tactile_autoencoder_forward.3} parent=1 // pred_region
      %218 = dma.done [#allocation8], 16
    $region137: #{tactile_autoencoder_forward.3} parent=1 // pred_fallthru
      _
    // Predicated region
    $region138: #{tactile_autoencoder_forward.3} parent=1 // pred_check
      _
    $region139: #{tactile_autoencoder_forward.3} parent=1 // pred_check_branch
      %220 = sbr.rel (0) target = $region141
    $region140: #{tactile_autoencoder_forward.3} parent=1 // pred_region
      %222 = dma.done [#allocation8], 16
    $region141: #{tactile_autoencoder_forward.3} parent=1 // pred_fallthru
      _
    // Predicated region
    $region142: #{tactile_autoencoder_forward.3} parent=1 // pred_check
      _
    $region143: #{tactile_autoencoder_forward.3} parent=1 // pred_check_branch
      %224 = sbr.rel (0) target = $region145
    $region144: #{tactile_autoencoder_forward.3} parent=1 // pred_region
      %226 = dma.done [#allocation11], 16
    $region145: #{tactile_autoencoder_forward.3} parent=1 // pred_fallthru
      _
    // Predicated region
    $region146: #{tactile_autoencoder_forward.3} parent=1 // pred_check
      _
    $region147: #{tactile_autoencoder_forward.3} parent=1 // pred_check_branch
      %228 = sbr.rel (0) target = $region149
    $region148: #{tactile_autoencoder_forward.3} parent=1 // pred_region
      %230 = dma.done [#allocation11], 16
    $region149: #{tactile_autoencoder_forward.3} parent=1 // pred_fallthru
      _
    // Predicated region
    $region150: #{tactile_autoencoder_forward.3} parent=1 // pred_check
      _
    $region151: #{tactile_autoencoder_forward.3} parent=1 // pred_check_branch
      %232 = sbr.rel (0) target = $region153
    $region152: #{tactile_autoencoder_forward.3} parent=1 // pred_region
      %234 = dma.done [#allocation14], 16
    $region153: #{tactile_autoencoder_forward.3} parent=1 // pred_fallthru
      _
    %v236 = vld [vmem:[%s1] sm:$0xf]
    %v237 = vld [vmem:[%s1 + $0x4] sm:$0xf]
    %v238 = vld [vmem:[%s1 + $0x8] sm:$0xf]
    %v239 = vld [vmem:[%s1 + $0xc] sm:$0xf]
    %v240 = vld [vmem:[%s1 + $0x10] sm:$0xf]
    %v241 = vld [vmem:[%s1 + $0x14] sm:$0xf]
    %v242 = vld [vmem:[%s1 + $0x18] sm:$0xf]
    %v243 = vld [vmem:[%s1 + $0x1c] sm:$0xf]
    %v244 = vld [vmem:[%s1 + $0x20] sm:$0xf]
    %v245 = vld [vmem:[%s1 + $0x24] sm:$0xf]
    %v246 = vld [vmem:[%s1 + $0x28] sm:$0xf]
    %v247 = vld [vmem:[%s1 + $0x2c] sm:$0xf]
    %v248 = vld [vmem:[%s1 + $0x30] sm:$0xf]
    %v249 = vld [vmem:[%s1 + $0x34] sm:$0xf]
    %v250 = vld [vmem:[%s1 + $0x38] sm:$0xf]
    %v251 = vld [vmem:[%s1 + $0x3c] sm:$0xf]
    %v252 = vld [vmem:[%s1 + $0x40] sm:$0xf]
    %v253 = vld [vmem:[%s1 + $0x44] sm:$0xf]
    %v254 = vld [vmem:[%s1 + $0x48] sm:$0xf]
    %v255 = vld [vmem:[%s1 + $0x4c] sm:$0xf]
    %v256 = vld [vmem:[%s1 + $0x50] sm:$0xf]
    %v257 = vld [vmem:[%s1 + $0x54] sm:$0xf]
    %v258 = vld [vmem:[%s1 + $0x58] sm:$0xf]
    %v259 = vld [vmem:[%s1 + $0x5c] sm:$0xf]
    %v260 = vld [vmem:[%s1 + $0x60] sm:$0xf]
    %v261 = vld [vmem:[%s1 + $0x64] sm:$0xf]
    %v262 = vld [vmem:[%s1 + $0x68] sm:$0xf]
    %v263 = vld [vmem:[%s1 + $0x6c] sm:$0xf]
    %v264 = vld [vmem:[%s1 + $0x70] sm:$0xf]
    %v265 = vld [vmem:[%s1 + $0x74] sm:$0xf]
    %v266 = vld [vmem:[%s1 + $0x78] sm:$0xf]
    %v267 = vld [vmem:[%s1 + $0x7c] sm:$0xf]
    %v268 = vld [vmem:[%s1 + $0x80] sm:$0xf]
    %v269 = vld [vmem:[%s1 + $0x84] sm:$0xf]
    %v270 = vld [vmem:[%s1 + $0x88] sm:$0xf]
    %v271 = vld [vmem:[%s1 + $0x8c] sm:$0xf]
    %v272 = vld [vmem:[%s1 + $0x90] sm:$0xf]
    %v273 = vld [vmem:[%s1 + $0x94] sm:$0xf]
    %v274 = vld [vmem:[%s1 + $0x98] sm:$0xf]
    %v275 = vld [vmem:[%s1 + $0x9c] sm:$0xf]
    %v276 = vld [vmem:[%s1 + $0xa0] sm:$0xf]
    %v277 = vld [vmem:[%s1 + $0xa4] sm:$0xf]
    %v278 = vld [vmem:[%s1 + $0xa8] sm:$0xf]
    %v279 = vld [vmem:[%s1 + $0xac] sm:$0xf]
    %v280 = vld [vmem:[%s1 + $0xb0] sm:$0xf]
    %v281 = vld [vmem:[%s1 + $0xb4] sm:$0xf]
    %v282 = vld [vmem:[%s1 + $0xb8] sm:$0xf]
    %v283 = vld [vmem:[%s1 + $0xbc] sm:$0xf]
    %v284 = vld [vmem:[%s3] sm:$0xf]
    %v285 = vld [vmem:[%s3 + $0x4] sm:$0xf]
    %v286 = vld [vmem:[%s3 + $0x8] sm:$0xf]
    %v287 = vld [vmem:[%s3 + $0xc] sm:$0xf]
    %v288 = vld [vmem:[%s5] sm:$0x1]
    %v290 = vperm.slane %v288, 0
    %v340 = vunpack.c.l.b16 %v236
    %v341 = vunpack.c.l.b16 %v237
    %v342 = vunpack.c.l.b16 %v238
    %v343 = vunpack.c.l.b16 %v239
    %v344 = vunpack.c.l.b16 %v240
    %v345 = vunpack.c.l.b16 %v241
    %v346 = vunpack.c.l.b16 %v242
    %v347 = vunpack.c.l.b16 %v243
    %v348 = vunpack.c.l.b16 %v244
    %v349 = vunpack.c.l.b16 %v245
    %v350 = vunpack.c.l.b16 %v246
    %v351 = vunpack.c.l.b16 %v247
    %v352 = vunpack.c.l.b16 %v248
    %v353 = vunpack.c.l.b16 %v249
    %v354 = vunpack.c.l.b16 %v250
    %v355 = vunpack.c.l.b16 %v251
    %v356 = vunpack.c.l.b16 %v252
    %v357 = vunpack.c.l.b16 %v253
    %v358 = vunpack.c.l.b16 %v254
    %v359 = vunpack.c.l.b16 %v255
    %v360 = vunpack.c.l.b16 %v256
    %v361 = vunpack.c.l.b16 %v257
    %v362 = vunpack.c.l.b16 %v258
    %v363 = vunpack.c.l.b16 %v259
    %v364 = vunpack.c.l.b16 %v260
    %v365 = vunpack.c.l.b16 %v261
    %v366 = vunpack.c.l.b16 %v262
    %v367 = vunpack.c.l.b16 %v263
    %v368 = vunpack.c.l.b16 %v264
    %v369 = vunpack.c.l.b16 %v265
    %v370 = vunpack.c.l.b16 %v266
    %v371 = vunpack.c.l.b16 %v267
    %v372 = vunpack.c.l.b16 %v268
    %v373 = vunpack.c.l.b16 %v269
    %v374 = vunpack.c.l.b16 %v270
    %v375 = vunpack.c.l.b16 %v271
    %v376 = vunpack.c.l.b16 %v272
    %v377 = vunpack.c.l.b16 %v273
    %v378 = vunpack.c.l.b16 %v274
    %v379 = vunpack.c.l.b16 %v275
    %v380 = vunpack.c.l.b16 %v276
    %v381 = vunpack.c.l.b16 %v277
    %v382 = vunpack.c.l.b16 %v278
    %v383 = vunpack.c.l.b16 %v279
    %v384 = vunpack.c.l.b16 %v280
    %v385 = vunpack.c.l.b16 %v281
    %v386 = vunpack.c.l.b16 %v282
    %v387 = vunpack.c.l.b16 %v283
    %v388 = vpack.c.b16 %v341, %v340
    %v389 = vpack.c.b16 %v343, %v342
    %v390 = vpack.c.b16 %v345, %v344
    %v391 = vpack.c.b16 %v347, %v346
    %v392 = vpack.c.b16 %v349, %v348
    %v393 = vpack.c.b16 %v351, %v350
    %v394 = vpack.c.b16 %v353, %v352
    %v395 = vpack.c.b16 %v355, %v354
    %v396 = vpack.c.b16 %v357, %v356
    %v397 = vpack.c.b16 %v359, %v358
    %v398 = vpack.c.b16 %v361, %v360
    %v399 = vpack.c.b16 %v363, %v362
    %v400 = vpack.c.b16 %v365, %v364
    %v401 = vpack.c.b16 %v367, %v366
    %v402 = vpack.c.b16 %v369, %v368
    %v403 = vpack.c.b16 %v371, %v370
    %v404 = vpack.c.b16 %v373, %v372
    %v405 = vpack.c.b16 %v375, %v374
    %v406 = vpack.c.b16 %v377, %v376
    %v407 = vpack.c.b16 %v379, %v378
    %v408 = vpack.c.b16 %v381, %v380
    %v409 = vpack.c.b16 %v383, %v382
    %v410 = vpack.c.b16 %v385, %v384
    %v411 = vpack.c.b16 %v387, %v386
    %v416 = vunpack.c.l.b16 %v284
    %v417 = vunpack.c.l.b16 %v285
    %v418 = vunpack.c.l.b16 %v286
    %v419 = vunpack.c.l.b16 %v287
    %v420 = vpack.c.b16 %v417, %v416
    %v421 = vpack.c.b16 %v419, %v418
    %vm424 = vcmask 261120
    %v426 = vsel %vm424, %v388, 0
    %v429 = vsel %vm424, %v389, 0
    %v432 = vsel %vm424, %v390, 0
    %v435 = vsel %vm424, %v391, 0
    %v438 = vsel %vm424, %v392, 0
    %v441 = vsel %vm424, %v393, 0
    %v444 = vsel %vm424, %v394, 0
    %v447 = vsel %vm424, %v395, 0
    %v450 = vsel %vm424, %v396, 0
    %v453 = vsel %vm424, %v397, 0
    %v456 = vsel %vm424, %v398, 0
    %v459 = vsel %vm424, %v399, 0
    %v462 = vsel %vm424, %v400, 0
    %v465 = vsel %vm424, %v401, 0
    %v468 = vsel %vm424, %v402, 0
    %v471 = vsel %vm424, %v403, 0
    %v474 = vsel %vm424, %v404, 0
    %v477 = vsel %vm424, %v405, 0
    %v480 = vsel %vm424, %v406, 0
    %v483 = vsel %vm424, %v407, 0
    %v486 = vsel %vm424, %v408, 0
    %v489 = vsel %vm424, %v409, 0
    %v492 = vsel %vm424, %v410, 0
    %v495 = vsel %vm424, %v411, 0
    %497 = vmatpush.bf16.msra.mxu0 0
    %498 = vmatpush.bf16.msra.mxu0 0
    %499 = vmatpush.bf16.msra.mxu0 0
    %500 = vmatpush.bf16.msra.mxu0 0
    %501 = vmatpush.bf16.msra.mxu0 0
    %502 = vmatpush.bf16.msra.mxu0 0
    %503 = vmatpush.bf16.msra.mxu0 %v421
    %504 = vmatpush.bf16.msra.mxu0 %v420
    %505 = vmatmul.bf16.gmra.mxu0 %v426
    %v506 = vpop.f32.mrf.mxu0
    %v507 = vadd.f32 %v290, %v506
    %v508 = vpop.f32.mrf.mxu0
    %v509 = vadd.f32 %v290, %v508
    %510 = vmatmul.bf16.gmra.mxu0 %v429
    %v511 = vpop.f32.mrf.mxu0
    %v512 = vadd.f32 %v290, %v511
    %v513 = vpop.f32.mrf.mxu0
    %v514 = vadd.f32 %v290, %v513
    %515 = vmatmul.bf16.gmra.mxu0 %v432
    %v516 = vpop.f32.mrf.mxu0
    %v517 = vadd.f32 %v290, %v516
    %v518 = vpop.f32.mrf.mxu0
    %v519 = vadd.f32 %v290, %v518
    %520 = vmatmul.bf16.gmra.mxu0 %v435
    %v521 = vpop.f32.mrf.mxu0
    %v522 = vadd.f32 %v290, %v521
    %v523 = vpop.f32.mrf.mxu0
    %v524 = vadd.f32 %v290, %v523
    %525 = vmatmul.bf16.gmra.mxu0 %v438
    %v526 = vpop.f32.mrf.mxu0
    %v527 = vadd.f32 %v290, %v526
    %v528 = vpop.f32.mrf.mxu0
    %v529 = vadd.f32 %v290, %v528
    %530 = vmatmul.bf16.gmra.mxu0 %v441
    %v531 = vpop.f32.mrf.mxu0
    %v532 = vadd.f32 %v290, %v531
    %v533 = vpop.f32.mrf.mxu0
    %v534 = vadd.f32 %v290, %v533
    %535 = vmatmul.bf16.gmra.mxu0 %v444
    %v536 = vpop.f32.mrf.mxu0
    %v537 = vadd.f32 %v290, %v536
    %v538 = vpop.f32.mrf.mxu0
    %v539 = vadd.f32 %v290, %v538
    %540 = vmatmul.bf16.gmra.mxu0 %v447
    %v541 = vpop.f32.mrf.mxu0
    %v542 = vadd.f32 %v290, %v541
    %v543 = vpop.f32.mrf.mxu0
    %v544 = vadd.f32 %v290, %v543
    %545 = vmatmul.bf16.gmra.mxu0 %v450
    %v546 = vpop.f32.mrf.mxu0
    %v547 = vadd.f32 %v290, %v546
    %v548 = vpop.f32.mrf.mxu0
    %v549 = vadd.f32 %v290, %v548
    %550 = vmatmul.bf16.gmra.mxu0 %v453
    %v551 = vpop.f32.mrf.mxu0
    %v552 = vadd.f32 %v290, %v551
    %v553 = vpop.f32.mrf.mxu0
    %v554 = vadd.f32 %v290, %v553
    %555 = vmatmul.bf16.gmra.mxu0 %v456
    %v556 = vpop.f32.mrf.mxu0
    %v557 = vadd.f32 %v290, %v556
    %v558 = vpop.f32.mrf.mxu0
    %v559 = vadd.f32 %v290, %v558
    %560 = vmatmul.bf16.gmra.mxu0 %v459
    %v561 = vpop.f32.mrf.mxu0
    %v562 = vadd.f32 %v290, %v561
    %v563 = vpop.f32.mrf.mxu0
    %v564 = vadd.f32 %v290, %v563
    %565 = vmatmul.bf16.gmra.mxu0 %v462
    %v566 = vpop.f32.mrf.mxu0
    %v567 = vadd.f32 %v290, %v566
    %v568 = vpop.f32.mrf.mxu0
    %v569 = vadd.f32 %v290, %v568
    %570 = vmatmul.bf16.gmra.mxu0 %v465
    %v571 = vpop.f32.mrf.mxu0
    %v572 = vadd.f32 %v290, %v571
    %v573 = vpop.f32.mrf.mxu0
    %v574 = vadd.f32 %v290, %v573
    %575 = vmatmul.bf16.gmra.mxu0 %v468
    %v576 = vpop.f32.mrf.mxu0
    %v577 = vadd.f32 %v290, %v576
    %v578 = vpop.f32.mrf.mxu0
    %v579 = vadd.f32 %v290, %v578
    %580 = vmatmul.bf16.gmra.mxu0 %v471
    %v581 = vpop.f32.mrf.mxu0
    %v582 = vadd.f32 %v290, %v581
    %v583 = vpop.f32.mrf.mxu0
    %v584 = vadd.f32 %v290, %v583
    %585 = vmatmul.bf16.gmra.mxu0 %v474
    %v586 = vpop.f32.mrf.mxu0
    %v587 = vadd.f32 %v290, %v586
    %v588 = vpop.f32.mrf.mxu0
    %v589 = vadd.f32 %v290, %v588
    %590 = vmatmul.bf16.gmra.mxu0 %v477
    %v591 = vpop.f32.mrf.mxu0
    %v592 = vadd.f32 %v290, %v591
    %v593 = vpop.f32.mrf.mxu0
    %v594 = vadd.f32 %v290, %v593
    %595 = vmatmul.bf16.gmra.mxu0 %v480
    %v596 = vpop.f32.mrf.mxu0
    %v597 = vadd.f32 %v290, %v596
    %v598 = vpop.f32.mrf.mxu0
    %v599 = vadd.f32 %v290, %v598
    %600 = vmatmul.bf16.gmra.mxu0 %v483
    %v601 = vpop.f32.mrf.mxu0
    %v602 = vadd.f32 %v290, %v601
    %v603 = vpop.f32.mrf.mxu0
    %v604 = vadd.f32 %v290, %v603
    %605 = vmatmul.bf16.gmra.mxu0 %v486
    %v606 = vpop.f32.mrf.mxu0
    %v607 = vadd.f32 %v290, %v606
    %v608 = vpop.f32.mrf.mxu0
    %v609 = vadd.f32 %v290, %v608
    %610 = vmatmul.bf16.gmra.mxu0 %v489
    %v611 = vpop.f32.mrf.mxu0
    %v612 = vadd.f32 %v290, %v611
    %v613 = vpop.f32.mrf.mxu0
    %v614 = vadd.f32 %v290, %v613
    %615 = vmatmul.bf16.gmra.mxu0 %v492
    %v616 = vpop.f32.mrf.mxu0
    %v617 = vadd.f32 %v290, %v616
    %v618 = vpop.f32.mrf.mxu0
    %v619 = vadd.f32 %v290, %v618
    %620 = vmatmul.bf16.gmra.mxu0 %v495
    %v621 = vpop.f32.mrf.mxu0
    %v622 = vadd.f32 %v290, %v621
    %v623 = vpop.f32.mrf.mxu0
    %v624 = vadd.f32 %v290, %v623
    %625 = vdwg.mxu0
    %v626 = vmax.f32 %v507, 0.0
    %v627 = vmax.f32 %v509, 0.0
    %v628 = vmax.f32 %v512, 0.0
    %v629 = vmax.f32 %v514, 0.0
    %v630 = vmax.f32 %v517, 0.0
    %v631 = vmax.f32 %v519, 0.0
    %v632 = vmax.f32 %v522, 0.0
    %v633 = vmax.f32 %v524, 0.0
    %v634 = vmax.f32 %v527, 0.0
    %v635 = vmax.f32 %v529, 0.0
    %v636 = vmax.f32 %v532, 0.0
    %v637 = vmax.f32 %v534, 0.0
    %v638 = vmax.f32 %v537, 0.0
    %v639 = vmax.f32 %v539, 0.0
    %v640 = vmax.f32 %v542, 0.0
    %v641 = vmax.f32 %v544, 0.0
    %v642 = vmax.f32 %v547, 0.0
    %v643 = vmax.f32 %v549, 0.0
    %v644 = vmax.f32 %v552, 0.0
    %v645 = vmax.f32 %v554, 0.0
    %v646 = vmax.f32 %v557, 0.0
    %v647 = vmax.f32 %v559, 0.0
    %v648 = vmax.f32 %v562, 0.0
    %v649 = vmax.f32 %v564, 0.0
    %v650 = vmax.f32 %v567, 0.0
    %v651 = vmax.f32 %v569, 0.0
    %v652 = vmax.f32 %v572, 0.0
    %v653 = vmax.f32 %v574, 0.0
    %v654 = vmax.f32 %v577, 0.0
    %v655 = vmax.f32 %v579, 0.0
    %v656 = vmax.f32 %v582, 0.0
    %v657 = vmax.f32 %v584, 0.0
    %v658 = vmax.f32 %v587, 0.0
    %v659 = vmax.f32 %v589, 0.0
    %v660 = vmax.f32 %v592, 0.0
    %v661 = vmax.f32 %v594, 0.0
    %v662 = vmax.f32 %v597, 0.0
    %v663 = vmax.f32 %v599, 0.0
    %v664 = vmax.f32 %v602, 0.0
    %v665 = vmax.f32 %v604, 0.0
    %v666 = vmax.f32 %v607, 0.0
    %v667 = vmax.f32 %v609, 0.0
    %v668 = vmax.f32 %v612, 0.0
    %v669 = vmax.f32 %v614, 0.0
    %v670 = vmax.f32 %v617, 0.0
    %v671 = vmax.f32 %v619, 0.0
    %v672 = vmax.f32 %v622, 0.0
    %v673 = vmax.f32 %v624, 0.0
    %v674 = vld [vmem:[%s11] sm:$0x1]
    %v675 = vld [vmem:[%s7] sm:$0xff]
    %v676 = vld [vmem:[%s7 + $0x8] sm:$0xf]
    %v677 = vld [vmem:[%s7 + $0xc] sm:$0xff]
    %v678 = vld [vmem:[%s7 + $0x14] sm:$0xf]
    %v679 = vld [vmem:[%s7 + $0x18] sm:$0xff]
    %v680 = vld [vmem:[%s7 + $0x20] sm:$0xf]
    %v681 = vld [vmem:[%s7 + $0x24] sm:$0xff]
    %v682 = vld [vmem:[%s7 + $0x2c] sm:$0xf]
    %v683 = vld [vmem:[%s7 + $0x30] sm:$0xff]
    %v684 = vld [vmem:[%s7 + $0x38] sm:$0xf]
    %v685 = vld [vmem:[%s7 + $0x3c] sm:$0xff]
    %v686 = vld [vmem:[%s7 + $0x44] sm:$0xf]
    %v687 = vld [vmem:[%s7 + $0x48] sm:$0xff]
    %v688 = vld [vmem:[%s7 + $0x50] sm:$0xf]
    %v689 = vld [vmem:[%s7 + $0x54] sm:$0xff]
    %v690 = vld [vmem:[%s7 + $0x5c] sm:$0xf]
    %v691 = vld [vmem:[%s7 + $0x60] sm:$0xff]
    %v692 = vld [vmem:[%s7 + $0x68] sm:$0xf]
    %v693 = vld [vmem:[%s7 + $0x6c] sm:$0xff]
    %v694 = vld [vmem:[%s7 + $0x74] sm:$0xf]
    %v695 = vld [vmem:[%s7 + $0x78] sm:$0xff]
    %v696 = vld [vmem:[%s7 + $0x80] sm:$0xf]
    %v697 = vld [vmem:[%s7 + $0x84] sm:$0xff]
    %v698 = vld [vmem:[%s7 + $0x8c] sm:$0xf]
    %v699 = vld [vmem:[%s7 + $0x90] sm:$0xff]
    %v700 = vld [vmem:[%s7 + $0x98] sm:$0xf]
    %v701 = vld [vmem:[%s7 + $0x9c] sm:$0xff]
    %v702 = vld [vmem:[%s7 + $0xa4] sm:$0xf]
    %v703 = vld [vmem:[%s7 + $0xa8] sm:$0xff]
    %v704 = vld [vmem:[%s7 + $0xb0] sm:$0xf]
    %v705 = vld [vmem:[%s7 + $0xb4] sm:$0xff]
    %v706 = vld [vmem:[%s7 + $0xbc] sm:$0xf]
    %v707 = vld [vmem:[%s7 + $0xc0] sm:$0xff]
    %v708 = vld [vmem:[%s7 + $0xc8] sm:$0xf]
    %v709 = vld [vmem:[%s7 + $0xcc] sm:$0xff]
    %v710 = vld [vmem:[%s7 + $0xd4] sm:$0xf]
    %v711 = vld [vmem:[%s7 + $0xd8] sm:$0xff]
    %v712 = vld [vmem:[%s7 + $0xe0] sm:$0xf]
    %v713 = vld [vmem:[%s7 + $0xe4] sm:$0xff]
    %v714 = vld [vmem:[%s7 + $0xec] sm:$0xf]
    %v715 = vld [vmem:[%s7 + $0xf0] sm:$0xff]
    %v716 = vld [vmem:[%s7 + $0xf8] sm:$0xf]
    %v717 = vld [vmem:[%s7 + $0xfc] sm:$0xff]
    %v718 = vld [vmem:[%s7 + $0x104] sm:$0xf]
    %v719 = vld [vmem:[%s7 + $0x108] sm:$0xff]
    %v720 = vld [vmem:[%s7 + $0x110] sm:$0xf]
    %v721 = vld [vmem:[%s7 + $0x114] sm:$0xff]
    %v722 = vld [vmem:[%s7 + $0x11c] sm:$0xf]
    %v723 = vld [vmem:[%s7 + $0x120] sm:$0xff]
    %v724 = vld [vmem:[%s7 + $0x128] sm:$0xf]
    %v725 = vld [vmem:[%s7 + $0x12c] sm:$0xff]
    %v726 = vld [vmem:[%s7 + $0x134] sm:$0xf]
    %v727 = vld [vmem:[%s7 + $0x138] sm:$0xff]
    %v728 = vld [vmem:[%s7 + $0x140] sm:$0xf]
    %v729 = vld [vmem:[%s7 + $0x144] sm:$0xff]
    %v730 = vld [vmem:[%s7 + $0x14c] sm:$0xf]
    %v731 = vld [vmem:[%s7 + $0x150] sm:$0xff]
    %v732 = vld [vmem:[%s7 + $0x158] sm:$0xf]
    %v733 = vld [vmem:[%s7 + $0x15c] sm:$0xff]
    %v734 = vld [vmem:[%s7 + $0x164] sm:$0xf]
    %v735 = vld [vmem:[%s7 + $0x168] sm:$0xff]
    %v736 = vld [vmem:[%s7 + $0x170] sm:$0xf]
    %v737 = vld [vmem:[%s7 + $0x174] sm:$0xff]
    %v738 = vld [vmem:[%s7 + $0x17c] sm:$0xf]
    %v739 = vld [vmem:[%s7 + $0x180] sm:$0xff]
    %v740 = vld [vmem:[%s7 + $0x188] sm:$0xf]
    %v741 = vld [vmem:[%s7 + $0x18c] sm:$0xff]
    %v742 = vld [vmem:[%s7 + $0x194] sm:$0xf]
    %v743 = vld [vmem:[%s7 + $0x198] sm:$0xff]
    %v744 = vld [vmem:[%s7 + $0x1a0] sm:$0xf]
    %v745 = vld [vmem:[%s7 + $0x1a4] sm:$0xff]
    %v746 = vld [vmem:[%s7 + $0x1ac] sm:$0xf]
    %v747 = vld [vmem:[%s7 + $0x1b0] sm:$0xff]
    %v748 = vld [vmem:[%s7 + $0x1b8] sm:$0xf]
    %v749 = vld [vmem:[%s7 + $0x1bc] sm:$0xff]
    %v750 = vld [vmem:[%s7 + $0x1c4] sm:$0xf]
    %v751 = vld [vmem:[%s7 + $0x1c8] sm:$0xff]
    %v752 = vld [vmem:[%s7 + $0x1d0] sm:$0xf]
    %v753 = vld [vmem:[%s7 + $0x1d4] sm:$0xff]
    %v754 = vld [vmem:[%s7 + $0x1dc] sm:$0xf]
    %v755 = vld [vmem:[%s7 + $0x1e0] sm:$0xff]
    %v756 = vld [vmem:[%s7 + $0x1e8] sm:$0xf]
    %v757 = vld [vmem:[%s7 + $0x1ec] sm:$0xff]
    %v758 = vld [vmem:[%s7 + $0x1f4] sm:$0xf]
    %v759 = vld [vmem:[%s7 + $0x1f8] sm:$0xff]
    %v760 = vld [vmem:[%s7 + $0x200] sm:$0xf]
    %v761 = vld [vmem:[%s7 + $0x204] sm:$0xff]
    %v762 = vld [vmem:[%s7 + $0x20c] sm:$0xf]
    %v763 = vld [vmem:[%s7 + $0x210] sm:$0xff]
    %v764 = vld [vmem:[%s7 + $0x218] sm:$0xf]
    %v765 = vld [vmem:[%s7 + $0x21c] sm:$0xff]
    %v766 = vld [vmem:[%s7 + $0x224] sm:$0xf]
    %v767 = vld [vmem:[%s7 + $0x228] sm:$0xff]
    %v768 = vld [vmem:[%s7 + $0x230] sm:$0xf]
    %v769 = vld [vmem:[%s7 + $0x234] sm:$0xff]
    %v770 = vld [vmem:[%s7 + $0x23c] sm:$0xf]
    %v771 = vld [vmem:[%s7 + $0x240] sm:$0xff]
    %v772 = vld [vmem:[%s7 + $0x248] sm:$0xf]
    %v773 = vld [vmem:[%s7 + $0x24c] sm:$0xff]
    %v774 = vld [vmem:[%s7 + $0x254] sm:$0xf]
    %v775 = vld [vmem:[%s7 + $0x258] sm:$0xff]
    %v776 = vld [vmem:[%s7 + $0x260] sm:$0xf]
    %v777 = vld [vmem:[%s7 + $0x264] sm:$0xff]
    %v778 = vld [vmem:[%s7 + $0x26c] sm:$0xf]
    %v779 = vld [vmem:[%s7 + $0x270] sm:$0xff]
    %v780 = vld [vmem:[%s7 + $0x278] sm:$0xf]
    %v781 = vld [vmem:[%s7 + $0x27c] sm:$0xff]
    %v782 = vld [vmem:[%s7 + $0x284] sm:$0xf]
    %v783 = vld [vmem:[%s7 + $0x288] sm:$0xff]
    %v784 = vld [vmem:[%s7 + $0x290] sm:$0xf]
    %v785 = vld [vmem:[%s7 + $0x294] sm:$0xff]
    %v786 = vld [vmem:[%s7 + $0x29c] sm:$0xf]
    %v787 = vld [vmem:[%s7 + $0x2a0] sm:$0xff]
    %v788 = vld [vmem:[%s7 + $0x2a8] sm:$0xf]
    %v789 = vld [vmem:[%s7 + $0x2ac] sm:$0xff]
    %v790 = vld [vmem:[%s7 + $0x2b4] sm:$0xf]
    %v791 = vld [vmem:[%s7 + $0x2b8] sm:$0xff]
    %v792 = vld [vmem:[%s7 + $0x2c0] sm:$0xf]
    %v793 = vld [vmem:[%s7 + $0x2c4] sm:$0xff]
    %v794 = vld [vmem:[%s7 + $0x2cc] sm:$0xf]
    %v795 = vld [vmem:[%s7 + $0x2d0] sm:$0xff]
    %v796 = vld [vmem:[%s7 + $0x2d8] sm:$0xf]
    %v797 = vld [vmem:[%s7 + $0x2dc] sm:$0xff]
    %v798 = vld [vmem:[%s7 + $0x2e4] sm:$0xf]
    %v799 = vld [vmem:[%s7 + $0x2e8] sm:$0xff]
    %v800 = vld [vmem:[%s7 + $0x2f0] sm:$0xf]
    %v801 = vld [vmem:[%s7 + $0x2f4] sm:$0xff]
    %v802 = vld [vmem:[%s7 + $0x2fc] sm:$0xf]
    %v803 = vld [vmem:[%s7 + $0x300] sm:$0xff]
    %v804 = vld [vmem:[%s7 + $0x308] sm:$0xf]
    %v805 = vld [vmem:[%s7 + $0x30c] sm:$0xff]
    %v806 = vld [vmem:[%s7 + $0x314] sm:$0xf]
    %v807 = vld [vmem:[%s7 + $0x318] sm:$0xff]
    %v808 = vld [vmem:[%s7 + $0x320] sm:$0xf]
    %v809 = vld [vmem:[%s7 + $0x324] sm:$0xff]
    %v810 = vld [vmem:[%s7 + $0x32c] sm:$0xf]
    %v811 = vld [vmem:[%s7 + $0x330] sm:$0xff]
    %v812 = vld [vmem:[%s7 + $0x338] sm:$0xf]
    %v813 = vld [vmem:[%s7 + $0x33c] sm:$0xff]
    %v814 = vld [vmem:[%s7 + $0x344] sm:$0xf]
    %v815 = vld [vmem:[%s7 + $0x348] sm:$0xff]
    %v816 = vld [vmem:[%s7 + $0x350] sm:$0xf]
    %v817 = vld [vmem:[%s7 + $0x354] sm:$0xff]
    %v818 = vld [vmem:[%s7 + $0x35c] sm:$0xf]
    %v819 = vld [vmem:[%s7 + $0x360] sm:$0xff]
    %v820 = vld [vmem:[%s7 + $0x368] sm:$0xf]
    %v821 = vld [vmem:[%s7 + $0x36c] sm:$0xff]
    %v822 = vld [vmem:[%s7 + $0x374] sm:$0xf]
    %v823 = vld [vmem:[%s7 + $0x378] sm:$0xff]
    %v824 = vld [vmem:[%s7 + $0x380] sm:$0xf]
    %v825 = vld [vmem:[%s7 + $0x384] sm:$0xff]
    %v826 = vld [vmem:[%s7 + $0x38c] sm:$0xf]
    %v827 = vld [vmem:[%s7 + $0x390] sm:$0xff]
    %v828 = vld [vmem:[%s7 + $0x398] sm:$0xf]
    %v829 = vld [vmem:[%s7 + $0x39c] sm:$0xff]
    %v830 = vld [vmem:[%s7 + $0x3a4] sm:$0xf]
    %v831 = vld [vmem:[%s7 + $0x3a8] sm:$0xff]
    %v832 = vld [vmem:[%s7 + $0x3b0] sm:$0xf]
    %v833 = vld [vmem:[%s7 + $0x3b4] sm:$0xff]
    %v834 = vld [vmem:[%s7 + $0x3bc] sm:$0xf]
    %v835 = vld [vmem:[%s7 + $0x3c0] sm:$0xff]
    %v836 = vld [vmem:[%s7 + $0x3c8] sm:$0xf]
    %v837 = vld [vmem:[%s7 + $0x3cc] sm:$0xff]
    %v838 = vld [vmem:[%s7 + $0x3d4] sm:$0xf]
    %v839 = vld [vmem:[%s7 + $0x3d8] sm:$0xff]
    %v840 = vld [vmem:[%s7 + $0x3e0] sm:$0xf]
    %v841 = vld [vmem:[%s7 + $0x3e4] sm:$0xff]
    %v842 = vld [vmem:[%s7 + $0x3ec] sm:$0xf]
    %v843 = vld [vmem:[%s7 + $0x3f0] sm:$0xff]
    %v844 = vld [vmem:[%s7 + $0x3f8] sm:$0xf]
    %v845 = vld [vmem:[%s7 + $0x3fc] sm:$0xff]
    %v846 = vld [vmem:[%s7 + $0x404] sm:$0xf]
    %v847 = vld [vmem:[%s7 + $0x408] sm:$0xff]
    %v848 = vld [vmem:[%s7 + $0x410] sm:$0xf]
    %v849 = vld [vmem:[%s7 + $0x414] sm:$0xff]
    %v850 = vld [vmem:[%s7 + $0x41c] sm:$0xf]
    %v851 = vld [vmem:[%s7 + $0x420] sm:$0xff]
    %v852 = vld [vmem:[%s7 + $0x428] sm:$0xf]
    %v853 = vld [vmem:[%s7 + $0x42c] sm:$0xff]
    %v854 = vld [vmem:[%s7 + $0x434] sm:$0xf]
    %v855 = vld [vmem:[%s7 + $0x438] sm:$0xff]
    %v856 = vld [vmem:[%s7 + $0x440] sm:$0xf]
    %v857 = vld [vmem:[%s7 + $0x444] sm:$0xff]
    %v858 = vld [vmem:[%s7 + $0x44c] sm:$0xf]
    %v859 = vld [vmem:[%s7 + $0x450] sm:$0xff]
    %v860 = vld [vmem:[%s7 + $0x458] sm:$0xf]
    %v861 = vld [vmem:[%s7 + $0x45c] sm:$0xff]
    %v862 = vld [vmem:[%s7 + $0x464] sm:$0xf]
    %v863 = vld [vmem:[%s7 + $0x468] sm:$0xff]
    %v864 = vld [vmem:[%s7 + $0x470] sm:$0xf]
    %v865 = vld [vmem:[%s7 + $0x474] sm:$0xff]
    %v866 = vld [vmem:[%s7 + $0x47c] sm:$0xf]
    %v867 = vld [vmem:[%s7 + $0x480] sm:$0xff]
    %v868 = vld [vmem:[%s7 + $0x488] sm:$0xf]
    %v869 = vld [vmem:[%s7 + $0x48c] sm:$0xff]
    %v870 = vld [vmem:[%s7 + $0x494] sm:$0xf]
    %v871 = vld [vmem:[%s7 + $0x498] sm:$0xff]
    %v872 = vld [vmem:[%s7 + $0x4a0] sm:$0xf]
    %v873 = vld [vmem:[%s7 + $0x4a4] sm:$0xff]
    %v874 = vld [vmem:[%s7 + $0x4ac] sm:$0xf]
    %v875 = vld [vmem:[%s7 + $0x4b0] sm:$0xff]
    %v876 = vld [vmem:[%s7 + $0x4b8] sm:$0xf]
    %v877 = vld [vmem:[%s7 + $0x4bc] sm:$0xff]
    %v878 = vld [vmem:[%s7 + $0x4c4] sm:$0xf]
    %v879 = vld [vmem:[%s7 + $0x4c8] sm:$0xff]
    %v880 = vld [vmem:[%s7 + $0x4d0] sm:$0xf]
    %v881 = vld [vmem:[%s7 + $0x4d4] sm:$0xff]
    %v882 = vld [vmem:[%s7 + $0x4dc] sm:$0xf]
    %v883 = vld [vmem:[%s7 + $0x4e0] sm:$0xff]
    %v884 = vld [vmem:[%s7 + $0x4e8] sm:$0xf]
    %v885 = vld [vmem:[%s7 + $0x4ec] sm:$0xff]
    %v886 = vld [vmem:[%s7 + $0x4f4] sm:$0xf]
    %v887 = vld [vmem:[%s7 + $0x4f8] sm:$0xff]
    %v888 = vld [vmem:[%s7 + $0x500] sm:$0xf]
    %v889 = vld [vmem:[%s7 + $0x504] sm:$0xff]
    %v890 = vld [vmem:[%s7 + $0x50c] sm:$0xf]
    %v891 = vpack.c.bf16 %v627, %v626
    %v892 = vpack.c.bf16 %v629, %v628
    %v893 = vpack.c.bf16 %v631, %v630
    %v894 = vpack.c.bf16 %v633, %v632
    %v895 = vpack.c.bf16 %v635, %v634
    %v896 = vpack.c.bf16 %v637, %v636
    %v897 = vpack.c.bf16 %v639, %v638
    %v898 = vpack.c.bf16 %v641, %v640
    %v899 = vpack.c.bf16 %v643, %v642
    %v900 = vpack.c.bf16 %v645, %v644
    %v901 = vpack.c.bf16 %v647, %v646
    %v902 = vpack.c.bf16 %v649, %v648
    %v903 = vpack.c.bf16 %v651, %v650
    %v904 = vpack.c.bf16 %v653, %v652
    %v905 = vpack.c.bf16 %v655, %v654
    %v906 = vpack.c.bf16 %v657, %v656
    %v907 = vpack.c.bf16 %v659, %v658
    %v908 = vpack.c.bf16 %v661, %v660
    %v909 = vpack.c.bf16 %v663, %v662
    %v910 = vpack.c.bf16 %v665, %v664
    %v911 = vpack.c.bf16 %v667, %v666
    %v912 = vpack.c.bf16 %v669, %v668
    %v913 = vpack.c.bf16 %v671, %v670
    %v914 = vpack.c.bf16 %v673, %v672
    %v1131 = vunpack.c.l.b16 %v675
    %v1132 = vunpack.c.h.b16 %v675
    %v1133 = vunpack.c.l.b16 %v676
    %v1134 = vunpack.c.l.b16 %v677
    %v1135 = vunpack.c.h.b16 %v677
    %v1136 = vunpack.c.l.b16 %v678
    %v1137 = vunpack.c.l.b16 %v679
    %v1138 = vunpack.c.h.b16 %v679
    %v1139 = vunpack.c.l.b16 %v680
    %v1140 = vunpack.c.l.b16 %v681
    %v1141 = vunpack.c.h.b16 %v681
    %v1142 = vunpack.c.l.b16 %v682
    %v1143 = vunpack.c.l.b16 %v683
    %v1144 = vunpack.c.h.b16 %v683
    %v1145 = vunpack.c.l.b16 %v684
    %v1146 = vunpack.c.l.b16 %v685
    %v1147 = vunpack.c.h.b16 %v685
    %v1148 = vunpack.c.l.b16 %v686
    %v1149 = vunpack.c.l.b16 %v687
    %v1150 = vunpack.c.h.b16 %v687
    %v1151 = vunpack.c.l.b16 %v688
    %v1152 = vunpack.c.l.b16 %v689
    %v1153 = vunpack.c.h.b16 %v689
    %v1154 = vunpack.c.l.b16 %v690
    %v1155 = vunpack.c.l.b16 %v691
    %v1156 = vunpack.c.h.b16 %v691
    %v1157 = vunpack.c.l.b16 %v692
    %v1158 = vunpack.c.l.b16 %v693
    %v1159 = vunpack.c.h.b16 %v693
    %v1160 = vunpack.c.l.b16 %v694
    %v1161 = vunpack.c.l.b16 %v695
    %v1162 = vunpack.c.h.b16 %v695
    %v1163 = vunpack.c.l.b16 %v696
    %v1164 = vunpack.c.l.b16 %v697
    %v1165 = vunpack.c.h.b16 %v697
    %v1166 = vunpack.c.l.b16 %v698
    %v1167 = vunpack.c.l.b16 %v699
    %v1168 = vunpack.c.h.b16 %v699
    %v1169 = vunpack.c.l.b16 %v700
    %v1170 = vunpack.c.l.b16 %v701
    %v1171 = vunpack.c.h.b16 %v701
    %v1172 = vunpack.c.l.b16 %v702
    %v1173 = vunpack.c.l.b16 %v703
    %v1174 = vunpack.c.h.b16 %v703
    %v1175 = vunpack.c.l.b16 %v704
    %v1176 = vunpack.c.l.b16 %v705
    %v1177 = vunpack.c.h.b16 %v705
    %v1178 = vunpack.c.l.b16 %v706
    %v1179 = vunpack.c.l.b16 %v707
    %v1180 = vunpack.c.h.b16 %v707
    %v1181 = vunpack.c.l.b16 %v708
    %v1182 = vunpack.c.l.b16 %v709
    %v1183 = vunpack.c.h.b16 %v709
    %v1184 = vunpack.c.l.b16 %v710
    %v1185 = vunpack.c.l.b16 %v711
    %v1186 = vunpack.c.h.b16 %v711
    %v1187 = vunpack.c.l.b16 %v712
    %v1188 = vunpack.c.l.b16 %v713
    %v1189 = vunpack.c.h.b16 %v713
    %v1190 = vunpack.c.l.b16 %v714
    %v1191 = vunpack.c.l.b16 %v715
    %v1192 = vunpack.c.h.b16 %v715
    %v1193 = vunpack.c.l.b16 %v716
    %v1194 = vunpack.c.l.b16 %v717
    %v1195 = vunpack.c.h.b16 %v717
    %v1196 = vunpack.c.l.b16 %v718
    %v1197 = vunpack.c.l.b16 %v719
    %v1198 = vunpack.c.h.b16 %v719
    %v1199 = vunpack.c.l.b16 %v720
    %v1200 = vunpack.c.l.b16 %v721
    %v1201 = vunpack.c.h.b16 %v721
    %v1202 = vunpack.c.l.b16 %v722
    %v1203 = vunpack.c.l.b16 %v723
    %v1204 = vunpack.c.h.b16 %v723
    %v1205 = vunpack.c.l.b16 %v724
    %v1206 = vunpack.c.l.b16 %v725
    %v1207 = vunpack.c.h.b16 %v725
    %v1208 = vunpack.c.l.b16 %v726
    %v1209 = vunpack.c.l.b16 %v727
    %v1210 = vunpack.c.h.b16 %v727
    %v1211 = vunpack.c.l.b16 %v728
    %v1212 = vunpack.c.l.b16 %v729
    %v1213 = vunpack.c.h.b16 %v729
    %v1214 = vunpack.c.l.b16 %v730
    %v1215 = vunpack.c.l.b16 %v731
    %v1216 = vunpack.c.h.b16 %v731
    %v1217 = vunpack.c.l.b16 %v732
    %v1218 = vunpack.c.l.b16 %v733
    %v1219 = vunpack.c.h.b16 %v733
    %v1220 = vunpack.c.l.b16 %v734
    %v1221 = vunpack.c.l.b16 %v735
    %v1222 = vunpack.c.h.b16 %v735
    %v1223 = vunpack.c.l.b16 %v736
    %v1224 = vunpack.c.l.b16 %v737
    %v1225 = vunpack.c.h.b16 %v737
    %v1226 = vunpack.c.l.b16 %v738
    %v1227 = vunpack.c.l.b16 %v739
    %v1228 = vunpack.c.h.b16 %v739
    %v1229 = vunpack.c.l.b16 %v740
    %v1230 = vunpack.c.l.b16 %v741
    %v1231 = vunpack.c.h.b16 %v741
    %v1232 = vunpack.c.l.b16 %v742
    %v1233 = vunpack.c.l.b16 %v743
    %v1234 = vunpack.c.h.b16 %v743
    %v1235 = vunpack.c.l.b16 %v744
    %v1236 = vunpack.c.l.b16 %v745
    %v1237 = vunpack.c.h.b16 %v745
    %v1238 = vunpack.c.l.b16 %v746
    %v1239 = vunpack.c.l.b16 %v747
    %v1240 = vunpack.c.h.b16 %v747
    %v1241 = vunpack.c.l.b16 %v748
    %v1242 = vunpack.c.l.b16 %v749
    %v1243 = vunpack.c.h.b16 %v749
    %v1244 = vunpack.c.l.b16 %v750
    %v1245 = vunpack.c.l.b16 %v751
    %v1246 = vunpack.c.h.b16 %v751
    %v1247 = vunpack.c.l.b16 %v752
    %v1248 = vunpack.c.l.b16 %v753
    %v1249 = vunpack.c.h.b16 %v753
    %v1250 = vunpack.c.l.b16 %v754
    %v1251 = vunpack.c.l.b16 %v755
    %v1252 = vunpack.c.h.b16 %v755
    %v1253 = vunpack.c.l.b16 %v756
    %v1254 = vunpack.c.l.b16 %v757
    %v1255 = vunpack.c.h.b16 %v757
    %v1256 = vunpack.c.l.b16 %v758
    %v1257 = vunpack.c.l.b16 %v759
    %v1258 = vunpack.c.h.b16 %v759
    %v1259 = vunpack.c.l.b16 %v760
    %v1260 = vunpack.c.l.b16 %v761
    %v1261 = vunpack.c.h.b16 %v761
    %v1262 = vunpack.c.l.b16 %v762
    %v1263 = vunpack.c.l.b16 %v763
    %v1264 = vunpack.c.h.b16 %v763
    %v1265 = vunpack.c.l.b16 %v764
    %v1266 = vunpack.c.l.b16 %v765
    %v1267 = vunpack.c.h.b16 %v765
    %v1268 = vunpack.c.l.b16 %v766
    %v1269 = vunpack.c.l.b16 %v767
    %v1270 = vunpack.c.h.b16 %v767
    %v1271 = vunpack.c.l.b16 %v768
    %v1272 = vunpack.c.l.b16 %v769
    %v1273 = vunpack.c.h.b16 %v769
    %v1274 = vunpack.c.l.b16 %v770
    %v1275 = vunpack.c.l.b16 %v771
    %v1276 = vunpack.c.h.b16 %v771
    %v1277 = vunpack.c.l.b16 %v772
    %v1278 = vunpack.c.l.b16 %v773
    %v1279 = vunpack.c.h.b16 %v773
    %v1280 = vunpack.c.l.b16 %v774
    %v1281 = vunpack.c.l.b16 %v775
    %v1282 = vunpack.c.h.b16 %v775
    %v1283 = vunpack.c.l.b16 %v776
    %v1284 = vunpack.c.l.b16 %v777
    %v1285 = vunpack.c.h.b16 %v777
    %v1286 = vunpack.c.l.b16 %v778
    %v1287 = vunpack.c.l.b16 %v779
    %v1288 = vunpack.c.h.b16 %v779
    %v1289 = vunpack.c.l.b16 %v780
    %v1290 = vunpack.c.l.b16 %v781
    %v1291 = vunpack.c.h.b16 %v781
    %v1292 = vunpack.c.l.b16 %v782
    %v1293 = vunpack.c.l.b16 %v783
    %v1294 = vunpack.c.h.b16 %v783
    %v1295 = vunpack.c.l.b16 %v784
    %v1296 = vunpack.c.l.b16 %v785
    %v1297 = vunpack.c.h.b16 %v785
    %v1298 = vunpack.c.l.b16 %v786
    %v1299 = vunpack.c.l.b16 %v787
    %v1300 = vunpack.c.h.b16 %v787
    %v1301 = vunpack.c.l.b16 %v788
    %v1302 = vunpack.c.l.b16 %v789
    %v1303 = vunpack.c.h.b16 %v789
    %v1304 = vunpack.c.l.b16 %v790
    %v1305 = vunpack.c.l.b16 %v791
    %v1306 = vunpack.c.h.b16 %v791
    %v1307 = vunpack.c.l.b16 %v792
    %v1308 = vunpack.c.l.b16 %v793
    %v1309 = vunpack.c.h.b16 %v793
    %v1310 = vunpack.c.l.b16 %v794
    %v1311 = vunpack.c.l.b16 %v795
    %v1312 = vunpack.c.h.b16 %v795
    %v1313 = vunpack.c.l.b16 %v796
    %v1314 = vunpack.c.l.b16 %v797
    %v1315 = vunpack.c.h.b16 %v797
    %v1316 = vunpack.c.l.b16 %v798
    %v1317 = vunpack.c.l.b16 %v799
    %v1318 = vunpack.c.h.b16 %v799
    %v1319 = vunpack.c.l.b16 %v800
    %v1320 = vunpack.c.l.b16 %v801
    %v1321 = vunpack.c.h.b16 %v801
    %v1322 = vunpack.c.l.b16 %v802
    %v1323 = vunpack.c.l.b16 %v803
    %v1324 = vunpack.c.h.b16 %v803
    %v1325 = vunpack.c.l.b16 %v804
    %v1326 = vunpack.c.l.b16 %v805
    %v1327 = vunpack.c.h.b16 %v805
    %v1328 = vunpack.c.l.b16 %v806
    %v1329 = vunpack.c.l.b16 %v807
    %v1330 = vunpack.c.h.b16 %v807
    %v1331 = vunpack.c.l.b16 %v808
    %v1332 = vunpack.c.l.b16 %v809
    %v1333 = vunpack.c.h.b16 %v809
    %v1334 = vunpack.c.l.b16 %v810
    %v1335 = vunpack.c.l.b16 %v811
    %v1336 = vunpack.c.h.b16 %v811
    %v1337 = vunpack.c.l.b16 %v812
    %v1338 = vunpack.c.l.b16 %v813
    %v1339 = vunpack.c.h.b16 %v813
    %v1340 = vunpack.c.l.b16 %v814
    %v1341 = vunpack.c.l.b16 %v815
    %v1342 = vunpack.c.h.b16 %v815
    %v1343 = vunpack.c.l.b16 %v816
    %v1344 = vunpack.c.l.b16 %v817
    %v1345 = vunpack.c.h.b16 %v817
    %v1346 = vunpack.c.l.b16 %v818
    %v1347 = vunpack.c.l.b16 %v819
    %v1348 = vunpack.c.h.b16 %v819
    %v1349 = vunpack.c.l.b16 %v820
    %v1350 = vunpack.c.l.b16 %v821
    %v1351 = vunpack.c.h.b16 %v821
    %v1352 = vunpack.c.l.b16 %v822
    %v1353 = vunpack.c.l.b16 %v823
    %v1354 = vunpack.c.h.b16 %v823
    %v1355 = vunpack.c.l.b16 %v824
    %v1356 = vunpack.c.l.b16 %v825
    %v1357 = vunpack.c.h.b16 %v825
    %v1358 = vunpack.c.l.b16 %v826
    %v1359 = vunpack.c.l.b16 %v827
    %v1360 = vunpack.c.h.b16 %v827
    %v1361 = vunpack.c.l.b16 %v828
    %v1362 = vunpack.c.l.b16 %v829
    %v1363 = vunpack.c.h.b16 %v829
    %v1364 = vunpack.c.l.b16 %v830
    %v1365 = vunpack.c.l.b16 %v831
    %v1366 = vunpack.c.h.b16 %v831
    %v1367 = vunpack.c.l.b16 %v832
    %v1368 = vunpack.c.l.b16 %v833
    %v1369 = vunpack.c.h.b16 %v833
    %v1370 = vunpack.c.l.b16 %v834
    %v1371 = vunpack.c.l.b16 %v835
    %v1372 = vunpack.c.h.b16 %v835
    %v1373 = vunpack.c.l.b16 %v836
    %v1374 = vunpack.c.l.b16 %v837
    %v1375 = vunpack.c.h.b16 %v837
    %v1376 = vunpack.c.l.b16 %v838
    %v1377 = vunpack.c.l.b16 %v839
    %v1378 = vunpack.c.h.b16 %v839
    %v1379 = vunpack.c.l.b16 %v840
    %v1380 = vunpack.c.l.b16 %v841
    %v1381 = vunpack.c.h.b16 %v841
    %v1382 = vunpack.c.l.b16 %v842
    %v1383 = vunpack.c.l.b16 %v843
    %v1384 = vunpack.c.h.b16 %v843
    %v1385 = vunpack.c.l.b16 %v844
    %v1386 = vunpack.c.l.b16 %v845
    %v1387 = vunpack.c.h.b16 %v845
    %v1388 = vunpack.c.l.b16 %v846
    %v1389 = vunpack.c.l.b16 %v847
    %v1390 = vunpack.c.h.b16 %v847
    %v1391 = vunpack.c.l.b16 %v848
    %v1392 = vunpack.c.l.b16 %v849
    %v1393 = vunpack.c.h.b16 %v849
    %v1394 = vunpack.c.l.b16 %v850
    %v1395 = vunpack.c.l.b16 %v851
    %v1396 = vunpack.c.h.b16 %v851
    %v1397 = vunpack.c.l.b16 %v852
    %v1398 = vunpack.c.l.b16 %v853
    %v1399 = vunpack.c.h.b16 %v853
    %v1400 = vunpack.c.l.b16 %v854
    %v1401 = vunpack.c.l.b16 %v855
    %v1402 = vunpack.c.h.b16 %v855
    %v1403 = vunpack.c.l.b16 %v856
    %v1404 = vunpack.c.l.b16 %v857
    %v1405 = vunpack.c.h.b16 %v857
    %v1406 = vunpack.c.l.b16 %v858
    %v1407 = vunpack.c.l.b16 %v859
    %v1408 = vunpack.c.h.b16 %v859
    %v1409 = vunpack.c.l.b16 %v860
    %v1410 = vunpack.c.l.b16 %v861
    %v1411 = vunpack.c.h.b16 %v861
    %v1412 = vunpack.c.l.b16 %v862
    %v1413 = vunpack.c.l.b16 %v863
    %v1414 = vunpack.c.h.b16 %v863
    %v1415 = vunpack.c.l.b16 %v864
    %v1416 = vunpack.c.l.b16 %v865
    %v1417 = vunpack.c.h.b16 %v865
    %v1418 = vunpack.c.l.b16 %v866
    %v1419 = vunpack.c.l.b16 %v867
    %v1420 = vunpack.c.h.b16 %v867
    %v1421 = vunpack.c.l.b16 %v868
    %v1422 = vunpack.c.l.b16 %v869
    %v1423 = vunpack.c.h.b16 %v869
    %v1424 = vunpack.c.l.b16 %v870
    %v1425 = vunpack.c.l.b16 %v871
    %v1426 = vunpack.c.h.b16 %v871
    %v1427 = vunpack.c.l.b16 %v872
    %v1428 = vunpack.c.l.b16 %v873
    %v1429 = vunpack.c.h.b16 %v873
    %v1430 = vunpack.c.l.b16 %v874
    %v1431 = vunpack.c.l.b16 %v875
    %v1432 = vunpack.c.h.b16 %v875
    %v1433 = vunpack.c.l.b16 %v876
    %v1434 = vunpack.c.l.b16 %v877
    %v1435 = vunpack.c.h.b16 %v877
    %v1436 = vunpack.c.l.b16 %v878
    %v1437 = vunpack.c.l.b16 %v879
    %v1438 = vunpack.c.h.b16 %v879
    %v1439 = vunpack.c.l.b16 %v880
    %v1440 = vunpack.c.l.b16 %v881
    %v1441 = vunpack.c.h.b16 %v881
    %v1442 = vunpack.c.l.b16 %v882
    %v1443 = vunpack.c.l.b16 %v883
    %v1444 = vunpack.c.h.b16 %v883
    %v1445 = vunpack.c.l.b16 %v884
    %v1446 = vunpack.c.l.b16 %v885
    %v1447 = vunpack.c.h.b16 %v885
    %v1448 = vunpack.c.l.b16 %v886
    %v1449 = vunpack.c.l.b16 %v887
    %v1450 = vunpack.c.h.b16 %v887
    %v1451 = vunpack.c.l.b16 %v888
    %v1452 = vunpack.c.l.b16 %v889
    %v1453 = vunpack.c.h.b16 %v889
    %v1454 = vunpack.c.l.b16 %v890
    %v1455 = vpack.c.b16 %v1134, %v1131
    %v1456 = vpack.c.b16 %v1135, %v1132
    %v1457 = vpack.c.b16 %v1136, %v1133
    %v1458 = vpack.c.b16 %v1140, %v1137
    %v1459 = vpack.c.b16 %v1141, %v1138
    %v1460 = vpack.c.b16 %v1142, %v1139
    %v1461 = vpack.c.b16 %v1146, %v1143
    %v1462 = vpack.c.b16 %v1147, %v1144
    %v1463 = vpack.c.b16 %v1148, %v1145
    %v1464 = vpack.c.b16 %v1152, %v1149
    %v1465 = vpack.c.b16 %v1153, %v1150
    %v1466 = vpack.c.b16 %v1154, %v1151
    %v1467 = vpack.c.b16 %v1158, %v1155
    %v1468 = vpack.c.b16 %v1159, %v1156
    %v1469 = vpack.c.b16 %v1160, %v1157
    %v1470 = vpack.c.b16 %v1164, %v1161
    %v1471 = vpack.c.b16 %v1165, %v1162
    %v1472 = vpack.c.b16 %v1166, %v1163
    %v1473 = vpack.c.b16 %v1170, %v1167
    %v1474 = vpack.c.b16 %v1171, %v1168
    %v1475 = vpack.c.b16 %v1172, %v1169
    %v1476 = vpack.c.b16 %v1176, %v1173
    %v1477 = vpack.c.b16 %v1177, %v1174
    %v1478 = vpack.c.b16 %v1178, %v1175
    %v1479 = vpack.c.b16 %v1182, %v1179
    %v1480 = vpack.c.b16 %v1183, %v1180
    %v1481 = vpack.c.b16 %v1184, %v1181
    %v1482 = vpack.c.b16 %v1188, %v1185
    %v1483 = vpack.c.b16 %v1189, %v1186
    %v1484 = vpack.c.b16 %v1190, %v1187
    %v1485 = vpack.c.b16 %v1194, %v1191
    %v1486 = vpack.c.b16 %v1195, %v1192
    %v1487 = vpack.c.b16 %v1196, %v1193
    %v1488 = vpack.c.b16 %v1200, %v1197
    %v1489 = vpack.c.b16 %v1201, %v1198
    %v1490 = vpack.c.b16 %v1202, %v1199
    %v1491 = vpack.c.b16 %v1206, %v1203
    %v1492 = vpack.c.b16 %v1207, %v1204
    %v1493 = vpack.c.b16 %v1208, %v1205
    %v1494 = vpack.c.b16 %v1212, %v1209
    %v1495 = vpack.c.b16 %v1213, %v1210
    %v1496 = vpack.c.b16 %v1214, %v1211
    %v1497 = vpack.c.b16 %v1218, %v1215
    %v1498 = vpack.c.b16 %v1219, %v1216
    %v1499 = vpack.c.b16 %v1220, %v1217
    %v1500 = vpack.c.b16 %v1224, %v1221
    %v1501 = vpack.c.b16 %v1225, %v1222
    %v1502 = vpack.c.b16 %v1226, %v1223
    %v1503 = vpack.c.b16 %v1230, %v1227
    %v1504 = vpack.c.b16 %v1231, %v1228
    %v1505 = vpack.c.b16 %v1232, %v1229
    %v1506 = vpack.c.b16 %v1236, %v1233
    %v1507 = vpack.c.b16 %v1237, %v1234
    %v1508 = vpack.c.b16 %v1238, %v1235
    %v1509 = vpack.c.b16 %v1242, %v1239
    %v1510 = vpack.c.b16 %v1243, %v1240
    %v1511 = vpack.c.b16 %v1244, %v1241
    %v1512 = vpack.c.b16 %v1248, %v1245
    %v1513 = vpack.c.b16 %v1249, %v1246
    %v1514 = vpack.c.b16 %v1250, %v1247
    %v1515 = vpack.c.b16 %v1254, %v1251
    %v1516 = vpack.c.b16 %v1255, %v1252
    %v1517 = vpack.c.b16 %v1256, %v1253
    %v1518 = vpack.c.b16 %v1260, %v1257
    %v1519 = vpack.c.b16 %v1261, %v1258
    %v1520 = vpack.c.b16 %v1262, %v1259
    %v1521 = vpack.c.b16 %v1266, %v1263
    %v1522 = vpack.c.b16 %v1267, %v1264
    %v1523 = vpack.c.b16 %v1268, %v1265
    %v1524 = vpack.c.b16 %v1272, %v1269
    %v1525 = vpack.c.b16 %v1273, %v1270
    %v1526 = vpack.c.b16 %v1274, %v1271
    %v1527 = vpack.c.b16 %v1278, %v1275
    %v1528 = vpack.c.b16 %v1279, %v1276
    %v1529 = vpack.c.b16 %v1280, %v1277
    %v1530 = vpack.c.b16 %v1284, %v1281
    %v1531 = vpack.c.b16 %v1285, %v1282
    %v1532 = vpack.c.b16 %v1286, %v1283
    %v1533 = vpack.c.b16 %v1290, %v1287
    %v1534 = vpack.c.b16 %v1291, %v1288
    %v1535 = vpack.c.b16 %v1292, %v1289
    %v1536 = vpack.c.b16 %v1296, %v1293
    %v1537 = vpack.c.b16 %v1297, %v1294
    %v1538 = vpack.c.b16 %v1298, %v1295
    %v1539 = vpack.c.b16 %v1302, %v1299
    %v1540 = vpack.c.b16 %v1303, %v1300
    %v1541 = vpack.c.b16 %v1304, %v1301
    %v1542 = vpack.c.b16 %v1308, %v1305
    %v1543 = vpack.c.b16 %v1309, %v1306
    %v1544 = vpack.c.b16 %v1310, %v1307
    %v1545 = vpack.c.b16 %v1314, %v1311
    %v1546 = vpack.c.b16 %v1315, %v1312
    %v1547 = vpack.c.b16 %v1316, %v1313
    %v1548 = vpack.c.b16 %v1320, %v1317
    %v1549 = vpack.c.b16 %v1321, %v1318
    %v1550 = vpack.c.b16 %v1322, %v1319
    %v1551 = vpack.c.b16 %v1326, %v1323
    %v1552 = vpack.c.b16 %v1327, %v1324
    %v1553 = vpack.c.b16 %v1328, %v1325
    %v1554 = vpack.c.b16 %v1332, %v1329
    %v1555 = vpack.c.b16 %v1333, %v1330
    %v1556 = vpack.c.b16 %v1334, %v1331
    %v1557 = vpack.c.b16 %v1338, %v1335
    %v1558 = vpack.c.b16 %v1339, %v1336
    %v1559 = vpack.c.b16 %v1340, %v1337
    %v1560 = vpack.c.b16 %v1344, %v1341
    %v1561 = vpack.c.b16 %v1345, %v1342
    %v1562 = vpack.c.b16 %v1346, %v1343
    %v1563 = vpack.c.b16 %v1350, %v1347
    %v1564 = vpack.c.b16 %v1351, %v1348
    %v1565 = vpack.c.b16 %v1352, %v1349
    %v1566 = vpack.c.b16 %v1356, %v1353
    %v1567 = vpack.c.b16 %v1357, %v1354
    %v1568 = vpack.c.b16 %v1358, %v1355
    %v1569 = vpack.c.b16 %v1362, %v1359
    %v1570 = vpack.c.b16 %v1363, %v1360
    %v1571 = vpack.c.b16 %v1364, %v1361
    %v1572 = vpack.c.b16 %v1368, %v1365
    %v1573 = vpack.c.b16 %v1369, %v1366
    %v1574 = vpack.c.b16 %v1370, %v1367
    %v1575 = vpack.c.b16 %v1374, %v1371
    %v1576 = vpack.c.b16 %v1375, %v1372
    %v1577 = vpack.c.b16 %v1376, %v1373
    %v1578 = vpack.c.b16 %v1380, %v1377
    %v1579 = vpack.c.b16 %v1381, %v1378
    %v1580 = vpack.c.b16 %v1382, %v1379
    %v1581 = vpack.c.b16 %v1386, %v1383
    %v1582 = vpack.c.b16 %v1387, %v1384
    %v1583 = vpack.c.b16 %v1388, %v1385
    %v1584 = vpack.c.b16 %v1392, %v1389
    %v1585 = vpack.c.b16 %v1393, %v1390
    %v1586 = vpack.c.b16 %v1394, %v1391
    %v1587 = vpack.c.b16 %v1398, %v1395
    %v1588 = vpack.c.b16 %v1399, %v1396
    %v1589 = vpack.c.b16 %v1400, %v1397
    %v1590 = vpack.c.b16 %v1404, %v1401
    %v1591 = vpack.c.b16 %v1405, %v1402
    %v1592 = vpack.c.b16 %v1406, %v1403
    %v1593 = vpack.c.b16 %v1410, %v1407
    %v1594 = vpack.c.b16 %v1411, %v1408
    %v1595 = vpack.c.b16 %v1412, %v1409
    %v1596 = vpack.c.b16 %v1416, %v1413
    %v1597 = vpack.c.b16 %v1417, %v1414
    %v1598 = vpack.c.b16 %v1418, %v1415
    %v1599 = vpack.c.b16 %v1422, %v1419
    %v1600 = vpack.c.b16 %v1423, %v1420
    %v1601 = vpack.c.b16 %v1424, %v1421
    %v1602 = vpack.c.b16 %v1428, %v1425
    %v1603 = vpack.c.b16 %v1429, %v1426
    %v1604 = vpack.c.b16 %v1430, %v1427
    %v1605 = vpack.c.b16 %v1434, %v1431
    %v1606 = vpack.c.b16 %v1435, %v1432
    %v1607 = vpack.c.b16 %v1436, %v1433
    %v1608 = vpack.c.b16 %v1440, %v1437
    %v1609 = vpack.c.b16 %v1441, %v1438
    %v1610 = vpack.c.b16 %v1442, %v1439
    %v1611 = vpack.c.b16 %v1446, %v1443
    %v1612 = vpack.c.b16 %v1447, %v1444
    %v1613 = vpack.c.b16 %v1448, %v1445
    %v1614 = vpack.c.b16 %v1452, %v1449
    %v1615 = vpack.c.b16 %v1453, %v1450
    %v1616 = vpack.c.b16 %v1454, %v1451
    %1779 = vmatpush.bf16.msra.mxu0 %v898
    %1780 = vmatpush.bf16.msra.mxu0 %v897
    %1781 = vmatpush.bf16.msra.mxu0 %v896
    %1782 = vmatpush.bf16.msra.mxu0 %v895
    %1783 = vmatpush.bf16.msra.mxu0 %v894
    %1784 = vmatpush.bf16.msra.mxu0 %v893
    %1785 = vmatpush.bf16.msra.mxu0 %v892
    %1786 = vmatpush.bf16.msra.mxu0 %v891
    %1787 = vmatmul.bf16.gmra.mxu0 %v1455
    %v1788 = vpop.f32.mrf.mxu0
    %v1789 = vadd.f32 0.0, %v1788
    %v1790 = vpop.f32.mrf.mxu0
    %v1791 = vadd.f32 0.0, %v1790
    %1792 = vmatmul.bf16.gmra.mxu0 %v1458
    %v1793 = vpop.f32.mrf.mxu0
    %v1794 = vadd.f32 0.0, %v1793
    %v1795 = vpop.f32.mrf.mxu0
    %v1796 = vadd.f32 0.0, %v1795
    %1797 = vmatmul.bf16.gmra.mxu0 %v1461
    %v1798 = vpop.f32.mrf.mxu0
    %v1799 = vadd.f32 0.0, %v1798
    %v1800 = vpop.f32.mrf.mxu0
    %v1801 = vadd.f32 0.0, %v1800
    %1802 = vmatmul.bf16.gmra.mxu0 %v1464
    %v1803 = vpop.f32.mrf.mxu0
    %v1804 = vadd.f32 0.0, %v1803
    %v1805 = vpop.f32.mrf.mxu0
    %v1806 = vadd.f32 0.0, %v1805
    %1807 = vmatmul.bf16.gmra.mxu0 %v1467
    %v1808 = vpop.f32.mrf.mxu0
    %v1809 = vadd.f32 0.0, %v1808
    %v1810 = vpop.f32.mrf.mxu0
    %v1811 = vadd.f32 0.0, %v1810
    %1812 = vmatmul.bf16.gmra.mxu0 %v1470
    %v1813 = vpop.f32.mrf.mxu0
    %v1814 = vadd.f32 0.0, %v1813
    %v1815 = vpop.f32.mrf.mxu0
    %v1816 = vadd.f32 0.0, %v1815
    %1817 = vmatmul.bf16.gmra.mxu0 %v1473
    %v1818 = vpop.f32.mrf.mxu0
    %v1819 = vadd.f32 0.0, %v1818
    %v1820 = vpop.f32.mrf.mxu0
    %v1821 = vadd.f32 0.0, %v1820
    %1822 = vmatmul.bf16.gmra.mxu0 %v1476
    %v1823 = vpop.f32.mrf.mxu0
    %v1824 = vadd.f32 0.0, %v1823
    %v1825 = vpop.f32.mrf.mxu0
    %v1826 = vadd.f32 0.0, %v1825
    %1827 = vmatmul.bf16.gmra.mxu0 %v1479
    %v1828 = vpop.f32.mrf.mxu0
    %v1829 = vadd.f32 0.0, %v1828
    %v1830 = vpop.f32.mrf.mxu0
    %v1831 = vadd.f32 0.0, %v1830
    %1832 = vmatmul.bf16.gmra.mxu0 %v1482
    %v1833 = vpop.f32.mrf.mxu0
    %v1834 = vadd.f32 0.0, %v1833
    %v1835 = vpop.f32.mrf.mxu0
    %v1836 = vadd.f32 0.0, %v1835
    %1837 = vmatmul.bf16.gmra.mxu0 %v1485
    %v1838 = vpop.f32.mrf.mxu0
    %v1839 = vadd.f32 0.0, %v1838
    %v1840 = vpop.f32.mrf.mxu0
    %v1841 = vadd.f32 0.0, %v1840
    %1842 = vmatmul.bf16.gmra.mxu0 %v1488
    %v1843 = vpop.f32.mrf.mxu0
    %v1844 = vadd.f32 0.0, %v1843
    %v1845 = vpop.f32.mrf.mxu0
    %v1846 = vadd.f32 0.0, %v1845
    %1847 = vmatmul.bf16.gmra.mxu0 %v1491
    %v1848 = vpop.f32.mrf.mxu0
    %v1849 = vadd.f32 0.0, %v1848
    %v1850 = vpop.f32.mrf.mxu0
    %v1851 = vadd.f32 0.0, %v1850
    %1852 = vmatmul.bf16.gmra.mxu0 %v1494
    %v1853 = vpop.f32.mrf.mxu0
    %v1854 = vadd.f32 0.0, %v1853
    %v1855 = vpop.f32.mrf.mxu0
    %v1856 = vadd.f32 0.0, %v1855
    %1857 = vmatmul.bf16.gmra.mxu0 %v1497
    %v1858 = vpop.f32.mrf.mxu0
    %v1859 = vadd.f32 0.0, %v1858
    %v1860 = vpop.f32.mrf.mxu0
    %v1861 = vadd.f32 0.0, %v1860
    %1862 = vmatmul.bf16.gmra.mxu0 %v1500
    %v1863 = vpop.f32.mrf.mxu0
    %v1864 = vadd.f32 0.0, %v1863
    %v1865 = vpop.f32.mrf.mxu0
    %v1866 = vadd.f32 0.0, %v1865
    %1867 = vmatmul.bf16.gmra.mxu0 %v1503
    %v1868 = vpop.f32.mrf.mxu0
    %v1869 = vadd.f32 0.0, %v1868
    %v1870 = vpop.f32.mrf.mxu0
    %v1871 = vadd.f32 0.0, %v1870
    %1872 = vmatmul.bf16.gmra.mxu0 %v1506
    %v1873 = vpop.f32.mrf.mxu0
    %v1874 = vadd.f32 0.0, %v1873
    %v1875 = vpop.f32.mrf.mxu0
    %v1876 = vadd.f32 0.0, %v1875
    %1877 = vmatmul.bf16.gmra.mxu0 %v1509
    %v1878 = vpop.f32.mrf.mxu0
    %v1879 = vadd.f32 0.0, %v1878
    %v1880 = vpop.f32.mrf.mxu0
    %v1881 = vadd.f32 0.0, %v1880
    %1882 = vmatmul.bf16.gmra.mxu0 %v1512
    %v1883 = vpop.f32.mrf.mxu0
    %v1884 = vadd.f32 0.0, %v1883
    %v1885 = vpop.f32.mrf.mxu0
    %v1886 = vadd.f32 0.0, %v1885
    %1887 = vmatmul.bf16.gmra.mxu0 %v1515
    %v1888 = vpop.f32.mrf.mxu0
    %v1889 = vadd.f32 0.0, %v1888
    %v1890 = vpop.f32.mrf.mxu0
    %v1891 = vadd.f32 0.0, %v1890
    %1892 = vmatmul.bf16.gmra.mxu0 %v1518
    %v1893 = vpop.f32.mrf.mxu0
    %v1894 = vadd.f32 0.0, %v1893
    %v1895 = vpop.f32.mrf.mxu0
    %v1896 = vadd.f32 0.0, %v1895
    %1897 = vmatmul.bf16.gmra.mxu0 %v1521
    %v1898 = vpop.f32.mrf.mxu0
    %v1899 = vadd.f32 0.0, %v1898
    %v1900 = vpop.f32.mrf.mxu0
    %v1901 = vadd.f32 0.0, %v1900
    %1902 = vmatmul.bf16.gmra.mxu0 %v1524
    %v1903 = vpop.f32.mrf.mxu0
    %v1904 = vadd.f32 0.0, %v1903
    %v1905 = vpop.f32.mrf.mxu0
    %v1906 = vadd.f32 0.0, %v1905
    %1907 = vmatmul.bf16.gmra.mxu0 %v1527
    %v1908 = vpop.f32.mrf.mxu0
    %v1909 = vadd.f32 0.0, %v1908
    %v1910 = vpop.f32.mrf.mxu0
    %v1911 = vadd.f32 0.0, %v1910
    %1912 = vmatmul.bf16.gmra.mxu0 %v1530
    %v1913 = vpop.f32.mrf.mxu0
    %v1914 = vadd.f32 0.0, %v1913
    %v1915 = vpop.f32.mrf.mxu0
    %v1916 = vadd.f32 0.0, %v1915
    %1917 = vmatmul.bf16.gmra.mxu0 %v1533
    %v1918 = vpop.f32.mrf.mxu0
    %v1919 = vadd.f32 0.0, %v1918
    %v1920 = vpop.f32.mrf.mxu0
    %v1921 = vadd.f32 0.0, %v1920
    %1922 = vmatmul.bf16.gmra.mxu0 %v1536
    %v1923 = vpop.f32.mrf.mxu0
    %v1924 = vadd.f32 0.0, %v1923
    %v1925 = vpop.f32.mrf.mxu0
    %v1926 = vadd.f32 0.0, %v1925
    %1927 = vmatmul.bf16.gmra.mxu0 %v1539
    %v1928 = vpop.f32.mrf.mxu0
    %v1929 = vadd.f32 0.0, %v1928
    %v1930 = vpop.f32.mrf.mxu0
    %v1931 = vadd.f32 0.0, %v1930
    %1932 = vmatmul.bf16.gmra.mxu0 %v1542
    %v1933 = vpop.f32.mrf.mxu0
    %v1934 = vadd.f32 0.0, %v1933
    %v1935 = vpop.f32.mrf.mxu0
    %v1936 = vadd.f32 0.0, %v1935
    %1937 = vmatmul.bf16.gmra.mxu0 %v1545
    %v1938 = vpop.f32.mrf.mxu0
    %v1939 = vadd.f32 0.0, %v1938
    %v1940 = vpop.f32.mrf.mxu0
    %v1941 = vadd.f32 0.0, %v1940
    %1942 = vmatmul.bf16.gmra.mxu0 %v1548
    %v1943 = vpop.f32.mrf.mxu0
    %v1944 = vadd.f32 0.0, %v1943
    %v1945 = vpop.f32.mrf.mxu0
    %v1946 = vadd.f32 0.0, %v1945
    %1947 = vmatmul.bf16.gmra.mxu0 %v1551
    %v1948 = vpop.f32.mrf.mxu0
    %v1949 = vadd.f32 0.0, %v1948
    %v1950 = vpop.f32.mrf.mxu0
    %v1951 = vadd.f32 0.0, %v1950
    %1952 = vmatmul.bf16.gmra.mxu0 %v1554
    %v1953 = vpop.f32.mrf.mxu0
    %v1954 = vadd.f32 0.0, %v1953
    %v1955 = vpop.f32.mrf.mxu0
    %v1956 = vadd.f32 0.0, %v1955
    %1957 = vmatmul.bf16.gmra.mxu0 %v1557
    %v1958 = vpop.f32.mrf.mxu0
    %v1959 = vadd.f32 0.0, %v1958
    %v1960 = vpop.f32.mrf.mxu0
    %v1961 = vadd.f32 0.0, %v1960
    %1962 = vmatmul.bf16.gmra.mxu0 %v1560
    %v1963 = vpop.f32.mrf.mxu0
    %v1964 = vadd.f32 0.0, %v1963
    %v1965 = vpop.f32.mrf.mxu0
    %v1966 = vadd.f32 0.0, %v1965
    %1967 = vmatmul.bf16.gmra.mxu0 %v1563
    %v1968 = vpop.f32.mrf.mxu0
    %v1969 = vadd.f32 0.0, %v1968
    %v1970 = vpop.f32.mrf.mxu0
    %v1971 = vadd.f32 0.0, %v1970
    %1972 = vmatmul.bf16.gmra.mxu0 %v1566
    %v1973 = vpop.f32.mrf.mxu0
    %v1974 = vadd.f32 0.0, %v1973
    %v1975 = vpop.f32.mrf.mxu0
    %v1976 = vadd.f32 0.0, %v1975
    %1977 = vmatmul.bf16.gmra.mxu0 %v1569
    %v1978 = vpop.f32.mrf.mxu0
    %v1979 = vadd.f32 0.0, %v1978
    %v1980 = vpop.f32.mrf.mxu0
    %v1981 = vadd.f32 0.0, %v1980
    %1982 = vmatmul.bf16.gmra.mxu0 %v1572
    %v1983 = vpop.f32.mrf.mxu0
    %v1984 = vadd.f32 0.0, %v1983
    %v1985 = vpop.f32.mrf.mxu0
    %v1986 = vadd.f32 0.0, %v1985
    %1987 = vmatmul.bf16.gmra.mxu0 %v1575
    %v1988 = vpop.f32.mrf.mxu0
    %v1989 = vadd.f32 0.0, %v1988
    %v1990 = vpop.f32.mrf.mxu0
    %v1991 = vadd.f32 0.0, %v1990
    %1992 = vmatmul.bf16.gmra.mxu0 %v1578
    %v1993 = vpop.f32.mrf.mxu0
    %v1994 = vadd.f32 0.0, %v1993
    %v1995 = vpop.f32.mrf.mxu0
    %v1996 = vadd.f32 0.0, %v1995
    %1997 = vmatmul.bf16.gmra.mxu0 %v1581
    %v1998 = vpop.f32.mrf.mxu0
    %v1999 = vadd.f32 0.0, %v1998
    %v2000 = vpop.f32.mrf.mxu0
    %v2001 = vadd.f32 0.0, %v2000
    %2002 = vmatmul.bf16.gmra.mxu0 %v1584
    %v2003 = vpop.f32.mrf.mxu0
    %v2004 = vadd.f32 0.0, %v2003
    %v2005 = vpop.f32.mrf.mxu0
    %v2006 = vadd.f32 0.0, %v2005
    %2007 = vmatmul.bf16.gmra.mxu0 %v1587
    %v2008 = vpop.f32.mrf.mxu0
    %v2009 = vadd.f32 0.0, %v2008
    %v2010 = vpop.f32.mrf.mxu0
    %v2011 = vadd.f32 0.0, %v2010
    %2012 = vmatmul.bf16.gmra.mxu0 %v1590
    %v2013 = vpop.f32.mrf.mxu0
    %v2014 = vadd.f32 0.0, %v2013
    %v2015 = vpop.f32.mrf.mxu0
    %v2016 = vadd.f32 0.0, %v2015
    %2017 = vmatmul.bf16.gmra.mxu0 %v1593
    %v2018 = vpop.f32.mrf.mxu0
    %v2019 = vadd.f32 0.0, %v2018
    %v2020 = vpop.f32.mrf.mxu0
    %v2021 = vadd.f32 0.0, %v2020
    %2022 = vmatmul.bf16.gmra.mxu0 %v1596
    %v2023 = vpop.f32.mrf.mxu0
    %v2024 = vadd.f32 0.0, %v2023
    %v2025 = vpop.f32.mrf.mxu0
    %v2026 = vadd.f32 0.0, %v2025
    %2027 = vmatmul.bf16.gmra.mxu0 %v1599
    %v2028 = vpop.f32.mrf.mxu0
    %v2029 = vadd.f32 0.0, %v2028
    %v2030 = vpop.f32.mrf.mxu0
    %v2031 = vadd.f32 0.0, %v2030
    %2032 = vmatmul.bf16.gmra.mxu0 %v1602
    %v2033 = vpop.f32.mrf.mxu0
    %v2034 = vadd.f32 0.0, %v2033
    %v2035 = vpop.f32.mrf.mxu0
    %v2036 = vadd.f32 0.0, %v2035
    %2037 = vmatmul.bf16.gmra.mxu0 %v1605
    %v2038 = vpop.f32.mrf.mxu0
    %v2039 = vadd.f32 0.0, %v2038
    %v2040 = vpop.f32.mrf.mxu0
    %v2041 = vadd.f32 0.0, %v2040
    %2042 = vmatmul.bf16.gmra.mxu0 %v1608
    %v2043 = vpop.f32.mrf.mxu0
    %v2044 = vadd.f32 0.0, %v2043
    %v2045 = vpop.f32.mrf.mxu0
    %v2046 = vadd.f32 0.0, %v2045
    %2047 = vmatmul.bf16.gmra.mxu0 %v1611
    %v2048 = vpop.f32.mrf.mxu0
    %v2049 = vadd.f32 0.0, %v2048
    %v2050 = vpop.f32.mrf.mxu0
    %v2051 = vadd.f32 0.0, %v2050
    %2052 = vmatmul.bf16.gmra.mxu0 %v1614
    %v2053 = vpop.f32.mrf.mxu0
    %v2054 = vadd.f32 0.0, %v2053
    %v2055 = vpop.f32.mrf.mxu0
    %v2056 = vadd.f32 0.0, %v2055
    %2057 = vdwg.mxu0
    %2058 = vmatpush.bf16.msra.mxu0 %v906
    %2059 = vmatpush.bf16.msra.mxu0 %v905
    %2060 = vmatpush.bf16.msra.mxu0 %v904
    %2061 = vmatpush.bf16.msra.mxu0 %v903
    %2062 = vmatpush.bf16.msra.mxu0 %v902
    %2063 = vmatpush.bf16.msra.mxu0 %v901
    %2064 = vmatpush.bf16.msra.mxu0 %v900
    %2065 = vmatpush.bf16.msra.mxu0 %v899
    %2066 = vmatmul.bf16.gmra.mxu0 %v1456
    %v2067 = vpop.f32.mrf.mxu0
    %v2068 = vadd.f32 %v1789, %v2067
    %v2069 = vpop.f32.mrf.mxu0
    %v2070 = vadd.f32 %v1791, %v2069
    %2071 = vmatmul.bf16.gmra.mxu0 %v1459
    %v2072 = vpop.f32.mrf.mxu0
    %v2073 = vadd.f32 %v1794, %v2072
    %v2074 = vpop.f32.mrf.mxu0
    %v2075 = vadd.f32 %v1796, %v2074
    %2076 = vmatmul.bf16.gmra.mxu0 %v1462
    %v2077 = vpop.f32.mrf.mxu0
    %v2078 = vadd.f32 %v1799, %v2077
    %v2079 = vpop.f32.mrf.mxu0
    %v2080 = vadd.f32 %v1801, %v2079
    %2081 = vmatmul.bf16.gmra.mxu0 %v1465
    %v2082 = vpop.f32.mrf.mxu0
    %v2083 = vadd.f32 %v1804, %v2082
    %v2084 = vpop.f32.mrf.mxu0
    %v2085 = vadd.f32 %v1806, %v2084
    %2086 = vmatmul.bf16.gmra.mxu0 %v1468
    %v2087 = vpop.f32.mrf.mxu0
    %v2088 = vadd.f32 %v1809, %v2087
    %v2089 = vpop.f32.mrf.mxu0
    %v2090 = vadd.f32 %v1811, %v2089
    %2091 = vmatmul.bf16.gmra.mxu0 %v1471
    %v2092 = vpop.f32.mrf.mxu0
    %v2093 = vadd.f32 %v1814, %v2092
    %v2094 = vpop.f32.mrf.mxu0
    %v2095 = vadd.f32 %v1816, %v2094
    %2096 = vmatmul.bf16.gmra.mxu0 %v1474
    %v2097 = vpop.f32.mrf.mxu0
    %v2098 = vadd.f32 %v1819, %v2097
    %v2099 = vpop.f32.mrf.mxu0
    %v2100 = vadd.f32 %v1821, %v2099
    %2101 = vmatmul.bf16.gmra.mxu0 %v1477
    %v2102 = vpop.f32.mrf.mxu0
    %v2103 = vadd.f32 %v1824, %v2102
    %v2104 = vpop.f32.mrf.mxu0
    %v2105 = vadd.f32 %v1826, %v2104
    %2106 = vmatmul.bf16.gmra.mxu0 %v1480
    %v2107 = vpop.f32.mrf.mxu0
    %v2108 = vadd.f32 %v1829, %v2107
    %v2109 = vpop.f32.mrf.mxu0
    %v2110 = vadd.f32 %v1831, %v2109
    %2111 = vmatmul.bf16.gmra.mxu0 %v1483
    %v2112 = vpop.f32.mrf.mxu0
    %v2113 = vadd.f32 %v1834, %v2112
    %v2114 = vpop.f32.mrf.mxu0
    %v2115 = vadd.f32 %v1836, %v2114
    %2116 = vmatmul.bf16.gmra.mxu0 %v1486
    %v2117 = vpop.f32.mrf.mxu0
    %v2118 = vadd.f32 %v1839, %v2117
    %v2119 = vpop.f32.mrf.mxu0
    %v2120 = vadd.f32 %v1841, %v2119
    %2121 = vmatmul.bf16.gmra.mxu0 %v1489
    %v2122 = vpop.f32.mrf.mxu0
    %v2123 = vadd.f32 %v1844, %v2122
    %v2124 = vpop.f32.mrf.mxu0
    %v2125 = vadd.f32 %v1846, %v2124
    %2126 = vmatmul.bf16.gmra.mxu0 %v1492
    %v2127 = vpop.f32.mrf.mxu0
    %v2128 = vadd.f32 %v1849, %v2127
    %v2129 = vpop.f32.mrf.mxu0
    %v2130 = vadd.f32 %v1851, %v2129
    %2131 = vmatmul.bf16.gmra.mxu0 %v1495
    %v2132 = vpop.f32.mrf.mxu0
    %v2133 = vadd.f32 %v1854, %v2132
    %v2134 = vpop.f32.mrf.mxu0
    %v2135 = vadd.f32 %v1856, %v2134
    %2136 = vmatmul.bf16.gmra.mxu0 %v1498
    %v2137 = vpop.f32.mrf.mxu0
    %v2138 = vadd.f32 %v1859, %v2137
    %v2139 = vpop.f32.mrf.mxu0
    %v2140 = vadd.f32 %v1861, %v2139
    %2141 = vmatmul.bf16.gmra.mxu0 %v1501
    %v2142 = vpop.f32.mrf.mxu0
    %v2143 = vadd.f32 %v1864, %v2142
    %v2144 = vpop.f32.mrf.mxu0
    %v2145 = vadd.f32 %v1866, %v2144
    %2146 = vmatmul.bf16.gmra.mxu0 %v1504
    %v2147 = vpop.f32.mrf.mxu0
    %v2148 = vadd.f32 %v1869, %v2147
    %v2149 = vpop.f32.mrf.mxu0
    %v2150 = vadd.f32 %v1871, %v2149
    %2151 = vmatmul.bf16.gmra.mxu0 %v1507
    %v2152 = vpop.f32.mrf.mxu0
    %v2153 = vadd.f32 %v1874, %v2152
    %v2154 = vpop.f32.mrf.mxu0
    %v2155 = vadd.f32 %v1876, %v2154
    %2156 = vmatmul.bf16.gmra.mxu0 %v1510
    %v2157 = vpop.f32.mrf.mxu0
    %v2158 = vadd.f32 %v1879, %v2157
    %v2159 = vpop.f32.mrf.mxu0
    %v2160 = vadd.f32 %v1881, %v2159
    %2161 = vmatmul.bf16.gmra.mxu0 %v1513
    %v2162 = vpop.f32.mrf.mxu0
    %v2163 = vadd.f32 %v1884, %v2162
    %v2164 = vpop.f32.mrf.mxu0
    %v2165 = vadd.f32 %v1886, %v2164
    %2166 = vmatmul.bf16.gmra.mxu0 %v1516
    %v2167 = vpop.f32.mrf.mxu0
    %v2168 = vadd.f32 %v1889, %v2167
    %v2169 = vpop.f32.mrf.mxu0
    %v2170 = vadd.f32 %v1891, %v2169
    %2171 = vmatmul.bf16.gmra.mxu0 %v1519
    %v2172 = vpop.f32.mrf.mxu0
    %v2173 = vadd.f32 %v1894, %v2172
    %v2174 = vpop.f32.mrf.mxu0
    %v2175 = vadd.f32 %v1896, %v2174
    %2176 = vmatmul.bf16.gmra.mxu0 %v1522
    %v2177 = vpop.f32.mrf.mxu0
    %v2178 = vadd.f32 %v1899, %v2177
    %v2179 = vpop.f32.mrf.mxu0
    %v2180 = vadd.f32 %v1901, %v2179
    %2181 = vmatmul.bf16.gmra.mxu0 %v1525
    %v2182 = vpop.f32.mrf.mxu0
    %v2183 = vadd.f32 %v1904, %v2182
    %v2184 = vpop.f32.mrf.mxu0
    %v2185 = vadd.f32 %v1906, %v2184
    %2186 = vmatmul.bf16.gmra.mxu0 %v1528
    %v2187 = vpop.f32.mrf.mxu0
    %v2188 = vadd.f32 %v1909, %v2187
    %v2189 = vpop.f32.mrf.mxu0
    %v2190 = vadd.f32 %v1911, %v2189
    %2191 = vmatmul.bf16.gmra.mxu0 %v1531
    %v2192 = vpop.f32.mrf.mxu0
    %v2193 = vadd.f32 %v1914, %v2192
    %v2194 = vpop.f32.mrf.mxu0
    %v2195 = vadd.f32 %v1916, %v2194
    %2196 = vmatmul.bf16.gmra.mxu0 %v1534
    %v2197 = vpop.f32.mrf.mxu0
    %v2198 = vadd.f32 %v1919, %v2197
    %v2199 = vpop.f32.mrf.mxu0
    %v2200 = vadd.f32 %v1921, %v2199
    %2201 = vmatmul.bf16.gmra.mxu0 %v1537
    %v2202 = vpop.f32.mrf.mxu0
    %v2203 = vadd.f32 %v1924, %v2202
    %v2204 = vpop.f32.mrf.mxu0
    %v2205 = vadd.f32 %v1926, %v2204
    %2206 = vmatmul.bf16.gmra.mxu0 %v1540
    %v2207 = vpop.f32.mrf.mxu0
    %v2208 = vadd.f32 %v1929, %v2207
    %v2209 = vpop.f32.mrf.mxu0
    %v2210 = vadd.f32 %v1931, %v2209
    %2211 = vmatmul.bf16.gmra.mxu0 %v1543
    %v2212 = vpop.f32.mrf.mxu0
    %v2213 = vadd.f32 %v1934, %v2212
    %v2214 = vpop.f32.mrf.mxu0
    %v2215 = vadd.f32 %v1936, %v2214
    %2216 = vmatmul.bf16.gmra.mxu0 %v1546
    %v2217 = vpop.f32.mrf.mxu0
    %v2218 = vadd.f32 %v1939, %v2217
    %v2219 = vpop.f32.mrf.mxu0
    %v2220 = vadd.f32 %v1941, %v2219
    %2221 = vmatmul.bf16.gmra.mxu0 %v1549
    %v2222 = vpop.f32.mrf.mxu0
    %v2223 = vadd.f32 %v1944, %v2222
    %v2224 = vpop.f32.mrf.mxu0
    %v2225 = vadd.f32 %v1946, %v2224
    %2226 = vmatmul.bf16.gmra.mxu0 %v1552
    %v2227 = vpop.f32.mrf.mxu0
    %v2228 = vadd.f32 %v1949, %v2227
    %v2229 = vpop.f32.mrf.mxu0
    %v2230 = vadd.f32 %v1951, %v2229
    %2231 = vmatmul.bf16.gmra.mxu0 %v1555
    %v2232 = vpop.f32.mrf.mxu0
    %v2233 = vadd.f32 %v1954, %v2232
    %v2234 = vpop.f32.mrf.mxu0
    %v2235 = vadd.f32 %v1956, %v2234
    %2236 = vmatmul.bf16.gmra.mxu0 %v1558
    %v2237 = vpop.f32.mrf.mxu0
    %v2238 = vadd.f32 %v1959, %v2237
    %v2239 = vpop.f32.mrf.mxu0
    %v2240 = vadd.f32 %v1961, %v2239
    %2241 = vmatmul.bf16.gmra.mxu0 %v1561
    %v2242 = vpop.f32.mrf.mxu0
    %v2243 = vadd.f32 %v1964, %v2242
    %v2244 = vpop.f32.mrf.mxu0
    %v2245 = vadd.f32 %v1966, %v2244
    %2246 = vmatmul.bf16.gmra.mxu0 %v1564
    %v2247 = vpop.f32.mrf.mxu0
    %v2248 = vadd.f32 %v1969, %v2247
    %v2249 = vpop.f32.mrf.mxu0
    %v2250 = vadd.f32 %v1971, %v2249
    %2251 = vmatmul.bf16.gmra.mxu0 %v1567
    %v2252 = vpop.f32.mrf.mxu0
    %v2253 = vadd.f32 %v1974, %v2252
    %v2254 = vpop.f32.mrf.mxu0
    %v2255 = vadd.f32 %v1976, %v2254
    %2256 = vmatmul.bf16.gmra.mxu0 %v1570
    %v2257 = vpop.f32.mrf.mxu0
    %v2258 = vadd.f32 %v1979, %v2257
    %v2259 = vpop.f32.mrf.mxu0
    %v2260 = vadd.f32 %v1981, %v2259
    %2261 = vmatmul.bf16.gmra.mxu0 %v1573
    %v2262 = vpop.f32.mrf.mxu0
    %v2263 = vadd.f32 %v1984, %v2262
    %v2264 = vpop.f32.mrf.mxu0
    %v2265 = vadd.f32 %v1986, %v2264
    %2266 = vmatmul.bf16.gmra.mxu0 %v1576
    %v2267 = vpop.f32.mrf.mxu0
    %v2268 = vadd.f32 %v1989, %v2267
    %v2269 = vpop.f32.mrf.mxu0
    %v2270 = vadd.f32 %v1991, %v2269
    %2271 = vmatmul.bf16.gmra.mxu0 %v1579
    %v2272 = vpop.f32.mrf.mxu0
    %v2273 = vadd.f32 %v1994, %v2272
    %v2274 = vpop.f32.mrf.mxu0
    %v2275 = vadd.f32 %v1996, %v2274
    %2276 = vmatmul.bf16.gmra.mxu0 %v1582
    %v2277 = vpop.f32.mrf.mxu0
    %v2278 = vadd.f32 %v1999, %v2277
    %v2279 = vpop.f32.mrf.mxu0
    %v2280 = vadd.f32 %v2001, %v2279
    %2281 = vmatmul.bf16.gmra.mxu0 %v1585
    %v2282 = vpop.f32.mrf.mxu0
    %v2283 = vadd.f32 %v2004, %v2282
    %v2284 = vpop.f32.mrf.mxu0
    %v2285 = vadd.f32 %v2006, %v2284
    %2286 = vmatmul.bf16.gmra.mxu0 %v1588
    %v2287 = vpop.f32.mrf.mxu0
    %v2288 = vadd.f32 %v2009, %v2287
    %v2289 = vpop.f32.mrf.mxu0
    %v2290 = vadd.f32 %v2011, %v2289
    %2291 = vmatmul.bf16.gmra.mxu0 %v1591
    %v2292 = vpop.f32.mrf.mxu0
    %v2293 = vadd.f32 %v2014, %v2292
    %v2294 = vpop.f32.mrf.mxu0
    %v2295 = vadd.f32 %v2016, %v2294
    %2296 = vmatmul.bf16.gmra.mxu0 %v1594
    %v2297 = vpop.f32.mrf.mxu0
    %v2298 = vadd.f32 %v2019, %v2297
    %v2299 = vpop.f32.mrf.mxu0
    %v2300 = vadd.f32 %v2021, %v2299
    %2301 = vmatmul.bf16.gmra.mxu0 %v1597
    %v2302 = vpop.f32.mrf.mxu0
    %v2303 = vadd.f32 %v2024, %v2302
    %v2304 = vpop.f32.mrf.mxu0
    %v2305 = vadd.f32 %v2026, %v2304
    %2306 = vmatmul.bf16.gmra.mxu0 %v1600
    %v2307 = vpop.f32.mrf.mxu0
    %v2308 = vadd.f32 %v2029, %v2307
    %v2309 = vpop.f32.mrf.mxu0
    %v2310 = vadd.f32 %v2031, %v2309
    %2311 = vmatmul.bf16.gmra.mxu0 %v1603
    %v2312 = vpop.f32.mrf.mxu0
    %v2313 = vadd.f32 %v2034, %v2312
    %v2314 = vpop.f32.mrf.mxu0
    %v2315 = vadd.f32 %v2036, %v2314
    %2316 = vmatmul.bf16.gmra.mxu0 %v1606
    %v2317 = vpop.f32.mrf.mxu0
    %v2318 = vadd.f32 %v2039, %v2317
    %v2319 = vpop.f32.mrf.mxu0
    %v2320 = vadd.f32 %v2041, %v2319
    %2321 = vmatmul.bf16.gmra.mxu0 %v1609
    %v2322 = vpop.f32.mrf.mxu0
    %v2323 = vadd.f32 %v2044, %v2322
    %v2324 = vpop.f32.mrf.mxu0
    %v2325 = vadd.f32 %v2046, %v2324
    %2326 = vmatmul.bf16.gmra.mxu0 %v1612
    %v2327 = vpop.f32.mrf.mxu0
    %v2328 = vadd.f32 %v2049, %v2327
    %v2329 = vpop.f32.mrf.mxu0
    %v2330 = vadd.f32 %v2051, %v2329
    %2331 = vmatmul.bf16.gmra.mxu0 %v1615
    %v2332 = vpop.f32.mrf.mxu0
    %v2333 = vadd.f32 %v2054, %v2332
    %v2334 = vpop.f32.mrf.mxu0
    %v2335 = vadd.f32 %v2056, %v2334
    %2336 = vdwg.mxu0
    %2337 = vmatpush.bf16.msra.mxu0 %v914
    %2338 = vmatpush.bf16.msra.mxu0 %v913
    %2339 = vmatpush.bf16.msra.mxu0 %v912
    %2340 = vmatpush.bf16.msra.mxu0 %v911
    %2341 = vmatpush.bf16.msra.mxu0 %v910
    %2342 = vmatpush.bf16.msra.mxu0 %v909
    %2343 = vmatpush.bf16.msra.mxu0 %v908
    %2344 = vmatpush.bf16.msra.mxu0 %v907
    %2345 = vmatmul.bf16.gmra.mxu0 %v1457
    %v2346 = vpop.f32.mrf.mxu0
    %v2347 = vadd.f32 %v2068, %v2346
    %v2348 = vpop.f32.mrf.mxu0
    %v2349 = vadd.f32 %v2070, %v2348
    %2350 = vmatmul.bf16.gmra.mxu0 %v1460
    %v2351 = vpop.f32.mrf.mxu0
    %v2352 = vadd.f32 %v2073, %v2351
    %v2353 = vpop.f32.mrf.mxu0
    %v2354 = vadd.f32 %v2075, %v2353
    %2355 = vmatmul.bf16.gmra.mxu0 %v1463
    %v2356 = vpop.f32.mrf.mxu0
    %v2357 = vadd.f32 %v2078, %v2356
    %v2358 = vpop.f32.mrf.mxu0
    %v2359 = vadd.f32 %v2080, %v2358
    %2360 = vmatmul.bf16.gmra.mxu0 %v1466
    %v2361 = vpop.f32.mrf.mxu0
    %v2362 = vadd.f32 %v2083, %v2361
    %v2363 = vpop.f32.mrf.mxu0
    %v2364 = vadd.f32 %v2085, %v2363
    %2365 = vmatmul.bf16.gmra.mxu0 %v1469
    %v2366 = vpop.f32.mrf.mxu0
    %v2367 = vadd.f32 %v2088, %v2366
    %v2368 = vpop.f32.mrf.mxu0
    %v2369 = vadd.f32 %v2090, %v2368
    %2370 = vmatmul.bf16.gmra.mxu0 %v1472
    %v2371 = vpop.f32.mrf.mxu0
    %v2372 = vadd.f32 %v2093, %v2371
    %v2373 = vpop.f32.mrf.mxu0
    %v2374 = vadd.f32 %v2095, %v2373
    %2375 = vmatmul.bf16.gmra.mxu0 %v1475
    %v2376 = vpop.f32.mrf.mxu0
    %v2377 = vadd.f32 %v2098, %v2376
    %v2378 = vpop.f32.mrf.mxu0
    %v2379 = vadd.f32 %v2100, %v2378
    %2380 = vmatmul.bf16.gmra.mxu0 %v1478
    %v2381 = vpop.f32.mrf.mxu0
    %v2382 = vadd.f32 %v2103, %v2381
    %v2383 = vpop.f32.mrf.mxu0
    %v2384 = vadd.f32 %v2105, %v2383
    %2385 = vmatmul.bf16.gmra.mxu0 %v1481
    %v2386 = vpop.f32.mrf.mxu0
    %v2387 = vadd.f32 %v2108, %v2386
    %v2388 = vpop.f32.mrf.mxu0
    %v2389 = vadd.f32 %v2110, %v2388
    %2390 = vmatmul.bf16.gmra.mxu0 %v1484
    %v2391 = vpop.f32.mrf.mxu0
    %v2392 = vadd.f32 %v2113, %v2391
    %v2393 = vpop.f32.mrf.mxu0
    %v2394 = vadd.f32 %v2115, %v2393
    %2395 = vmatmul.bf16.gmra.mxu0 %v1487
    %v2396 = vpop.f32.mrf.mxu0
    %v2397 = vadd.f32 %v2118, %v2396
    %v2398 = vpop.f32.mrf.mxu0
    %v2399 = vadd.f32 %v2120, %v2398
    %2400 = vmatmul.bf16.gmra.mxu0 %v1490
    %v2401 = vpop.f32.mrf.mxu0
    %v2402 = vadd.f32 %v2123, %v2401
    %v2403 = vpop.f32.mrf.mxu0
    %v2404 = vadd.f32 %v2125, %v2403
    %2405 = vmatmul.bf16.gmra.mxu0 %v1493
    %v2406 = vpop.f32.mrf.mxu0
    %v2407 = vadd.f32 %v2128, %v2406
    %v2408 = vpop.f32.mrf.mxu0
    %v2409 = vadd.f32 %v2130, %v2408
    %2410 = vmatmul.bf16.gmra.mxu0 %v1496
    %v2411 = vpop.f32.mrf.mxu0
    %v2412 = vadd.f32 %v2133, %v2411
    %v2413 = vpop.f32.mrf.mxu0
    %v2414 = vadd.f32 %v2135, %v2413
    %2415 = vmatmul.bf16.gmra.mxu0 %v1499
    %v2416 = vpop.f32.mrf.mxu0
    %v2417 = vadd.f32 %v2138, %v2416
    %v2418 = vpop.f32.mrf.mxu0
    %v2419 = vadd.f32 %v2140, %v2418
    %2420 = vmatmul.bf16.gmra.mxu0 %v1502
    %v2421 = vpop.f32.mrf.mxu0
    %v2422 = vadd.f32 %v2143, %v2421
    %v2423 = vpop.f32.mrf.mxu0
    %v2424 = vadd.f32 %v2145, %v2423
    %2425 = vmatmul.bf16.gmra.mxu0 %v1505
    %v2426 = vpop.f32.mrf.mxu0
    %v2427 = vadd.f32 %v2148, %v2426
    %v2428 = vpop.f32.mrf.mxu0
    %v2429 = vadd.f32 %v2150, %v2428
    %2430 = vmatmul.bf16.gmra.mxu0 %v1508
    %v2431 = vpop.f32.mrf.mxu0
    %v2432 = vadd.f32 %v2153, %v2431
    %v2433 = vpop.f32.mrf.mxu0
    %v2434 = vadd.f32 %v2155, %v2433
    %2435 = vmatmul.bf16.gmra.mxu0 %v1511
    %v2436 = vpop.f32.mrf.mxu0
    %v2437 = vadd.f32 %v2158, %v2436
    %v2438 = vpop.f32.mrf.mxu0
    %v2439 = vadd.f32 %v2160, %v2438
    %2440 = vmatmul.bf16.gmra.mxu0 %v1514
    %v2441 = vpop.f32.mrf.mxu0
    %v2442 = vadd.f32 %v2163, %v2441
    %v2443 = vpop.f32.mrf.mxu0
    %v2444 = vadd.f32 %v2165, %v2443
    %2445 = vmatmul.bf16.gmra.mxu0 %v1517
    %v2446 = vpop.f32.mrf.mxu0
    %v2447 = vadd.f32 %v2168, %v2446
    %v2448 = vpop.f32.mrf.mxu0
    %v2449 = vadd.f32 %v2170, %v2448
    %2450 = vmatmul.bf16.gmra.mxu0 %v1520
    %v2451 = vpop.f32.mrf.mxu0
    %v2452 = vadd.f32 %v2173, %v2451
    %v2453 = vpop.f32.mrf.mxu0
    %v2454 = vadd.f32 %v2175, %v2453
    %2455 = vmatmul.bf16.gmra.mxu0 %v1523
    %v2456 = vpop.f32.mrf.mxu0
    %v2457 = vadd.f32 %v2178, %v2456
    %v2458 = vpop.f32.mrf.mxu0
    %v2459 = vadd.f32 %v2180, %v2458
    %2460 = vmatmul.bf16.gmra.mxu0 %v1526
    %v2461 = vpop.f32.mrf.mxu0
    %v2462 = vadd.f32 %v2183, %v2461
    %v2463 = vpop.f32.mrf.mxu0
    %v2464 = vadd.f32 %v2185, %v2463
    %2465 = vmatmul.bf16.gmra.mxu0 %v1529
    %v2466 = vpop.f32.mrf.mxu0
    %v2467 = vadd.f32 %v2188, %v2466
    %v2468 = vpop.f32.mrf.mxu0
    %v2469 = vadd.f32 %v2190, %v2468
    %2470 = vmatmul.bf16.gmra.mxu0 %v1532
    %v2471 = vpop.f32.mrf.mxu0
    %v2472 = vadd.f32 %v2193, %v2471
    %v2473 = vpop.f32.mrf.mxu0
    %v2474 = vadd.f32 %v2195, %v2473
    %2475 = vmatmul.bf16.gmra.mxu0 %v1535
    %v2476 = vpop.f32.mrf.mxu0
    %v2477 = vadd.f32 %v2198, %v2476
    %v2478 = vpop.f32.mrf.mxu0
    %v2479 = vadd.f32 %v2200, %v2478
    %2480 = vmatmul.bf16.gmra.mxu0 %v1538
    %v2481 = vpop.f32.mrf.mxu0
    %v2482 = vadd.f32 %v2203, %v2481
    %v2483 = vpop.f32.mrf.mxu0
    %v2484 = vadd.f32 %v2205, %v2483
    %2485 = vmatmul.bf16.gmra.mxu0 %v1541
    %v2486 = vpop.f32.mrf.mxu0
    %v2487 = vadd.f32 %v2208, %v2486
    %v2488 = vpop.f32.mrf.mxu0
    %v2489 = vadd.f32 %v2210, %v2488
    %2490 = vmatmul.bf16.gmra.mxu0 %v1544
    %v2491 = vpop.f32.mrf.mxu0
    %v2492 = vadd.f32 %v2213, %v2491
    %v2493 = vpop.f32.mrf.mxu0
    %v2494 = vadd.f32 %v2215, %v2493
    %2495 = vmatmul.bf16.gmra.mxu0 %v1547
    %v2496 = vpop.f32.mrf.mxu0
    %v2497 = vadd.f32 %v2218, %v2496
    %v2498 = vpop.f32.mrf.mxu0
    %v2499 = vadd.f32 %v2220, %v2498
    %2500 = vmatmul.bf16.gmra.mxu0 %v1550
    %v2501 = vpop.f32.mrf.mxu0
    %v2502 = vadd.f32 %v2223, %v2501
    %v2503 = vpop.f32.mrf.mxu0
    %v2504 = vadd.f32 %v2225, %v2503
    %2505 = vmatmul.bf16.gmra.mxu0 %v1553
    %v2506 = vpop.f32.mrf.mxu0
    %v2507 = vadd.f32 %v2228, %v2506
    %v2508 = vpop.f32.mrf.mxu0
    %v2509 = vadd.f32 %v2230, %v2508
    %2510 = vmatmul.bf16.gmra.mxu0 %v1556
    %v2511 = vpop.f32.mrf.mxu0
    %v2512 = vadd.f32 %v2233, %v2511
    %v2513 = vpop.f32.mrf.mxu0
    %v2514 = vadd.f32 %v2235, %v2513
    %2515 = vmatmul.bf16.gmra.mxu0 %v1559
    %v2516 = vpop.f32.mrf.mxu0
    %v2517 = vadd.f32 %v2238, %v2516
    %v2518 = vpop.f32.mrf.mxu0
    %v2519 = vadd.f32 %v2240, %v2518
    %2520 = vmatmul.bf16.gmra.mxu0 %v1562
    %v2521 = vpop.f32.mrf.mxu0
    %v2522 = vadd.f32 %v2243, %v2521
    %v2523 = vpop.f32.mrf.mxu0
    %v2524 = vadd.f32 %v2245, %v2523
    %2525 = vmatmul.bf16.gmra.mxu0 %v1565
    %v2526 = vpop.f32.mrf.mxu0
    %v2527 = vadd.f32 %v2248, %v2526
    %v2528 = vpop.f32.mrf.mxu0
    %v2529 = vadd.f32 %v2250, %v2528
    %2530 = vmatmul.bf16.gmra.mxu0 %v1568
    %v2531 = vpop.f32.mrf.mxu0
    %v2532 = vadd.f32 %v2253, %v2531
    %v2533 = vpop.f32.mrf.mxu0
    %v2534 = vadd.f32 %v2255, %v2533
    %2535 = vmatmul.bf16.gmra.mxu0 %v1571
    %v2536 = vpop.f32.mrf.mxu0
    %v2537 = vadd.f32 %v2258, %v2536
    %v2538 = vpop.f32.mrf.mxu0
    %v2539 = vadd.f32 %v2260, %v2538
    %2540 = vmatmul.bf16.gmra.mxu0 %v1574
    %v2541 = vpop.f32.mrf.mxu0
    %v2542 = vadd.f32 %v2263, %v2541
    %v2543 = vpop.f32.mrf.mxu0
    %v2544 = vadd.f32 %v2265, %v2543
    %2545 = vmatmul.bf16.gmra.mxu0 %v1577
    %v2546 = vpop.f32.mrf.mxu0
    %v2547 = vadd.f32 %v2268, %v2546
    %v2548 = vpop.f32.mrf.mxu0
    %v2549 = vadd.f32 %v2270, %v2548
    %2550 = vmatmul.bf16.gmra.mxu0 %v1580
    %v2551 = vpop.f32.mrf.mxu0
    %v2552 = vadd.f32 %v2273, %v2551
    %v2553 = vpop.f32.mrf.mxu0
    %v2554 = vadd.f32 %v2275, %v2553
    %2555 = vmatmul.bf16.gmra.mxu0 %v1583
    %v2556 = vpop.f32.mrf.mxu0
    %v2557 = vadd.f32 %v2278, %v2556
    %v2558 = vpop.f32.mrf.mxu0
    %v2559 = vadd.f32 %v2280, %v2558
    %2560 = vmatmul.bf16.gmra.mxu0 %v1586
    %v2561 = vpop.f32.mrf.mxu0
    %v2562 = vadd.f32 %v2283, %v2561
    %v2563 = vpop.f32.mrf.mxu0
    %v2564 = vadd.f32 %v2285, %v2563
    %2565 = vmatmul.bf16.gmra.mxu0 %v1589
    %v2566 = vpop.f32.mrf.mxu0
    %v2567 = vadd.f32 %v2288, %v2566
    %v2568 = vpop.f32.mrf.mxu0
    %v2569 = vadd.f32 %v2290, %v2568
    %2570 = vmatmul.bf16.gmra.mxu0 %v1592
    %v2571 = vpop.f32.mrf.mxu0
    %v2572 = vadd.f32 %v2293, %v2571
    %v2573 = vpop.f32.mrf.mxu0
    %v2574 = vadd.f32 %v2295, %v2573
    %2575 = vmatmul.bf16.gmra.mxu0 %v1595
    %v2576 = vpop.f32.mrf.mxu0
    %v2577 = vadd.f32 %v2298, %v2576
    %v2578 = vpop.f32.mrf.mxu0
    %v2579 = vadd.f32 %v2300, %v2578
    %2580 = vmatmul.bf16.gmra.mxu0 %v1598
    %v2581 = vpop.f32.mrf.mxu0
    %v2582 = vadd.f32 %v2303, %v2581
    %v2583 = vpop.f32.mrf.mxu0
    %v2584 = vadd.f32 %v2305, %v2583
    %2585 = vmatmul.bf16.gmra.mxu0 %v1601
    %v2586 = vpop.f32.mrf.mxu0
    %v2587 = vadd.f32 %v2308, %v2586
    %v2588 = vpop.f32.mrf.mxu0
    %v2589 = vadd.f32 %v2310, %v2588
    %2590 = vmatmul.bf16.gmra.mxu0 %v1604
    %v2591 = vpop.f32.mrf.mxu0
    %v2592 = vadd.f32 %v2313, %v2591
    %v2593 = vpop.f32.mrf.mxu0
    %v2594 = vadd.f32 %v2315, %v2593
    %2595 = vmatmul.bf16.gmra.mxu0 %v1607
    %v2596 = vpop.f32.mrf.mxu0
    %v2597 = vadd.f32 %v2318, %v2596
    %v2598 = vpop.f32.mrf.mxu0
    %v2599 = vadd.f32 %v2320, %v2598
    %2600 = vmatmul.bf16.gmra.mxu0 %v1610
    %v2601 = vpop.f32.mrf.mxu0
    %v2602 = vadd.f32 %v2323, %v2601
    %v2603 = vpop.f32.mrf.mxu0
    %v2604 = vadd.f32 %v2325, %v2603
    %2605 = vmatmul.bf16.gmra.mxu0 %v1613
    %v2606 = vpop.f32.mrf.mxu0
    %v2607 = vadd.f32 %v2328, %v2606
    %v2608 = vpop.f32.mrf.mxu0
    %v2609 = vadd.f32 %v2330, %v2608
    %2610 = vmatmul.bf16.gmra.mxu0 %v1616
    %v2611 = vpop.f32.mrf.mxu0
    %v2612 = vadd.f32 %v2333, %v2611
    %v2613 = vpop.f32.mrf.mxu0
    %v2614 = vadd.f32 %v2335, %v2613
    %2615 = vdwg.mxu0
    %v2616 = vld [vmem:[%s9] sm:$0xf]
    %v2617 = vld [vmem:[%s9 + $0x4] sm:$0xf]
    %v2618 = vld [vmem:[%s9 + $0x8] sm:$0xf]
    %v2619 = vld [vmem:[%s9 + $0xc] sm:$0xf]
    %v2620 = vld [vmem:[%s9 + $0x10] sm:$0xf]
    %v2621 = vld [vmem:[%s9 + $0x14] sm:$0xf]
    %v2622 = vld [vmem:[%s9 + $0x18] sm:$0xf]
    %v2623 = vld [vmem:[%s9 + $0x1c] sm:$0xf]
    %v2624 = vld [vmem:[%s9 + $0x20] sm:$0xf]
    %v2625 = vld [vmem:[%s9 + $0x24] sm:$0xf]
    %v2626 = vld [vmem:[%s9 + $0x28] sm:$0xf]
    %v2627 = vld [vmem:[%s9 + $0x2c] sm:$0xf]
    %v2628 = vld [vmem:[%s9 + $0x30] sm:$0xf]
    %v2629 = vld [vmem:[%s9 + $0x34] sm:$0xf]
    %v2630 = vld [vmem:[%s9 + $0x38] sm:$0xf]
    %v2631 = vld [vmem:[%s9 + $0x3c] sm:$0xf]
    %v2632 = vpack.c.bf16 %v2349, %v2347
    %v2633 = vpack.c.bf16 %v2354, %v2352
    %v2634 = vpack.c.bf16 %v2359, %v2357
    %v2635 = vpack.c.bf16 %v2364, %v2362
    %v2636 = vpack.c.bf16 %v2369, %v2367
    %v2637 = vpack.c.bf16 %v2374, %v2372
    %v2638 = vld [vmem:[%s9 + $0x40] sm:$0xf]
    %v2639 = vld [vmem:[%s9 + $0x44] sm:$0xf]
    %v2640 = vld [vmem:[%s9 + $0x48] sm:$0xf]
    %v2641 = vld [vmem:[%s9 + $0x4c] sm:$0xf]
    %v2642 = vld [vmem:[%s9 + $0x50] sm:$0xf]
    %v2643 = vld [vmem:[%s9 + $0x54] sm:$0xf]
    %v2644 = vld [vmem:[%s9 + $0x58] sm:$0xf]
    %v2645 = vld [vmem:[%s9 + $0x5c] sm:$0xf]
    %v2646 = vld [vmem:[%s9 + $0x60] sm:$0xf]
    %v2647 = vld [vmem:[%s9 + $0x64] sm:$0xf]
    %v2648 = vld [vmem:[%s9 + $0x68] sm:$0xf]
    %v2649 = vld [vmem:[%s9 + $0x6c] sm:$0xf]
    %v2650 = vld [vmem:[%s9 + $0x70] sm:$0xf]
    %v2651 = vld [vmem:[%s9 + $0x74] sm:$0xf]
    %v2652 = vld [vmem:[%s9 + $0x78] sm:$0xf]
    %v2653 = vld [vmem:[%s9 + $0x7c] sm:$0xf]
    %v2654 = vpack.c.bf16 %v2379, %v2377
    %v2655 = vpack.c.bf16 %v2384, %v2382
    %v2656 = vpack.c.bf16 %v2389, %v2387
    %v2657 = vpack.c.bf16 %v2394, %v2392
    %v2658 = vpack.c.bf16 %v2399, %v2397
    %v2659 = vpack.c.bf16 %v2404, %v2402
    %v2676 = vunpack.c.l.b16 %v2638
    %v2677 = vunpack.c.l.b16 %v2639
    %v2678 = vunpack.c.l.b16 %v2640
    %v2679 = vunpack.c.l.b16 %v2641
    %v2680 = vunpack.c.l.b16 %v2642
    %v2681 = vunpack.c.l.b16 %v2643
    %v2682 = vunpack.c.l.b16 %v2644
    %v2683 = vunpack.c.l.b16 %v2645
    %v2684 = vunpack.c.l.b16 %v2646
    %v2685 = vunpack.c.l.b16 %v2647
    %v2686 = vunpack.c.l.b16 %v2648
    %v2687 = vunpack.c.l.b16 %v2649
    %v2688 = vunpack.c.l.b16 %v2650
    %v2689 = vunpack.c.l.b16 %v2651
    %v2690 = vunpack.c.l.b16 %v2652
    %v2691 = vunpack.c.l.b16 %v2653
    %v2692 = vpack.c.b16 %v2677, %v2676
    %v2693 = vpack.c.b16 %v2679, %v2678
    %v2694 = vpack.c.b16 %v2681, %v2680
    %v2695 = vpack.c.b16 %v2683, %v2682
    %v2696 = vpack.c.b16 %v2685, %v2684
    %v2697 = vpack.c.b16 %v2687, %v2686
    %v2698 = vpack.c.b16 %v2689, %v2688
    %v2699 = vpack.c.b16 %v2691, %v2690
    %2708 = vmatpush.bf16.msra.mxu0 %v2699
    %2709 = vmatpush.bf16.msra.mxu0 %v2698
    %2710 = vmatpush.bf16.msra.mxu0 %v2697
    %2711 = vmatpush.bf16.msra.mxu0 %v2696
    %2712 = vmatpush.bf16.msra.mxu0 %v2695
    %2713 = vmatpush.bf16.msra.mxu0 %v2694
    %2714 = vmatpush.bf16.msra.mxu0 %v2693
    %2715 = vmatpush.bf16.msra.mxu0 %v2692
    %2716 = vmatmul.bf16.gmra.mxu0 %v2654
    %v2717 = vpop.f32.mrf.mxu0
    %v2718 = vadd.f32 0.0, %v2717
    %v2719 = vpop.f32.mrf.mxu0
    %v2720 = vadd.f32 0.0, %v2719
    %2721 = vmatmul.bf16.gmra.mxu0 %v2655
    %v2722 = vpop.f32.mrf.mxu0
    %v2723 = vadd.f32 0.0, %v2722
    %v2724 = vpop.f32.mrf.mxu0
    %v2725 = vadd.f32 0.0, %v2724
    %2726 = vmatmul.bf16.gmra.mxu0 %v2656
    %v2727 = vpop.f32.mrf.mxu0
    %v2728 = vadd.f32 0.0, %v2727
    %v2729 = vpop.f32.mrf.mxu0
    %v2730 = vadd.f32 0.0, %v2729
    %2731 = vmatmul.bf16.gmra.mxu0 %v2657
    %v2732 = vpop.f32.mrf.mxu0
    %v2733 = vadd.f32 0.0, %v2732
    %v2734 = vpop.f32.mrf.mxu0
    %v2735 = vadd.f32 0.0, %v2734
    %2736 = vmatmul.bf16.gmra.mxu0 %v2658
    %v2737 = vpop.f32.mrf.mxu0
    %v2738 = vadd.f32 0.0, %v2737
    %v2739 = vpop.f32.mrf.mxu0
    %v2740 = vadd.f32 0.0, %v2739
    %2741 = vmatmul.bf16.gmra.mxu0 %v2659
    %v2742 = vpop.f32.mrf.mxu0
    %v2743 = vadd.f32 0.0, %v2742
    %v2744 = vpop.f32.mrf.mxu0
    %v2745 = vadd.f32 0.0, %v2744
    %2746 = vdwg.mxu0
    %v2763 = vunpack.c.l.b16 %v2616
    %v2764 = vunpack.c.l.b16 %v2617
    %v2765 = vunpack.c.l.b16 %v2618
    %v2766 = vunpack.c.l.b16 %v2619
    %v2767 = vunpack.c.l.b16 %v2620
    %v2768 = vunpack.c.l.b16 %v2621
    %v2769 = vunpack.c.l.b16 %v2622
    %v2770 = vunpack.c.l.b16 %v2623
    %v2771 = vunpack.c.l.b16 %v2624
    %v2772 = vunpack.c.l.b16 %v2625
    %v2773 = vunpack.c.l.b16 %v2626
    %v2774 = vunpack.c.l.b16 %v2627
    %v2775 = vunpack.c.l.b16 %v2628
    %v2776 = vunpack.c.l.b16 %v2629
    %v2777 = vunpack.c.l.b16 %v2630
    %v2778 = vunpack.c.l.b16 %v2631
    %v2779 = vpack.c.b16 %v2764, %v2763
    %v2780 = vpack.c.b16 %v2766, %v2765
    %v2781 = vpack.c.b16 %v2768, %v2767
    %v2782 = vpack.c.b16 %v2770, %v2769
    %v2783 = vpack.c.b16 %v2772, %v2771
    %v2784 = vpack.c.b16 %v2774, %v2773
    %v2785 = vpack.c.b16 %v2776, %v2775
    %v2786 = vpack.c.b16 %v2778, %v2777
    %2795 = vmatpush.bf16.msra.mxu0 %v2786
    %2796 = vmatpush.bf16.msra.mxu0 %v2785
    %2797 = vmatpush.bf16.msra.mxu0 %v2784
    %2798 = vmatpush.bf16.msra.mxu0 %v2783
    %2799 = vmatpush.bf16.msra.mxu0 %v2782
    %2800 = vmatpush.bf16.msra.mxu0 %v2781
    %2801 = vmatpush.bf16.msra.mxu0 %v2780
    %2802 = vmatpush.bf16.msra.mxu0 %v2779
    %2803 = vmatmul.bf16.gmra.mxu0 %v2632
    %v2804 = vpop.f32.mrf.mxu0
    %v2805 = vadd.f32 %v2718, %v2804
    %v2806 = vpop.f32.mrf.mxu0
    %v2807 = vadd.f32 %v2720, %v2806
    %2808 = vmatmul.bf16.gmra.mxu0 %v2633
    %v2809 = vpop.f32.mrf.mxu0
    %v2810 = vadd.f32 %v2723, %v2809
    %v2811 = vpop.f32.mrf.mxu0
    %v2812 = vadd.f32 %v2725, %v2811
    %2813 = vmatmul.bf16.gmra.mxu0 %v2634
    %v2814 = vpop.f32.mrf.mxu0
    %v2815 = vadd.f32 %v2728, %v2814
    %v2816 = vpop.f32.mrf.mxu0
    %v2817 = vadd.f32 %v2730, %v2816
    %2818 = vmatmul.bf16.gmra.mxu0 %v2635
    %v2819 = vpop.f32.mrf.mxu0
    %v2820 = vadd.f32 %v2733, %v2819
    %v2821 = vpop.f32.mrf.mxu0
    %v2822 = vadd.f32 %v2735, %v2821
    %2823 = vmatmul.bf16.gmra.mxu0 %v2636
    %v2824 = vpop.f32.mrf.mxu0
    %v2825 = vadd.f32 %v2738, %v2824
    %v2826 = vpop.f32.mrf.mxu0
    %v2827 = vadd.f32 %v2740, %v2826
    %2828 = vmatmul.bf16.gmra.mxu0 %v2637
    %v2829 = vpop.f32.mrf.mxu0
    %v2830 = vadd.f32 %v2743, %v2829
    %v2831 = vpop.f32.mrf.mxu0
    %v2832 = vadd.f32 %v2745, %v2831
    %2833 = vdwg.mxu0
    %v2834 = vld [vmem:[%s9 + $0x80] sm:$0xf]
    %v2835 = vld [vmem:[%s9 + $0x84] sm:$0xf]
    %v2836 = vld [vmem:[%s9 + $0x88] sm:$0xf]
    %v2837 = vld [vmem:[%s9 + $0x8c] sm:$0xf]
    %v2838 = vld [vmem:[%s9 + $0x90] sm:$0xf]
    %v2839 = vld [vmem:[%s9 + $0x94] sm:$0xf]
    %v2840 = vld [vmem:[%s9 + $0x98] sm:$0xf]
    %v2841 = vld [vmem:[%s9 + $0x9c] sm:$0xf]
    %v2842 = vld [vmem:[%s9 + $0xa0] sm:$0xf]
    %v2843 = vld [vmem:[%s9 + $0xa4] sm:$0xf]
    %v2844 = vld [vmem:[%s9 + $0xa8] sm:$0xf]
    %v2845 = vld [vmem:[%s9 + $0xac] sm:$0xf]
    %v2846 = vld [vmem:[%s9 + $0xb0] sm:$0xf]
    %v2847 = vld [vmem:[%s9 + $0xb4] sm:$0xf]
    %v2848 = vld [vmem:[%s9 + $0xb8] sm:$0xf]
    %v2849 = vld [vmem:[%s9 + $0xbc] sm:$0xf]
    %v2850 = vpack.c.bf16 %v2409, %v2407
    %v2851 = vpack.c.bf16 %v2414, %v2412
    %v2852 = vpack.c.bf16 %v2419, %v2417
    %v2853 = vpack.c.bf16 %v2424, %v2422
    %v2854 = vpack.c.bf16 %v2429, %v2427
    %v2855 = vpack.c.bf16 %v2434, %v2432
    %v2872 = vunpack.c.l.b16 %v2834
    %v2873 = vunpack.c.l.b16 %v2835
    %v2874 = vunpack.c.l.b16 %v2836
    %v2875 = vunpack.c.l.b16 %v2837
    %v2876 = vunpack.c.l.b16 %v2838
    %v2877 = vunpack.c.l.b16 %v2839
    %v2878 = vunpack.c.l.b16 %v2840
    %v2879 = vunpack.c.l.b16 %v2841
    %v2880 = vunpack.c.l.b16 %v2842
    %v2881 = vunpack.c.l.b16 %v2843
    %v2882 = vunpack.c.l.b16 %v2844
    %v2883 = vunpack.c.l.b16 %v2845
    %v2884 = vunpack.c.l.b16 %v2846
    %v2885 = vunpack.c.l.b16 %v2847
    %v2886 = vunpack.c.l.b16 %v2848
    %v2887 = vunpack.c.l.b16 %v2849
    %v2888 = vpack.c.b16 %v2873, %v2872
    %v2889 = vpack.c.b16 %v2875, %v2874
    %v2890 = vpack.c.b16 %v2877, %v2876
    %v2891 = vpack.c.b16 %v2879, %v2878
    %v2892 = vpack.c.b16 %v2881, %v2880
    %v2893 = vpack.c.b16 %v2883, %v2882
    %v2894 = vpack.c.b16 %v2885, %v2884
    %v2895 = vpack.c.b16 %v2887, %v2886
    %2904 = vmatpush.bf16.msra.mxu0 %v2895
    %2905 = vmatpush.bf16.msra.mxu0 %v2894
    %2906 = vmatpush.bf16.msra.mxu0 %v2893
    %2907 = vmatpush.bf16.msra.mxu0 %v2892
    %2908 = vmatpush.bf16.msra.mxu0 %v2891
    %2909 = vmatpush.bf16.msra.mxu0 %v2890
    %2910 = vmatpush.bf16.msra.mxu0 %v2889
    %2911 = vmatpush.bf16.msra.mxu0 %v2888
    %2912 = vmatmul.bf16.gmra.mxu0 %v2850
    %v2913 = vpop.f32.mrf.mxu0
    %v2914 = vadd.f32 0.0, %v2913
    %v2915 = vpop.f32.mrf.mxu0
    %v2916 = vadd.f32 0.0, %v2915
    %2917 = vmatmul.bf16.gmra.mxu0 %v2851
    %v2918 = vpop.f32.mrf.mxu0
    %v2919 = vadd.f32 0.0, %v2918
    %v2920 = vpop.f32.mrf.mxu0
    %v2921 = vadd.f32 0.0, %v2920
    %2922 = vmatmul.bf16.gmra.mxu0 %v2852
    %v2923 = vpop.f32.mrf.mxu0
    %v2924 = vadd.f32 0.0, %v2923
    %v2925 = vpop.f32.mrf.mxu0
    %v2926 = vadd.f32 0.0, %v2925
    %2927 = vmatmul.bf16.gmra.mxu0 %v2853
    %v2928 = vpop.f32.mrf.mxu0
    %v2929 = vadd.f32 0.0, %v2928
    %v2930 = vpop.f32.mrf.mxu0
    %v2931 = vadd.f32 0.0, %v2930
    %2932 = vmatmul.bf16.gmra.mxu0 %v2854
    %v2933 = vpop.f32.mrf.mxu0
    %v2934 = vadd.f32 0.0, %v2933
    %v2935 = vpop.f32.mrf.mxu0
    %v2936 = vadd.f32 0.0, %v2935
    %2937 = vmatmul.bf16.gmra.mxu0 %v2855
    %v2938 = vpop.f32.mrf.mxu0
    %v2939 = vadd.f32 0.0, %v2938
    %v2940 = vpop.f32.mrf.mxu0
    %v2941 = vadd.f32 0.0, %v2940
    %2942 = vdwg.mxu0
    %v2943 = vadd.f32 %v2805, %v2914
    %v2944 = vadd.f32 %v2807, %v2916
    %v2945 = vadd.f32 %v2810, %v2919
    %v2946 = vadd.f32 %v2812, %v2921
    %v2947 = vadd.f32 %v2815, %v2924
    %v2948 = vadd.f32 %v2817, %v2926
    %v2949 = vadd.f32 %v2820, %v2929
    %v2950 = vadd.f32 %v2822, %v2931
    %v2951 = vadd.f32 %v2825, %v2934
    %v2952 = vadd.f32 %v2827, %v2936
    %v2953 = vadd.f32 %v2830, %v2939
    %v2954 = vadd.f32 %v2832, %v2941
    %v2955 = vld [vmem:[%s9 + $0xc0] sm:$0xf]
    %v2956 = vld [vmem:[%s9 + $0xc4] sm:$0xf]
    %v2957 = vld [vmem:[%s9 + $0xc8] sm:$0xf]
    %v2958 = vld [vmem:[%s9 + $0xcc] sm:$0xf]
    %v2959 = vld [vmem:[%s9 + $0xd0] sm:$0xf]
    %v2960 = vld [vmem:[%s9 + $0xd4] sm:$0xf]
    %v2961 = vld [vmem:[%s9 + $0xd8] sm:$0xf]
    %v2962 = vld [vmem:[%s9 + $0xdc] sm:$0xf]
    %v2963 = vld [vmem:[%s9 + $0xe0] sm:$0xf]
    %v2964 = vld [vmem:[%s9 + $0xe4] sm:$0xf]
    %v2965 = vld [vmem:[%s9 + $0xe8] sm:$0xf]
    %v2966 = vld [vmem:[%s9 + $0xec] sm:$0xf]
    %v2967 = vld [vmem:[%s9 + $0xf0] sm:$0xf]
    %v2968 = vld [vmem:[%s9 + $0xf4] sm:$0xf]
    %v2969 = vld [vmem:[%s9 + $0xf8] sm:$0xf]
    %v2970 = vld [vmem:[%s9 + $0xfc] sm:$0xf]
    %v2971 = vpack.c.bf16 %v2439, %v2437
    %v2972 = vpack.c.bf16 %v2444, %v2442
    %v2973 = vpack.c.bf16 %v2449, %v2447
    %v2974 = vpack.c.bf16 %v2454, %v2452
    %v2975 = vpack.c.bf16 %v2459, %v2457
    %v2976 = vpack.c.bf16 %v2464, %v2462
    %v2993 = vunpack.c.l.b16 %v2955
    %v2994 = vunpack.c.l.b16 %v2956
    %v2995 = vunpack.c.l.b16 %v2957
    %v2996 = vunpack.c.l.b16 %v2958
    %v2997 = vunpack.c.l.b16 %v2959
    %v2998 = vunpack.c.l.b16 %v2960
    %v2999 = vunpack.c.l.b16 %v2961
    %v3000 = vunpack.c.l.b16 %v2962
    %v3001 = vunpack.c.l.b16 %v2963
    %v3002 = vunpack.c.l.b16 %v2964
    %v3003 = vunpack.c.l.b16 %v2965
    %v3004 = vunpack.c.l.b16 %v2966
    %v3005 = vunpack.c.l.b16 %v2967
    %v3006 = vunpack.c.l.b16 %v2968
    %v3007 = vunpack.c.l.b16 %v2969
    %v3008 = vunpack.c.l.b16 %v2970
    %v3009 = vpack.c.b16 %v2994, %v2993
    %v3010 = vpack.c.b16 %v2996, %v2995
    %v3011 = vpack.c.b16 %v2998, %v2997
    %v3012 = vpack.c.b16 %v3000, %v2999
    %v3013 = vpack.c.b16 %v3002, %v3001
    %v3014 = vpack.c.b16 %v3004, %v3003
    %v3015 = vpack.c.b16 %v3006, %v3005
    %v3016 = vpack.c.b16 %v3008, %v3007
    %3025 = vmatpush.bf16.msra.mxu0 %v3016
    %3026 = vmatpush.bf16.msra.mxu0 %v3015
    %3027 = vmatpush.bf16.msra.mxu0 %v3014
    %3028 = vmatpush.bf16.msra.mxu0 %v3013
    %3029 = vmatpush.bf16.msra.mxu0 %v3012
    %3030 = vmatpush.bf16.msra.mxu0 %v3011
    %3031 = vmatpush.bf16.msra.mxu0 %v3010
    %3032 = vmatpush.bf16.msra.mxu0 %v3009
    %3033 = vmatmul.bf16.gmra.mxu0 %v2971
    %v3034 = vpop.f32.mrf.mxu0
    %v3035 = vadd.f32 0.0, %v3034
    %v3036 = vpop.f32.mrf.mxu0
    %v3037 = vadd.f32 0.0, %v3036
    %3038 = vmatmul.bf16.gmra.mxu0 %v2972
    %v3039 = vpop.f32.mrf.mxu0
    %v3040 = vadd.f32 0.0, %v3039
    %v3041 = vpop.f32.mrf.mxu0
    %v3042 = vadd.f32 0.0, %v3041
    %3043 = vmatmul.bf16.gmra.mxu0 %v2973
    %v3044 = vpop.f32.mrf.mxu0
    %v3045 = vadd.f32 0.0, %v3044
    %v3046 = vpop.f32.mrf.mxu0
    %v3047 = vadd.f32 0.0, %v3046
    %3048 = vmatmul.bf16.gmra.mxu0 %v2974
    %v3049 = vpop.f32.mrf.mxu0
    %v3050 = vadd.f32 0.0, %v3049
    %v3051 = vpop.f32.mrf.mxu0
    %v3052 = vadd.f32 0.0, %v3051
    %3053 = vmatmul.bf16.gmra.mxu0 %v2975
    %v3054 = vpop.f32.mrf.mxu0
    %v3055 = vadd.f32 0.0, %v3054
    %v3056 = vpop.f32.mrf.mxu0
    %v3057 = vadd.f32 0.0, %v3056
    %3058 = vmatmul.bf16.gmra.mxu0 %v2976
    %v3059 = vpop.f32.mrf.mxu0
    %v3060 = vadd.f32 0.0, %v3059
    %v3061 = vpop.f32.mrf.mxu0
    %v3062 = vadd.f32 0.0, %v3061
    %3063 = vdwg.mxu0
    %v3064 = vadd.f32 %v2943, %v3035
    %v3065 = vadd.f32 %v2944, %v3037
    %v3066 = vadd.f32 %v2945, %v3040
    %v3067 = vadd.f32 %v2946, %v3042
    %v3068 = vadd.f32 %v2947, %v3045
    %v3069 = vadd.f32 %v2948, %v3047
    %v3070 = vadd.f32 %v2949, %v3050
    %v3071 = vadd.f32 %v2950, %v3052
    %v3072 = vadd.f32 %v2951, %v3055
    %v3073 = vadd.f32 %v2952, %v3057
    %v3074 = vadd.f32 %v2953, %v3060
    %v3075 = vadd.f32 %v2954, %v3062
    %v3076 = vld [vmem:[%s9 + $0x100] sm:$0xf]
    %v3077 = vld [vmem:[%s9 + $0x104] sm:$0xf]
    %v3078 = vld [vmem:[%s9 + $0x108] sm:$0xf]
    %v3079 = vld [vmem:[%s9 + $0x10c] sm:$0xf]
    %v3080 = vld [vmem:[%s9 + $0x110] sm:$0xf]
    %v3081 = vld [vmem:[%s9 + $0x114] sm:$0xf]
    %v3082 = vld [vmem:[%s9 + $0x118] sm:$0xf]
    %v3083 = vld [vmem:[%s9 + $0x11c] sm:$0xf]
    %v3084 = vld [vmem:[%s9 + $0x120] sm:$0xf]
    %v3085 = vld [vmem:[%s9 + $0x124] sm:$0xf]
    %v3086 = vld [vmem:[%s9 + $0x128] sm:$0xf]
    %v3087 = vld [vmem:[%s9 + $0x12c] sm:$0xf]
    %v3088 = vld [vmem:[%s9 + $0x130] sm:$0xf]
    %v3089 = vld [vmem:[%s9 + $0x134] sm:$0xf]
    %v3090 = vld [vmem:[%s9 + $0x138] sm:$0xf]
    %v3091 = vld [vmem:[%s9 + $0x13c] sm:$0xf]
    %v3092 = vpack.c.bf16 %v2469, %v2467
    %v3093 = vpack.c.bf16 %v2474, %v2472
    %v3094 = vpack.c.bf16 %v2479, %v2477
    %v3095 = vpack.c.bf16 %v2484, %v2482
    %v3096 = vpack.c.bf16 %v2489, %v2487
    %v3097 = vpack.c.bf16 %v2494, %v2492
    %v3114 = vunpack.c.l.b16 %v3076
    %v3115 = vunpack.c.l.b16 %v3077
    %v3116 = vunpack.c.l.b16 %v3078
    %v3117 = vunpack.c.l.b16 %v3079
    %v3118 = vunpack.c.l.b16 %v3080
    %v3119 = vunpack.c.l.b16 %v3081
    %v3120 = vunpack.c.l.b16 %v3082
    %v3121 = vunpack.c.l.b16 %v3083
    %v3122 = vunpack.c.l.b16 %v3084
    %v3123 = vunpack.c.l.b16 %v3085
    %v3124 = vunpack.c.l.b16 %v3086
    %v3125 = vunpack.c.l.b16 %v3087
    %v3126 = vunpack.c.l.b16 %v3088
    %v3127 = vunpack.c.l.b16 %v3089
    %v3128 = vunpack.c.l.b16 %v3090
    %v3129 = vunpack.c.l.b16 %v3091
    %v3130 = vpack.c.b16 %v3115, %v3114
    %v3131 = vpack.c.b16 %v3117, %v3116
    %v3132 = vpack.c.b16 %v3119, %v3118
    %v3133 = vpack.c.b16 %v3121, %v3120
    %v3134 = vpack.c.b16 %v3123, %v3122
    %v3135 = vpack.c.b16 %v3125, %v3124
    %v3136 = vpack.c.b16 %v3127, %v3126
    %v3137 = vpack.c.b16 %v3129, %v3128
    %3146 = vmatpush.bf16.msra.mxu0 %v3137
    %3147 = vmatpush.bf16.msra.mxu0 %v3136
    %3148 = vmatpush.bf16.msra.mxu0 %v3135
    %3149 = vmatpush.bf16.msra.mxu0 %v3134
    %3150 = vmatpush.bf16.msra.mxu0 %v3133
    %3151 = vmatpush.bf16.msra.mxu0 %v3132
    %3152 = vmatpush.bf16.msra.mxu0 %v3131
    %3153 = vmatpush.bf16.msra.mxu0 %v3130
    %3154 = vmatmul.bf16.gmra.mxu0 %v3092
    %v3155 = vpop.f32.mrf.mxu0
    %v3156 = vadd.f32 0.0, %v3155
    %v3157 = vpop.f32.mrf.mxu0
    %v3158 = vadd.f32 0.0, %v3157
    %3159 = vmatmul.bf16.gmra.mxu0 %v3093
    %v3160 = vpop.f32.mrf.mxu0
    %v3161 = vadd.f32 0.0, %v3160
    %v3162 = vpop.f32.mrf.mxu0
    %v3163 = vadd.f32 0.0, %v3162
    %3164 = vmatmul.bf16.gmra.mxu0 %v3094
    %v3165 = vpop.f32.mrf.mxu0
    %v3166 = vadd.f32 0.0, %v3165
    %v3167 = vpop.f32.mrf.mxu0
    %v3168 = vadd.f32 0.0, %v3167
    %3169 = vmatmul.bf16.gmra.mxu0 %v3095
    %v3170 = vpop.f32.mrf.mxu0
    %v3171 = vadd.f32 0.0, %v3170
    %v3172 = vpop.f32.mrf.mxu0
    %v3173 = vadd.f32 0.0, %v3172
    %3174 = vmatmul.bf16.gmra.mxu0 %v3096
    %v3175 = vpop.f32.mrf.mxu0
    %v3176 = vadd.f32 0.0, %v3175
    %v3177 = vpop.f32.mrf.mxu0
    %v3178 = vadd.f32 0.0, %v3177
    %3179 = vmatmul.bf16.gmra.mxu0 %v3097
    %v3180 = vpop.f32.mrf.mxu0
    %v3181 = vadd.f32 0.0, %v3180
    %v3182 = vpop.f32.mrf.mxu0
    %v3183 = vadd.f32 0.0, %v3182
    %3184 = vdwg.mxu0
    %v3185 = vadd.f32 %v3064, %v3156
    %v3186 = vadd.f32 %v3065, %v3158
    %v3187 = vadd.f32 %v3066, %v3161
    %v3188 = vadd.f32 %v3067, %v3163
    %v3189 = vadd.f32 %v3068, %v3166
    %v3190 = vadd.f32 %v3069, %v3168
    %v3191 = vadd.f32 %v3070, %v3171
    %v3192 = vadd.f32 %v3071, %v3173
    %v3193 = vadd.f32 %v3072, %v3176
    %v3194 = vadd.f32 %v3073, %v3178
    %v3195 = vadd.f32 %v3074, %v3181
    %v3196 = vadd.f32 %v3075, %v3183
    %v3197 = vld [vmem:[%s9 + $0x140] sm:$0xf]
    %v3198 = vld [vmem:[%s9 + $0x144] sm:$0xf]
    %v3199 = vld [vmem:[%s9 + $0x148] sm:$0xf]
    %v3200 = vld [vmem:[%s9 + $0x14c] sm:$0xf]
    %v3201 = vld [vmem:[%s9 + $0x150] sm:$0xf]
    %v3202 = vld [vmem:[%s9 + $0x154] sm:$0xf]
    %v3203 = vld [vmem:[%s9 + $0x158] sm:$0xf]
    %v3204 = vld [vmem:[%s9 + $0x15c] sm:$0xf]
    %v3205 = vld [vmem:[%s9 + $0x160] sm:$0xf]
    %v3206 = vld [vmem:[%s9 + $0x164] sm:$0xf]
    %v3207 = vld [vmem:[%s9 + $0x168] sm:$0xf]
    %v3208 = vld [vmem:[%s9 + $0x16c] sm:$0xf]
    %v3209 = vld [vmem:[%s9 + $0x170] sm:$0xf]
    %v3210 = vld [vmem:[%s9 + $0x174] sm:$0xf]
    %v3211 = vld [vmem:[%s9 + $0x178] sm:$0xf]
    %v3212 = vld [vmem:[%s9 + $0x17c] sm:$0xf]
    %v3213 = vpack.c.bf16 %v2499, %v2497
    %v3214 = vpack.c.bf16 %v2504, %v2502
    %v3215 = vpack.c.bf16 %v2509, %v2507
    %v3216 = vpack.c.bf16 %v2514, %v2512
    %v3217 = vpack.c.bf16 %v2519, %v2517
    %v3218 = vpack.c.bf16 %v2524, %v2522
    %v3235 = vunpack.c.l.b16 %v3197
    %v3236 = vunpack.c.l.b16 %v3198
    %v3237 = vunpack.c.l.b16 %v3199
    %v3238 = vunpack.c.l.b16 %v3200
    %v3239 = vunpack.c.l.b16 %v3201
    %v3240 = vunpack.c.l.b16 %v3202
    %v3241 = vunpack.c.l.b16 %v3203
    %v3242 = vunpack.c.l.b16 %v3204
    %v3243 = vunpack.c.l.b16 %v3205
    %v3244 = vunpack.c.l.b16 %v3206
    %v3245 = vunpack.c.l.b16 %v3207
    %v3246 = vunpack.c.l.b16 %v3208
    %v3247 = vunpack.c.l.b16 %v3209
    %v3248 = vunpack.c.l.b16 %v3210
    %v3249 = vunpack.c.l.b16 %v3211
    %v3250 = vunpack.c.l.b16 %v3212
    %v3251 = vpack.c.b16 %v3236, %v3235
    %v3252 = vpack.c.b16 %v3238, %v3237
    %v3253 = vpack.c.b16 %v3240, %v3239
    %v3254 = vpack.c.b16 %v3242, %v3241
    %v3255 = vpack.c.b16 %v3244, %v3243
    %v3256 = vpack.c.b16 %v3246, %v3245
    %v3257 = vpack.c.b16 %v3248, %v3247
    %v3258 = vpack.c.b16 %v3250, %v3249
    %3267 = vmatpush.bf16.msra.mxu0 %v3258
    %3268 = vmatpush.bf16.msra.mxu0 %v3257
    %3269 = vmatpush.bf16.msra.mxu0 %v3256
    %3270 = vmatpush.bf16.msra.mxu0 %v3255
    %3271 = vmatpush.bf16.msra.mxu0 %v3254
    %3272 = vmatpush.bf16.msra.mxu0 %v3253
    %3273 = vmatpush.bf16.msra.mxu0 %v3252
    %3274 = vmatpush.bf16.msra.mxu0 %v3251
    %3275 = vmatmul.bf16.gmra.mxu0 %v3213
    %v3276 = vpop.f32.mrf.mxu0
    %v3277 = vadd.f32 0.0, %v3276
    %v3278 = vpop.f32.mrf.mxu0
    %v3279 = vadd.f32 0.0, %v3278
    %3280 = vmatmul.bf16.gmra.mxu0 %v3214
    %v3281 = vpop.f32.mrf.mxu0
    %v3282 = vadd.f32 0.0, %v3281
    %v3283 = vpop.f32.mrf.mxu0
    %v3284 = vadd.f32 0.0, %v3283
    %3285 = vmatmul.bf16.gmra.mxu0 %v3215
    %v3286 = vpop.f32.mrf.mxu0
    %v3287 = vadd.f32 0.0, %v3286
    %v3288 = vpop.f32.mrf.mxu0
    %v3289 = vadd.f32 0.0, %v3288
    %3290 = vmatmul.bf16.gmra.mxu0 %v3216
    %v3291 = vpop.f32.mrf.mxu0
    %v3292 = vadd.f32 0.0, %v3291
    %v3293 = vpop.f32.mrf.mxu0
    %v3294 = vadd.f32 0.0, %v3293
    %3295 = vmatmul.bf16.gmra.mxu0 %v3217
    %v3296 = vpop.f32.mrf.mxu0
    %v3297 = vadd.f32 0.0, %v3296
    %v3298 = vpop.f32.mrf.mxu0
    %v3299 = vadd.f32 0.0, %v3298
    %3300 = vmatmul.bf16.gmra.mxu0 %v3218
    %v3301 = vpop.f32.mrf.mxu0
    %v3302 = vadd.f32 0.0, %v3301
    %v3303 = vpop.f32.mrf.mxu0
    %v3304 = vadd.f32 0.0, %v3303
    %3305 = vdwg.mxu0
    %v3306 = vadd.f32 %v3185, %v3277
    %v3307 = vadd.f32 %v3186, %v3279
    %v3308 = vadd.f32 %v3187, %v3282
    %v3309 = vadd.f32 %v3188, %v3284
    %v3310 = vadd.f32 %v3189, %v3287
    %v3311 = vadd.f32 %v3190, %v3289
    %v3312 = vadd.f32 %v3191, %v3292
    %v3313 = vadd.f32 %v3192, %v3294
    %v3314 = vadd.f32 %v3193, %v3297
    %v3315 = vadd.f32 %v3194, %v3299
    %v3316 = vadd.f32 %v3195, %v3302
    %v3317 = vadd.f32 %v3196, %v3304
    %v3318 = vld [vmem:[%s9 + $0x180] sm:$0xf]
    %v3319 = vld [vmem:[%s9 + $0x184] sm:$0xf]
    %v3320 = vld [vmem:[%s9 + $0x188] sm:$0xf]
    %v3321 = vld [vmem:[%s9 + $0x18c] sm:$0xf]
    %v3322 = vld [vmem:[%s9 + $0x190] sm:$0xf]
    %v3323 = vld [vmem:[%s9 + $0x194] sm:$0xf]
    %v3324 = vld [vmem:[%s9 + $0x198] sm:$0xf]
    %v3325 = vld [vmem:[%s9 + $0x19c] sm:$0xf]
    %v3326 = vld [vmem:[%s9 + $0x1a0] sm:$0xf]
    %v3327 = vld [vmem:[%s9 + $0x1a4] sm:$0xf]
    %v3328 = vld [vmem:[%s9 + $0x1a8] sm:$0xf]
    %v3329 = vld [vmem:[%s9 + $0x1ac] sm:$0xf]
    %v3330 = vld [vmem:[%s9 + $0x1b0] sm:$0xf]
    %v3331 = vld [vmem:[%s9 + $0x1b4] sm:$0xf]
    %v3332 = vld [vmem:[%s9 + $0x1b8] sm:$0xf]
    %v3333 = vld [vmem:[%s9 + $0x1bc] sm:$0xf]
    %v3334 = vpack.c.bf16 %v2529, %v2527
    %v3335 = vpack.c.bf16 %v2534, %v2532
    %v3336 = vpack.c.bf16 %v2539, %v2537
    %v3337 = vpack.c.bf16 %v2544, %v2542
    %v3338 = vpack.c.bf16 %v2549, %v2547
    %v3339 = vpack.c.bf16 %v2554, %v2552
    %v3356 = vunpack.c.l.b16 %v3318
    %v3357 = vunpack.c.l.b16 %v3319
    %v3358 = vunpack.c.l.b16 %v3320
    %v3359 = vunpack.c.l.b16 %v3321
    %v3360 = vunpack.c.l.b16 %v3322
    %v3361 = vunpack.c.l.b16 %v3323
    %v3362 = vunpack.c.l.b16 %v3324
    %v3363 = vunpack.c.l.b16 %v3325
    %v3364 = vunpack.c.l.b16 %v3326
    %v3365 = vunpack.c.l.b16 %v3327
    %v3366 = vunpack.c.l.b16 %v3328
    %v3367 = vunpack.c.l.b16 %v3329
    %v3368 = vunpack.c.l.b16 %v3330
    %v3369 = vunpack.c.l.b16 %v3331
    %v3370 = vunpack.c.l.b16 %v3332
    %v3371 = vunpack.c.l.b16 %v3333
    %v3372 = vpack.c.b16 %v3357, %v3356
    %v3373 = vpack.c.b16 %v3359, %v3358
    %v3374 = vpack.c.b16 %v3361, %v3360
    %v3375 = vpack.c.b16 %v3363, %v3362
    %v3376 = vpack.c.b16 %v3365, %v3364
    %v3377 = vpack.c.b16 %v3367, %v3366
    %v3378 = vpack.c.b16 %v3369, %v3368
    %v3379 = vpack.c.b16 %v3371, %v3370
    %3388 = vmatpush.bf16.msra.mxu0 %v3379
    %3389 = vmatpush.bf16.msra.mxu0 %v3378
    %3390 = vmatpush.bf16.msra.mxu0 %v3377
    %3391 = vmatpush.bf16.msra.mxu0 %v3376
    %3392 = vmatpush.bf16.msra.mxu0 %v3375
    %3393 = vmatpush.bf16.msra.mxu0 %v3374
    %3394 = vmatpush.bf16.msra.mxu0 %v3373
    %3395 = vmatpush.bf16.msra.mxu0 %v3372
    %3396 = vmatmul.bf16.gmra.mxu0 %v3334
    %v3397 = vpop.f32.mrf.mxu0
    %v3398 = vadd.f32 0.0, %v3397
    %v3399 = vpop.f32.mrf.mxu0
    %v3400 = vadd.f32 0.0, %v3399
    %3401 = vmatmul.bf16.gmra.mxu0 %v3335
    %v3402 = vpop.f32.mrf.mxu0
    %v3403 = vadd.f32 0.0, %v3402
    %v3404 = vpop.f32.mrf.mxu0
    %v3405 = vadd.f32 0.0, %v3404
    %3406 = vmatmul.bf16.gmra.mxu0 %v3336
    %v3407 = vpop.f32.mrf.mxu0
    %v3408 = vadd.f32 0.0, %v3407
    %v3409 = vpop.f32.mrf.mxu0
    %v3410 = vadd.f32 0.0, %v3409
    %3411 = vmatmul.bf16.gmra.mxu0 %v3337
    %v3412 = vpop.f32.mrf.mxu0
    %v3413 = vadd.f32 0.0, %v3412
    %v3414 = vpop.f32.mrf.mxu0
    %v3415 = vadd.f32 0.0, %v3414
    %3416 = vmatmul.bf16.gmra.mxu0 %v3338
    %v3417 = vpop.f32.mrf.mxu0
    %v3418 = vadd.f32 0.0, %v3417
    %v3419 = vpop.f32.mrf.mxu0
    %v3420 = vadd.f32 0.0, %v3419
    %3421 = vmatmul.bf16.gmra.mxu0 %v3339
    %v3422 = vpop.f32.mrf.mxu0
    %v3423 = vadd.f32 0.0, %v3422
    %v3424 = vpop.f32.mrf.mxu0
    %v3425 = vadd.f32 0.0, %v3424
    %3426 = vdwg.mxu0
    %v3427 = vadd.f32 %v3306, %v3398
    %v3428 = vadd.f32 %v3307, %v3400
    %v3429 = vadd.f32 %v3308, %v3403
    %v3430 = vadd.f32 %v3309, %v3405
    %v3431 = vadd.f32 %v3310, %v3408
    %v3432 = vadd.f32 %v3311, %v3410
    %v3433 = vadd.f32 %v3312, %v3413
    %v3434 = vadd.f32 %v3313, %v3415
    %v3435 = vadd.f32 %v3314, %v3418
    %v3436 = vadd.f32 %v3315, %v3420
    %v3437 = vadd.f32 %v3316, %v3423
    %v3438 = vadd.f32 %v3317, %v3425
    %v3439 = vld [vmem:[%s9 + $0x1c0] sm:$0xf]
    %v3440 = vld [vmem:[%s9 + $0x1c4] sm:$0xf]
    %v3441 = vld [vmem:[%s9 + $0x1c8] sm:$0xf]
    %v3442 = vld [vmem:[%s9 + $0x1cc] sm:$0xf]
    %v3443 = vld [vmem:[%s9 + $0x1d0] sm:$0xf]
    %v3444 = vld [vmem:[%s9 + $0x1d4] sm:$0xf]
    %v3445 = vld [vmem:[%s9 + $0x1d8] sm:$0xf]
    %v3446 = vld [vmem:[%s9 + $0x1dc] sm:$0xf]
    %v3447 = vld [vmem:[%s9 + $0x1e0] sm:$0xf]
    %v3448 = vld [vmem:[%s9 + $0x1e4] sm:$0xf]
    %v3449 = vld [vmem:[%s9 + $0x1e8] sm:$0xf]
    %v3450 = vld [vmem:[%s9 + $0x1ec] sm:$0xf]
    %v3451 = vld [vmem:[%s9 + $0x1f0] sm:$0xf]
    %v3452 = vld [vmem:[%s9 + $0x1f4] sm:$0xf]
    %v3453 = vld [vmem:[%s9 + $0x1f8] sm:$0xf]
    %v3454 = vld [vmem:[%s9 + $0x1fc] sm:$0xf]
    %v3455 = vpack.c.bf16 %v2559, %v2557
    %v3456 = vpack.c.bf16 %v2564, %v2562
    %v3457 = vpack.c.bf16 %v2569, %v2567
    %v3458 = vpack.c.bf16 %v2574, %v2572
    %v3459 = vpack.c.bf16 %v2579, %v2577
    %v3460 = vpack.c.bf16 %v2584, %v2582
    %v3477 = vunpack.c.l.b16 %v3439
    %v3478 = vunpack.c.l.b16 %v3440
    %v3479 = vunpack.c.l.b16 %v3441
    %v3480 = vunpack.c.l.b16 %v3442
    %v3481 = vunpack.c.l.b16 %v3443
    %v3482 = vunpack.c.l.b16 %v3444
    %v3483 = vunpack.c.l.b16 %v3445
    %v3484 = vunpack.c.l.b16 %v3446
    %v3485 = vunpack.c.l.b16 %v3447
    %v3486 = vunpack.c.l.b16 %v3448
    %v3487 = vunpack.c.l.b16 %v3449
    %v3488 = vunpack.c.l.b16 %v3450
    %v3489 = vunpack.c.l.b16 %v3451
    %v3490 = vunpack.c.l.b16 %v3452
    %v3491 = vunpack.c.l.b16 %v3453
    %v3492 = vunpack.c.l.b16 %v3454
    %v3493 = vpack.c.b16 %v3478, %v3477
    %v3494 = vpack.c.b16 %v3480, %v3479
    %v3495 = vpack.c.b16 %v3482, %v3481
    %v3496 = vpack.c.b16 %v3484, %v3483
    %v3497 = vpack.c.b16 %v3486, %v3485
    %v3498 = vpack.c.b16 %v3488, %v3487
    %v3499 = vpack.c.b16 %v3490, %v3489
    %v3500 = vpack.c.b16 %v3492, %v3491
    %3509 = vmatpush.bf16.msra.mxu0 %v3500
    %3510 = vmatpush.bf16.msra.mxu0 %v3499
    %3511 = vmatpush.bf16.msra.mxu0 %v3498
    %3512 = vmatpush.bf16.msra.mxu0 %v3497
    %3513 = vmatpush.bf16.msra.mxu0 %v3496
    %3514 = vmatpush.bf16.msra.mxu0 %v3495
    %3515 = vmatpush.bf16.msra.mxu0 %v3494
    %3516 = vmatpush.bf16.msra.mxu0 %v3493
    %3517 = vmatmul.bf16.gmra.mxu0 %v3455
    %v3518 = vpop.f32.mrf.mxu0
    %v3519 = vadd.f32 0.0, %v3518
    %v3520 = vpop.f32.mrf.mxu0
    %v3521 = vadd.f32 0.0, %v3520
    %3522 = vmatmul.bf16.gmra.mxu0 %v3456
    %v3523 = vpop.f32.mrf.mxu0
    %v3524 = vadd.f32 0.0, %v3523
    %v3525 = vpop.f32.mrf.mxu0
    %v3526 = vadd.f32 0.0, %v3525
    %3527 = vmatmul.bf16.gmra.mxu0 %v3457
    %v3528 = vpop.f32.mrf.mxu0
    %v3529 = vadd.f32 0.0, %v3528
    %v3530 = vpop.f32.mrf.mxu0
    %v3531 = vadd.f32 0.0, %v3530
    %3532 = vmatmul.bf16.gmra.mxu0 %v3458
    %v3533 = vpop.f32.mrf.mxu0
    %v3534 = vadd.f32 0.0, %v3533
    %v3535 = vpop.f32.mrf.mxu0
    %v3536 = vadd.f32 0.0, %v3535
    %3537 = vmatmul.bf16.gmra.mxu0 %v3459
    %v3538 = vpop.f32.mrf.mxu0
    %v3539 = vadd.f32 0.0, %v3538
    %v3540 = vpop.f32.mrf.mxu0
    %v3541 = vadd.f32 0.0, %v3540
    %3542 = vmatmul.bf16.gmra.mxu0 %v3460
    %v3543 = vpop.f32.mrf.mxu0
    %v3544 = vadd.f32 0.0, %v3543
    %v3545 = vpop.f32.mrf.mxu0
    %v3546 = vadd.f32 0.0, %v3545
    %3547 = vdwg.mxu0
    %v3548 = vadd.f32 %v3427, %v3519
    %v3549 = vadd.f32 %v3428, %v3521
    %v3550 = vadd.f32 %v3429, %v3524
    %v3551 = vadd.f32 %v3430, %v3526
    %v3552 = vadd.f32 %v3431, %v3529
    %v3553 = vadd.f32 %v3432, %v3531
    %v3554 = vadd.f32 %v3433, %v3534
    %v3555 = vadd.f32 %v3434, %v3536
    %v3556 = vadd.f32 %v3435, %v3539
    %v3557 = vadd.f32 %v3436, %v3541
    %v3558 = vadd.f32 %v3437, %v3544
    %v3559 = vadd.f32 %v3438, %v3546
    %v3560 = vld [vmem:[%s9 + $0x200] sm:$0xf]
    %v3561 = vld [vmem:[%s9 + $0x204] sm:$0xf]
    %v3562 = vld [vmem:[%s9 + $0x208] sm:$0xf]
    %v3563 = vld [vmem:[%s9 + $0x20c] sm:$0xf]
    %v3564 = vld [vmem:[%s9 + $0x210] sm:$0xf]
    %v3565 = vld [vmem:[%s9 + $0x214] sm:$0xf]
    %v3566 = vld [vmem:[%s9 + $0x218] sm:$0xf]
    %v3567 = vld [vmem:[%s9 + $0x21c] sm:$0xf]
    %v3568 = vld [vmem:[%s9 + $0x220] sm:$0xf]
    %v3569 = vld [vmem:[%s9 + $0x224] sm:$0xf]
    %v3570 = vld [vmem:[%s9 + $0x228] sm:$0xf]
    %v3571 = vld [vmem:[%s9 + $0x22c] sm:$0xf]
    %v3572 = vld [vmem:[%s9 + $0x230] sm:$0xf]
    %v3573 = vld [vmem:[%s9 + $0x234] sm:$0xf]
    %v3574 = vld [vmem:[%s9 + $0x238] sm:$0xf]
    %v3575 = vld [vmem:[%s9 + $0x23c] sm:$0xf]
    %v3576 = vpack.c.bf16 %v2589, %v2587
    %v3577 = vpack.c.bf16 %v2594, %v2592
    %v3578 = vpack.c.bf16 %v2599, %v2597
    %v3579 = vpack.c.bf16 %v2604, %v2602
    %v3580 = vpack.c.bf16 %v2609, %v2607
    %v3581 = vpack.c.bf16 %v2614, %v2612
    %v3598 = vunpack.c.l.b16 %v3560
    %v3599 = vunpack.c.l.b16 %v3561
    %v3600 = vunpack.c.l.b16 %v3562
    %v3601 = vunpack.c.l.b16 %v3563
    %v3602 = vunpack.c.l.b16 %v3564
    %v3603 = vunpack.c.l.b16 %v3565
    %v3604 = vunpack.c.l.b16 %v3566
    %v3605 = vunpack.c.l.b16 %v3567
    %v3606 = vunpack.c.l.b16 %v3568
    %v3607 = vunpack.c.l.b16 %v3569
    %v3608 = vunpack.c.l.b16 %v3570
    %v3609 = vunpack.c.l.b16 %v3571
    %v3610 = vunpack.c.l.b16 %v3572
    %v3611 = vunpack.c.l.b16 %v3573
    %v3612 = vunpack.c.l.b16 %v3574
    %v3613 = vunpack.c.l.b16 %v3575
    %v3614 = vpack.c.b16 %v3599, %v3598
    %v3615 = vpack.c.b16 %v3601, %v3600
    %v3616 = vpack.c.b16 %v3603, %v3602
    %v3617 = vpack.c.b16 %v3605, %v3604
    %v3618 = vpack.c.b16 %v3607, %v3606
    %v3619 = vpack.c.b16 %v3609, %v3608
    %v3620 = vpack.c.b16 %v3611, %v3610
    %v3621 = vpack.c.b16 %v3613, %v3612
    %3630 = vmatpush.bf16.msra.mxu0 %v3621
    %3631 = vmatpush.bf16.msra.mxu0 %v3620
    %3632 = vmatpush.bf16.msra.mxu0 %v3619
    %3633 = vmatpush.bf16.msra.mxu0 %v3618
    %3634 = vmatpush.bf16.msra.mxu0 %v3617
    %3635 = vmatpush.bf16.msra.mxu0 %v3616
    %3636 = vmatpush.bf16.msra.mxu0 %v3615
    %3637 = vmatpush.bf16.msra.mxu0 %v3614
    %3638 = vmatmul.bf16.gmra.mxu0 %v3576
    %v3639 = vpop.f32.mrf.mxu0
    %v3640 = vadd.f32 0.0, %v3639
    %v3641 = vpop.f32.mrf.mxu0
    %v3642 = vadd.f32 0.0, %v3641
    %3643 = vmatmul.bf16.gmra.mxu0 %v3577
    %v3644 = vpop.f32.mrf.mxu0
    %v3645 = vadd.f32 0.0, %v3644
    %v3646 = vpop.f32.mrf.mxu0
    %v3647 = vadd.f32 0.0, %v3646
    %3648 = vmatmul.bf16.gmra.mxu0 %v3578
    %v3649 = vpop.f32.mrf.mxu0
    %v3650 = vadd.f32 0.0, %v3649
    %v3651 = vpop.f32.mrf.mxu0
    %v3652 = vadd.f32 0.0, %v3651
    %3653 = vmatmul.bf16.gmra.mxu0 %v3579
    %v3654 = vpop.f32.mrf.mxu0
    %v3655 = vadd.f32 0.0, %v3654
    %v3656 = vpop.f32.mrf.mxu0
    %v3657 = vadd.f32 0.0, %v3656
    %3658 = vmatmul.bf16.gmra.mxu0 %v3580
    %v3659 = vpop.f32.mrf.mxu0
    %v3660 = vadd.f32 0.0, %v3659
    %v3661 = vpop.f32.mrf.mxu0
    %v3662 = vadd.f32 0.0, %v3661
    %3663 = vmatmul.bf16.gmra.mxu0 %v3581
    %v3664 = vpop.f32.mrf.mxu0
    %v3665 = vadd.f32 0.0, %v3664
    %v3666 = vpop.f32.mrf.mxu0
    %v3667 = vadd.f32 0.0, %v3666
    %3668 = vdwg.mxu0
    %v3669 = vadd.f32 %v3548, %v3640
    %v3670 = vadd.f32 %v3549, %v3642
    %v3671 = vadd.f32 %v3550, %v3645
    %v3672 = vadd.f32 %v3551, %v3647
    %v3673 = vadd.f32 %v3552, %v3650
    %v3674 = vadd.f32 %v3553, %v3652
    %v3675 = vadd.f32 %v3554, %v3655
    %v3676 = vadd.f32 %v3555, %v3657
    %v3677 = vadd.f32 %v3556, %v3660
    %v3678 = vadd.f32 %v3557, %v3662
    %v3679 = vadd.f32 %v3558, %v3665
    %v3680 = vadd.f32 %v3559, %v3667
    %v3682 = vperm.slane %v674, 0
    %v3684 = vadd.f32 %v3669, %v3682
    %v3685 = vadd.f32 %v3670, %v3682
    %v3686 = vadd.f32 %v3671, %v3682
    %v3687 = vadd.f32 %v3672, %v3682
    %v3688 = vadd.f32 %v3673, %v3682
    %v3689 = vadd.f32 %v3674, %v3682
    %v3690 = vadd.f32 %v3675, %v3682
    %v3691 = vadd.f32 %v3676, %v3682
    %v3692 = vadd.f32 %v3677, %v3682
    %v3693 = vadd.f32 %v3678, %v3682
    %v3694 = vadd.f32 %v3679, %v3682
    %v3695 = vadd.f32 %v3680, %v3682
    %v3696 = vmax.f32 %v3684, 0.0
    %v3697 = vmax.f32 %v3685, 0.0
    %v3698 = vmax.f32 %v3686, 0.0
    %v3699 = vmax.f32 %v3687, 0.0
    %v3700 = vmax.f32 %v3688, 0.0
    %v3701 = vmax.f32 %v3689, 0.0
    %v3702 = vmax.f32 %v3690, 0.0
    %v3703 = vmax.f32 %v3691, 0.0
    %v3704 = vmax.f32 %v3692, 0.0
    %v3705 = vmax.f32 %v3693, 0.0
    %v3706 = vmax.f32 %v3694, 0.0
    %v3707 = vmax.f32 %v3695, 0.0
    %v3708 = vld [vmem:[%s17] sm:$0x1]
    %v3709 = vld [vmem:[%s13] sm:$0xf]
    %v3710 = vld [vmem:[%s13 + $0x4] sm:$0xf]
    %v3711 = vld [vmem:[%s13 + $0x8] sm:$0xf]
    %v3712 = vld [vmem:[%s13 + $0xc] sm:$0xf]
    %v3713 = vld [vmem:[%s13 + $0x10] sm:$0xf]
    %v3714 = vld [vmem:[%s13 + $0x14] sm:$0xf]
    %v3715 = vld [vmem:[%s13 + $0x18] sm:$0xf]
    %v3716 = vld [vmem:[%s13 + $0x1c] sm:$0xf]
    %v3717 = vld [vmem:[%s13 + $0x20] sm:$0xf]
    %v3718 = vld [vmem:[%s13 + $0x24] sm:$0xf]
    %v3719 = vld [vmem:[%s13 + $0x28] sm:$0xf]
    %v3720 = vld [vmem:[%s13 + $0x2c] sm:$0xf]
    %v3721 = vld [vmem:[%s13 + $0x30] sm:$0xf]
    %v3722 = vld [vmem:[%s13 + $0x34] sm:$0xf]
    %v3723 = vld [vmem:[%s13 + $0x38] sm:$0xf]
    %v3724 = vld [vmem:[%s13 + $0x3c] sm:$0xf]
    %v3725 = vld [vmem:[%s13 + $0x40] sm:$0xf]
    %v3726 = vld [vmem:[%s13 + $0x44] sm:$0xf]
    %v3727 = vld [vmem:[%s13 + $0x48] sm:$0xf]
    %v3728 = vld [vmem:[%s13 + $0x4c] sm:$0xf]
    %v3729 = vld [vmem:[%s13 + $0x50] sm:$0xf]
    %v3730 = vld [vmem:[%s13 + $0x54] sm:$0xf]
    %v3731 = vld [vmem:[%s13 + $0x58] sm:$0xf]
    %v3732 = vld [vmem:[%s13 + $0x5c] sm:$0xf]
    %v3733 = vld [vmem:[%s13 + $0x60] sm:$0xf]
    %v3734 = vld [vmem:[%s13 + $0x64] sm:$0xf]
    %v3735 = vld [vmem:[%s13 + $0x68] sm:$0xf]
    %v3736 = vpack.c.bf16 %v3697, %v3696
    %v3737 = vpack.c.bf16 %v3699, %v3698
    %v3738 = vpack.c.bf16 %v3701, %v3700
    %v3739 = vpack.c.bf16 %v3703, %v3702
    %v3740 = vpack.c.bf16 %v3705, %v3704
    %v3741 = vpack.c.bf16 %v3707, %v3706
    %v3769 = vunpack.c.l.b16 %v3709
    %v3770 = vunpack.c.l.b16 %v3710
    %v3771 = vunpack.c.l.b16 %v3711
    %v3772 = vunpack.c.l.b16 %v3712
    %v3773 = vunpack.c.l.b16 %v3713
    %v3774 = vunpack.c.l.b16 %v3714
    %v3775 = vunpack.c.l.b16 %v3715
    %v3776 = vunpack.c.l.b16 %v3716
    %v3777 = vunpack.c.l.b16 %v3717
    %v3778 = vunpack.c.l.b16 %v3718
    %v3779 = vunpack.c.l.b16 %v3719
    %v3780 = vunpack.c.l.b16 %v3720
    %v3781 = vunpack.c.l.b16 %v3721
    %v3782 = vunpack.c.l.b16 %v3722
    %v3783 = vunpack.c.l.b16 %v3723
    %v3784 = vunpack.c.l.b16 %v3724
    %v3785 = vunpack.c.l.b16 %v3725
    %v3786 = vunpack.c.l.b16 %v3726
    %v3787 = vunpack.c.l.b16 %v3727
    %v3788 = vunpack.c.l.b16 %v3728
    %v3789 = vunpack.c.l.b16 %v3729
    %v3790 = vunpack.c.l.b16 %v3730
    %v3791 = vunpack.c.l.b16 %v3731
    %v3792 = vunpack.c.l.b16 %v3732
    %v3793 = vunpack.c.l.b16 %v3733
    %v3794 = vunpack.c.l.b16 %v3734
    %v3795 = vunpack.c.l.b16 %v3735
    %v3796 = vpack.c.b16 %v3770, %v3769
    %v3797 = vpack.c.b16 %v3772, %v3771
    %v3798 = vpack.c.b16 %v3774, %v3773
    %v3799 = vpack.c.b16 %v3776, %v3775
    %v3800 = vpack.c.b16 %v3778, %v3777
    %v3801 = vpack.c.b16 %v3780, %v3779
    %v3802 = vpack.c.b16 %v3782, %v3781
    %v3803 = vpack.c.b16 %v3784, %v3783
    %v3804 = vpack.c.b16 %v3786, %v3785
    %v3805 = vpack.c.b16 %v3788, %v3787
    %v3806 = vpack.c.b16 %v3790, %v3789
    %v3807 = vpack.c.b16 %v3792, %v3791
    %v3808 = vpack.c.b16 %v3794, %v3793
    %v3809 = vpack.c.b16 %v3795, %v3795
    %vm3810 = vcmask 785408
    %v3812 = vsel %vm3810, %v3796, 0
    %v3815 = vsel %vm3810, %v3797, 0
    %v3818 = vsel %vm3810, %v3798, 0
    %v3821 = vsel %vm3810, %v3799, 0
    %v3824 = vsel %vm3810, %v3800, 0
    %v3827 = vsel %vm3810, %v3801, 0
    %v3830 = vsel %vm3810, %v3802, 0
    %v3833 = vsel %vm3810, %v3803, 0
    %v3836 = vsel %vm3810, %v3804, 0
    %v3839 = vsel %vm3810, %v3805, 0
    %v3842 = vsel %vm3810, %v3806, 0
    %v3845 = vsel %vm3810, %v3807, 0
    %v3848 = vsel %vm3810, %v3808, 0
    %v3851 = vsel %vm3810, %v3809, 0
    %3853 = vmatpush.bf16.msra.mxu0 0
    %3854 = vmatpush.bf16.msra.mxu0 0
    %3855 = vmatpush.bf16.msra.mxu0 %v3741
    %3856 = vmatpush.bf16.msra.mxu0 %v3740
    %3857 = vmatpush.bf16.msra.mxu0 %v3739
    %3858 = vmatpush.bf16.msra.mxu0 %v3738
    %3859 = vmatpush.bf16.msra.mxu0 %v3737
    %3860 = vmatpush.bf16.msra.mxu0 %v3736
    %3861 = vmatmul.bf16.gmra.mxu0 %v3812
    %v3862 = vpop.f32.mrf.mxu0
    %v3863 = vadd.f32 0.0, %v3862
    %v3864 = vpop.f32.mrf.mxu0
    %v3865 = vadd.f32 0.0, %v3864
    %3866 = vmatmul.bf16.gmra.mxu0 %v3815
    %v3867 = vpop.f32.mrf.mxu0
    %v3868 = vadd.f32 0.0, %v3867
    %v3869 = vpop.f32.mrf.mxu0
    %v3870 = vadd.f32 0.0, %v3869
    %3871 = vmatmul.bf16.gmra.mxu0 %v3818
    %v3872 = vpop.f32.mrf.mxu0
    %v3873 = vadd.f32 0.0, %v3872
    %v3874 = vpop.f32.mrf.mxu0
    %v3875 = vadd.f32 0.0, %v3874
    %3876 = vmatmul.bf16.gmra.mxu0 %v3821
    %v3877 = vpop.f32.mrf.mxu0
    %v3878 = vadd.f32 0.0, %v3877
    %v3879 = vpop.f32.mrf.mxu0
    %v3880 = vadd.f32 0.0, %v3879
    %3881 = vmatmul.bf16.gmra.mxu0 %v3824
    %v3882 = vpop.f32.mrf.mxu0
    %v3883 = vadd.f32 0.0, %v3882
    %v3884 = vpop.f32.mrf.mxu0
    %v3885 = vadd.f32 0.0, %v3884
    %3886 = vmatmul.bf16.gmra.mxu0 %v3827
    %v3887 = vpop.f32.mrf.mxu0
    %v3888 = vadd.f32 0.0, %v3887
    %v3889 = vpop.f32.mrf.mxu0
    %v3890 = vadd.f32 0.0, %v3889
    %3891 = vmatmul.bf16.gmra.mxu0 %v3830
    %v3892 = vpop.f32.mrf.mxu0
    %v3893 = vadd.f32 0.0, %v3892
    %v3894 = vpop.f32.mrf.mxu0
    %v3895 = vadd.f32 0.0, %v3894
    %3896 = vmatmul.bf16.gmra.mxu0 %v3833
    %v3897 = vpop.f32.mrf.mxu0
    %v3898 = vadd.f32 0.0, %v3897
    %v3899 = vpop.f32.mrf.mxu0
    %v3900 = vadd.f32 0.0, %v3899
    %3901 = vmatmul.bf16.gmra.mxu0 %v3836
    %v3902 = vpop.f32.mrf.mxu0
    %v3903 = vadd.f32 0.0, %v3902
    %v3904 = vpop.f32.mrf.mxu0
    %v3905 = vadd.f32 0.0, %v3904
    %3906 = vmatmul.bf16.gmra.mxu0 %v3839
    %v3907 = vpop.f32.mrf.mxu0
    %v3908 = vadd.f32 0.0, %v3907
    %v3909 = vpop.f32.mrf.mxu0
    %v3910 = vadd.f32 0.0, %v3909
    %3911 = vmatmul.bf16.gmra.mxu0 %v3842
    %v3912 = vpop.f32.mrf.mxu0
    %v3913 = vadd.f32 0.0, %v3912
    %v3914 = vpop.f32.mrf.mxu0
    %v3915 = vadd.f32 0.0, %v3914
    %3916 = vmatmul.bf16.gmra.mxu0 %v3845
    %v3917 = vpop.f32.mrf.mxu0
    %v3918 = vadd.f32 0.0, %v3917
    %v3919 = vpop.f32.mrf.mxu0
    %v3920 = vadd.f32 0.0, %v3919
    %3921 = vmatmul.bf16.gmra.mxu0 %v3848
    %v3922 = vpop.f32.mrf.mxu0
    %v3923 = vadd.f32 0.0, %v3922
    %v3924 = vpop.f32.mrf.mxu0
    %v3925 = vadd.f32 0.0, %v3924
    %3926 = vmatmul.bf16.gmra.mxu0 %v3851
    %v3927 = vpop.f32.mrf.mxu0
    %v3928 = vadd.f32 0.0, %v3927
    %v3929 = vpop.f32.mrf.mxu0
    %3930 = vdwg.mxu0
    %v3931 = vld [vmem:[%s15] sm:$0xf]
    %v3932 = vld [vmem:[%s15 + $0x4] sm:$0xf]
    %v3933 = vld [vmem:[%s15 + $0x8] sm:$0xf]
    %v3934 = vld [vmem:[%s15 + $0xc] sm:$0xf]
    %v3935 = vld [vmem:[%s15 + $0x10] sm:$0xf]
    %v3936 = vld [vmem:[%s15 + $0x14] sm:$0xf]
    %v3937 = vld [vmem:[%s15 + $0x18] sm:$0xf]
    %v3938 = vld [vmem:[%s15 + $0x1c] sm:$0xf]
    %v3939 = vld [vmem:[%s15 + $0x20] sm:$0xf]
    %v3940 = vld [vmem:[%s15 + $0x24] sm:$0xf]
    %v3941 = vld [vmem:[%s15 + $0x28] sm:$0xf]
    %v3942 = vld [vmem:[%s15 + $0x2c] sm:$0xf]
    %v3943 = vld [vmem:[%s15 + $0x30] sm:$0xf]
    %v3944 = vld [vmem:[%s15 + $0x34] sm:$0xf]
    %v3945 = vld [vmem:[%s15 + $0x38] sm:$0xf]
    %v3946 = vld [vmem:[%s15 + $0x3c] sm:$0xf]
    %v3947 = vpack.c.bf16 %v3865, %v3863
    %v3948 = vpack.c.bf16 %v3868, %v3868
    %v3949 = vld [vmem:[%s15 + $0x40] sm:$0xf]
    %v3950 = vld [vmem:[%s15 + $0x44] sm:$0xf]
    %v3951 = vld [vmem:[%s15 + $0x48] sm:$0xf]
    %v3952 = vld [vmem:[%s15 + $0x4c] sm:$0xf]
    %v3953 = vld [vmem:[%s15 + $0x50] sm:$0xf]
    %v3954 = vld [vmem:[%s15 + $0x54] sm:$0xf]
    %v3955 = vld [vmem:[%s15 + $0x58] sm:$0xf]
    %v3956 = vld [vmem:[%s15 + $0x5c] sm:$0xf]
    %v3957 = vld [vmem:[%s15 + $0x60] sm:$0xf]
    %v3958 = vld [vmem:[%s15 + $0x64] sm:$0xf]
    %v3959 = vld [vmem:[%s15 + $0x68] sm:$0xf]
    %v3960 = vld [vmem:[%s15 + $0x6c] sm:$0xf]
    %v3961 = vld [vmem:[%s15 + $0x70] sm:$0xf]
    %v3962 = vld [vmem:[%s15 + $0x74] sm:$0xf]
    %v3963 = vld [vmem:[%s15 + $0x78] sm:$0xf]
    %v3964 = vld [vmem:[%s15 + $0x7c] sm:$0xf]
    %v3965 = vpack.c.bf16 %v3873, %v3870
    %v3966 = vpack.c.bf16 %v3875, %v3875
    %v3983 = vunpack.c.l.b16 %v3949
    %v3984 = vunpack.c.l.b16 %v3950
    %v3985 = vunpack.c.l.b16 %v3951
    %v3986 = vunpack.c.l.b16 %v3952
    %v3987 = vunpack.c.l.b16 %v3953
    %v3988 = vunpack.c.l.b16 %v3954
    %v3989 = vunpack.c.l.b16 %v3955
    %v3990 = vunpack.c.l.b16 %v3956
    %v3991 = vunpack.c.l.b16 %v3957
    %v3992 = vunpack.c.l.b16 %v3958
    %v3993 = vunpack.c.l.b16 %v3959
    %v3994 = vunpack.c.l.b16 %v3960
    %v3995 = vunpack.c.l.b16 %v3961
    %v3996 = vunpack.c.l.b16 %v3962
    %v3997 = vunpack.c.l.b16 %v3963
    %v3998 = vunpack.c.l.b16 %v3964
    %v3999 = vpack.c.b16 %v3984, %v3983
    %v4000 = vpack.c.b16 %v3986, %v3985
    %v4001 = vpack.c.b16 %v3988, %v3987
    %v4002 = vpack.c.b16 %v3990, %v3989
    %v4003 = vpack.c.b16 %v3992, %v3991
    %v4004 = vpack.c.b16 %v3994, %v3993
    %v4005 = vpack.c.b16 %v3996, %v3995
    %v4006 = vpack.c.b16 %v3998, %v3997
    %4015 = vmatpush.bf16.msra.mxu0 %v4006
    %4016 = vmatpush.bf16.msra.mxu0 %v4005
    %4017 = vmatpush.bf16.msra.mxu0 %v4004
    %4018 = vmatpush.bf16.msra.mxu0 %v4003
    %4019 = vmatpush.bf16.msra.mxu0 %v4002
    %4020 = vmatpush.bf16.msra.mxu0 %v4001
    %4021 = vmatpush.bf16.msra.mxu0 %v4000
    %4022 = vmatpush.bf16.msra.mxu0 %v3999
    %4023 = vmatmul.bf16.gmra.mxu0 %v3965
    %v4024 = vpop.f32.mrf.mxu0
    %v4025 = vadd.f32 0.0, %v4024
    %v4026 = vpop.f32.mrf.mxu0
    %v4027 = vadd.f32 0.0, %v4026
    %4028 = vmatmul.bf16.gmra.mxu0 %v3966
    %v4029 = vpop.f32.mrf.mxu0
    %v4030 = vadd.f32 0.0, %v4029
    %v4031 = vpop.f32.mrf.mxu0
    %4032 = vdwg.mxu0
    %v4049 = vunpack.c.l.b16 %v3931
    %v4050 = vunpack.c.l.b16 %v3932
    %v4051 = vunpack.c.l.b16 %v3933
    %v4052 = vunpack.c.l.b16 %v3934
    %v4053 = vunpack.c.l.b16 %v3935
    %v4054 = vunpack.c.l.b16 %v3936
    %v4055 = vunpack.c.l.b16 %v3937
    %v4056 = vunpack.c.l.b16 %v3938
    %v4057 = vunpack.c.l.b16 %v3939
    %v4058 = vunpack.c.l.b16 %v3940
    %v4059 = vunpack.c.l.b16 %v3941
    %v4060 = vunpack.c.l.b16 %v3942
    %v4061 = vunpack.c.l.b16 %v3943
    %v4062 = vunpack.c.l.b16 %v3944
    %v4063 = vunpack.c.l.b16 %v3945
    %v4064 = vunpack.c.l.b16 %v3946
    %v4065 = vpack.c.b16 %v4050, %v4049
    %v4066 = vpack.c.b16 %v4052, %v4051
    %v4067 = vpack.c.b16 %v4054, %v4053
    %v4068 = vpack.c.b16 %v4056, %v4055
    %v4069 = vpack.c.b16 %v4058, %v4057
    %v4070 = vpack.c.b16 %v4060, %v4059
    %v4071 = vpack.c.b16 %v4062, %v4061
    %v4072 = vpack.c.b16 %v4064, %v4063
    %4081 = vmatpush.bf16.msra.mxu0 %v4072
    %4082 = vmatpush.bf16.msra.mxu0 %v4071
    %4083 = vmatpush.bf16.msra.mxu0 %v4070
    %4084 = vmatpush.bf16.msra.mxu0 %v4069
    %4085 = vmatpush.bf16.msra.mxu0 %v4068
    %4086 = vmatpush.bf16.msra.mxu0 %v4067
    %4087 = vmatpush.bf16.msra.mxu0 %v4066
    %4088 = vmatpush.bf16.msra.mxu0 %v4065
    %4089 = vmatmul.bf16.gmra.mxu0 %v3947
    %v4090 = vpop.f32.mrf.mxu0
    %v4091 = vadd.f32 %v4025, %v4090
    %v4092 = vpop.f32.mrf.mxu0
    %v4093 = vadd.f32 %v4027, %v4092
    %4094 = vmatmul.bf16.gmra.mxu0 %v3948
    %v4095 = vpop.f32.mrf.mxu0
    %v4096 = vadd.f32 %v4030, %v4095
    %v4097 = vpop.f32.mrf.mxu0
    %4098 = vdwg.mxu0
    %v4099 = vld [vmem:[%s15 + $0x80] sm:$0xf]
    %v4100 = vld [vmem:[%s15 + $0x84] sm:$0xf]
    %v4101 = vld [vmem:[%s15 + $0x88] sm:$0xf]
    %v4102 = vld [vmem:[%s15 + $0x8c] sm:$0xf]
    %v4103 = vld [vmem:[%s15 + $0x90] sm:$0xf]
    %v4104 = vld [vmem:[%s15 + $0x94] sm:$0xf]
    %v4105 = vld [vmem:[%s15 + $0x98] sm:$0xf]
    %v4106 = vld [vmem:[%s15 + $0x9c] sm:$0xf]
    %v4107 = vld [vmem:[%s15 + $0xa0] sm:$0xf]
    %v4108 = vld [vmem:[%s15 + $0xa4] sm:$0xf]
    %v4109 = vld [vmem:[%s15 + $0xa8] sm:$0xf]
    %v4110 = vld [vmem:[%s15 + $0xac] sm:$0xf]
    %v4111 = vld [vmem:[%s15 + $0xb0] sm:$0xf]
    %v4112 = vld [vmem:[%s15 + $0xb4] sm:$0xf]
    %v4113 = vld [vmem:[%s15 + $0xb8] sm:$0xf]
    %v4114 = vld [vmem:[%s15 + $0xbc] sm:$0xf]
    %v4115 = vpack.c.bf16 %v3880, %v3878
    %v4116 = vpack.c.bf16 %v3883, %v3883
    %v4133 = vunpack.c.l.b16 %v4099
    %v4134 = vunpack.c.l.b16 %v4100
    %v4135 = vunpack.c.l.b16 %v4101
    %v4136 = vunpack.c.l.b16 %v4102
    %v4137 = vunpack.c.l.b16 %v4103
    %v4138 = vunpack.c.l.b16 %v4104
    %v4139 = vunpack.c.l.b16 %v4105
    %v4140 = vunpack.c.l.b16 %v4106
    %v4141 = vunpack.c.l.b16 %v4107
    %v4142 = vunpack.c.l.b16 %v4108
    %v4143 = vunpack.c.l.b16 %v4109
    %v4144 = vunpack.c.l.b16 %v4110
    %v4145 = vunpack.c.l.b16 %v4111
    %v4146 = vunpack.c.l.b16 %v4112
    %v4147 = vunpack.c.l.b16 %v4113
    %v4148 = vunpack.c.l.b16 %v4114
    %v4149 = vpack.c.b16 %v4134, %v4133
    %v4150 = vpack.c.b16 %v4136, %v4135
    %v4151 = vpack.c.b16 %v4138, %v4137
    %v4152 = vpack.c.b16 %v4140, %v4139
    %v4153 = vpack.c.b16 %v4142, %v4141
    %v4154 = vpack.c.b16 %v4144, %v4143
    %v4155 = vpack.c.b16 %v4146, %v4145
    %v4156 = vpack.c.b16 %v4148, %v4147
    %4165 = vmatpush.bf16.msra.mxu0 %v4156
    %4166 = vmatpush.bf16.msra.mxu0 %v4155
    %4167 = vmatpush.bf16.msra.mxu0 %v4154
    %4168 = vmatpush.bf16.msra.mxu0 %v4153
    %4169 = vmatpush.bf16.msra.mxu0 %v4152
    %4170 = vmatpush.bf16.msra.mxu0 %v4151
    %4171 = vmatpush.bf16.msra.mxu0 %v4150
    %4172 = vmatpush.bf16.msra.mxu0 %v4149
    %4173 = vmatmul.bf16.gmra.mxu0 %v4115
    %v4174 = vpop.f32.mrf.mxu0
    %v4175 = vadd.f32 0.0, %v4174
    %v4176 = vpop.f32.mrf.mxu0
    %v4177 = vadd.f32 0.0, %v4176
    %4178 = vmatmul.bf16.gmra.mxu0 %v4116
    %v4179 = vpop.f32.mrf.mxu0
    %v4180 = vadd.f32 0.0, %v4179
    %v4181 = vpop.f32.mrf.mxu0
    %4182 = vdwg.mxu0
    %v4183 = vadd.f32 %v4091, %v4175
    %v4184 = vadd.f32 %v4093, %v4177
    %v4185 = vadd.f32 %v4096, %v4180
    %v4186 = vld [vmem:[%s15 + $0xc0] sm:$0xf]
    %v4187 = vld [vmem:[%s15 + $0xc4] sm:$0xf]
    %v4188 = vld [vmem:[%s15 + $0xc8] sm:$0xf]
    %v4189 = vld [vmem:[%s15 + $0xcc] sm:$0xf]
    %v4190 = vld [vmem:[%s15 + $0xd0] sm:$0xf]
    %v4191 = vld [vmem:[%s15 + $0xd4] sm:$0xf]
    %v4192 = vld [vmem:[%s15 + $0xd8] sm:$0xf]
    %v4193 = vld [vmem:[%s15 + $0xdc] sm:$0xf]
    %v4194 = vld [vmem:[%s15 + $0xe0] sm:$0xf]
    %v4195 = vld [vmem:[%s15 + $0xe4] sm:$0xf]
    %v4196 = vld [vmem:[%s15 + $0xe8] sm:$0xf]
    %v4197 = vld [vmem:[%s15 + $0xec] sm:$0xf]
    %v4198 = vld [vmem:[%s15 + $0xf0] sm:$0xf]
    %v4199 = vld [vmem:[%s15 + $0xf4] sm:$0xf]
    %v4200 = vld [vmem:[%s15 + $0xf8] sm:$0xf]
    %v4201 = vld [vmem:[%s15 + $0xfc] sm:$0xf]
    %v4202 = vpack.c.bf16 %v3888, %v3885
    %v4203 = vpack.c.bf16 %v3890, %v3890
    %v4220 = vunpack.c.l.b16 %v4186
    %v4221 = vunpack.c.l.b16 %v4187
    %v4222 = vunpack.c.l.b16 %v4188
    %v4223 = vunpack.c.l.b16 %v4189
    %v4224 = vunpack.c.l.b16 %v4190
    %v4225 = vunpack.c.l.b16 %v4191
    %v4226 = vunpack.c.l.b16 %v4192
    %v4227 = vunpack.c.l.b16 %v4193
    %v4228 = vunpack.c.l.b16 %v4194
    %v4229 = vunpack.c.l.b16 %v4195
    %v4230 = vunpack.c.l.b16 %v4196
    %v4231 = vunpack.c.l.b16 %v4197
    %v4232 = vunpack.c.l.b16 %v4198
    %v4233 = vunpack.c.l.b16 %v4199
    %v4234 = vunpack.c.l.b16 %v4200
    %v4235 = vunpack.c.l.b16 %v4201
    %v4236 = vpack.c.b16 %v4221, %v4220
    %v4237 = vpack.c.b16 %v4223, %v4222
    %v4238 = vpack.c.b16 %v4225, %v4224
    %v4239 = vpack.c.b16 %v4227, %v4226
    %v4240 = vpack.c.b16 %v4229, %v4228
    %v4241 = vpack.c.b16 %v4231, %v4230
    %v4242 = vpack.c.b16 %v4233, %v4232
    %v4243 = vpack.c.b16 %v4235, %v4234
    %4252 = vmatpush.bf16.msra.mxu0 %v4243
    %4253 = vmatpush.bf16.msra.mxu0 %v4242
    %4254 = vmatpush.bf16.msra.mxu0 %v4241
    %4255 = vmatpush.bf16.msra.mxu0 %v4240
    %4256 = vmatpush.bf16.msra.mxu0 %v4239
    %4257 = vmatpush.bf16.msra.mxu0 %v4238
    %4258 = vmatpush.bf16.msra.mxu0 %v4237
    %4259 = vmatpush.bf16.msra.mxu0 %v4236
    %4260 = vmatmul.bf16.gmra.mxu0 %v4202
    %v4261 = vpop.f32.mrf.mxu0
    %v4262 = vadd.f32 0.0, %v4261
    %v4263 = vpop.f32.mrf.mxu0
    %v4264 = vadd.f32 0.0, %v4263
    %4265 = vmatmul.bf16.gmra.mxu0 %v4203
    %v4266 = vpop.f32.mrf.mxu0
    %v4267 = vadd.f32 0.0, %v4266
    %v4268 = vpop.f32.mrf.mxu0
    %4269 = vdwg.mxu0
    %v4270 = vadd.f32 %v4183, %v4262
    %v4271 = vadd.f32 %v4184, %v4264
    %v4272 = vadd.f32 %v4185, %v4267
    %v4273 = vld [vmem:[%s15 + $0x100] sm:$0xf]
    %v4274 = vld [vmem:[%s15 + $0x104] sm:$0xf]
    %v4275 = vld [vmem:[%s15 + $0x108] sm:$0xf]
    %v4276 = vld [vmem:[%s15 + $0x10c] sm:$0xf]
    %v4277 = vld [vmem:[%s15 + $0x110] sm:$0xf]
    %v4278 = vld [vmem:[%s15 + $0x114] sm:$0xf]
    %v4279 = vld [vmem:[%s15 + $0x118] sm:$0xf]
    %v4280 = vld [vmem:[%s15 + $0x11c] sm:$0xf]
    %v4281 = vld [vmem:[%s15 + $0x120] sm:$0xf]
    %v4282 = vld [vmem:[%s15 + $0x124] sm:$0xf]
    %v4283 = vld [vmem:[%s15 + $0x128] sm:$0xf]
    %v4284 = vld [vmem:[%s15 + $0x12c] sm:$0xf]
    %v4285 = vld [vmem:[%s15 + $0x130] sm:$0xf]
    %v4286 = vld [vmem:[%s15 + $0x134] sm:$0xf]
    %v4287 = vld [vmem:[%s15 + $0x138] sm:$0xf]
    %v4288 = vld [vmem:[%s15 + $0x13c] sm:$0xf]
    %v4289 = vpack.c.bf16 %v3895, %v3893
    %v4290 = vpack.c.bf16 %v3898, %v3898
    %v4307 = vunpack.c.l.b16 %v4273
    %v4308 = vunpack.c.l.b16 %v4274
    %v4309 = vunpack.c.l.b16 %v4275
    %v4310 = vunpack.c.l.b16 %v4276
    %v4311 = vunpack.c.l.b16 %v4277
    %v4312 = vunpack.c.l.b16 %v4278
    %v4313 = vunpack.c.l.b16 %v4279
    %v4314 = vunpack.c.l.b16 %v4280
    %v4315 = vunpack.c.l.b16 %v4281
    %v4316 = vunpack.c.l.b16 %v4282
    %v4317 = vunpack.c.l.b16 %v4283
    %v4318 = vunpack.c.l.b16 %v4284
    %v4319 = vunpack.c.l.b16 %v4285
    %v4320 = vunpack.c.l.b16 %v4286
    %v4321 = vunpack.c.l.b16 %v4287
    %v4322 = vunpack.c.l.b16 %v4288
    %v4323 = vpack.c.b16 %v4308, %v4307
    %v4324 = vpack.c.b16 %v4310, %v4309
    %v4325 = vpack.c.b16 %v4312, %v4311
    %v4326 = vpack.c.b16 %v4314, %v4313
    %v4327 = vpack.c.b16 %v4316, %v4315
    %v4328 = vpack.c.b16 %v4318, %v4317
    %v4329 = vpack.c.b16 %v4320, %v4319
    %v4330 = vpack.c.b16 %v4322, %v4321
    %4339 = vmatpush.bf16.msra.mxu0 %v4330
    %4340 = vmatpush.bf16.msra.mxu0 %v4329
    %4341 = vmatpush.bf16.msra.mxu0 %v4328
    %4342 = vmatpush.bf16.msra.mxu0 %v4327
    %4343 = vmatpush.bf16.msra.mxu0 %v4326
    %4344 = vmatpush.bf16.msra.mxu0 %v4325
    %4345 = vmatpush.bf16.msra.mxu0 %v4324
    %4346 = vmatpush.bf16.msra.mxu0 %v4323
    %4347 = vmatmul.bf16.gmra.mxu0 %v4289
    %v4348 = vpop.f32.mrf.mxu0
    %v4349 = vadd.f32 0.0, %v4348
    %v4350 = vpop.f32.mrf.mxu0
    %v4351 = vadd.f32 0.0, %v4350
    %4352 = vmatmul.bf16.gmra.mxu0 %v4290
    %v4353 = vpop.f32.mrf.mxu0
    %v4354 = vadd.f32 0.0, %v4353
    %v4355 = vpop.f32.mrf.mxu0
    %4356 = vdwg.mxu0
    %v4357 = vadd.f32 %v4270, %v4349
    %v4358 = vadd.f32 %v4271, %v4351
    %v4359 = vadd.f32 %v4272, %v4354
    %v4360 = vld [vmem:[%s15 + $0x140] sm:$0xf]
    %v4361 = vld [vmem:[%s15 + $0x144] sm:$0xf]
    %v4362 = vld [vmem:[%s15 + $0x148] sm:$0xf]
    %v4363 = vld [vmem:[%s15 + $0x14c] sm:$0xf]
    %v4364 = vld [vmem:[%s15 + $0x150] sm:$0xf]
    %v4365 = vld [vmem:[%s15 + $0x154] sm:$0xf]
    %v4366 = vld [vmem:[%s15 + $0x158] sm:$0xf]
    %v4367 = vld [vmem:[%s15 + $0x15c] sm:$0xf]
    %v4368 = vld [vmem:[%s15 + $0x160] sm:$0xf]
    %v4369 = vld [vmem:[%s15 + $0x164] sm:$0xf]
    %v4370 = vld [vmem:[%s15 + $0x168] sm:$0xf]
    %v4371 = vld [vmem:[%s15 + $0x16c] sm:$0xf]
    %v4372 = vld [vmem:[%s15 + $0x170] sm:$0xf]
    %v4373 = vld [vmem:[%s15 + $0x174] sm:$0xf]
    %v4374 = vld [vmem:[%s15 + $0x178] sm:$0xf]
    %v4375 = vld [vmem:[%s15 + $0x17c] sm:$0xf]
    %v4376 = vpack.c.bf16 %v3903, %v3900
    %v4377 = vpack.c.bf16 %v3905, %v3905
    %v4394 = vunpack.c.l.b16 %v4360
    %v4395 = vunpack.c.l.b16 %v4361
    %v4396 = vunpack.c.l.b16 %v4362
    %v4397 = vunpack.c.l.b16 %v4363
    %v4398 = vunpack.c.l.b16 %v4364
    %v4399 = vunpack.c.l.b16 %v4365
    %v4400 = vunpack.c.l.b16 %v4366
    %v4401 = vunpack.c.l.b16 %v4367
    %v4402 = vunpack.c.l.b16 %v4368
    %v4403 = vunpack.c.l.b16 %v4369
    %v4404 = vunpack.c.l.b16 %v4370
    %v4405 = vunpack.c.l.b16 %v4371
    %v4406 = vunpack.c.l.b16 %v4372
    %v4407 = vunpack.c.l.b16 %v4373
    %v4408 = vunpack.c.l.b16 %v4374
    %v4409 = vunpack.c.l.b16 %v4375
    %v4410 = vpack.c.b16 %v4395, %v4394
    %v4411 = vpack.c.b16 %v4397, %v4396
    %v4412 = vpack.c.b16 %v4399, %v4398
    %v4413 = vpack.c.b16 %v4401, %v4400
    %v4414 = vpack.c.b16 %v4403, %v4402
    %v4415 = vpack.c.b16 %v4405, %v4404
    %v4416 = vpack.c.b16 %v4407, %v4406
    %v4417 = vpack.c.b16 %v4409, %v4408
    %4426 = vmatpush.bf16.msra.mxu0 %v4417
    %4427 = vmatpush.bf16.msra.mxu0 %v4416
    %4428 = vmatpush.bf16.msra.mxu0 %v4415
    %4429 = vmatpush.bf16.msra.mxu0 %v4414
    %4430 = vmatpush.bf16.msra.mxu0 %v4413
    %4431 = vmatpush.bf16.msra.mxu0 %v4412
    %4432 = vmatpush.bf16.msra.mxu0 %v4411
    %4433 = vmatpush.bf16.msra.mxu0 %v4410
    %4434 = vmatmul.bf16.gmra.mxu0 %v4376
    %v4435 = vpop.f32.mrf.mxu0
    %v4436 = vadd.f32 0.0, %v4435
    %v4437 = vpop.f32.mrf.mxu0
    %v4438 = vadd.f32 0.0, %v4437
    %4439 = vmatmul.bf16.gmra.mxu0 %v4377
    %v4440 = vpop.f32.mrf.mxu0
    %v4441 = vadd.f32 0.0, %v4440
    %v4442 = vpop.f32.mrf.mxu0
    %4443 = vdwg.mxu0
    %v4444 = vadd.f32 %v4357, %v4436
    %v4445 = vadd.f32 %v4358, %v4438
    %v4446 = vadd.f32 %v4359, %v4441
    %v4447 = vld [vmem:[%s15 + $0x180] sm:$0xf]
    %v4448 = vld [vmem:[%s15 + $0x184] sm:$0xf]
    %v4449 = vld [vmem:[%s15 + $0x188] sm:$0xf]
    %v4450 = vld [vmem:[%s15 + $0x18c] sm:$0xf]
    %v4451 = vld [vmem:[%s15 + $0x190] sm:$0xf]
    %v4452 = vld [vmem:[%s15 + $0x194] sm:$0xf]
    %v4453 = vld [vmem:[%s15 + $0x198] sm:$0xf]
    %v4454 = vld [vmem:[%s15 + $0x19c] sm:$0xf]
    %v4455 = vld [vmem:[%s15 + $0x1a0] sm:$0xf]
    %v4456 = vld [vmem:[%s15 + $0x1a4] sm:$0xf]
    %v4457 = vld [vmem:[%s15 + $0x1a8] sm:$0xf]
    %v4458 = vld [vmem:[%s15 + $0x1ac] sm:$0xf]
    %v4459 = vld [vmem:[%s15 + $0x1b0] sm:$0xf]
    %v4460 = vld [vmem:[%s15 + $0x1b4] sm:$0xf]
    %v4461 = vld [vmem:[%s15 + $0x1b8] sm:$0xf]
    %v4462 = vld [vmem:[%s15 + $0x1bc] sm:$0xf]
    %v4463 = vpack.c.bf16 %v3910, %v3908
    %v4464 = vpack.c.bf16 %v3913, %v3913
    %v4481 = vunpack.c.l.b16 %v4447
    %v4482 = vunpack.c.l.b16 %v4448
    %v4483 = vunpack.c.l.b16 %v4449
    %v4484 = vunpack.c.l.b16 %v4450
    %v4485 = vunpack.c.l.b16 %v4451
    %v4486 = vunpack.c.l.b16 %v4452
    %v4487 = vunpack.c.l.b16 %v4453
    %v4488 = vunpack.c.l.b16 %v4454
    %v4489 = vunpack.c.l.b16 %v4455
    %v4490 = vunpack.c.l.b16 %v4456
    %v4491 = vunpack.c.l.b16 %v4457
    %v4492 = vunpack.c.l.b16 %v4458
    %v4493 = vunpack.c.l.b16 %v4459
    %v4494 = vunpack.c.l.b16 %v4460
    %v4495 = vunpack.c.l.b16 %v4461
    %v4496 = vunpack.c.l.b16 %v4462
    %v4497 = vpack.c.b16 %v4482, %v4481
    %v4498 = vpack.c.b16 %v4484, %v4483
    %v4499 = vpack.c.b16 %v4486, %v4485
    %v4500 = vpack.c.b16 %v4488, %v4487
    %v4501 = vpack.c.b16 %v4490, %v4489
    %v4502 = vpack.c.b16 %v4492, %v4491
    %v4503 = vpack.c.b16 %v4494, %v4493
    %v4504 = vpack.c.b16 %v4496, %v4495
    %4513 = vmatpush.bf16.msra.mxu0 %v4504
    %4514 = vmatpush.bf16.msra.mxu0 %v4503
    %4515 = vmatpush.bf16.msra.mxu0 %v4502
    %4516 = vmatpush.bf16.msra.mxu0 %v4501
    %4517 = vmatpush.bf16.msra.mxu0 %v4500
    %4518 = vmatpush.bf16.msra.mxu0 %v4499
    %4519 = vmatpush.bf16.msra.mxu0 %v4498
    %4520 = vmatpush.bf16.msra.mxu0 %v4497
    %4521 = vmatmul.bf16.gmra.mxu0 %v4463
    %v4522 = vpop.f32.mrf.mxu0
    %v4523 = vadd.f32 0.0, %v4522
    %v4524 = vpop.f32.mrf.mxu0
    %v4525 = vadd.f32 0.0, %v4524
    %4526 = vmatmul.bf16.gmra.mxu0 %v4464
    %v4527 = vpop.f32.mrf.mxu0
    %v4528 = vadd.f32 0.0, %v4527
    %v4529 = vpop.f32.mrf.mxu0
    %4530 = vdwg.mxu0
    %v4531 = vadd.f32 %v4444, %v4523
    %v4532 = vadd.f32 %v4445, %v4525
    %v4533 = vadd.f32 %v4446, %v4528
    %v4534 = vld [vmem:[%s15 + $0x1c0] sm:$0xf]
    %v4535 = vld [vmem:[%s15 + $0x1c4] sm:$0xf]
    %v4536 = vld [vmem:[%s15 + $0x1c8] sm:$0xf]
    %v4537 = vld [vmem:[%s15 + $0x1cc] sm:$0xf]
    %v4538 = vld [vmem:[%s15 + $0x1d0] sm:$0xf]
    %v4539 = vld [vmem:[%s15 + $0x1d4] sm:$0xf]
    %v4540 = vld [vmem:[%s15 + $0x1d8] sm:$0xf]
    %v4541 = vld [vmem:[%s15 + $0x1dc] sm:$0xf]
    %v4542 = vld [vmem:[%s15 + $0x1e0] sm:$0xf]
    %v4543 = vld [vmem:[%s15 + $0x1e4] sm:$0xf]
    %v4544 = vld [vmem:[%s15 + $0x1e8] sm:$0xf]
    %v4545 = vld [vmem:[%s15 + $0x1ec] sm:$0xf]
    %v4546 = vld [vmem:[%s15 + $0x1f0] sm:$0xf]
    %v4547 = vld [vmem:[%s15 + $0x1f4] sm:$0xf]
    %v4548 = vld [vmem:[%s15 + $0x1f8] sm:$0xf]
    %v4549 = vld [vmem:[%s15 + $0x1fc] sm:$0xf]
    %v4550 = vpack.c.bf16 %v3918, %v3915
    %v4551 = vpack.c.bf16 %v3920, %v3920
    %v4568 = vunpack.c.l.b16 %v4534
    %v4569 = vunpack.c.l.b16 %v4535
    %v4570 = vunpack.c.l.b16 %v4536
    %v4571 = vunpack.c.l.b16 %v4537
    %v4572 = vunpack.c.l.b16 %v4538
    %v4573 = vunpack.c.l.b16 %v4539
    %v4574 = vunpack.c.l.b16 %v4540
    %v4575 = vunpack.c.l.b16 %v4541
    %v4576 = vunpack.c.l.b16 %v4542
    %v4577 = vunpack.c.l.b16 %v4543
    %v4578 = vunpack.c.l.b16 %v4544
    %v4579 = vunpack.c.l.b16 %v4545
    %v4580 = vunpack.c.l.b16 %v4546
    %v4581 = vunpack.c.l.b16 %v4547
    %v4582 = vunpack.c.l.b16 %v4548
    %v4583 = vunpack.c.l.b16 %v4549
    %v4584 = vpack.c.b16 %v4569, %v4568
    %v4585 = vpack.c.b16 %v4571, %v4570
    %v4586 = vpack.c.b16 %v4573, %v4572
    %v4587 = vpack.c.b16 %v4575, %v4574
    %v4588 = vpack.c.b16 %v4577, %v4576
    %v4589 = vpack.c.b16 %v4579, %v4578
    %v4590 = vpack.c.b16 %v4581, %v4580
    %v4591 = vpack.c.b16 %v4583, %v4582
    %4600 = vmatpush.bf16.msra.mxu0 %v4591
    %4601 = vmatpush.bf16.msra.mxu0 %v4590
    %4602 = vmatpush.bf16.msra.mxu0 %v4589
    %4603 = vmatpush.bf16.msra.mxu0 %v4588
    %4604 = vmatpush.bf16.msra.mxu0 %v4587
    %4605 = vmatpush.bf16.msra.mxu0 %v4586
    %4606 = vmatpush.bf16.msra.mxu0 %v4585
    %4607 = vmatpush.bf16.msra.mxu0 %v4584
    %4608 = vmatmul.bf16.gmra.mxu0 %v4550
    %v4609 = vpop.f32.mrf.mxu0
    %v4610 = vadd.f32 0.0, %v4609
    %v4611 = vpop.f32.mrf.mxu0
    %v4612 = vadd.f32 0.0, %v4611
    %4613 = vmatmul.bf16.gmra.mxu0 %v4551
    %v4614 = vpop.f32.mrf.mxu0
    %v4615 = vadd.f32 0.0, %v4614
    %v4616 = vpop.f32.mrf.mxu0
    %4617 = vdwg.mxu0
    %v4618 = vadd.f32 %v4531, %v4610
    %v4619 = vadd.f32 %v4532, %v4612
    %v4620 = vadd.f32 %v4533, %v4615
    %v4621 = vld [vmem:[%s15 + $0x200] sm:$0xf]
    %v4622 = vld [vmem:[%s15 + $0x204] sm:$0xf]
    %v4623 = vld [vmem:[%s15 + $0x208] sm:$0xf]
    %v4624 = vld [vmem:[%s15 + $0x20c] sm:$0xf]
    %v4625 = vld [vmem:[%s15 + $0x210] sm:$0xf]
    %v4626 = vld [vmem:[%s15 + $0x214] sm:$0xf]
    %v4627 = vld [vmem:[%s15 + $0x218] sm:$0xf]
    %v4628 = vld [vmem:[%s15 + $0x21c] sm:$0xf]
    %v4629 = vld [vmem:[%s15 + $0x220] sm:$0xf]
    %v4630 = vld [vmem:[%s15 + $0x224] sm:$0xf]
    %v4631 = vld [vmem:[%s15 + $0x228] sm:$0xf]
    %v4632 = vld [vmem:[%s15 + $0x22c] sm:$0xf]
    %v4633 = vld [vmem:[%s15 + $0x230] sm:$0xf]
    %v4634 = vld [vmem:[%s15 + $0x234] sm:$0xf]
    %v4635 = vld [vmem:[%s15 + $0x238] sm:$0xf]
    %v4636 = vld [vmem:[%s15 + $0x23c] sm:$0xf]
    %v4637 = vpack.c.bf16 %v3925, %v3923
    %v4638 = vpack.c.bf16 %v3928, %v3928
    %v4655 = vunpack.c.l.b16 %v4621
    %v4656 = vunpack.c.l.b16 %v4622
    %v4657 = vunpack.c.l.b16 %v4623
    %v4658 = vunpack.c.l.b16 %v4624
    %v4659 = vunpack.c.l.b16 %v4625
    %v4660 = vunpack.c.l.b16 %v4626
    %v4661 = vunpack.c.l.b16 %v4627
    %v4662 = vunpack.c.l.b16 %v4628
    %v4663 = vunpack.c.l.b16 %v4629
    %v4664 = vunpack.c.l.b16 %v4630
    %v4665 = vunpack.c.l.b16 %v4631
    %v4666 = vunpack.c.l.b16 %v4632
    %v4667 = vunpack.c.l.b16 %v4633
    %v4668 = vunpack.c.l.b16 %v4634
    %v4669 = vunpack.c.l.b16 %v4635
    %v4670 = vunpack.c.l.b16 %v4636
    %v4671 = vpack.c.b16 %v4656, %v4655
    %v4672 = vpack.c.b16 %v4658, %v4657
    %v4673 = vpack.c.b16 %v4660, %v4659
    %v4674 = vpack.c.b16 %v4662, %v4661
    %v4675 = vpack.c.b16 %v4664, %v4663
    %v4676 = vpack.c.b16 %v4666, %v4665
    %v4677 = vpack.c.b16 %v4668, %v4667
    %v4678 = vpack.c.b16 %v4670, %v4669
    %4687 = vmatpush.bf16.msra.mxu0 %v4678
    %4688 = vmatpush.bf16.msra.mxu0 %v4677
    %4689 = vmatpush.bf16.msra.mxu0 %v4676
    %4690 = vmatpush.bf16.msra.mxu0 %v4675
    %4691 = vmatpush.bf16.msra.mxu0 %v4674
    %4692 = vmatpush.bf16.msra.mxu0 %v4673
    %4693 = vmatpush.bf16.msra.mxu0 %v4672
    %4694 = vmatpush.bf16.msra.mxu0 %v4671
    %4695 = vmatmul.bf16.gmra.mxu0 %v4637
    %v4696 = vpop.f32.mrf.mxu0
    %v4697 = vadd.f32 0.0, %v4696
    %v4698 = vpop.f32.mrf.mxu0
    %v4699 = vadd.f32 0.0, %v4698
    %4700 = vmatmul.bf16.gmra.mxu0 %v4638
    %v4701 = vpop.f32.mrf.mxu0
    %v4702 = vadd.f32 0.0, %v4701
    %v4703 = vpop.f32.mrf.mxu0
    %4704 = vdwg.mxu0
    %v4705 = vadd.f32 %v4618, %v4697
    %v4706 = vadd.f32 %v4619, %v4699
    %v4707 = vadd.f32 %v4620, %v4702
    %v4709 = vperm.slane %v3708, 0
    %v4711 = vadd.f32 %v4705, %v4709
    %v4712 = vadd.f32 %v4706, %v4709
    %v4713 = vadd.f32 %v4707, %v4709
    %v4714 = vmax.f32 %v4711, 0.0
    %v4715 = vmax.f32 %v4712, 0.0
    %v4716 = vmax.f32 %v4713, 0.0
    %v4717 = vld [vmem:[%s19] sm:$0xff]
    %vm4718 = vcmask 195584
    %v4720 = vsel %vm4718, %v4717, 0
    %4722 = vmatpush.msra.mxu0 0.0
    %4723 = vmatpush.msra.mxu0 0.0
    %4724 = vmatpush.msra.mxu0 0.0
    %4725 = vmatpush.msra.mxu0 0.0
    %4726 = vmatpush.msra.mxu0 0.0
    %4727 = vmatpush.msra.mxu0 0.0
    %4728 = vmatpush.msra.mxu0 0.0
    %4729 = vmatpush.msra.mxu0 0.0
    %4730 = vmatpush.msra.mxu0 0.0
    %4731 = vmatpush.msra.mxu0 0.0
    %4732 = vmatpush.msra.mxu0 0.0
    %4733 = vmatpush.msra.mxu0 0.0
    %4734 = vmatpush.msra.mxu0 0.0
    %4735 = vmatpush.msra.mxu0 %v4716
    %4736 = vmatpush.msra.mxu0 %v4715
    %4737 = vmatpush.msra.mxu0 %v4714
    %4738 = vmatmul.f32.gmra.mxu0 %v4720
    %v4739 = vpop.f32.mrf.mxu0
    %v4740 = vadd.f32 0.0, %v4739
    %4741 = vdwg.mxu0
    %v4742 = vld [vmem:[%s21] sm:$0xf]
    %v4743 = vld [vmem:[%s21 + $0x4] sm:$0xf]
    %v4744 = vld [vmem:[%s21 + $0x8] sm:$0xf]
    %v4745 = vld [vmem:[%s21 + $0xc] sm:$0xf]
    %v4746 = vld [vmem:[%s21 + $0x10] sm:$0xf]
    %v4747 = vld [vmem:[%s21 + $0x14] sm:$0xf]
    %v4748 = vld [vmem:[%s21 + $0x18] sm:$0xf]
    %v4749 = vld [vmem:[%s21 + $0x1c] sm:$0xf]
    %v4750 = vld [vmem:[%s21 + $0x20] sm:$0xf]
    %v4751 = vld [vmem:[%s21 + $0x24] sm:$0xf]
    %v4752 = vld [vmem:[%s21 + $0x28] sm:$0xf]
    %v4753 = vld [vmem:[%s21 + $0x2c] sm:$0xf]
    %v4754 = vld [vmem:[%s21 + $0x30] sm:$0xf]
    %v4755 = vld [vmem:[%s21 + $0x34] sm:$0xf]
    %v4756 = vld [vmem:[%s21 + $0x38] sm:$0xf]
    %v4757 = vld [vmem:[%s21 + $0x3c] sm:$0xf]
    %v4758 = vpack.c.bf16 %v4740, %v4740
    %v4759 = vld [vmem:[%s23] sm:$0x1]
    %v4761 = vperm.slane %v4759, 0
    %v4779 = vunpack.c.l.b16 %v4742
    %v4780 = vunpack.c.l.b16 %v4743
    %v4781 = vunpack.c.l.b16 %v4744
    %v4782 = vunpack.c.l.b16 %v4745
    %v4783 = vunpack.c.l.b16 %v4746
    %v4784 = vunpack.c.l.b16 %v4747
    %v4785 = vunpack.c.l.b16 %v4748
    %v4786 = vunpack.c.l.b16 %v4749
    %v4787 = vunpack.c.l.b16 %v4750
    %v4788 = vunpack.c.l.b16 %v4751
    %v4789 = vunpack.c.l.b16 %v4752
    %v4790 = vunpack.c.l.b16 %v4753
    %v4791 = vunpack.c.l.b16 %v4754
    %v4792 = vunpack.c.l.b16 %v4755
    %v4793 = vunpack.c.l.b16 %v4756
    %v4794 = vunpack.c.l.b16 %v4757
    %v4795 = vpack.c.b16 %v4780, %v4779
    %v4796 = vpack.c.b16 %v4782, %v4781
    %v4797 = vpack.c.b16 %v4784, %v4783
    %v4798 = vpack.c.b16 %v4786, %v4785
    %v4799 = vpack.c.b16 %v4788, %v4787
    %v4800 = vpack.c.b16 %v4790, %v4789
    %v4801 = vpack.c.b16 %v4792, %v4791
    %v4802 = vpack.c.b16 %v4794, %v4793
    %4811 = vmatpush.bf16.msra.mxu0 %v4802
    %4812 = vmatpush.bf16.msra.mxu0 %v4801
    %4813 = vmatpush.bf16.msra.mxu0 %v4800
    %4814 = vmatpush.bf16.msra.mxu0 %v4799
    %4815 = vmatpush.bf16.msra.mxu0 %v4798
    %4816 = vmatpush.bf16.msra.mxu0 %v4797
    %4817 = vmatpush.bf16.msra.mxu0 %v4796
    %4818 = vmatpush.bf16.msra.mxu0 %v4795
    %4819 = vmatmul.bf16.gmra.mxu0 %v4758
    %v4820 = vpop.f32.mrf.mxu0
    %v4821 = vadd.f32 %v4761, %v4820
    %v4822 = vpop.f32.mrf.mxu0
    %4823 = vdwg.mxu0
    %v4824 = vld [vmem:[%s25] sm:$0xff]
    %v4825 = vld [vmem:[%s27] sm:$0xf]
    %v4826 = vld [vmem:[%s27 + $0x4] sm:$0xf]
    %v4827 = vld [vmem:[%s27 + $0x8] sm:$0xf]
    %v4828 = vld [vmem:[%s27 + $0xc] sm:$0xf]
    %v4829 = vld [vmem:[%s27 + $0x10] sm:$0xf]
    %v4830 = vld [vmem:[%s27 + $0x14] sm:$0xf]
    %v4831 = vld [vmem:[%s27 + $0x18] sm:$0xf]
    %v4832 = vld [vmem:[%s27 + $0x1c] sm:$0xf]
    %v4833 = vld [vmem:[%s27 + $0x20] sm:$0xf]
    %v4834 = vld [vmem:[%s27 + $0x24] sm:$0xf]
    %v4835 = vld [vmem:[%s27 + $0x28] sm:$0xf]
    %v4836 = vld [vmem:[%s27 + $0x2c] sm:$0xf]
    %v4837 = vld [vmem:[%s27 + $0x30] sm:$0xf]
    %v4838 = vld [vmem:[%s27 + $0x34] sm:$0xf]
    %v4839 = vld [vmem:[%s27 + $0x38] sm:$0xf]
    %v4840 = vld [vmem:[%s27 + $0x3c] sm:$0xf]
    %v4841 = vpack.c.bf16 %v4824, %v4824
    %v4842 = vld [vmem:[%s29] sm:$0x1]
    %v4844 = vperm.slane %v4842, 0
    %v4862 = vunpack.c.l.b16 %v4825
    %v4863 = vunpack.c.l.b16 %v4826
    %v4864 = vunpack.c.l.b16 %v4827
    %v4865 = vunpack.c.l.b16 %v4828
    %v4866 = vunpack.c.l.b16 %v4829
    %v4867 = vunpack.c.l.b16 %v4830
    %v4868 = vunpack.c.l.b16 %v4831
    %v4869 = vunpack.c.l.b16 %v4832
    %v4870 = vunpack.c.l.b16 %v4833
    %v4871 = vunpack.c.l.b16 %v4834
    %v4872 = vunpack.c.l.b16 %v4835
    %v4873 = vunpack.c.l.b16 %v4836
    %v4874 = vunpack.c.l.b16 %v4837
    %v4875 = vunpack.c.l.b16 %v4838
    %v4876 = vunpack.c.l.b16 %v4839
    %v4877 = vunpack.c.l.b16 %v4840
    %v4878 = vpack.c.b16 %v4863, %v4862
    %v4879 = vpack.c.b16 %v4865, %v4864
    %v4880 = vpack.c.b16 %v4867, %v4866
    %v4881 = vpack.c.b16 %v4869, %v4868
    %v4882 = vpack.c.b16 %v4871, %v4870
    %v4883 = vpack.c.b16 %v4873, %v4872
    %v4884 = vpack.c.b16 %v4875, %v4874
    %v4885 = vpack.c.b16 %v4877, %v4876
    %4894 = vmatpush.bf16.msra.mxu0 %v4885
    %4895 = vmatpush.bf16.msra.mxu0 %v4884
    %4896 = vmatpush.bf16.msra.mxu0 %v4883
    %4897 = vmatpush.bf16.msra.mxu0 %v4882
    %4898 = vmatpush.bf16.msra.mxu0 %v4881
    %4899 = vmatpush.bf16.msra.mxu0 %v4880
    %4900 = vmatpush.bf16.msra.mxu0 %v4879
    %4901 = vmatpush.bf16.msra.mxu0 %v4878
    %4902 = vmatmul.bf16.gmra.mxu0 %v4841
    %v4903 = vpop.f32.mrf.mxu0
    %v4904 = vadd.f32 %v4844, %v4903
    %v4905 = vpop.f32.mrf.mxu0
    %4906 = vdwg.mxu0
    %v4907 = vld [vmem:[%s31] sm:$0xf]
    %v4908 = vld [vmem:[%s31 + $0x4] sm:$0xf]
    %v4909 = vld [vmem:[%s31 + $0x8] sm:$0xf]
    %v4910 = vld [vmem:[%s31 + $0xc] sm:$0xf]
    %v4911 = vld [vmem:[%s31 + $0x10] sm:$0xf]
    %v4912 = vld [vmem:[%s31 + $0x14] sm:$0xf]
    %v4913 = vld [vmem:[%s31 + $0x18] sm:$0xf]
    %v4914 = vld [vmem:[%s31 + $0x1c] sm:$0xf]
    %v4915 = vld [vmem:[%s31 + $0x20] sm:$0xf]
    %v4916 = vld [vmem:[%s31 + $0x24] sm:$0xf]
    %v4917 = vld [vmem:[%s31 + $0x28] sm:$0xf]
    %v4918 = vld [vmem:[%s31 + $0x2c] sm:$0xf]
    %v4919 = vld [vmem:[%s31 + $0x30] sm:$0xf]
    %v4920 = vld [vmem:[%s31 + $0x34] sm:$0xf]
    %v4921 = vld [vmem:[%s31 + $0x38] sm:$0xf]
    %v4922 = vld [vmem:[%s31 + $0x3c] sm:$0xf]
    %v4923 = vpack.c.bf16 %v4904, %v4904
    %v4924 = vld [vmem:[#allocation2] sm:$0x1]
    %v4926 = vperm.slane %v4924, 0
    %v4944 = vunpack.c.l.b16 %v4907
    %v4945 = vunpack.c.l.b16 %v4908
    %v4946 = vunpack.c.l.b16 %v4909
    %v4947 = vunpack.c.l.b16 %v4910
    %v4948 = vunpack.c.l.b16 %v4911
    %v4949 = vunpack.c.l.b16 %v4912
    %v4950 = vunpack.c.l.b16 %v4913
    %v4951 = vunpack.c.l.b16 %v4914
    %v4952 = vunpack.c.l.b16 %v4915
    %v4953 = vunpack.c.l.b16 %v4916
    %v4954 = vunpack.c.l.b16 %v4917
    %v4955 = vunpack.c.l.b16 %v4918
    %v4956 = vunpack.c.l.b16 %v4919
    %v4957 = vunpack.c.l.b16 %v4920
    %v4958 = vunpack.c.l.b16 %v4921
    %v4959 = vunpack.c.l.b16 %v4922
    %v4960 = vpack.c.b16 %v4945, %v4944
    %v4961 = vpack.c.b16 %v4947, %v4946
    %v4962 = vpack.c.b16 %v4949, %v4948
    %v4963 = vpack.c.b16 %v4951, %v4950
    %v4964 = vpack.c.b16 %v4953, %v4952
    %v4965 = vpack.c.b16 %v4955, %v4954
    %v4966 = vpack.c.b16 %v4957, %v4956
    %v4967 = vpack.c.b16 %v4959, %v4958
    %4976 = vmatpush.bf16.msra.mxu0 %v4967
    %4977 = vmatpush.bf16.msra.mxu0 %v4966
    %4978 = vmatpush.bf16.msra.mxu0 %v4965
    %4979 = vmatpush.bf16.msra.mxu0 %v4964
    %4980 = vmatpush.bf16.msra.mxu0 %v4963
    %4981 = vmatpush.bf16.msra.mxu0 %v4962
    %4982 = vmatpush.bf16.msra.mxu0 %v4961
    %4983 = vmatpush.bf16.msra.mxu0 %v4960
    %4984 = vmatmul.bf16.gmra.mxu0 %v4923
    %v4985 = vpop.f32.mrf.mxu0
    %v4986 = vadd.f32 %v4926, %v4985
    %v4987 = vpop.f32.mrf.mxu0
    %4988 = vdwg.mxu0
    %v4989 = vadd.f32 %v4821, %v4986
    %v4990 = vld [vmem:[#allocation4] sm:$0x1]
    %v4991 = vld [vmem:[#allocation6] sm:$0x1]
    %4992 = vadd.xlane.f32.xlu0 %v4989
    %v4993 = vpop.xlane.xlu0 %4992
    %v4994 = vrcp.pop 128.0
    %v4995 = vmul.f32 128.0, %v4994
    %v4996 = vsub.f32 1.0, %v4995
    %v4997 = vmul.f32 %v4994, %v4996
    %v4998 = vadd.f32 %v4994, %v4997
    %vm4999 = vweird.f32 %v4994
    %v5000 = vsel %vm4999, %v4994, %v4998
    %v5001 = vmul.f32 %v4993, %v5000
    %v5002 = vsub.f32 %v4989, %v5001
    %v5003 = vmul.f32 %v5002, %v5002
    %5004 = vadd.xlane.f32.xlu0 %v5003
    %v5005 = vpop.xlane.xlu0 %5004
    %v5006 = vmul.f32 %v5005, %v5000
    %v5007 = vadd.f32 %v5006, 1e-05
    %v5008 = vrsqrt.pop %v5007
    %v5009 = vmul.f32 %v5008, %v5007
    %v5010 = vmul.f32 %v5009, %v5008
    %v5011 = vmul.f32 0.5, %v5010
    %v5012 = vsub.f32 1.5, %v5011
    %v5013 = vmul.f32 %v5008, %v5012
    %vm5014 = vweird.f32 %v5007
    %vm5015 = vweird.f32 %v5008
    %vm5016 = vmor %vm5014, %vm5015
    %v5017 = vsel %vm5016, %v5008, %v5013
    %v5018 = vmul.f32 %v5002, %v5017
    %v5020 = vperm.slane %v4990, 0
    %v5022 = vmul.f32 %v5018, %v5020
    %v5024 = vperm.slane %v4991, 0
    %v5026 = vadd.f32 %v5022, %v5024
    %v5027 = vld [vmem:[%s39] sm:$0xf]
    %v5028 = vld [vmem:[%s39 + $0x4] sm:$0xf]
    %v5029 = vld [vmem:[%s39 + $0x8] sm:$0xf]
    %v5030 = vld [vmem:[%s39 + $0xc] sm:$0xf]
    %v5031 = vld [vmem:[%s39 + $0x10] sm:$0xf]
    %v5032 = vld [vmem:[%s39 + $0x14] sm:$0xf]
    %v5033 = vld [vmem:[%s39 + $0x18] sm:$0xf]
    %v5034 = vld [vmem:[%s39 + $0x1c] sm:$0xf]
    %v5035 = vld [vmem:[%s39 + $0x20] sm:$0xf]
    %v5036 = vld [vmem:[%s39 + $0x24] sm:$0xf]
    %v5037 = vld [vmem:[%s39 + $0x28] sm:$0xf]
    %v5038 = vld [vmem:[%s39 + $0x2c] sm:$0xf]
    %v5039 = vld [vmem:[%s39 + $0x30] sm:$0xf]
    %v5040 = vld [vmem:[%s39 + $0x34] sm:$0xf]
    %v5041 = vld [vmem:[%s39 + $0x38] sm:$0xf]
    %v5042 = vld [vmem:[%s39 + $0x3c] sm:$0xf]
    %v5043 = vpack.c.bf16 %v5026, %v5026
    %v5044 = vld [vmem:[#allocation7] sm:$0x1]
    %v5046 = vperm.slane %v5044, 0
    %v5064 = vunpack.c.l.b16 %v5027
    %v5065 = vunpack.c.l.b16 %v5028
    %v5066 = vunpack.c.l.b16 %v5029
    %v5067 = vunpack.c.l.b16 %v5030
    %v5068 = vunpack.c.l.b16 %v5031
    %v5069 = vunpack.c.l.b16 %v5032
    %v5070 = vunpack.c.l.b16 %v5033
    %v5071 = vunpack.c.l.b16 %v5034
    %v5072 = vunpack.c.l.b16 %v5035
    %v5073 = vunpack.c.l.b16 %v5036
    %v5074 = vunpack.c.l.b16 %v5037
    %v5075 = vunpack.c.l.b16 %v5038
    %v5076 = vunpack.c.l.b16 %v5039
    %v5077 = vunpack.c.l.b16 %v5040
    %v5078 = vunpack.c.l.b16 %v5041
    %v5079 = vunpack.c.l.b16 %v5042
    %v5080 = vpack.c.b16 %v5065, %v5064
    %v5081 = vpack.c.b16 %v5067, %v5066
    %v5082 = vpack.c.b16 %v5069, %v5068
    %v5083 = vpack.c.b16 %v5071, %v5070
    %v5084 = vpack.c.b16 %v5073, %v5072
    %v5085 = vpack.c.b16 %v5075, %v5074
    %v5086 = vpack.c.b16 %v5077, %v5076
    %v5087 = vpack.c.b16 %v5079, %v5078
    %5096 = vmatpush.bf16.msra.mxu0 %v5087
    %5097 = vmatpush.bf16.msra.mxu0 %v5086
    %5098 = vmatpush.bf16.msra.mxu0 %v5085
    %5099 = vmatpush.bf16.msra.mxu0 %v5084
    %5100 = vmatpush.bf16.msra.mxu0 %v5083
    %5101 = vmatpush.bf16.msra.mxu0 %v5082
    %5102 = vmatpush.bf16.msra.mxu0 %v5081
    %5103 = vmatpush.bf16.msra.mxu0 %v5080
    %5104 = vmatmul.bf16.gmra.mxu0 %v5043
    %v5105 = vpop.f32.mrf.mxu0
    %v5106 = vadd.f32 %v5046, %v5105
    %v5107 = vpop.f32.mrf.mxu0
    %5108 = vdwg.mxu0
    %v5109 = vld [vmem:[%s43] sm:$0xf]
    %v5110 = vld [vmem:[%s43 + $0x4] sm:$0xf]
    %v5111 = vld [vmem:[%s43 + $0x8] sm:$0xf]
    %v5112 = vld [vmem:[%s43 + $0xc] sm:$0xf]
    %v5113 = vld [vmem:[%s43 + $0x10] sm:$0xf]
    %v5114 = vld [vmem:[%s43 + $0x14] sm:$0xf]
    %v5115 = vld [vmem:[%s43 + $0x18] sm:$0xf]
    %v5116 = vld [vmem:[%s43 + $0x1c] sm:$0xf]
    %v5117 = vld [vmem:[%s43 + $0x20] sm:$0xf]
    %v5118 = vld [vmem:[%s43 + $0x24] sm:$0xf]
    %v5119 = vld [vmem:[%s43 + $0x28] sm:$0xf]
    %v5120 = vld [vmem:[%s43 + $0x2c] sm:$0xf]
    %v5121 = vld [vmem:[%s43 + $0x30] sm:$0xf]
    %v5122 = vld [vmem:[%s43 + $0x34] sm:$0xf]
    %v5123 = vld [vmem:[%s43 + $0x38] sm:$0xf]
    %v5124 = vld [vmem:[%s43 + $0x3c] sm:$0xf]
    %v5125 = vpack.c.bf16 %v5106, %v5106
    %v5126 = vld [vmem:[#allocation9] sm:$0x1]
    %v5128 = vperm.slane %v5126, 0
    %v5146 = vunpack.c.l.b16 %v5109
    %v5147 = vunpack.c.l.b16 %v5110
    %v5148 = vunpack.c.l.b16 %v5111
    %v5149 = vunpack.c.l.b16 %v5112
    %v5150 = vunpack.c.l.b16 %v5113
    %v5151 = vunpack.c.l.b16 %v5114
    %v5152 = vunpack.c.l.b16 %v5115
    %v5153 = vunpack.c.l.b16 %v5116
    %v5154 = vunpack.c.l.b16 %v5117
    %v5155 = vunpack.c.l.b16 %v5118
    %v5156 = vunpack.c.l.b16 %v5119
    %v5157 = vunpack.c.l.b16 %v5120
    %v5158 = vunpack.c.l.b16 %v5121
    %v5159 = vunpack.c.l.b16 %v5122
    %v5160 = vunpack.c.l.b16 %v5123
    %v5161 = vunpack.c.l.b16 %v5124
    %v5162 = vpack.c.b16 %v5147, %v5146
    %v5163 = vpack.c.b16 %v5149, %v5148
    %v5164 = vpack.c.b16 %v5151, %v5150
    %v5165 = vpack.c.b16 %v5153, %v5152
    %v5166 = vpack.c.b16 %v5155, %v5154
    %v5167 = vpack.c.b16 %v5157, %v5156
    %v5168 = vpack.c.b16 %v5159, %v5158
    %v5169 = vpack.c.b16 %v5161, %v5160
    %5178 = vmatpush.bf16.msra.mxu0 %v5169
    %5179 = vmatpush.bf16.msra.mxu0 %v5168
    %5180 = vmatpush.bf16.msra.mxu0 %v5167
    %5181 = vmatpush.bf16.msra.mxu0 %v5166
    %5182 = vmatpush.bf16.msra.mxu0 %v5165
    %5183 = vmatpush.bf16.msra.mxu0 %v5164
    %5184 = vmatpush.bf16.msra.mxu0 %v5163
    %5185 = vmatpush.bf16.msra.mxu0 %v5162
    %5186 = vmatmul.bf16.gmra.mxu0 %v5125
    %v5187 = vpop.f32.mrf.mxu0
    %v5188 = vadd.f32 %v5128, %v5187
    %v5189 = vpop.f32.mrf.mxu0
    %5190 = vdwg.mxu0
    %v5191 = vadd.f32 %v4824, %v5188
    %v5192 = vld [vmem:[#allocation10] sm:$0x1]
    %v5193 = vld [vmem:[#allocation12] sm:$0x1]
    %5194 = vadd.xlane.f32.xlu0 %v5191
    %v5195 = vpop.xlane.xlu0 %5194
    %v5196 = vmul.f32 %v5195, %v5000
    %v5197 = vsub.f32 %v5191, %v5196
    %v5198 = vmul.f32 %v5197, %v5197
    %5199 = vadd.xlane.f32.xlu0 %v5198
    %v5200 = vpop.xlane.xlu0 %5199
    %v5201 = vmul.f32 %v5200, %v5000
    %v5202 = vadd.f32 %v5201, 1e-05
    %v5203 = vrsqrt.pop %v5202
    %v5204 = vmul.f32 %v5203, %v5202
    %v5205 = vmul.f32 %v5204, %v5203
    %v5206 = vmul.f32 0.5, %v5205
    %v5207 = vsub.f32 1.5, %v5206
    %v5208 = vmul.f32 %v5203, %v5207
    %vm5209 = vweird.f32 %v5202
    %vm5210 = vweird.f32 %v5203
    %vm5211 = vmor %vm5209, %vm5210
    %v5212 = vsel %vm5211, %v5203, %v5208
    %v5213 = vmul.f32 %v5197, %v5212
    %v5215 = vperm.slane %v5192, 0
    %v5217 = vmul.f32 %v5213, %v5215
    %v5219 = vperm.slane %v5193, 0
    %v5221 = vadd.f32 %v5217, %v5219
    %v5222 = vld [vmem:[%s51] sm:$0xf]
    %v5223 = vld [vmem:[%s51 + $0x4] sm:$0xf]
    %v5224 = vld [vmem:[%s51 + $0x8] sm:$0xf]
    %v5225 = vld [vmem:[%s51 + $0xc] sm:$0xf]
    %v5226 = vld [vmem:[%s51 + $0x10] sm:$0xf]
    %v5227 = vld [vmem:[%s51 + $0x14] sm:$0xf]
    %v5228 = vld [vmem:[%s51 + $0x18] sm:$0xf]
    %v5229 = vld [vmem:[%s51 + $0x1c] sm:$0xf]
    %v5230 = vld [vmem:[%s51 + $0x20] sm:$0xf]
    %v5231 = vld [vmem:[%s51 + $0x24] sm:$0xf]
    %v5232 = vld [vmem:[%s51 + $0x28] sm:$0xf]
    %v5233 = vld [vmem:[%s51 + $0x2c] sm:$0xf]
    %v5234 = vld [vmem:[%s51 + $0x30] sm:$0xf]
    %v5235 = vld [vmem:[%s51 + $0x34] sm:$0xf]
    %v5236 = vld [vmem:[%s51 + $0x38] sm:$0xf]
    %v5237 = vld [vmem:[%s51 + $0x3c] sm:$0xf]
    %v5238 = vld [vmem:[%s53] sm:$0xf]
    %v5239 = vld [vmem:[%s53 + $0x4] sm:$0xf]
    %v5240 = vld [vmem:[%s53 + $0x8] sm:$0xf]
    %v5241 = vld [vmem:[%s53 + $0xc] sm:$0xf]
    %v5242 = vld [vmem:[%s53 + $0x10] sm:$0xf]
    %v5243 = vld [vmem:[%s53 + $0x14] sm:$0xf]
    %v5244 = vld [vmem:[%s53 + $0x18] sm:$0xf]
    %v5245 = vld [vmem:[%s53 + $0x1c] sm:$0xf]
    %v5246 = vld [vmem:[%s53 + $0x20] sm:$0xf]
    %v5247 = vld [vmem:[%s53 + $0x24] sm:$0xf]
    %v5248 = vld [vmem:[%s53 + $0x28] sm:$0xf]
    %v5249 = vld [vmem:[%s53 + $0x2c] sm:$0xf]
    %v5250 = vld [vmem:[%s53 + $0x30] sm:$0xf]
    %v5251 = vld [vmem:[%s53 + $0x34] sm:$0xf]
    %v5252 = vld [vmem:[%s53 + $0x38] sm:$0xf]
    %v5253 = vld [vmem:[%s53 + $0x3c] sm:$0xf]
    %v5254 = vpack.c.bf16 %v5221, %v5221
    %v5271 = vunpack.c.l.b16 %v5238
    %v5272 = vunpack.c.l.b16 %v5239
    %v5273 = vunpack.c.l.b16 %v5240
    %v5274 = vunpack.c.l.b16 %v5241
    %v5275 = vunpack.c.l.b16 %v5242
    %v5276 = vunpack.c.l.b16 %v5243
    %v5277 = vunpack.c.l.b16 %v5244
    %v5278 = vunpack.c.l.b16 %v5245
    %v5279 = vunpack.c.l.b16 %v5246
    %v5280 = vunpack.c.l.b16 %v5247
    %v5281 = vunpack.c.l.b16 %v5248
    %v5282 = vunpack.c.l.b16 %v5249
    %v5283 = vunpack.c.l.b16 %v5250
    %v5284 = vunpack.c.l.b16 %v5251
    %v5285 = vunpack.c.l.b16 %v5252
    %v5286 = vunpack.c.l.b16 %v5253
    %v5287 = vpack.c.b16 %v5272, %v5271
    %v5288 = vpack.c.b16 %v5274, %v5273
    %v5289 = vpack.c.b16 %v5276, %v5275
    %v5290 = vpack.c.b16 %v5278, %v5277
    %v5291 = vpack.c.b16 %v5280, %v5279
    %v5292 = vpack.c.b16 %v5282, %v5281
    %v5293 = vpack.c.b16 %v5284, %v5283
    %v5294 = vpack.c.b16 %v5286, %v5285
    %5303 = vmatpush.bf16.msra.mxu0 %v5294
    %5304 = vmatpush.bf16.msra.mxu0 %v5293
    %5305 = vmatpush.bf16.msra.mxu0 %v5292
    %5306 = vmatpush.bf16.msra.mxu0 %v5291
    %5307 = vmatpush.bf16.msra.mxu0 %v5290
    %5308 = vmatpush.bf16.msra.mxu0 %v5289
    %5309 = vmatpush.bf16.msra.mxu0 %v5288
    %5310 = vmatpush.bf16.msra.mxu0 %v5287
    %5311 = vmatmul.bf16.gmra.mxu0 %v5254
    %v5312 = vpop.f32.mrf.mxu0
    %v5313 = vadd.f32 0.0, %v5312
    %v5314 = vpop.f32.mrf.mxu0
    %5315 = vdwg.mxu0
    %v5332 = vunpack.c.l.b16 %v5222
    %v5333 = vunpack.c.l.b16 %v5223
    %v5334 = vunpack.c.l.b16 %v5224
    %v5335 = vunpack.c.l.b16 %v5225
    %v5336 = vunpack.c.l.b16 %v5226
    %v5337 = vunpack.c.l.b16 %v5227
    %v5338 = vunpack.c.l.b16 %v5228
    %v5339 = vunpack.c.l.b16 %v5229
    %v5340 = vunpack.c.l.b16 %v5230
    %v5341 = vunpack.c.l.b16 %v5231
    %v5342 = vunpack.c.l.b16 %v5232
    %v5343 = vunpack.c.l.b16 %v5233
    %v5344 = vunpack.c.l.b16 %v5234
    %v5345 = vunpack.c.l.b16 %v5235
    %v5346 = vunpack.c.l.b16 %v5236
    %v5347 = vunpack.c.l.b16 %v5237
    %v5348 = vpack.c.b16 %v5333, %v5332
    %v5349 = vpack.c.b16 %v5335, %v5334
    %v5350 = vpack.c.b16 %v5337, %v5336
    %v5351 = vpack.c.b16 %v5339, %v5338
    %v5352 = vpack.c.b16 %v5341, %v5340
    %v5353 = vpack.c.b16 %v5343, %v5342
    %v5354 = vpack.c.b16 %v5345, %v5344
    %v5355 = vpack.c.b16 %v5347, %v5346
    %5364 = vmatpush.bf16.msra.mxu0 %v5355
    %5365 = vmatpush.bf16.msra.mxu0 %v5354
    %5366 = vmatpush.bf16.msra.mxu0 %v5353
    %5367 = vmatpush.bf16.msra.mxu0 %v5352
    %5368 = vmatpush.bf16.msra.mxu0 %v5351
    %5369 = vmatpush.bf16.msra.mxu0 %v5350
    %5370 = vmatpush.bf16.msra.mxu0 %v5349
    %5371 = vmatpush.bf16.msra.mxu0 %v5348
    %5372 = vmatmul.bf16.gmra.mxu0 %v5043
    %v5373 = vpop.f32.mrf.mxu0
    %v5374 = vadd.f32 %v5313, %v5373
    %v5375 = vpop.f32.mrf.mxu0
    %5376 = vdwg.mxu0
    %v5377 = vld [vmem:[#allocation13] sm:$0x1]
    %v5379 = vperm.slane %v5377, 0
    %v5381 = vadd.f32 %v5374, %v5379
    %v5382 = vmax.f32 %v5381, 0.0
    %v5383 = vld [vmem:[%s57] sm:$0xff]
    %v5384 = vld [vmem:[%s57 + $0x8] sm:$0xff]
    %v5385 = vld [vmem:[%s57 + $0x10] sm:$0xff]
    %v5386 = vld [vmem:[%s57 + $0x18] sm:$0xff]
    %v5387 = vld [vmem:[%s57 + $0x20] sm:$0xff]
    %v5388 = vld [vmem:[%s57 + $0x28] sm:$0xff]
    %v5389 = vld [vmem:[%s57 + $0x30] sm:$0xff]
    %v5390 = vld [vmem:[%s57 + $0x38] sm:$0xff]
    %v5391 = vld [vmem:[%s57 + $0x40] sm:$0xff]
    %v5392 = vld [vmem:[%s57 + $0x48] sm:$0xff]
    %v5393 = vld [vmem:[%s57 + $0x50] sm:$0xff]
    %v5394 = vld [vmem:[%s57 + $0x58] sm:$0xff]
    %v5395 = vld [vmem:[%s57 + $0x60] sm:$0xff]
    %v5396 = vld [vmem:[%s57 + $0x68] sm:$0xff]
    %v5397 = vld [vmem:[%s57 + $0x70] sm:$0xff]
    %v5398 = vld [vmem:[%s57 + $0x78] sm:$0xff]
    %v5399 = vld [vmem:[%s57 + $0x80] sm:$0xff]
    %v5400 = vld [vmem:[%s57 + $0x88] sm:$0xff]
    %v5401 = vld [vmem:[%s57 + $0x90] sm:$0xff]
    %v5402 = vld [vmem:[%s57 + $0x98] sm:$0xff]
    %v5403 = vld [vmem:[%s57 + $0xa0] sm:$0xff]
    %v5404 = vld [vmem:[%s57 + $0xa8] sm:$0xff]
    %v5405 = vld [vmem:[%s57 + $0xb0] sm:$0xff]
    %v5406 = vld [vmem:[%s57 + $0xb8] sm:$0xff]
    %v5407 = vld [vmem:[%s57 + $0xc0] sm:$0xff]
    %v5408 = vld [vmem:[%s57 + $0xc8] sm:$0xff]
    %v5409 = vld [vmem:[%s57 + $0xd0] sm:$0xff]
    %v5410 = vld [vmem:[%s57 + $0xd8] sm:$0xff]
    %v5411 = vld [vmem:[%s57 + $0xe0] sm:$0xff]
    %v5412 = vld [vmem:[%s57 + $0xe8] sm:$0xff]
    %v5413 = vld [vmem:[%s57 + $0xf0] sm:$0xff]
    %v5414 = vld [vmem:[%s57 + $0xf8] sm:$0xff]
    %v5415 = vld [vmem:[%s57 + $0x100] sm:$0xff]
    %v5416 = vld [vmem:[%s57 + $0x108] sm:$0xff]
    %v5417 = vld [vmem:[%s57 + $0x110] sm:$0xff]
    %v5418 = vld [vmem:[%s57 + $0x118] sm:$0xff]
    %v5419 = vld [vmem:[%s57 + $0x120] sm:$0xff]
    %v5420 = vld [vmem:[%s57 + $0x128] sm:$0xff]
    %v5421 = vld [vmem:[%s57 + $0x130] sm:$0xff]
    %v5422 = vld [vmem:[%s57 + $0x138] sm:$0xff]
    %v5423 = vld [vmem:[%s57 + $0x140] sm:$0xff]
    %v5424 = vld [vmem:[%s57 + $0x148] sm:$0xff]
    %v5425 = vld [vmem:[%s57 + $0x150] sm:$0xff]
    %v5426 = vld [vmem:[%s57 + $0x158] sm:$0xff]
    %v5427 = vld [vmem:[%s57 + $0x160] sm:$0xff]
    %v5428 = vld [vmem:[%s57 + $0x168] sm:$0xff]
    %v5429 = vld [vmem:[%s57 + $0x170] sm:$0xff]
    %v5430 = vld [vmem:[%s57 + $0x178] sm:$0xff]
    %v5431 = vld [vmem:[%s57 + $0x180] sm:$0xff]
    %v5432 = vld [vmem:[%s57 + $0x188] sm:$0xff]
    %v5433 = vld [vmem:[%s57 + $0x190] sm:$0xff]
    %v5434 = vld [vmem:[%s57 + $0x198] sm:$0xff]
    %v5435 = vld [vmem:[%s57 + $0x1a0] sm:$0xff]
    %v5436 = vld [vmem:[%s57 + $0x1a8] sm:$0xff]
    %v5437 = vld [vmem:[%s57 + $0x1b0] sm:$0xff]
    %v5438 = vld [vmem:[%s57 + $0x1b8] sm:$0xff]
    %v5439 = vld [vmem:[%s57 + $0x1c0] sm:$0xff]
    %v5440 = vld [vmem:[%s57 + $0x1c8] sm:$0xff]
    %v5441 = vld [vmem:[%s57 + $0x1d0] sm:$0xff]
    %v5442 = vld [vmem:[%s57 + $0x1d8] sm:$0xff]
    %v5443 = vld [vmem:[%s57 + $0x1e0] sm:$0xff]
    %v5444 = vld [vmem:[%s57 + $0x1e8] sm:$0xff]
    %v5445 = vld [vmem:[%s57 + $0x1f0] sm:$0xff]
    %v5446 = vld [vmem:[%s57 + $0x1f8] sm:$0xff]
    %v5447 = vld [vmem:[%s57 + $0x200] sm:$0xff]
    %v5448 = vld [vmem:[%s57 + $0x208] sm:$0xff]
    %v5449 = vld [vmem:[%s57 + $0x210] sm:$0xff]
    %v5450 = vld [vmem:[%s57 + $0x218] sm:$0xff]
    %v5451 = vld [vmem:[%s57 + $0x220] sm:$0xff]
    %v5452 = vld [vmem:[%s57 + $0x228] sm:$0xff]
    %v5453 = vld [vmem:[%s57 + $0x230] sm:$0xff]
    %v5454 = vld [vmem:[%s57 + $0x238] sm:$0xff]
    %v5455 = vld [vmem:[%s57 + $0x240] sm:$0xff]
    %v5456 = vld [vmem:[%s57 + $0x248] sm:$0xff]
    %v5457 = vld [vmem:[%s57 + $0x250] sm:$0xff]
    %v5458 = vld [vmem:[%s57 + $0x258] sm:$0xff]
    %v5459 = vld [vmem:[%s57 + $0x260] sm:$0xff]
    %v5460 = vld [vmem:[%s57 + $0x268] sm:$0xff]
    %v5461 = vld [vmem:[%s57 + $0x270] sm:$0xff]
    %v5462 = vld [vmem:[%s57 + $0x278] sm:$0xff]
    %v5463 = vld [vmem:[%s57 + $0x280] sm:$0xff]
    %v5464 = vld [vmem:[%s57 + $0x288] sm:$0xff]
    %v5465 = vld [vmem:[%s57 + $0x290] sm:$0xff]
    %v5466 = vld [vmem:[%s57 + $0x298] sm:$0xff]
    %v5467 = vld [vmem:[%s57 + $0x2a0] sm:$0xff]
    %v5468 = vld [vmem:[%s57 + $0x2a8] sm:$0xff]
    %v5469 = vld [vmem:[%s57 + $0x2b0] sm:$0xff]
    %v5470 = vld [vmem:[%s57 + $0x2b8] sm:$0xff]
    %v5471 = vld [vmem:[%s57 + $0x2c0] sm:$0xff]
    %v5472 = vld [vmem:[%s57 + $0x2c8] sm:$0xff]
    %v5473 = vld [vmem:[%s57 + $0x2d0] sm:$0xff]
    %v5474 = vld [vmem:[%s57 + $0x2d8] sm:$0xff]
    %v5475 = vld [vmem:[%s57 + $0x2e0] sm:$0xff]
    %v5476 = vld [vmem:[%s57 + $0x2e8] sm:$0xff]
    %v5477 = vld [vmem:[%s57 + $0x2f0] sm:$0xff]
    %v5478 = vld [vmem:[%s57 + $0x2f8] sm:$0xff]
    %v5479 = vld [vmem:[%s57 + $0x300] sm:$0xff]
    %v5480 = vld [vmem:[%s57 + $0x308] sm:$0xff]
    %v5481 = vld [vmem:[%s57 + $0x310] sm:$0xff]
    %v5482 = vld [vmem:[%s57 + $0x318] sm:$0xff]
    %v5483 = vld [vmem:[%s57 + $0x320] sm:$0xff]
    %v5484 = vld [vmem:[%s57 + $0x328] sm:$0xff]
    %v5485 = vld [vmem:[%s57 + $0x330] sm:$0xff]
    %v5486 = vld [vmem:[%s57 + $0x338] sm:$0xff]
    %v5487 = vld [vmem:[%s57 + $0x340] sm:$0xff]
    %v5488 = vld [vmem:[%s57 + $0x348] sm:$0xff]
    %v5489 = vld [vmem:[%s57 + $0x350] sm:$0xff]
    %v5490 = vld [vmem:[%s57 + $0x358] sm:$0xff]
    %v5491 = vld [vmem:[%s57 + $0x360] sm:$0xff]
    %v5492 = vld [vmem:[%s57 + $0x368] sm:$0xff]
    %v5493 = vld [vmem:[%s57 + $0x370] sm:$0xff]
    %v5494 = vld [vmem:[%s57 + $0x378] sm:$0xff]
    %v5495 = vld [vmem:[%s57 + $0x380] sm:$0xff]
    %v5496 = vld [vmem:[%s57 + $0x388] sm:$0xff]
    %v5497 = vld [vmem:[%s57 + $0x390] sm:$0xff]
    %v5498 = vld [vmem:[%s57 + $0x398] sm:$0xff]
    %v5499 = vld [vmem:[%s57 + $0x3a0] sm:$0xff]
    %v5500 = vld [vmem:[%s57 + $0x3a8] sm:$0xff]
    %v5501 = vld [vmem:[%s57 + $0x3b0] sm:$0xff]
    %v5502 = vld [vmem:[%s57 + $0x3b8] sm:$0xff]
    %v5503 = vld [vmem:[%s57 + $0x3c0] sm:$0xff]
    %v5504 = vld [vmem:[%s57 + $0x3c8] sm:$0xff]
    %v5505 = vld [vmem:[%s57 + $0x3d0] sm:$0xff]
    %v5506 = vld [vmem:[%s57 + $0x3d8] sm:$0xff]
    %v5507 = vld [vmem:[%s57 + $0x3e0] sm:$0xff]
    %v5508 = vld [vmem:[%s57 + $0x3e8] sm:$0xff]
    %v5509 = vld [vmem:[%s57 + $0x3f0] sm:$0xff]
    %v5510 = vld [vmem:[%s57 + $0x3f8] sm:$0xff]
    %v5511 = vld [vmem:[%s57 + $0x400] sm:$0xff]
    %v5512 = vld [vmem:[%s57 + $0x408] sm:$0xff]
    %v5513 = vld [vmem:[%s57 + $0x410] sm:$0xff]
    %v5514 = vld [vmem:[%s57 + $0x418] sm:$0xff]
    %v5515 = vld [vmem:[%s57 + $0x420] sm:$0xff]
    %v5516 = vld [vmem:[%s57 + $0x428] sm:$0xff]
    %v5517 = vld [vmem:[%s57 + $0x430] sm:$0xff]
    %v5518 = vld [vmem:[%s57 + $0x438] sm:$0xff]
    %v5519 = vld [vmem:[%s57 + $0x440] sm:$0xff]
    %v5520 = vld [vmem:[%s57 + $0x448] sm:$0xff]
    %v5521 = vld [vmem:[%s57 + $0x450] sm:$0xff]
    %v5522 = vld [vmem:[%s57 + $0x458] sm:$0xff]
    %v5523 = vld [vmem:[%s57 + $0x460] sm:$0xff]
    %v5524 = vld [vmem:[%s57 + $0x468] sm:$0xff]
    %v5525 = vld [vmem:[%s57 + $0x470] sm:$0xff]
    %v5526 = vld [vmem:[%s57 + $0x478] sm:$0xff]
    %v5527 = vpack.c.bf16 %v5382, %v5382
    %v5528 = vld [vmem:[%s59] sm:$0xff]
    %v5529 = vld [vmem:[%s59 + $0x8] sm:$0xff]
    %v5530 = vld [vmem:[%s59 + $0x10] sm:$0x3]
    %v5534 = vperm.slane %v5528, 0
    %v5535 = vperm.slane %v5528, 1
    %v5536 = vperm.slane %v5528, 2
    %v5537 = vperm.slane %v5528, 3
    %v5538 = vperm.slane %v5528, 4
    %v5539 = vperm.slane %v5528, 5
    %v5540 = vperm.slane %v5528, 6
    %v5541 = vperm.slane %v5528, 7
    %v5542 = vperm.slane %v5529, 0
    %v5543 = vperm.slane %v5529, 1
    %v5544 = vperm.slane %v5529, 2
    %v5545 = vperm.slane %v5529, 3
    %v5546 = vperm.slane %v5529, 4
    %v5547 = vperm.slane %v5529, 5
    %v5548 = vperm.slane %v5529, 6
    %v5549 = vperm.slane %v5529, 7
    %v5550 = vperm.slane %v5530, 0
    %v5551 = vperm.slane %v5530, 1
    %v5714 = vunpack.c.l.b16 %v5383
    %v5715 = vunpack.c.h.b16 %v5383
    %v5716 = vunpack.c.l.b16 %v5384
    %v5717 = vunpack.c.h.b16 %v5384
    %v5718 = vunpack.c.l.b16 %v5385
    %v5719 = vunpack.c.h.b16 %v5385
    %v5720 = vunpack.c.l.b16 %v5386
    %v5721 = vunpack.c.h.b16 %v5386
    %v5722 = vunpack.c.l.b16 %v5387
    %v5723 = vunpack.c.h.b16 %v5387
    %v5724 = vunpack.c.l.b16 %v5388
    %v5725 = vunpack.c.h.b16 %v5388
    %v5726 = vunpack.c.l.b16 %v5389
    %v5727 = vunpack.c.h.b16 %v5389
    %v5728 = vunpack.c.l.b16 %v5390
    %v5729 = vunpack.c.h.b16 %v5390
    %v5730 = vunpack.c.l.b16 %v5391
    %v5731 = vunpack.c.h.b16 %v5391
    %v5732 = vunpack.c.l.b16 %v5392
    %v5733 = vunpack.c.h.b16 %v5392
    %v5734 = vunpack.c.l.b16 %v5393
    %v5735 = vunpack.c.h.b16 %v5393
    %v5736 = vunpack.c.l.b16 %v5394
    %v5737 = vunpack.c.h.b16 %v5394
    %v5738 = vunpack.c.l.b16 %v5395
    %v5739 = vunpack.c.h.b16 %v5395
    %v5740 = vunpack.c.l.b16 %v5396
    %v5741 = vunpack.c.h.b16 %v5396
    %v5742 = vunpack.c.l.b16 %v5397
    %v5743 = vunpack.c.h.b16 %v5397
    %v5744 = vunpack.c.l.b16 %v5398
    %v5745 = vunpack.c.h.b16 %v5398
    %v5746 = vunpack.c.l.b16 %v5399
    %v5747 = vunpack.c.h.b16 %v5399
    %v5748 = vunpack.c.l.b16 %v5400
    %v5749 = vunpack.c.h.b16 %v5400
    %v5750 = vunpack.c.l.b16 %v5401
    %v5751 = vunpack.c.h.b16 %v5401
    %v5752 = vunpack.c.l.b16 %v5402
    %v5753 = vunpack.c.h.b16 %v5402
    %v5754 = vunpack.c.l.b16 %v5403
    %v5755 = vunpack.c.h.b16 %v5403
    %v5756 = vunpack.c.l.b16 %v5404
    %v5757 = vunpack.c.h.b16 %v5404
    %v5758 = vunpack.c.l.b16 %v5405
    %v5759 = vunpack.c.h.b16 %v5405
    %v5760 = vunpack.c.l.b16 %v5406
    %v5761 = vunpack.c.h.b16 %v5406
    %v5762 = vunpack.c.l.b16 %v5407
    %v5763 = vunpack.c.h.b16 %v5407
    %v5764 = vunpack.c.l.b16 %v5408
    %v5765 = vunpack.c.h.b16 %v5408
    %v5766 = vunpack.c.l.b16 %v5409
    %v5767 = vunpack.c.h.b16 %v5409
    %v5768 = vunpack.c.l.b16 %v5410
    %v5769 = vunpack.c.h.b16 %v5410
    %v5770 = vunpack.c.l.b16 %v5411
    %v5771 = vunpack.c.h.b16 %v5411
    %v5772 = vunpack.c.l.b16 %v5412
    %v5773 = vunpack.c.h.b16 %v5412
    %v5774 = vunpack.c.l.b16 %v5413
    %v5775 = vunpack.c.h.b16 %v5413
    %v5776 = vunpack.c.l.b16 %v5414
    %v5777 = vunpack.c.h.b16 %v5414
    %v5778 = vunpack.c.l.b16 %v5415
    %v5779 = vunpack.c.h.b16 %v5415
    %v5780 = vunpack.c.l.b16 %v5416
    %v5781 = vunpack.c.h.b16 %v5416
    %v5782 = vunpack.c.l.b16 %v5417
    %v5783 = vunpack.c.h.b16 %v5417
    %v5784 = vunpack.c.l.b16 %v5418
    %v5785 = vunpack.c.h.b16 %v5418
    %v5786 = vunpack.c.l.b16 %v5419
    %v5787 = vunpack.c.h.b16 %v5419
    %v5788 = vunpack.c.l.b16 %v5420
    %v5789 = vunpack.c.h.b16 %v5420
    %v5790 = vunpack.c.l.b16 %v5421
    %v5791 = vunpack.c.h.b16 %v5421
    %v5792 = vunpack.c.l.b16 %v5422
    %v5793 = vunpack.c.h.b16 %v5422
    %v5794 = vunpack.c.l.b16 %v5423
    %v5795 = vunpack.c.h.b16 %v5423
    %v5796 = vunpack.c.l.b16 %v5424
    %v5797 = vunpack.c.h.b16 %v5424
    %v5798 = vunpack.c.l.b16 %v5425
    %v5799 = vunpack.c.h.b16 %v5425
    %v5800 = vunpack.c.l.b16 %v5426
    %v5801 = vunpack.c.h.b16 %v5426
    %v5802 = vunpack.c.l.b16 %v5427
    %v5803 = vunpack.c.h.b16 %v5427
    %v5804 = vunpack.c.l.b16 %v5428
    %v5805 = vunpack.c.h.b16 %v5428
    %v5806 = vunpack.c.l.b16 %v5429
    %v5807 = vunpack.c.h.b16 %v5429
    %v5808 = vunpack.c.l.b16 %v5430
    %v5809 = vunpack.c.h.b16 %v5430
    %v5810 = vunpack.c.l.b16 %v5431
    %v5811 = vunpack.c.h.b16 %v5431
    %v5812 = vunpack.c.l.b16 %v5432
    %v5813 = vunpack.c.h.b16 %v5432
    %v5814 = vunpack.c.l.b16 %v5433
    %v5815 = vunpack.c.h.b16 %v5433
    %v5816 = vunpack.c.l.b16 %v5434
    %v5817 = vunpack.c.h.b16 %v5434
    %v5818 = vunpack.c.l.b16 %v5435
    %v5819 = vunpack.c.h.b16 %v5435
    %v5820 = vunpack.c.l.b16 %v5436
    %v5821 = vunpack.c.h.b16 %v5436
    %v5822 = vunpack.c.l.b16 %v5437
    %v5823 = vunpack.c.h.b16 %v5437
    %v5824 = vunpack.c.l.b16 %v5438
    %v5825 = vunpack.c.h.b16 %v5438
    %v5826 = vunpack.c.l.b16 %v5439
    %v5827 = vunpack.c.h.b16 %v5439
    %v5828 = vunpack.c.l.b16 %v5440
    %v5829 = vunpack.c.h.b16 %v5440
    %v5830 = vunpack.c.l.b16 %v5441
    %v5831 = vunpack.c.h.b16 %v5441
    %v5832 = vunpack.c.l.b16 %v5442
    %v5833 = vunpack.c.h.b16 %v5442
    %v5834 = vunpack.c.l.b16 %v5443
    %v5835 = vunpack.c.h.b16 %v5443
    %v5836 = vunpack.c.l.b16 %v5444
    %v5837 = vunpack.c.h.b16 %v5444
    %v5838 = vunpack.c.l.b16 %v5445
    %v5839 = vunpack.c.h.b16 %v5445
    %v5840 = vunpack.c.l.b16 %v5446
    %v5841 = vunpack.c.h.b16 %v5446
    %v5842 = vunpack.c.l.b16 %v5447
    %v5843 = vunpack.c.h.b16 %v5447
    %v5844 = vunpack.c.l.b16 %v5448
    %v5845 = vunpack.c.h.b16 %v5448
    %v5846 = vunpack.c.l.b16 %v5449
    %v5847 = vunpack.c.h.b16 %v5449
    %v5848 = vunpack.c.l.b16 %v5450
    %v5849 = vunpack.c.h.b16 %v5450
    %v5850 = vunpack.c.l.b16 %v5451
    %v5851 = vunpack.c.h.b16 %v5451
    %v5852 = vunpack.c.l.b16 %v5452
    %v5853 = vunpack.c.h.b16 %v5452
    %v5854 = vunpack.c.l.b16 %v5453
    %v5855 = vunpack.c.h.b16 %v5453
    %v5856 = vunpack.c.l.b16 %v5454
    %v5857 = vunpack.c.h.b16 %v5454
    %v5858 = vunpack.c.l.b16 %v5455
    %v5859 = vunpack.c.h.b16 %v5455
    %v5860 = vunpack.c.l.b16 %v5456
    %v5861 = vunpack.c.h.b16 %v5456
    %v5862 = vunpack.c.l.b16 %v5457
    %v5863 = vunpack.c.h.b16 %v5457
    %v5864 = vunpack.c.l.b16 %v5458
    %v5865 = vunpack.c.h.b16 %v5458
    %v5866 = vunpack.c.l.b16 %v5459
    %v5867 = vunpack.c.h.b16 %v5459
    %v5868 = vunpack.c.l.b16 %v5460
    %v5869 = vunpack.c.h.b16 %v5460
    %v5870 = vunpack.c.l.b16 %v5461
    %v5871 = vunpack.c.h.b16 %v5461
    %v5872 = vunpack.c.l.b16 %v5462
    %v5873 = vunpack.c.h.b16 %v5462
    %v5874 = vunpack.c.l.b16 %v5463
    %v5875 = vunpack.c.h.b16 %v5463
    %v5876 = vunpack.c.l.b16 %v5464
    %v5877 = vunpack.c.h.b16 %v5464
    %v5878 = vunpack.c.l.b16 %v5465
    %v5879 = vunpack.c.h.b16 %v5465
    %v5880 = vunpack.c.l.b16 %v5466
    %v5881 = vunpack.c.h.b16 %v5466
    %v5882 = vunpack.c.l.b16 %v5467
    %v5883 = vunpack.c.h.b16 %v5467
    %v5884 = vunpack.c.l.b16 %v5468
    %v5885 = vunpack.c.h.b16 %v5468
    %v5886 = vunpack.c.l.b16 %v5469
    %v5887 = vunpack.c.h.b16 %v5469
    %v5888 = vunpack.c.l.b16 %v5470
    %v5889 = vunpack.c.h.b16 %v5470
    %v5890 = vunpack.c.l.b16 %v5471
    %v5891 = vunpack.c.h.b16 %v5471
    %v5892 = vunpack.c.l.b16 %v5472
    %v5893 = vunpack.c.h.b16 %v5472
    %v5894 = vunpack.c.l.b16 %v5473
    %v5895 = vunpack.c.h.b16 %v5473
    %v5896 = vunpack.c.l.b16 %v5474
    %v5897 = vunpack.c.h.b16 %v5474
    %v5898 = vunpack.c.l.b16 %v5475
    %v5899 = vunpack.c.h.b16 %v5475
    %v5900 = vunpack.c.l.b16 %v5476
    %v5901 = vunpack.c.h.b16 %v5476
    %v5902 = vunpack.c.l.b16 %v5477
    %v5903 = vunpack.c.h.b16 %v5477
    %v5904 = vunpack.c.l.b16 %v5478
    %v5905 = vunpack.c.h.b16 %v5478
    %v5906 = vunpack.c.l.b16 %v5479
    %v5907 = vunpack.c.h.b16 %v5479
    %v5908 = vunpack.c.l.b16 %v5480
    %v5909 = vunpack.c.h.b16 %v5480
    %v5910 = vunpack.c.l.b16 %v5481
    %v5911 = vunpack.c.h.b16 %v5481
    %v5912 = vunpack.c.l.b16 %v5482
    %v5913 = vunpack.c.h.b16 %v5482
    %v5914 = vunpack.c.l.b16 %v5483
    %v5915 = vunpack.c.h.b16 %v5483
    %v5916 = vunpack.c.l.b16 %v5484
    %v5917 = vunpack.c.h.b16 %v5484
    %v5918 = vunpack.c.l.b16 %v5485
    %v5919 = vunpack.c.h.b16 %v5485
    %v5920 = vunpack.c.l.b16 %v5486
    %v5921 = vunpack.c.h.b16 %v5486
    %v5922 = vunpack.c.l.b16 %v5487
    %v5923 = vunpack.c.h.b16 %v5487
    %v5924 = vunpack.c.l.b16 %v5488
    %v5925 = vunpack.c.h.b16 %v5488
    %v5926 = vunpack.c.l.b16 %v5489
    %v5927 = vunpack.c.h.b16 %v5489
    %v5928 = vunpack.c.l.b16 %v5490
    %v5929 = vunpack.c.h.b16 %v5490
    %v5930 = vunpack.c.l.b16 %v5491
    %v5931 = vunpack.c.h.b16 %v5491
    %v5932 = vunpack.c.l.b16 %v5492
    %v5933 = vunpack.c.h.b16 %v5492
    %v5934 = vunpack.c.l.b16 %v5493
    %v5935 = vunpack.c.h.b16 %v5493
    %v5936 = vunpack.c.l.b16 %v5494
    %v5937 = vunpack.c.h.b16 %v5494
    %v5938 = vunpack.c.l.b16 %v5495
    %v5939 = vunpack.c.h.b16 %v5495
    %v5940 = vunpack.c.l.b16 %v5496
    %v5941 = vunpack.c.h.b16 %v5496
    %v5942 = vunpack.c.l.b16 %v5497
    %v5943 = vunpack.c.h.b16 %v5497
    %v5944 = vunpack.c.l.b16 %v5498
    %v5945 = vunpack.c.h.b16 %v5498
    %v5946 = vunpack.c.l.b16 %v5499
    %v5947 = vunpack.c.h.b16 %v5499
    %v5948 = vunpack.c.l.b16 %v5500
    %v5949 = vunpack.c.h.b16 %v5500
    %v5950 = vunpack.c.l.b16 %v5501
    %v5951 = vunpack.c.h.b16 %v5501
    %v5952 = vunpack.c.l.b16 %v5502
    %v5953 = vunpack.c.h.b16 %v5502
    %v5954 = vunpack.c.l.b16 %v5503
    %v5955 = vunpack.c.h.b16 %v5503
    %v5956 = vunpack.c.l.b16 %v5504
    %v5957 = vunpack.c.h.b16 %v5504
    %v5958 = vunpack.c.l.b16 %v5505
    %v5959 = vunpack.c.h.b16 %v5505
    %v5960 = vunpack.c.l.b16 %v5506
    %v5961 = vunpack.c.h.b16 %v5506
    %v5962 = vunpack.c.l.b16 %v5507
    %v5963 = vunpack.c.h.b16 %v5507
    %v5964 = vunpack.c.l.b16 %v5508
    %v5965 = vunpack.c.h.b16 %v5508
    %v5966 = vunpack.c.l.b16 %v5509
    %v5967 = vunpack.c.h.b16 %v5509
    %v5968 = vunpack.c.l.b16 %v5510
    %v5969 = vunpack.c.h.b16 %v5510
    %v5970 = vunpack.c.l.b16 %v5511
    %v5971 = vunpack.c.h.b16 %v5511
    %v5972 = vunpack.c.l.b16 %v5512
    %v5973 = vunpack.c.h.b16 %v5512
    %v5974 = vunpack.c.l.b16 %v5513
    %v5975 = vunpack.c.h.b16 %v5513
    %v5976 = vunpack.c.l.b16 %v5514
    %v5977 = vunpack.c.h.b16 %v5514
    %v5978 = vunpack.c.l.b16 %v5515
    %v5979 = vunpack.c.h.b16 %v5515
    %v5980 = vunpack.c.l.b16 %v5516
    %v5981 = vunpack.c.h.b16 %v5516
    %v5982 = vunpack.c.l.b16 %v5517
    %v5983 = vunpack.c.h.b16 %v5517
    %v5984 = vunpack.c.l.b16 %v5518
    %v5985 = vunpack.c.h.b16 %v5518
    %v5986 = vunpack.c.l.b16 %v5519
    %v5987 = vunpack.c.h.b16 %v5519
    %v5988 = vunpack.c.l.b16 %v5520
    %v5989 = vunpack.c.h.b16 %v5520
    %v5990 = vunpack.c.l.b16 %v5521
    %v5991 = vunpack.c.h.b16 %v5521
    %v5992 = vunpack.c.l.b16 %v5522
    %v5993 = vunpack.c.h.b16 %v5522
    %v5994 = vunpack.c.l.b16 %v5523
    %v5995 = vunpack.c.h.b16 %v5523
    %v5996 = vunpack.c.l.b16 %v5524
    %v5997 = vunpack.c.h.b16 %v5524
    %v5998 = vunpack.c.l.b16 %v5525
    %v5999 = vunpack.c.h.b16 %v5525
    %v6000 = vunpack.c.l.b16 %v5526
    %v6001 = vunpack.c.h.b16 %v5526
    %v6002 = vpack.c.b16 %v5732, %v5714
    %v6003 = vpack.c.b16 %v5733, %v5715
    %v6004 = vpack.c.b16 %v5734, %v5716
    %v6005 = vpack.c.b16 %v5735, %v5717
    %v6006 = vpack.c.b16 %v5736, %v5718
    %v6007 = vpack.c.b16 %v5737, %v5719
    %v6008 = vpack.c.b16 %v5738, %v5720
    %v6009 = vpack.c.b16 %v5739, %v5721
    %v6010 = vpack.c.b16 %v5740, %v5722
    %v6011 = vpack.c.b16 %v5741, %v5723
    %v6012 = vpack.c.b16 %v5742, %v5724
    %v6013 = vpack.c.b16 %v5743, %v5725
    %v6014 = vpack.c.b16 %v5744, %v5726
    %v6015 = vpack.c.b16 %v5745, %v5727
    %v6016 = vpack.c.b16 %v5746, %v5728
    %v6017 = vpack.c.b16 %v5747, %v5729
    %v6018 = vpack.c.b16 %v5748, %v5730
    %v6019 = vpack.c.b16 %v5749, %v5731
    %v6020 = vpack.c.b16 %v5768, %v5750
    %v6021 = vpack.c.b16 %v5769, %v5751
    %v6022 = vpack.c.b16 %v5770, %v5752
    %v6023 = vpack.c.b16 %v5771, %v5753
    %v6024 = vpack.c.b16 %v5772, %v5754
    %v6025 = vpack.c.b16 %v5773, %v5755
    %v6026 = vpack.c.b16 %v5774, %v5756
    %v6027 = vpack.c.b16 %v5775, %v5757
    %v6028 = vpack.c.b16 %v5776, %v5758
    %v6029 = vpack.c.b16 %v5777, %v5759
    %v6030 = vpack.c.b16 %v5778, %v5760
    %v6031 = vpack.c.b16 %v5779, %v5761
    %v6032 = vpack.c.b16 %v5780, %v5762
    %v6033 = vpack.c.b16 %v5781, %v5763
    %v6034 = vpack.c.b16 %v5782, %v5764
    %v6035 = vpack.c.b16 %v5783, %v5765
    %v6036 = vpack.c.b16 %v5784, %v5766
    %v6037 = vpack.c.b16 %v5785, %v5767
    %v6038 = vpack.c.b16 %v5804, %v5786
    %v6039 = vpack.c.b16 %v5805, %v5787
    %v6040 = vpack.c.b16 %v5806, %v5788
    %v6041 = vpack.c.b16 %v5807, %v5789
    %v6042 = vpack.c.b16 %v5808, %v5790
    %v6043 = vpack.c.b16 %v5809, %v5791
    %v6044 = vpack.c.b16 %v5810, %v5792
    %v6045 = vpack.c.b16 %v5811, %v5793
    %v6046 = vpack.c.b16 %v5812, %v5794
    %v6047 = vpack.c.b16 %v5813, %v5795
    %v6048 = vpack.c.b16 %v5814, %v5796
    %v6049 = vpack.c.b16 %v5815, %v5797
    %v6050 = vpack.c.b16 %v5816, %v5798
    %v6051 = vpack.c.b16 %v5817, %v5799
    %v6052 = vpack.c.b16 %v5818, %v5800
    %v6053 = vpack.c.b16 %v5819, %v5801
    %v6054 = vpack.c.b16 %v5820, %v5802
    %v6055 = vpack.c.b16 %v5821, %v5803
    %v6056 = vpack.c.b16 %v5840, %v5822
    %v6057 = vpack.c.b16 %v5841, %v5823
    %v6058 = vpack.c.b16 %v5842, %v5824
    %v6059 = vpack.c.b16 %v5843, %v5825
    %v6060 = vpack.c.b16 %v5844, %v5826
    %v6061 = vpack.c.b16 %v5845, %v5827
    %v6062 = vpack.c.b16 %v5846, %v5828
    %v6063 = vpack.c.b16 %v5847, %v5829
    %v6064 = vpack.c.b16 %v5848, %v5830
    %v6065 = vpack.c.b16 %v5849, %v5831
    %v6066 = vpack.c.b16 %v5850, %v5832
    %v6067 = vpack.c.b16 %v5851, %v5833
    %v6068 = vpack.c.b16 %v5852, %v5834
    %v6069 = vpack.c.b16 %v5853, %v5835
    %v6070 = vpack.c.b16 %v5854, %v5836
    %v6071 = vpack.c.b16 %v5855, %v5837
    %v6072 = vpack.c.b16 %v5856, %v5838
    %v6073 = vpack.c.b16 %v5857, %v5839
    %v6074 = vpack.c.b16 %v5876, %v5858
    %v6075 = vpack.c.b16 %v5877, %v5859
    %v6076 = vpack.c.b16 %v5878, %v5860
    %v6077 = vpack.c.b16 %v5879, %v5861
    %v6078 = vpack.c.b16 %v5880, %v5862
    %v6079 = vpack.c.b16 %v5881, %v5863
    %v6080 = vpack.c.b16 %v5882, %v5864
    %v6081 = vpack.c.b16 %v5883, %v5865
    %v6082 = vpack.c.b16 %v5884, %v5866
    %v6083 = vpack.c.b16 %v5885, %v5867
    %v6084 = vpack.c.b16 %v5886, %v5868
    %v6085 = vpack.c.b16 %v5887, %v5869
    %v6086 = vpack.c.b16 %v5888, %v5870
    %v6087 = vpack.c.b16 %v5889, %v5871
    %v6088 = vpack.c.b16 %v5890, %v5872
    %v6089 = vpack.c.b16 %v5891, %v5873
    %v6090 = vpack.c.b16 %v5892, %v5874
    %v6091 = vpack.c.b16 %v5893, %v5875
    %v6092 = vpack.c.b16 %v5912, %v5894
    %v6093 = vpack.c.b16 %v5913, %v5895
    %v6094 = vpack.c.b16 %v5914, %v5896
    %v6095 = vpack.c.b16 %v5915, %v5897
    %v6096 = vpack.c.b16 %v5916, %v5898
    %v6097 = vpack.c.b16 %v5917, %v5899
    %v6098 = vpack.c.b16 %v5918, %v5900
    %v6099 = vpack.c.b16 %v5919, %v5901
    %v6100 = vpack.c.b16 %v5920, %v5902
    %v6101 = vpack.c.b16 %v5921, %v5903
    %v6102 = vpack.c.b16 %v5922, %v5904
    %v6103 = vpack.c.b16 %v5923, %v5905
    %v6104 = vpack.c.b16 %v5924, %v5906
    %v6105 = vpack.c.b16 %v5925, %v5907
    %v6106 = vpack.c.b16 %v5926, %v5908
    %v6107 = vpack.c.b16 %v5927, %v5909
    %v6108 = vpack.c.b16 %v5928, %v5910
    %v6109 = vpack.c.b16 %v5929, %v5911
    %v6110 = vpack.c.b16 %v5948, %v5930
    %v6111 = vpack.c.b16 %v5949, %v5931
    %v6112 = vpack.c.b16 %v5950, %v5932
    %v6113 = vpack.c.b16 %v5951, %v5933
    %v6114 = vpack.c.b16 %v5952, %v5934
    %v6115 = vpack.c.b16 %v5953, %v5935
    %v6116 = vpack.c.b16 %v5954, %v5936
    %v6117 = vpack.c.b16 %v5955, %v5937
    %v6118 = vpack.c.b16 %v5956, %v5938
    %v6119 = vpack.c.b16 %v5957, %v5939
    %v6120 = vpack.c.b16 %v5958, %v5940
    %v6121 = vpack.c.b16 %v5959, %v5941
    %v6122 = vpack.c.b16 %v5960, %v5942
    %v6123 = vpack.c.b16 %v5961, %v5943
    %v6124 = vpack.c.b16 %v5962, %v5944
    %v6125 = vpack.c.b16 %v5963, %v5945
    %v6126 = vpack.c.b16 %v5964, %v5946
    %v6127 = vpack.c.b16 %v5965, %v5947
    %v6128 = vpack.c.b16 %v5984, %v5966
    %v6129 = vpack.c.b16 %v5985, %v5967
    %v6130 = vpack.c.b16 %v5986, %v5968
    %v6131 = vpack.c.b16 %v5987, %v5969
    %v6132 = vpack.c.b16 %v5988, %v5970
    %v6133 = vpack.c.b16 %v5989, %v5971
    %v6134 = vpack.c.b16 %v5990, %v5972
    %v6135 = vpack.c.b16 %v5991, %v5973
    %v6136 = vpack.c.b16 %v5992, %v5974
    %v6137 = vpack.c.b16 %v5993, %v5975
    %v6138 = vpack.c.b16 %v5994, %v5976
    %v6139 = vpack.c.b16 %v5995, %v5977
    %v6140 = vpack.c.b16 %v5996, %v5978
    %v6141 = vpack.c.b16 %v5997, %v5979
    %v6142 = vpack.c.b16 %v5998, %v5980
    %v6143 = vpack.c.b16 %v5999, %v5981
    %v6144 = vpack.c.b16 %v6000, %v5982
    %v6145 = vpack.c.b16 %v6001, %v5983
    %6290 = vmatpush.bf16.msra.mxu0 %v6128
    %6291 = vmatpush.bf16.msra.mxu0 %v6110
    %6292 = vmatpush.bf16.msra.mxu0 %v6092
    %6293 = vmatpush.bf16.msra.mxu0 %v6074
    %6294 = vmatpush.bf16.msra.mxu0 %v6056
    %6295 = vmatpush.bf16.msra.mxu0 %v6038
    %6296 = vmatpush.bf16.msra.mxu0 %v6020
    %6297 = vmatpush.bf16.msra.mxu0 %v6002
    %6298 = vmatmul.bf16.gmra.mxu0 %v5527
    %v6299 = vpop.f32.mrf.mxu0
    %v6300 = vadd.f32 %v5534, %v6299
    %v6301 = vpop.f32.mrf.mxu0
    %6302 = vdwg.mxu0
    %6303 = vmatpush.bf16.msra.mxu0 %v6129
    %6304 = vmatpush.bf16.msra.mxu0 %v6111
    %6305 = vmatpush.bf16.msra.mxu0 %v6093
    %6306 = vmatpush.bf16.msra.mxu0 %v6075
    %6307 = vmatpush.bf16.msra.mxu0 %v6057
    %6308 = vmatpush.bf16.msra.mxu0 %v6039
    %6309 = vmatpush.bf16.msra.mxu0 %v6021
    %6310 = vmatpush.bf16.msra.mxu0 %v6003
    %6311 = vmatmul.bf16.gmra.mxu0 %v5527
    %v6312 = vpop.f32.mrf.mxu0
    %v6313 = vadd.f32 %v5535, %v6312
    %v6314 = vpop.f32.mrf.mxu0
    %6315 = vdwg.mxu0
    %6316 = vmatpush.bf16.msra.mxu0 %v6130
    %6317 = vmatpush.bf16.msra.mxu0 %v6112
    %6318 = vmatpush.bf16.msra.mxu0 %v6094
    %6319 = vmatpush.bf16.msra.mxu0 %v6076
    %6320 = vmatpush.bf16.msra.mxu0 %v6058
    %6321 = vmatpush.bf16.msra.mxu0 %v6040
    %6322 = vmatpush.bf16.msra.mxu0 %v6022
    %6323 = vmatpush.bf16.msra.mxu0 %v6004
    %6324 = vmatmul.bf16.gmra.mxu0 %v5527
    %v6325 = vpop.f32.mrf.mxu0
    %v6326 = vadd.f32 %v5536, %v6325
    %v6327 = vpop.f32.mrf.mxu0
    %6328 = vdwg.mxu0
    %6329 = vmatpush.bf16.msra.mxu0 %v6131
    %6330 = vmatpush.bf16.msra.mxu0 %v6113
    %6331 = vmatpush.bf16.msra.mxu0 %v6095
    %6332 = vmatpush.bf16.msra.mxu0 %v6077
    %6333 = vmatpush.bf16.msra.mxu0 %v6059
    %6334 = vmatpush.bf16.msra.mxu0 %v6041
    %6335 = vmatpush.bf16.msra.mxu0 %v6023
    %6336 = vmatpush.bf16.msra.mxu0 %v6005
    %6337 = vmatmul.bf16.gmra.mxu0 %v5527
    %v6338 = vpop.f32.mrf.mxu0
    %v6339 = vadd.f32 %v5537, %v6338
    %v6340 = vpop.f32.mrf.mxu0
    %6341 = vdwg.mxu0
    %6342 = vmatpush.bf16.msra.mxu0 %v6132
    %6343 = vmatpush.bf16.msra.mxu0 %v6114
    %6344 = vmatpush.bf16.msra.mxu0 %v6096
    %6345 = vmatpush.bf16.msra.mxu0 %v6078
    %6346 = vmatpush.bf16.msra.mxu0 %v6060
    %6347 = vmatpush.bf16.msra.mxu0 %v6042
    %6348 = vmatpush.bf16.msra.mxu0 %v6024
    %6349 = vmatpush.bf16.msra.mxu0 %v6006
    %6350 = vmatmul.bf16.gmra.mxu0 %v5527
    %v6351 = vpop.f32.mrf.mxu0
    %v6352 = vadd.f32 %v5538, %v6351
    %v6353 = vpop.f32.mrf.mxu0
    %6354 = vdwg.mxu0
    %6355 = vmatpush.bf16.msra.mxu0 %v6133
    %6356 = vmatpush.bf16.msra.mxu0 %v6115
    %6357 = vmatpush.bf16.msra.mxu0 %v6097
    %6358 = vmatpush.bf16.msra.mxu0 %v6079
    %6359 = vmatpush.bf16.msra.mxu0 %v6061
    %6360 = vmatpush.bf16.msra.mxu0 %v6043
    %6361 = vmatpush.bf16.msra.mxu0 %v6025
    %6362 = vmatpush.bf16.msra.mxu0 %v6007
    %6363 = vmatmul.bf16.gmra.mxu0 %v5527
    %v6364 = vpop.f32.mrf.mxu0
    %v6365 = vadd.f32 %v5539, %v6364
    %v6366 = vpop.f32.mrf.mxu0
    %6367 = vdwg.mxu0
    %6368 = vmatpush.bf16.msra.mxu0 %v6134
    %6369 = vmatpush.bf16.msra.mxu0 %v6116
    %6370 = vmatpush.bf16.msra.mxu0 %v6098
    %6371 = vmatpush.bf16.msra.mxu0 %v6080
    %6372 = vmatpush.bf16.msra.mxu0 %v6062
    %6373 = vmatpush.bf16.msra.mxu0 %v6044
    %6374 = vmatpush.bf16.msra.mxu0 %v6026
    %6375 = vmatpush.bf16.msra.mxu0 %v6008
    %6376 = vmatmul.bf16.gmra.mxu0 %v5527
    %v6377 = vpop.f32.mrf.mxu0
    %v6378 = vadd.f32 %v5540, %v6377
    %v6379 = vpop.f32.mrf.mxu0
    %6380 = vdwg.mxu0
    %6381 = vmatpush.bf16.msra.mxu0 %v6135
    %6382 = vmatpush.bf16.msra.mxu0 %v6117
    %6383 = vmatpush.bf16.msra.mxu0 %v6099
    %6384 = vmatpush.bf16.msra.mxu0 %v6081
    %6385 = vmatpush.bf16.msra.mxu0 %v6063
    %6386 = vmatpush.bf16.msra.mxu0 %v6045
    %6387 = vmatpush.bf16.msra.mxu0 %v6027
    %6388 = vmatpush.bf16.msra.mxu0 %v6009
    %6389 = vmatmul.bf16.gmra.mxu0 %v5527
    %v6390 = vpop.f32.mrf.mxu0
    %v6391 = vadd.f32 %v5541, %v6390
    %v6392 = vpop.f32.mrf.mxu0
    %6393 = vdwg.mxu0
    %6394 = vmatpush.bf16.msra.mxu0 %v6136
    %6395 = vmatpush.bf16.msra.mxu0 %v6118
    %6396 = vmatpush.bf16.msra.mxu0 %v6100
    %6397 = vmatpush.bf16.msra.mxu0 %v6082
    %6398 = vmatpush.bf16.msra.mxu0 %v6064
    %6399 = vmatpush.bf16.msra.mxu0 %v6046
    %6400 = vmatpush.bf16.msra.mxu0 %v6028
    %6401 = vmatpush.bf16.msra.mxu0 %v6010
    %6402 = vmatmul.bf16.gmra.mxu0 %v5527
    %v6403 = vpop.f32.mrf.mxu0
    %v6404 = vadd.f32 %v5542, %v6403
    %v6405 = vpop.f32.mrf.mxu0
    %6406 = vdwg.mxu0
    %6407 = vmatpush.bf16.msra.mxu0 %v6137
    %6408 = vmatpush.bf16.msra.mxu0 %v6119
    %6409 = vmatpush.bf16.msra.mxu0 %v6101
    %6410 = vmatpush.bf16.msra.mxu0 %v6083
    %6411 = vmatpush.bf16.msra.mxu0 %v6065
    %6412 = vmatpush.bf16.msra.mxu0 %v6047
    %6413 = vmatpush.bf16.msra.mxu0 %v6029
    %6414 = vmatpush.bf16.msra.mxu0 %v6011
    %6415 = vmatmul.bf16.gmra.mxu0 %v5527
    %v6416 = vpop.f32.mrf.mxu0
    %v6417 = vadd.f32 %v5543, %v6416
    %v6418 = vpop.f32.mrf.mxu0
    %6419 = vdwg.mxu0
    %6420 = vmatpush.bf16.msra.mxu0 %v6138
    %6421 = vmatpush.bf16.msra.mxu0 %v6120
    %6422 = vmatpush.bf16.msra.mxu0 %v6102
    %6423 = vmatpush.bf16.msra.mxu0 %v6084
    %6424 = vmatpush.bf16.msra.mxu0 %v6066
    %6425 = vmatpush.bf16.msra.mxu0 %v6048
    %6426 = vmatpush.bf16.msra.mxu0 %v6030
    %6427 = vmatpush.bf16.msra.mxu0 %v6012
    %6428 = vmatmul.bf16.gmra.mxu0 %v5527
    %v6429 = vpop.f32.mrf.mxu0
    %v6430 = vadd.f32 %v5544, %v6429
    %v6431 = vpop.f32.mrf.mxu0
    %6432 = vdwg.mxu0
    %6433 = vmatpush.bf16.msra.mxu0 %v6139
    %6434 = vmatpush.bf16.msra.mxu0 %v6121
    %6435 = vmatpush.bf16.msra.mxu0 %v6103
    %6436 = vmatpush.bf16.msra.mxu0 %v6085
    %6437 = vmatpush.bf16.msra.mxu0 %v6067
    %6438 = vmatpush.bf16.msra.mxu0 %v6049
    %6439 = vmatpush.bf16.msra.mxu0 %v6031
    %6440 = vmatpush.bf16.msra.mxu0 %v6013
    %6441 = vmatmul.bf16.gmra.mxu0 %v5527
    %v6442 = vpop.f32.mrf.mxu0
    %v6443 = vadd.f32 %v5545, %v6442
    %v6444 = vpop.f32.mrf.mxu0
    %6445 = vdwg.mxu0
    %6446 = vmatpush.bf16.msra.mxu0 %v6140
    %6447 = vmatpush.bf16.msra.mxu0 %v6122
    %6448 = vmatpush.bf16.msra.mxu0 %v6104
    %6449 = vmatpush.bf16.msra.mxu0 %v6086
    %6450 = vmatpush.bf16.msra.mxu0 %v6068
    %6451 = vmatpush.bf16.msra.mxu0 %v6050
    %6452 = vmatpush.bf16.msra.mxu0 %v6032
    %6453 = vmatpush.bf16.msra.mxu0 %v6014
    %6454 = vmatmul.bf16.gmra.mxu0 %v5527
    %v6455 = vpop.f32.mrf.mxu0
    %v6456 = vadd.f32 %v5546, %v6455
    %v6457 = vpop.f32.mrf.mxu0
    %6458 = vdwg.mxu0
    %6459 = vmatpush.bf16.msra.mxu0 %v6141
    %6460 = vmatpush.bf16.msra.mxu0 %v6123
    %6461 = vmatpush.bf16.msra.mxu0 %v6105
    %6462 = vmatpush.bf16.msra.mxu0 %v6087
    %6463 = vmatpush.bf16.msra.mxu0 %v6069
    %6464 = vmatpush.bf16.msra.mxu0 %v6051
    %6465 = vmatpush.bf16.msra.mxu0 %v6033
    %6466 = vmatpush.bf16.msra.mxu0 %v6015
    %6467 = vmatmul.bf16.gmra.mxu0 %v5527
    %v6468 = vpop.f32.mrf.mxu0
    %v6469 = vadd.f32 %v5547, %v6468
    %v6470 = vpop.f32.mrf.mxu0
    %6471 = vdwg.mxu0
    %6472 = vmatpush.bf16.msra.mxu0 %v6142
    %6473 = vmatpush.bf16.msra.mxu0 %v6124
    %6474 = vmatpush.bf16.msra.mxu0 %v6106
    %6475 = vmatpush.bf16.msra.mxu0 %v6088
    %6476 = vmatpush.bf16.msra.mxu0 %v6070
    %6477 = vmatpush.bf16.msra.mxu0 %v6052
    %6478 = vmatpush.bf16.msra.mxu0 %v6034
    %6479 = vmatpush.bf16.msra.mxu0 %v6016
    %6480 = vmatmul.bf16.gmra.mxu0 %v5527
    %v6481 = vpop.f32.mrf.mxu0
    %v6482 = vadd.f32 %v5548, %v6481
    %v6483 = vpop.f32.mrf.mxu0
    %6484 = vdwg.mxu0
    %6485 = vmatpush.bf16.msra.mxu0 %v6143
    %6486 = vmatpush.bf16.msra.mxu0 %v6125
    %6487 = vmatpush.bf16.msra.mxu0 %v6107
    %6488 = vmatpush.bf16.msra.mxu0 %v6089
    %6489 = vmatpush.bf16.msra.mxu0 %v6071
    %6490 = vmatpush.bf16.msra.mxu0 %v6053
    %6491 = vmatpush.bf16.msra.mxu0 %v6035
    %6492 = vmatpush.bf16.msra.mxu0 %v6017
    %6493 = vmatmul.bf16.gmra.mxu0 %v5527
    %v6494 = vpop.f32.mrf.mxu0
    %v6495 = vadd.f32 %v5549, %v6494
    %v6496 = vpop.f32.mrf.mxu0
    %6497 = vdwg.mxu0
    %6498 = vmatpush.bf16.msra.mxu0 %v6144
    %6499 = vmatpush.bf16.msra.mxu0 %v6126
    %6500 = vmatpush.bf16.msra.mxu0 %v6108
    %6501 = vmatpush.bf16.msra.mxu0 %v6090
    %6502 = vmatpush.bf16.msra.mxu0 %v6072
    %6503 = vmatpush.bf16.msra.mxu0 %v6054
    %6504 = vmatpush.bf16.msra.mxu0 %v6036
    %6505 = vmatpush.bf16.msra.mxu0 %v6018
    %6506 = vmatmul.bf16.gmra.mxu0 %v5527
    %v6507 = vpop.f32.mrf.mxu0
    %v6508 = vadd.f32 %v5550, %v6507
    %v6509 = vpop.f32.mrf.mxu0
    %6510 = vdwg.mxu0
    %6511 = vmatpush.bf16.msra.mxu0 %v6145
    %6512 = vmatpush.bf16.msra.mxu0 %v6127
    %6513 = vmatpush.bf16.msra.mxu0 %v6109
    %6514 = vmatpush.bf16.msra.mxu0 %v6091
    %6515 = vmatpush.bf16.msra.mxu0 %v6073
    %6516 = vmatpush.bf16.msra.mxu0 %v6055
    %6517 = vmatpush.bf16.msra.mxu0 %v6037
    %6518 = vmatpush.bf16.msra.mxu0 %v6019
    %6519 = vmatmul.bf16.gmra.mxu0 %v5527
    %v6520 = vpop.f32.mrf.mxu0
    %v6521 = vadd.f32 %v5551, %v6520
    %v6522 = vpop.f32.mrf.mxu0
    %6523 = vdwg.mxu0
    %v6524 = vxor.u32 %v6300, 2147483648
    %v6525 = vxor.u32 %v6313, 2147483648
    %v6526 = vxor.u32 %v6326, 2147483648
    %v6527 = vxor.u32 %v6339, 2147483648
    %v6528 = vxor.u32 %v6352, 2147483648
    %v6529 = vxor.u32 %v6365, 2147483648
    %v6530 = vxor.u32 %v6378, 2147483648
    %v6531 = vxor.u32 %v6391, 2147483648
    %v6532 = vxor.u32 %v6404, 2147483648
    %v6533 = vxor.u32 %v6417, 2147483648
    %v6534 = vxor.u32 %v6430, 2147483648
    %v6535 = vxor.u32 %v6443, 2147483648
    %v6536 = vxor.u32 %v6456, 2147483648
    %v6537 = vxor.u32 %v6469, 2147483648
    %v6538 = vxor.u32 %v6482, 2147483648
    %v6539 = vxor.u32 %v6495, 2147483648
    %v6540 = vxor.u32 %v6508, 2147483648
    %v6541 = vxor.u32 %v6521, 2147483648
    %v6542 = vmul.f32 %v6524, 1.442695
    %v6543 = vpow.pop %v6542
    %v6544 = vmul.f32 %v6525, 1.442695
    %v6545 = vpow.pop %v6544
    %v6546 = vmul.f32 %v6526, 1.442695
    %v6547 = vpow.pop %v6546
    %v6548 = vmul.f32 %v6527, 1.442695
    %v6549 = vpow.pop %v6548
    %v6550 = vmul.f32 %v6528, 1.442695
    %v6551 = vpow.pop %v6550
    %v6552 = vmul.f32 %v6529, 1.442695
    %v6553 = vpow.pop %v6552
    %v6554 = vmul.f32 %v6530, 1.442695
    %v6555 = vpow.pop %v6554
    %v6556 = vmul.f32 %v6531, 1.442695
    %v6557 = vpow.pop %v6556
    %v6558 = vmul.f32 %v6532, 1.442695
    %v6559 = vpow.pop %v6558
    %v6560 = vmul.f32 %v6533, 1.442695
    %v6561 = vpow.pop %v6560
    %v6562 = vmul.f32 %v6534, 1.442695
    %v6563 = vpow.pop %v6562
    %v6564 = vmul.f32 %v6535, 1.442695
    %v6565 = vpow.pop %v6564
    %v6566 = vmul.f32 %v6536, 1.442695
    %v6567 = vpow.pop %v6566
    %v6568 = vmul.f32 %v6537, 1.442695
    %v6569 = vpow.pop %v6568
    %v6570 = vmul.f32 %v6538, 1.442695
    %v6571 = vpow.pop %v6570
    %v6572 = vmul.f32 %v6539, 1.442695
    %v6573 = vpow.pop %v6572
    %v6574 = vmul.f32 %v6540, 1.442695
    %v6575 = vpow.pop %v6574
    %v6576 = vmul.f32 %v6541, 1.442695
    %v6577 = vpow.pop %v6576
    %v6578 = vadd.f32 %v6543, 1.0
    %v6579 = vadd.f32 %v6545, 1.0
    %v6580 = vadd.f32 %v6547, 1.0
    %v6581 = vadd.f32 %v6549, 1.0
    %v6582 = vadd.f32 %v6551, 1.0
    %v6583 = vadd.f32 %v6553, 1.0
    %v6584 = vadd.f32 %v6555, 1.0
    %v6585 = vadd.f32 %v6557, 1.0
    %v6586 = vadd.f32 %v6559, 1.0
    %v6587 = vadd.f32 %v6561, 1.0
    %v6588 = vadd.f32 %v6563, 1.0
    %v6589 = vadd.f32 %v6565, 1.0
    %v6590 = vadd.f32 %v6567, 1.0
    %v6591 = vadd.f32 %v6569, 1.0
    %v6592 = vadd.f32 %v6571, 1.0
    %v6593 = vadd.f32 %v6573, 1.0
    %v6594 = vadd.f32 %v6575, 1.0
    %v6595 = vadd.f32 %v6577, 1.0
    %v6596 = vrcp.pop %v6578
    %v6597 = vmul.f32 %v6578, %v6596
    %v6598 = vsub.f32 1.0, %v6597
    %v6599 = vmul.f32 %v6596, %v6598
    %v6600 = vadd.f32 %v6596, %v6599
    %vm6601 = vweird.f32 %v6578
    %vm6602 = vweird.f32 %v6596
    %vm6603 = vmor %vm6601, %vm6602
    %v6604 = vsel %vm6603, %v6596, %v6600
    %v6605 = vand.u32 2147483647, %v6578
    %vm6606 = vcmp.eq.f32.partialorder %v6605, 8.507059e+37
    %v6607 = vand.u32 %v6578, 2147483648
    %v6608 = vor.u32 1.1754944e-38, %v6607
    %v6609 = vsel %vm6606, %v6608, %v6604
    %v6610 = vmul.f32 1.0, %v6609
    %v6611 = vrcp.pop %v6579
    %v6612 = vmul.f32 %v6579, %v6611
    %v6613 = vsub.f32 1.0, %v6612
    %v6614 = vmul.f32 %v6611, %v6613
    %v6615 = vadd.f32 %v6611, %v6614
    %vm6616 = vweird.f32 %v6579
    %vm6617 = vweird.f32 %v6611
    %vm6618 = vmor %vm6616, %vm6617
    %v6619 = vsel %vm6618, %v6611, %v6615
    %v6620 = vand.u32 2147483647, %v6579
    %vm6621 = vcmp.eq.f32.partialorder %v6620, 8.507059e+37
    %v6622 = vand.u32 %v6579, 2147483648
    %v6623 = vor.u32 1.1754944e-38, %v6622
    %v6624 = vsel %vm6621, %v6623, %v6619
    %v6625 = vmul.f32 1.0, %v6624
    %v6626 = vrcp.pop %v6580
    %v6627 = vmul.f32 %v6580, %v6626
    %v6628 = vsub.f32 1.0, %v6627
    %v6629 = vmul.f32 %v6626, %v6628
    %v6630 = vadd.f32 %v6626, %v6629
    %vm6631 = vweird.f32 %v6580
    %vm6632 = vweird.f32 %v6626
    %vm6633 = vmor %vm6631, %vm6632
    %v6634 = vsel %vm6633, %v6626, %v6630
    %v6635 = vand.u32 2147483647, %v6580
    %vm6636 = vcmp.eq.f32.partialorder %v6635, 8.507059e+37
    %v6637 = vand.u32 %v6580, 2147483648
    %v6638 = vor.u32 1.1754944e-38, %v6637
    %v6639 = vsel %vm6636, %v6638, %v6634
    %v6640 = vmul.f32 1.0, %v6639
    %v6641 = vrcp.pop %v6581
    %v6642 = vmul.f32 %v6581, %v6641
    %v6643 = vsub.f32 1.0, %v6642
    %v6644 = vmul.f32 %v6641, %v6643
    %v6645 = vadd.f32 %v6641, %v6644
    %vm6646 = vweird.f32 %v6581
    %vm6647 = vweird.f32 %v6641
    %vm6648 = vmor %vm6646, %vm6647
    %v6649 = vsel %vm6648, %v6641, %v6645
    %v6650 = vand.u32 2147483647, %v6581
    %vm6651 = vcmp.eq.f32.partialorder %v6650, 8.507059e+37
    %v6652 = vand.u32 %v6581, 2147483648
    %v6653 = vor.u32 1.1754944e-38, %v6652
    %v6654 = vsel %vm6651, %v6653, %v6649
    %v6655 = vmul.f32 1.0, %v6654
    %v6656 = vrcp.pop %v6582
    %v6657 = vmul.f32 %v6582, %v6656
    %v6658 = vsub.f32 1.0, %v6657
    %v6659 = vmul.f32 %v6656, %v6658
    %v6660 = vadd.f32 %v6656, %v6659
    %vm6661 = vweird.f32 %v6582
    %vm6662 = vweird.f32 %v6656
    %vm6663 = vmor %vm6661, %vm6662
    %v6664 = vsel %vm6663, %v6656, %v6660
    %v6665 = vand.u32 2147483647, %v6582
    %vm6666 = vcmp.eq.f32.partialorder %v6665, 8.507059e+37
    %v6667 = vand.u32 %v6582, 2147483648
    %v6668 = vor.u32 1.1754944e-38, %v6667
    %v6669 = vsel %vm6666, %v6668, %v6664
    %v6670 = vmul.f32 1.0, %v6669
    %v6671 = vrcp.pop %v6583
    %v6672 = vmul.f32 %v6583, %v6671
    %v6673 = vsub.f32 1.0, %v6672
    %v6674 = vmul.f32 %v6671, %v6673
    %v6675 = vadd.f32 %v6671, %v6674
    %vm6676 = vweird.f32 %v6583
    %vm6677 = vweird.f32 %v6671
    %vm6678 = vmor %vm6676, %vm6677
    %v6679 = vsel %vm6678, %v6671, %v6675
    %v6680 = vand.u32 2147483647, %v6583
    %vm6681 = vcmp.eq.f32.partialorder %v6680, 8.507059e+37
    %v6682 = vand.u32 %v6583, 2147483648
    %v6683 = vor.u32 1.1754944e-38, %v6682
    %v6684 = vsel %vm6681, %v6683, %v6679
    %v6685 = vmul.f32 1.0, %v6684
    %v6686 = vrcp.pop %v6584
    %v6687 = vmul.f32 %v6584, %v6686
    %v6688 = vsub.f32 1.0, %v6687
    %v6689 = vmul.f32 %v6686, %v6688
    %v6690 = vadd.f32 %v6686, %v6689
    %vm6691 = vweird.f32 %v6584
    %vm6692 = vweird.f32 %v6686
    %vm6693 = vmor %vm6691, %vm6692
    %v6694 = vsel %vm6693, %v6686, %v6690
    %v6695 = vand.u32 2147483647, %v6584
    %vm6696 = vcmp.eq.f32.partialorder %v6695, 8.507059e+37
    %v6697 = vand.u32 %v6584, 2147483648
    %v6698 = vor.u32 1.1754944e-38, %v6697
    %v6699 = vsel %vm6696, %v6698, %v6694
    %v6700 = vmul.f32 1.0, %v6699
    %v6701 = vrcp.pop %v6585
    %v6702 = vmul.f32 %v6585, %v6701
    %v6703 = vsub.f32 1.0, %v6702
    %v6704 = vmul.f32 %v6701, %v6703
    %v6705 = vadd.f32 %v6701, %v6704
    %vm6706 = vweird.f32 %v6585
    %vm6707 = vweird.f32 %v6701
    %vm6708 = vmor %vm6706, %vm6707
    %v6709 = vsel %vm6708, %v6701, %v6705
    %v6710 = vand.u32 2147483647, %v6585
    %vm6711 = vcmp.eq.f32.partialorder %v6710, 8.507059e+37
    %v6712 = vand.u32 %v6585, 2147483648
    %v6713 = vor.u32 1.1754944e-38, %v6712
    %v6714 = vsel %vm6711, %v6713, %v6709
    %v6715 = vmul.f32 1.0, %v6714
    %v6716 = vrcp.pop %v6586
    %v6717 = vmul.f32 %v6586, %v6716
    %v6718 = vsub.f32 1.0, %v6717
    %v6719 = vmul.f32 %v6716, %v6718
    %v6720 = vadd.f32 %v6716, %v6719
    %vm6721 = vweird.f32 %v6586
    %vm6722 = vweird.f32 %v6716
    %vm6723 = vmor %vm6721, %vm6722
    %v6724 = vsel %vm6723, %v6716, %v6720
    %v6725 = vand.u32 2147483647, %v6586
    %vm6726 = vcmp.eq.f32.partialorder %v6725, 8.507059e+37
    %v6727 = vand.u32 %v6586, 2147483648
    %v6728 = vor.u32 1.1754944e-38, %v6727
    %v6729 = vsel %vm6726, %v6728, %v6724
    %v6730 = vmul.f32 1.0, %v6729
    %v6731 = vrcp.pop %v6587
    %v6732 = vmul.f32 %v6587, %v6731
    %v6733 = vsub.f32 1.0, %v6732
    %v6734 = vmul.f32 %v6731, %v6733
    %v6735 = vadd.f32 %v6731, %v6734
    %vm6736 = vweird.f32 %v6587
    %vm6737 = vweird.f32 %v6731
    %vm6738 = vmor %vm6736, %vm6737
    %v6739 = vsel %vm6738, %v6731, %v6735
    %v6740 = vand.u32 2147483647, %v6587
    %vm6741 = vcmp.eq.f32.partialorder %v6740, 8.507059e+37
    %v6742 = vand.u32 %v6587, 2147483648
    %v6743 = vor.u32 1.1754944e-38, %v6742
    %v6744 = vsel %vm6741, %v6743, %v6739
    %v6745 = vmul.f32 1.0, %v6744
    %v6746 = vrcp.pop %v6588
    %v6747 = vmul.f32 %v6588, %v6746
    %v6748 = vsub.f32 1.0, %v6747
    %v6749 = vmul.f32 %v6746, %v6748
    %v6750 = vadd.f32 %v6746, %v6749
    %vm6751 = vweird.f32 %v6588
    %vm6752 = vweird.f32 %v6746
    %vm6753 = vmor %vm6751, %vm6752
    %v6754 = vsel %vm6753, %v6746, %v6750
    %v6755 = vand.u32 2147483647, %v6588
    %vm6756 = vcmp.eq.f32.partialorder %v6755, 8.507059e+37
    %v6757 = vand.u32 %v6588, 2147483648
    %v6758 = vor.u32 1.1754944e-38, %v6757
    %v6759 = vsel %vm6756, %v6758, %v6754
    %v6760 = vmul.f32 1.0, %v6759
    %v6761 = vrcp.pop %v6589
    %v6762 = vmul.f32 %v6589, %v6761
    %v6763 = vsub.f32 1.0, %v6762
    %v6764 = vmul.f32 %v6761, %v6763
    %v6765 = vadd.f32 %v6761, %v6764
    %vm6766 = vweird.f32 %v6589
    %vm6767 = vweird.f32 %v6761
    %vm6768 = vmor %vm6766, %vm6767
    %v6769 = vsel %vm6768, %v6761, %v6765
    %v6770 = vand.u32 2147483647, %v6589
    %vm6771 = vcmp.eq.f32.partialorder %v6770, 8.507059e+37
    %v6772 = vand.u32 %v6589, 2147483648
    %v6773 = vor.u32 1.1754944e-38, %v6772
    %v6774 = vsel %vm6771, %v6773, %v6769
    %v6775 = vmul.f32 1.0, %v6774
    %v6776 = vrcp.pop %v6590
    %v6777 = vmul.f32 %v6590, %v6776
    %v6778 = vsub.f32 1.0, %v6777
    %v6779 = vmul.f32 %v6776, %v6778
    %v6780 = vadd.f32 %v6776, %v6779
    %vm6781 = vweird.f32 %v6590
    %vm6782 = vweird.f32 %v6776
    %vm6783 = vmor %vm6781, %vm6782
    %v6784 = vsel %vm6783, %v6776, %v6780
    %v6785 = vand.u32 2147483647, %v6590
    %vm6786 = vcmp.eq.f32.partialorder %v6785, 8.507059e+37
    %v6787 = vand.u32 %v6590, 2147483648
    %v6788 = vor.u32 1.1754944e-38, %v6787
    %v6789 = vsel %vm6786, %v6788, %v6784
    %v6790 = vmul.f32 1.0, %v6789
    %v6791 = vrcp.pop %v6591
    %v6792 = vmul.f32 %v6591, %v6791
    %v6793 = vsub.f32 1.0, %v6792
    %v6794 = vmul.f32 %v6791, %v6793
    %v6795 = vadd.f32 %v6791, %v6794
    %vm6796 = vweird.f32 %v6591
    %vm6797 = vweird.f32 %v6791
    %vm6798 = vmor %vm6796, %vm6797
    %v6799 = vsel %vm6798, %v6791, %v6795
    %v6800 = vand.u32 2147483647, %v6591
    %vm6801 = vcmp.eq.f32.partialorder %v6800, 8.507059e+37
    %v6802 = vand.u32 %v6591, 2147483648
    %v6803 = vor.u32 1.1754944e-38, %v6802
    %v6804 = vsel %vm6801, %v6803, %v6799
    %v6805 = vmul.f32 1.0, %v6804
    %v6806 = vrcp.pop %v6592
    %v6807 = vmul.f32 %v6592, %v6806
    %v6808 = vsub.f32 1.0, %v6807
    %v6809 = vmul.f32 %v6806, %v6808
    %v6810 = vadd.f32 %v6806, %v6809
    %vm6811 = vweird.f32 %v6592
    %vm6812 = vweird.f32 %v6806
    %vm6813 = vmor %vm6811, %vm6812
    %v6814 = vsel %vm6813, %v6806, %v6810
    %v6815 = vand.u32 2147483647, %v6592
    %vm6816 = vcmp.eq.f32.partialorder %v6815, 8.507059e+37
    %v6817 = vand.u32 %v6592, 2147483648
    %v6818 = vor.u32 1.1754944e-38, %v6817
    %v6819 = vsel %vm6816, %v6818, %v6814
    %v6820 = vmul.f32 1.0, %v6819
    %v6821 = vrcp.pop %v6593
    %v6822 = vmul.f32 %v6593, %v6821
    %v6823 = vsub.f32 1.0, %v6822
    %v6824 = vmul.f32 %v6821, %v6823
    %v6825 = vadd.f32 %v6821, %v6824
    %vm6826 = vweird.f32 %v6593
    %vm6827 = vweird.f32 %v6821
    %vm6828 = vmor %vm6826, %vm6827
    %v6829 = vsel %vm6828, %v6821, %v6825
    %v6830 = vand.u32 2147483647, %v6593
    %vm6831 = vcmp.eq.f32.partialorder %v6830, 8.507059e+37
    %v6832 = vand.u32 %v6593, 2147483648
    %v6833 = vor.u32 1.1754944e-38, %v6832
    %v6834 = vsel %vm6831, %v6833, %v6829
    %v6835 = vmul.f32 1.0, %v6834
    %v6836 = vrcp.pop %v6594
    %v6837 = vmul.f32 %v6594, %v6836
    %v6838 = vsub.f32 1.0, %v6837
    %v6839 = vmul.f32 %v6836, %v6838
    %v6840 = vadd.f32 %v6836, %v6839
    %vm6841 = vweird.f32 %v6594
    %vm6842 = vweird.f32 %v6836
    %vm6843 = vmor %vm6841, %vm6842
    %v6844 = vsel %vm6843, %v6836, %v6840
    %v6845 = vand.u32 2147483647, %v6594
    %vm6846 = vcmp.eq.f32.partialorder %v6845, 8.507059e+37
    %v6847 = vand.u32 %v6594, 2147483648
    %v6848 = vor.u32 1.1754944e-38, %v6847
    %v6849 = vsel %vm6846, %v6848, %v6844
    %v6850 = vmul.f32 1.0, %v6849
    %v6851 = vrcp.pop %v6595
    %v6852 = vmul.f32 %v6595, %v6851
    %v6853 = vsub.f32 1.0, %v6852
    %v6854 = vmul.f32 %v6851, %v6853
    %v6855 = vadd.f32 %v6851, %v6854
    %vm6856 = vweird.f32 %v6595
    %vm6857 = vweird.f32 %v6851
    %vm6858 = vmor %vm6856, %vm6857
    %v6859 = vsel %vm6858, %v6851, %v6855
    %v6860 = vand.u32 2147483647, %v6595
    %vm6861 = vcmp.eq.f32.partialorder %v6860, 8.507059e+37
    %v6862 = vand.u32 %v6595, 2147483648
    %v6863 = vor.u32 1.1754944e-38, %v6862
    %v6864 = vsel %vm6861, %v6863, %v6859
    %v6865 = vmul.f32 1.0, %v6864
    %6866 = vst [vmem:[%s61] sm:$0xff] %v6610
    %6867 = vst [vmem:[%s61 + $0x8] sm:$0xff] %v6625
    %6868 = vst [vmem:[%s61 + $0x10] sm:$0xff] %v6640
    %6869 = vst [vmem:[%s61 + $0x18] sm:$0xff] %v6655
    %6870 = vst [vmem:[%s61 + $0x20] sm:$0xff] %v6670
    %6871 = vst [vmem:[%s61 + $0x28] sm:$0xff] %v6685
    %6872 = vst [vmem:[%s61 + $0x30] sm:$0xff] %v6700
    %6873 = vst [vmem:[%s61 + $0x38] sm:$0xff] %v6715
    %6874 = vst [vmem:[%s61 + $0x40] sm:$0xff] %v6730
    %6875 = vst [vmem:[%s61 + $0x48] sm:$0xff] %v6745
    %6876 = vst [vmem:[%s61 + $0x50] sm:$0xff] %v6760
    %6877 = vst [vmem:[%s61 + $0x58] sm:$0xff] %v6775
    %6878 = vst [vmem:[%s61 + $0x60] sm:$0xff] %v6790
    %6879 = vst [vmem:[%s61 + $0x68] sm:$0xff] %v6805
    %6880 = vst [vmem:[%s61 + $0x70] sm:$0xff] %v6820
    %6881 = vst [vmem:[%s61 + $0x78] sm:$0xff] %v6835
    %6882 = vst [vmem:[%s61 + $0x80] sm:$0xff] %v6850
    %6883 = vst [vmem:[%s61 + $0x88] sm:$0xff] %v6865
    // Predicated region
    $region154: #{tactile_autoencoder_forward.3} parent=1 // pred_check
      _
    $region155: #{tactile_autoencoder_forward.3} parent=1 // pred_check_branch
      %6885 = sbr.rel (0) target = $region157
    $region156: #{tactile_autoencoder_forward.3} parent=1 // pred_region
      _
    $region157: #{tactile_autoencoder_forward.3} parent=1 // pred_fallthru
      _
    // Predicated region
    $region158: #{tactile_autoencoder_forward.3} parent=1 // pred_check
      _
    $region159: #{tactile_autoencoder_forward.3} parent=1 // pred_check_branch
      %6887 = sbr.rel (0) target = $region161
    $region160: #{tactile_autoencoder_forward.3} parent=1 // pred_region
      _
    $region161: #{tactile_autoencoder_forward.3} parent=1 // pred_fallthru
      _
    %6888 = vsyncpa [#allocation3], 1
    %6889 = vsyncpa [#allocation5], 1
    %6890 = vsyncpa [#allocation8], 1
    %6891 = vsyncpa [#allocation11], 1
    %6892 = vsyncpa [#allocation14], 1

</llo_original>
